<compile_context>
chip_gen: v6e
topology: v6e:2x2x1
jax: 0.10.0
libtpu: 0.0.40
codegen_flags: <defaults>
</compile_context>

<pallas_src>
import functools

import jax
import jax.numpy as jnp
from jax import lax
from jax.experimental import pallas as pl
from jax.experimental.pallas import tpu as pltpu


def _silu(x):
    # x * sigmoid(x); exp and the approximate reciprocal both run on the EUP.
    return x * pl.reciprocal(1.0 + jnp.exp(-x), approx=True)


def _group_norm(h, mask, member, member_t, gamma, beta, *, hw, cg, eps):
    """Masked GroupNorm over a [L, C] window (mask marks the HW real pixels).

    member [C, G] / member_t [G, C] are 0/1 group-membership matrices hoisted
    into the wrapper (grid-invariant).  All statistics in f32.
    """
    inv_n = 1.0 / (hw * cg)
    hm = h * mask
    sum_c = jnp.sum(hm, axis=0, keepdims=True)                            # [1, C]
    mean_g = jnp.dot(sum_c, member, preferred_element_type=jnp.float32) * inv_n
    mean = jnp.dot(mean_g, member_t, preferred_element_type=jnp.float32)  # [1, C]
    d = h - mean
    ssq_c = jnp.sum(d * d * mask, axis=0, keepdims=True)                  # [1, C]
    var_g = jnp.dot(ssq_c, member, preferred_element_type=jnp.float32) * inv_n
    var = jnp.dot(var_g, member_t, preferred_element_type=jnp.float32)
    return d * lax.rsqrt(var + eps) * gamma + beta


def _resnet_block_kernel(*refs, H, W, groups, gn_eps, res_proj):
    """Fused ResnetBlock forward for one batch element.

    conv3x3 = 9 shifted matmuls over a zero-padded, spatially-flattened,
    channels-last buffer; the block1 output is staged in a VMEM scratch so it
    never leaves the chip.
    """
    if res_proj:
        (te_ref, wms_ref, wss_ref, bms_ref, bss_ref, mask_ref, mem_ref, memt_ref,
         xp_ref, w1_ref, b1_ref, g1_ref, be1_ref,
         w2_ref, b2_ref, g2_ref, be2_ref, wr_ref, br_ref,
         out_ref, h1buf) = refs
    else:
        (te_ref, wms_ref, wss_ref, bms_ref, bss_ref, mask_ref, mem_ref, memt_ref,
         xp_ref, w1_ref, b1_ref, g1_ref, be1_ref,
         w2_ref, b2_ref, g2_ref, be2_ref,
         out_ref, h1buf) = refs
        wr_ref = br_ref = None

    f32, bf16 = jnp.float32, jnp.bfloat16
    Wp = W + 2
    P0 = Wp + 1                        # padded-flat index of image pixel (0, 0)
    L = (H - 1) * Wp + W               # contiguous window covering all real pixels
    HW = H * W
    C = b1_ref.shape[-1]
    Cg = C // groups
    # tap shift in padded-flat coordinates, tap index = kh*3 + kw
    shifts = [(kh - 1) * Wp + (kw - 1) for kh in range(3) for kw in range(3)]

    mask = mask_ref[...]               # [L, 1]  1.0 on real pixels, 0.0 on pad cols
    member = mem_ref[...]              # [C, G]
    member_t = memt_ref[...]           # [G, C]

    # ---- time-embedding MLP: SiLU -> Linear (weight pre-split into halves) ----
    t = _silu(te_ref[...])                                                # [1, T]
    scale = jnp.dot(t, wms_ref[...], preferred_element_type=f32) + bms_ref[...]
    shift = jnp.dot(t, wss_ref[...], preferred_element_type=f32) + bss_ref[...]

    # ---- block1: WS conv3x3 (9 shifted bf16 matmuls) + GN + scale/shift + SiLU
    h = jnp.zeros((L, C), f32)
    for tap, s in enumerate(shifts):
        xs = xp_ref[pl.ds(P0 + s, L), :].astype(bf16)                     # [L, Cin]
        h = h + jnp.dot(xs, w1_ref[tap], preferred_element_type=f32)
    h = h + b1_ref[...]
    h = _group_norm(h, mask, member, member_t, g1_ref[...], be1_ref[...],
                    hw=HW, cg=Cg, eps=gn_eps)
    h = h * (scale + 1.0) + shift
    h = _silu(h)

    # ---- stage h1 as a zero-padded flat buffer in VMEM (no HBM round trip) ----
    h1buf[...] = jnp.zeros_like(h1buf)
    h1buf[pl.ds(P0, L), :] = h * mask

    # ---- block2: WS conv3x3 + GroupNorm + SiLU ----
    h2 = jnp.zeros((L, C), f32)
    for tap, s in enumerate(shifts):
        hs = h1buf[pl.ds(P0 + s, L), :].astype(bf16)
        h2 = h2 + jnp.dot(hs, w2_ref[tap], preferred_element_type=f32)
    h2 = h2 + b2_ref[...]
    h2 = _group_norm(h2, mask, member, member_t, g2_ref[...], be2_ref[...],
                     hw=HW, cg=Cg, eps=gn_eps)
    h2 = _silu(h2)

    # ---- residual: 1x1 conv only when Cin != Cout, otherwise a plain f32 add ----
    xwin = xp_ref[pl.ds(P0, L), :]                                        # [L, Cin] f32
    if res_proj:
        res = jnp.dot(xwin.astype(bf16), wr_ref[...],
                      preferred_element_type=f32) + br_ref[...]
    else:
        res = xwin
    out_ref[...] = (h2 + res).astype(out_ref.dtype)


def resnet_block_forward(x, time_emb, params, *, groups):
    """ResnetBlock.forward.  x: [B, Cin, H, W] (NCHW), time_emb: [B, T]."""
    B, Cin, H, W = x.shape
    Cout = params["w1"].shape[0]
    T = time_emb.shape[1]
    Hp, Wp = H + 2, W + 2
    Np = Hp * Wp
    P0 = Wp + 1
    L = (H - 1) * Wp + W
    f32, bf16 = jnp.float32, jnp.bfloat16
    ws_eps = 1e-5 if x.dtype == jnp.float32 else 1e-3   # torch picks eps from input dtype
    gn_eps = 1e-5
    res_proj = Cin != Cout

    # ---------- hoisted, grid-invariant parameter work (plain JAX) ----------
    def ws_taps(w):
        # Weight standardization over (in, kh, kw), matching the module verbatim:
        #   (w - mean) / rsqrt(var + eps)   (== multiply by sqrt(var + eps))
        w = w.astype(f32)
        mu = jnp.mean(w, axis=(1, 2, 3), keepdims=True)
        var = jnp.mean((w - mu) ** 2, axis=(1, 2, 3), keepdims=True)   # unbiased=False
        w_std = (w - mu) * jnp.sqrt(var + ws_eps)
        o, i, _, _ = w_std.shape
        # per-tap layout [9, Cin, Cout], tap index = kh*3 + kw
        return w_std.transpose(2, 3, 1, 0).reshape(9, i, o).astype(bf16)

    w1t, w2t = ws_taps(params["w1"]), ws_taps(params["w2"])
    b1 = params["b1"].reshape(1, Cout).astype(f32)
    g1 = params["gn1_w"].reshape(1, Cout).astype(f32)
    be1 = params["gn1_b"].reshape(1, Cout).astype(f32)
    b2 = params["b2"].reshape(1, Cout).astype(f32)
    g2 = params["gn2_w"].reshape(1, Cout).astype(f32)
    be2 = params["gn2_b"].reshape(1, Cout).astype(f32)
    wm, bm = params["mlp_w"], params["mlp_b"]                       # [2*Cout, T], [2*Cout]
    # torch's emb.chunk(2, dim=1) == splitting the Linear weight rows in half
    wms, wss = wm[:Cout].T.astype(f32), wm[Cout:].T.astype(f32)     # [T, Cout] each
    bms = bm[:Cout].reshape(1, Cout).astype(f32)
    bss = bm[Cout:].reshape(1, Cout).astype(f32)

    # GroupNorm group-membership matrices (hoisted out of the kernel)
    member = (jnp.arange(Cout)[:, None] // (Cout // groups)
              == jnp.arange(groups)[None, :]).astype(f32)           # [C, G]
    member_t = member.T                                             # [G, C]

    # zero-padded, channels-last, spatially flattened input (f32; cast to bf16
    # per-tap inside the kernel so the residual path stays full precision)
    x_nhwc = jnp.transpose(x, (0, 2, 3, 1)).astype(f32)
    xp = jnp.pad(x_nhwc, ((0, 0), (1, 1), (1, 1), (0, 0))).reshape(B, Np, Cin)

    # validity mask for the contiguous output window [P0, P0 + L)
    p = jnp.arange(P0, P0 + L)
    yy, xx = p // Wp, p % Wp
    mask = ((yy >= 1) & (yy <= H) & (xx >= 1) & (xx <= W)).astype(f32).reshape(L, 1)

    # TODO(synk): for large feature maps (e.g. HW=4096, C=512) add an HW-tile grid
    # axis with a 1-row halo + two-pass GroupNorm (and raise vmem_limit_bytes) so
    # blocks fit v7x's 64 MiB VMEM; real workloads should also keep Cout a
    # multiple of 128 for lane-dense output stores.

    # ---------- fused pallas_call ----------
    vec = pl.BlockSpec((1, Cout), lambda b: (0, 0))
    in_specs = [
        pl.BlockSpec((None, 1, T), lambda b: (b, 0, 0)),      # time_emb row b
        pl.BlockSpec((T, Cout), lambda b: (0, 0)),            # mlp W (scale half)
        pl.BlockSpec((T, Cout), lambda b: (0, 0)),            # mlp W (shift half)
        vec, vec,                                             # mlp biases
        pl.BlockSpec((L, 1), lambda b: (0, 0)),               # window validity mask
        pl.BlockSpec((Cout, groups), lambda b: (0, 0)),       # GN membership [C, G]
        pl.BlockSpec((groups, Cout), lambda b: (0, 0)),       # GN membership [G, C]
        pl.BlockSpec((None, Np, Cin), lambda b: (b, 0, 0)),   # padded input, batch b
        pl.BlockSpec((9, Cin, Cout), lambda b: (0, 0, 0)),    # conv1 taps (standardized)
        vec, vec, vec,                                        # b1, gn1 gamma/beta
        pl.BlockSpec((9, Cout, Cout), lambda b: (0, 0, 0)),   # conv2 taps (standardized)
        vec, vec, vec,                                        # b2, gn2 gamma/beta
    ]
    args = [time_emb.astype(f32).reshape(B, 1, T), wms, wss, bms, bss,
            mask, member, member_t, xp, w1t, b1, g1, be1, w2t, b2, g2, be2]
    if res_proj:
        wr = params["res_w"].reshape(Cout, Cin).T.astype(bf16)            # [Cin, Cout]
        br = params["res_b"].reshape(1, Cout).astype(f32)
        in_specs += [pl.BlockSpec((Cin, Cout), lambda b: (0, 0)), vec]
        args += [wr, br]

    kernel = functools.partial(_resnet_block_kernel, H=H, W=W, groups=groups,
                               gn_eps=gn_eps, res_proj=res_proj)
    out_win = pl.pallas_call(
        kernel,
        out_shape=jax.ShapeDtypeStruct((B, L, Cout), f32),
        grid=(B,),
        in_specs=in_specs,
        out_specs=pl.BlockSpec((None, L, Cout), lambda b: (b, 0, 0)),
        scratch_shapes=[pltpu.VMEM((Np, Cout), f32)],         # padded h1 staging buffer
        compiler_params=pltpu.CompilerParams(
            dimension_semantics=("parallel",)),               # megacore over batch
    )(*args)

    # window index k == i*Wp + j for real pixel (i, j): pad 2 rows, reshape, crop.
    out_rows = jnp.pad(out_win, ((0, 0), (0, Wp - W), (0, 0)))   # -> (B, H*Wp, Cout)
    out = out_rows.reshape(B, H, Wp, Cout)[:, :, :W, :]          # (B, H, W, Cout)
    return jnp.transpose(out, (0, 3, 1, 2))                      # NCHW


def _reference(x, te, params, groups):
    """Pure-JAX NCHW reference mirroring the PyTorch module."""
    eps = 1e-5
    silu = lambda v: v / (1.0 + jnp.exp(-v))

    def ws_conv(xx, w, b):
        mu = jnp.mean(w, axis=(1, 2, 3), keepdims=True)
        var = jnp.mean((w - mu) ** 2, axis=(1, 2, 3), keepdims=True)
        wn = (w - mu) / lax.rsqrt(var + eps)
        y = lax.conv_general_dilated(xx, wn, (1, 1), ((1, 1), (1, 1)),
                                     dimension_numbers=("NCHW", "OIHW", "NCHW"))
        return y + b[None, :, None, None]

    def gn(xx, gamma, beta):
        B, C, H, W = xx.shape
        xg = xx.reshape(B, groups, C // groups, H, W)
        mu = jnp.mean(xg, axis=(2, 3, 4), keepdims=True)
        var = jnp.mean((xg - mu) ** 2, axis=(2, 3, 4), keepdims=True)
        xn = ((xg - mu) / jnp.sqrt(var + eps)).reshape(B, C, H, W)
        return xn * gamma[None, :, None, None] + beta[None, :, None, None]

    Cout = params["w1"].shape[0]
    emb = silu(te) @ params["mlp_w"].T + params["mlp_b"]
    scale, shift = emb[:, :Cout], emb[:, Cout:]

    h = ws_conv(x, params["w1"], params["b1"])
    h = gn(h, params["gn1_w"], params["gn1_b"])
    h = h * (scale[:, :, None, None] + 1.0) + shift[:, :, None, None]
    h = silu(h)
    h = ws_conv(h, params["w2"], params["b2"])
    h = gn(h, params["gn2_w"], params["gn2_b"])
    h = silu(h)
    Cin = x.shape[1]
    if Cin != Cout:
        res = jnp.einsum("bchw,oc->bohw", x, params["res_w"][:, :, 0, 0]) \
            + params["res_b"][None, :, None, None]
    else:
        res = x
    return h + res


if __name__ == "__main__":
    def make_params(key, dim, dim_out, t_dim):
        ks = jax.random.split(key, 12)
        p = {
            "w1": 0.2 * jax.random.normal(ks[0], (dim_out, dim, 3, 3), jnp.float32),
            "b1": 0.1 * jax.random.normal(ks[1], (dim_out,), jnp.float32),
            "gn1_w": 1.0 + 0.1 * jax.random.normal(ks[2], (dim_out,), jnp.float32),
            "gn1_b": 0.1 * jax.random.normal(ks[3], (dim_out,), jnp.float32),
            "w2": 0.2 * jax.random.normal(ks[4], (dim_out, dim_out, 3, 3), jnp.float32),
            "b2": 0.1 * jax.random.normal(ks[5], (dim_out,), jnp.float32),
            "gn2_w": 1.0 + 0.1 * jax.random.normal(ks[6], (dim_out,), jnp.float32),
            "gn2_b": 0.1 * jax.random.normal(ks[7], (dim_out,), jnp.float32),
            "mlp_w": 0.2 * jax.random.normal(ks[8], (dim_out * 2, t_dim), jnp.float32),
            "mlp_b": 0.1 * jax.random.normal(ks[9], (dim_out * 2,), jnp.float32),
        }
        if dim != dim_out:
            p["res_w"] = 0.2 * jax.random.normal(ks[10], (dim_out, dim, 1, 1), jnp.float32)
            p["res_b"] = 0.1 * jax.random.normal(ks[11], (dim_out,), jnp.float32)
        return p

    B, dim, dim_out, H, W = 2, 4, 8, 16, 16
    groups, t_dim = 4, 16
    k_p1, k_p2, k_x, k_t = jax.random.split(jax.random.PRNGKey(0), 4)

    fwd = jax.jit(resnet_block_forward, static_argnames=("groups",))

    # tolerance reflects bf16 matmul operands (f32 accumulation / statistics / residual).
    TOL = 3e-2

    # config 1: dim != dim_out  (exercises the 1x1 residual-projection path)
    params = make_params(k_p1, dim, dim_out, t_dim)
    x = jax.random.normal(k_x, (B, dim, H, W), jnp.float32)
    te = jax.random.normal(k_t, (B, t_dim), jnp.float32)
    out = jax.block_until_ready(fwd(x, te, params, groups=groups))
    ref = _reference(x, te, params, groups)
    assert out.shape == (B, dim_out, H, W), out.shape
    err = float(jnp.max(jnp.abs(out - ref)))
    assert jnp.allclose(out, ref, rtol=TOL, atol=TOL), f"max abs err {err}"

    # config 2: dim == dim_out  (identity residual; the 1x1 matmul is skipped)
    params2 = make_params(k_p2, dim_out, dim_out, t_dim)
    x2 = jax.random.normal(jax.random.fold_in(k_x, 1), (B, dim_out, H, W), jnp.float32)
    out2 = jax.block_until_ready(fwd(x2, te, params2, groups=groups))
    ref2 = _reference(x2, te, params2, groups)
    err2 = float(jnp.max(jnp.abs(out2 - ref2)))
    assert jnp.allclose(out2, ref2, rtol=TOL, atol=TOL), f"max abs err {err2}"

    print("KERNEL_OK")
</pallas_src>

<mosaic_0001>
module attributes {stable_mosaic.version = 11 : i64} {
  func.func @_resnet_block_kernel(%arg0: i32, %arg1: memref<1x1x16xf32, #tpu.memory_space<vmem>>, %arg2: memref<16x8xf32, #tpu.memory_space<vmem>>, %arg3: memref<16x8xf32, #tpu.memory_space<vmem>>, %arg4: memref<1x8xf32, #tpu.memory_space<vmem>>, %arg5: memref<1x8xf32, #tpu.memory_space<vmem>>, %arg6: memref<286x1xf32, #tpu.memory_space<vmem>>, %arg7: memref<8x4xf32, #tpu.memory_space<vmem>>, %arg8: memref<4x8xf32, #tpu.memory_space<vmem>>, %arg9: memref<1x324x4xf32, #tpu.memory_space<vmem>>, %arg10: memref<9x4x8xbf16, #tpu.memory_space<vmem>>, %arg11: memref<1x8xf32, #tpu.memory_space<vmem>>, %arg12: memref<1x8xf32, #tpu.memory_space<vmem>>, %arg13: memref<1x8xf32, #tpu.memory_space<vmem>>, %arg14: memref<9x8x8xbf16, #tpu.memory_space<vmem>>, %arg15: memref<1x8xf32, #tpu.memory_space<vmem>>, %arg16: memref<1x8xf32, #tpu.memory_space<vmem>>, %arg17: memref<1x8xf32, #tpu.memory_space<vmem>>, %arg18: memref<4x8xbf16, #tpu.memory_space<vmem>>, %arg19: memref<1x8xf32, #tpu.memory_space<vmem>>, %arg20: memref<1x286x8xf32, #tpu.memory_space<vmem>>, %arg21: memref<324x8xf32, #tpu.memory_space<vmem>>) attributes {dimension_semantics = [#tpu.dimension_semantics<parallel>], iteration_bounds = array<i64: 2>, scalar_prefetch = 0 : i64, scratch_operands = 1 : i64, tpu.core_type = #tpu.core_type<tc>, window_params = [{transform_indices = @transform_0, window_bounds = array<i64: 1, 1, 16>}, {pipeline_mode = #tpu.pipeline_mode<synchronous>, transform_indices = @transform_1, window_bounds = array<i64: 16, 8>}, {pipeline_mode = #tpu.pipeline_mode<synchronous>, transform_indices = @transform_2, window_bounds = array<i64: 16, 8>}, {pipeline_mode = #tpu.pipeline_mode<synchronous>, transform_indices = @transform_3, window_bounds = array<i64: 1, 8>}, {pipeline_mode = #tpu.pipeline_mode<synchronous>, transform_indices = @transform_4, window_bounds = array<i64: 1, 8>}, {pipeline_mode = #tpu.pipeline_mode<synchronous>, transform_indices = @transform_5, window_bounds = array<i64: 286, 1>}, {pipeline_mode = #tpu.pipeline_mode<synchronous>, transform_indices = @transform_6, window_bounds = array<i64: 8, 4>}, {pipeline_mode = #tpu.pipeline_mode<synchronous>, transform_indices = @transform_7, window_bounds = array<i64: 4, 8>}, {transform_indices = @transform_8, window_bounds = array<i64: 1, 324, 4>}, {pipeline_mode = #tpu.pipeline_mode<synchronous>, transform_indices = @transform_9, window_bounds = array<i64: 9, 4, 8>}, {pipeline_mode = #tpu.pipeline_mode<synchronous>, transform_indices = @transform_10, window_bounds = array<i64: 1, 8>}, {pipeline_mode = #tpu.pipeline_mode<synchronous>, transform_indices = @transform_11, window_bounds = array<i64: 1, 8>}, {pipeline_mode = #tpu.pipeline_mode<synchronous>, transform_indices = @transform_12, window_bounds = array<i64: 1, 8>}, {pipeline_mode = #tpu.pipeline_mode<synchronous>, transform_indices = @transform_13, window_bounds = array<i64: 9, 8, 8>}, {pipeline_mode = #tpu.pipeline_mode<synchronous>, transform_indices = @transform_14, window_bounds = array<i64: 1, 8>}, {pipeline_mode = #tpu.pipeline_mode<synchronous>, transform_indices = @transform_15, window_bounds = array<i64: 1, 8>}, {pipeline_mode = #tpu.pipeline_mode<synchronous>, transform_indices = @transform_16, window_bounds = array<i64: 1, 8>}, {pipeline_mode = #tpu.pipeline_mode<synchronous>, transform_indices = @transform_17, window_bounds = array<i64: 4, 8>}, {pipeline_mode = #tpu.pipeline_mode<synchronous>, transform_indices = @transform_18, window_bounds = array<i64: 1, 8>}, {transform_indices = @transform_19, window_bounds = array<i64: 1, 286, 8>}]} {
    %c0 = arith.constant 0 : index
    %c0_0 = arith.constant 0 : index
    %0 = vector.load %arg6[%c0, %c0_0] : memref<286x1xf32, #tpu.memory_space<vmem>>, vector<286x1xf32>
    %c0_1 = arith.constant 0 : index
    %c0_2 = arith.constant 0 : index
    %1 = vector.load %arg7[%c0_1, %c0_2] : memref<8x4xf32, #tpu.memory_space<vmem>>, vector<8x4xf32>
    %c0_3 = arith.constant 0 : index
    %c0_4 = arith.constant 0 : index
    %2 = vector.load %arg8[%c0_3, %c0_4] : memref<4x8xf32, #tpu.memory_space<vmem>>, vector<4x8xf32>
    %c0_5 = arith.constant 0 : index
    %c0_6 = arith.constant 0 : index
    %c0_7 = arith.constant 0 : index
    %3 = vector.load %arg1[%c0_5, %c0_6, %c0_7] : memref<1x1x16xf32, #tpu.memory_space<vmem>>, vector<1x1x16xf32>
    %4 = vector.shape_cast %3 : vector<1x1x16xf32> to vector<1x16xf32>
    %cst = arith.constant 0.000000e+00 : f32
    %5 = vector.broadcast %cst : f32 to vector<1x16xf32>
    %6 = arith.subf %5, %4 : vector<1x16xf32>
    %7 = math.exp %6 : vector<1x16xf32>
    %cst_8 = arith.constant 1.000000e+00 : f32
    %8 = vector.broadcast %cst_8 : f32 to vector<1x16xf32>
    %9 = arith.addf %8, %7 : vector<1x16xf32>
    %10 = tpu.reciprocal %9 {approx = true} : vector<1x16xf32> -> vector<1x16xf32>
    %11 = arith.mulf %4, %10 : vector<1x16xf32>
    %c0_9 = arith.constant 0 : index
    %c0_10 = arith.constant 0 : index
    %12 = vector.load %arg2[%c0_9, %c0_10] : memref<16x8xf32, #tpu.memory_space<vmem>>, vector<16x8xf32>
    %cst_11 = arith.constant dense<0.000000e+00> : vector<1x8xf32>
    %13 = tpu.matmul %11, %12, %cst_11 {dimension_numbers = #tpu.dot_dimension_numbers<[1], [0], [0], [1], [0, 0, 1, 1], [], []>} : vector<1x16xf32>, vector<16x8xf32>, vector<1x8xf32> -> vector<1x8xf32>
    %c0_12 = arith.constant 0 : index
    %c0_13 = arith.constant 0 : index
    %14 = vector.load %arg4[%c0_12, %c0_13] : memref<1x8xf32, #tpu.memory_space<vmem>>, vector<1x8xf32>
    %15 = arith.addf %13, %14 : vector<1x8xf32>
    %c0_14 = arith.constant 0 : index
    %c0_15 = arith.constant 0 : index
    %16 = vector.load %arg3[%c0_14, %c0_15] : memref<16x8xf32, #tpu.memory_space<vmem>>, vector<16x8xf32>
    %cst_16 = arith.constant dense<0.000000e+00> : vector<1x8xf32>
    %17 = tpu.matmul %11, %16, %cst_16 {dimension_numbers = #tpu.dot_dimension_numbers<[1], [0], [0], [1], [0, 0, 1, 1], [], []>} : vector<1x16xf32>, vector<16x8xf32>, vector<1x8xf32> -> vector<1x8xf32>
    %c0_17 = arith.constant 0 : index
    %c0_18 = arith.constant 0 : index
    %18 = vector.load %arg5[%c0_17, %c0_18] : memref<1x8xf32, #tpu.memory_space<vmem>>, vector<1x8xf32>
    %19 = arith.addf %17, %18 : vector<1x8xf32>
    %cst_19 = arith.constant 0.000000e+00 : f32
    %20 = vector.broadcast %cst_19 : f32 to vector<286x8xf32>
    %c0_20 = arith.constant 0 : index
    %c0_21 = arith.constant 0 : index
    %c0_22 = arith.constant 0 : index
    %21 = vector.load %arg9[%c0_20, %c0_21, %c0_22] : memref<1x324x4xf32, #tpu.memory_space<vmem>>, vector<1x286x4xf32>
    %22 = vector.shape_cast %21 : vector<1x286x4xf32> to vector<286x4xf32>
    %23 = arith.truncf %22 : vector<286x4xf32> to vector<286x4xbf16>
    %c0_23 = arith.constant 0 : index
    %c0_24 = arith.constant 0 : index
    %c0_25 = arith.constant 0 : index
    %24 = vector.load %arg10[%c0_23, %c0_24, %c0_25] : memref<9x4x8xbf16, #tpu.memory_space<vmem>>, vector<1x4x8xbf16>
    %25 = vector.shape_cast %24 : vector<1x4x8xbf16> to vector<4x8xbf16>
    %cst_26 = arith.constant dense<0.000000e+00> : vector<286x8xf32>
    %26 = tpu.matmul %23, %25, %cst_26 {dimension_numbers = #tpu.dot_dimension_numbers<[1], [0], [0], [1], [0, 0, 1, 1], [], []>} : vector<286x4xbf16>, vector<4x8xbf16>, vector<286x8xf32> -> vector<286x8xf32>
    %27 = arith.addf %20, %26 : vector<286x8xf32>
    %c0_27 = arith.constant 0 : index
    %c1 = arith.constant 1 : index
    %c0_28 = arith.constant 0 : index
    %28 = vector.load %arg9[%c0_27, %c1, %c0_28] : memref<1x324x4xf32, #tpu.memory_space<vmem>>, vector<1x286x4xf32>
    %29 = vector.shape_cast %28 : vector<1x286x4xf32> to vector<286x4xf32>
    %30 = arith.truncf %29 : vector<286x4xf32> to vector<286x4xbf16>
    %c1_29 = arith.constant 1 : index
    %c0_30 = arith.constant 0 : index
    %c0_31 = arith.constant 0 : index
    %31 = vector.load %arg10[%c1_29, %c0_30, %c0_31] : memref<9x4x8xbf16, #tpu.memory_space<vmem>>, vector<1x4x8xbf16>
    %32 = vector.shape_cast %31 : vector<1x4x8xbf16> to vector<4x8xbf16>
    %cst_32 = arith.constant dense<0.000000e+00> : vector<286x8xf32>
    %33 = tpu.matmul %30, %32, %cst_32 {dimension_numbers = #tpu.dot_dimension_numbers<[1], [0], [0], [1], [0, 0, 1, 1], [], []>} : vector<286x4xbf16>, vector<4x8xbf16>, vector<286x8xf32> -> vector<286x8xf32>
    %34 = arith.addf %27, %33 : vector<286x8xf32>
    %c0_33 = arith.constant 0 : index
    %c2 = arith.constant 2 : index
    %c0_34 = arith.constant 0 : index
    %35 = vector.load %arg9[%c0_33, %c2, %c0_34] : memref<1x324x4xf32, #tpu.memory_space<vmem>>, vector<1x286x4xf32>
    %36 = vector.shape_cast %35 : vector<1x286x4xf32> to vector<286x4xf32>
    %37 = arith.truncf %36 : vector<286x4xf32> to vector<286x4xbf16>
    %c2_35 = arith.constant 2 : index
    %c0_36 = arith.constant 0 : index
    %c0_37 = arith.constant 0 : index
    %38 = vector.load %arg10[%c2_35, %c0_36, %c0_37] : memref<9x4x8xbf16, #tpu.memory_space<vmem>>, vector<1x4x8xbf16>
    %39 = vector.shape_cast %38 : vector<1x4x8xbf16> to vector<4x8xbf16>
    %cst_38 = arith.constant dense<0.000000e+00> : vector<286x8xf32>
    %40 = tpu.matmul %37, %39, %cst_38 {dimension_numbers = #tpu.dot_dimension_numbers<[1], [0], [0], [1], [0, 0, 1, 1], [], []>} : vector<286x4xbf16>, vector<4x8xbf16>, vector<286x8xf32> -> vector<286x8xf32>
    %41 = arith.addf %34, %40 : vector<286x8xf32>
    %c0_39 = arith.constant 0 : index
    %c18 = arith.constant 18 : index
    %c0_40 = arith.constant 0 : index
    %42 = vector.load %arg9[%c0_39, %c18, %c0_40] : memref<1x324x4xf32, #tpu.memory_space<vmem>>, vector<1x286x4xf32>
    %43 = vector.shape_cast %42 : vector<1x286x4xf32> to vector<286x4xf32>
    %44 = arith.truncf %43 : vector<286x4xf32> to vector<286x4xbf16>
    %c3 = arith.constant 3 : index
    %c0_41 = arith.constant 0 : index
    %c0_42 = arith.constant 0 : index
    %45 = vector.load %arg10[%c3, %c0_41, %c0_42] : memref<9x4x8xbf16, #tpu.memory_space<vmem>>, vector<1x4x8xbf16>
    %46 = vector.shape_cast %45 : vector<1x4x8xbf16> to vector<4x8xbf16>
    %cst_43 = arith.constant dense<0.000000e+00> : vector<286x8xf32>
    %47 = tpu.matmul %44, %46, %cst_43 {dimension_numbers = #tpu.dot_dimension_numbers<[1], [0], [0], [1], [0, 0, 1, 1], [], []>} : vector<286x4xbf16>, vector<4x8xbf16>, vector<286x8xf32> -> vector<286x8xf32>
    %48 = arith.addf %41, %47 : vector<286x8xf32>
    %c0_44 = arith.constant 0 : index
    %c19 = arith.constant 19 : index
    %c0_45 = arith.constant 0 : index
    %49 = vector.load %arg9[%c0_44, %c19, %c0_45] : memref<1x324x4xf32, #tpu.memory_space<vmem>>, vector<1x286x4xf32>
    %50 = vector.shape_cast %49 : vector<1x286x4xf32> to vector<286x4xf32>
    %51 = arith.truncf %50 : vector<286x4xf32> to vector<286x4xbf16>
    %c4 = arith.constant 4 : index
    %c0_46 = arith.constant 0 : index
    %c0_47 = arith.constant 0 : index
    %52 = vector.load %arg10[%c4, %c0_46, %c0_47] : memref<9x4x8xbf16, #tpu.memory_space<vmem>>, vector<1x4x8xbf16>
    %53 = vector.shape_cast %52 : vector<1x4x8xbf16> to vector<4x8xbf16>
    %cst_48 = arith.constant dense<0.000000e+00> : vector<286x8xf32>
    %54 = tpu.matmul %51, %53, %cst_48 {dimension_numbers = #tpu.dot_dimension_numbers<[1], [0], [0], [1], [0, 0, 1, 1], [], []>} : vector<286x4xbf16>, vector<4x8xbf16>, vector<286x8xf32> -> vector<286x8xf32>
    %55 = arith.addf %48, %54 : vector<286x8xf32>
    %c0_49 = arith.constant 0 : index
    %c20 = arith.constant 20 : index
    %c0_50 = arith.constant 0 : index
    %56 = vector.load %arg9[%c0_49, %c20, %c0_50] : memref<1x324x4xf32, #tpu.memory_space<vmem>>, vector<1x286x4xf32>
    %57 = vector.shape_cast %56 : vector<1x286x4xf32> to vector<286x4xf32>
    %58 = arith.truncf %57 : vector<286x4xf32> to vector<286x4xbf16>
    %c5 = arith.constant 5 : index
    %c0_51 = arith.constant 0 : index
    %c0_52 = arith.constant 0 : index
    %59 = vector.load %arg10[%c5, %c0_51, %c0_52] : memref<9x4x8xbf16, #tpu.memory_space<vmem>>, vector<1x4x8xbf16>
    %60 = vector.shape_cast %59 : vector<1x4x8xbf16> to vector<4x8xbf16>
    %cst_53 = arith.constant dense<0.000000e+00> : vector<286x8xf32>
    %61 = tpu.matmul %58, %60, %cst_53 {dimension_numbers = #tpu.dot_dimension_numbers<[1], [0], [0], [1], [0, 0, 1, 1], [], []>} : vector<286x4xbf16>, vector<4x8xbf16>, vector<286x8xf32> -> vector<286x8xf32>
    %62 = arith.addf %55, %61 : vector<286x8xf32>
    %c0_54 = arith.constant 0 : index
    %c36 = arith.constant 36 : index
    %c0_55 = arith.constant 0 : index
    %63 = vector.load %arg9[%c0_54, %c36, %c0_55] : memref<1x324x4xf32, #tpu.memory_space<vmem>>, vector<1x286x4xf32>
    %64 = vector.shape_cast %63 : vector<1x286x4xf32> to vector<286x4xf32>
    %65 = arith.truncf %64 : vector<286x4xf32> to vector<286x4xbf16>
    %c6 = arith.constant 6 : index
    %c0_56 = arith.constant 0 : index
    %c0_57 = arith.constant 0 : index
    %66 = vector.load %arg10[%c6, %c0_56, %c0_57] : memref<9x4x8xbf16, #tpu.memory_space<vmem>>, vector<1x4x8xbf16>
    %67 = vector.shape_cast %66 : vector<1x4x8xbf16> to vector<4x8xbf16>
    %cst_58 = arith.constant dense<0.000000e+00> : vector<286x8xf32>
    %68 = tpu.matmul %65, %67, %cst_58 {dimension_numbers = #tpu.dot_dimension_numbers<[1], [0], [0], [1], [0, 0, 1, 1], [], []>} : vector<286x4xbf16>, vector<4x8xbf16>, vector<286x8xf32> -> vector<286x8xf32>
    %69 = arith.addf %62, %68 : vector<286x8xf32>
    %c0_59 = arith.constant 0 : index
    %c37 = arith.constant 37 : index
    %c0_60 = arith.constant 0 : index
    %70 = vector.load %arg9[%c0_59, %c37, %c0_60] : memref<1x324x4xf32, #tpu.memory_space<vmem>>, vector<1x286x4xf32>
    %71 = vector.shape_cast %70 : vector<1x286x4xf32> to vector<286x4xf32>
    %72 = arith.truncf %71 : vector<286x4xf32> to vector<286x4xbf16>
    %c7 = arith.constant 7 : index
    %c0_61 = arith.constant 0 : index
    %c0_62 = arith.constant 0 : index
    %73 = vector.load %arg10[%c7, %c0_61, %c0_62] : memref<9x4x8xbf16, #tpu.memory_space<vmem>>, vector<1x4x8xbf16>
    %74 = vector.shape_cast %73 : vector<1x4x8xbf16> to vector<4x8xbf16>
    %cst_63 = arith.constant dense<0.000000e+00> : vector<286x8xf32>
    %75 = tpu.matmul %72, %74, %cst_63 {dimension_numbers = #tpu.dot_dimension_numbers<[1], [0], [0], [1], [0, 0, 1, 1], [], []>} : vector<286x4xbf16>, vector<4x8xbf16>, vector<286x8xf32> -> vector<286x8xf32>
    %76 = arith.addf %69, %75 : vector<286x8xf32>
    %c0_64 = arith.constant 0 : index
    %c38 = arith.constant 38 : index
    %c0_65 = arith.constant 0 : index
    %77 = vector.load %arg9[%c0_64, %c38, %c0_65] : memref<1x324x4xf32, #tpu.memory_space<vmem>>, vector<1x286x4xf32>
    %78 = vector.shape_cast %77 : vector<1x286x4xf32> to vector<286x4xf32>
    %79 = arith.truncf %78 : vector<286x4xf32> to vector<286x4xbf16>
    %c8 = arith.constant 8 : index
    %c0_66 = arith.constant 0 : index
    %c0_67 = arith.constant 0 : index
    %80 = vector.load %arg10[%c8, %c0_66, %c0_67] : memref<9x4x8xbf16, #tpu.memory_space<vmem>>, vector<1x4x8xbf16>
    %81 = vector.shape_cast %80 : vector<1x4x8xbf16> to vector<4x8xbf16>
    %cst_68 = arith.constant dense<0.000000e+00> : vector<286x8xf32>
    %82 = tpu.matmul %79, %81, %cst_68 {dimension_numbers = #tpu.dot_dimension_numbers<[1], [0], [0], [1], [0, 0, 1, 1], [], []>} : vector<286x4xbf16>, vector<4x8xbf16>, vector<286x8xf32> -> vector<286x8xf32>
    %83 = arith.addf %76, %82 : vector<286x8xf32>
    %c0_69 = arith.constant 0 : index
    %c0_70 = arith.constant 0 : index
    %84 = vector.load %arg11[%c0_69, %c0_70] : memref<1x8xf32, #tpu.memory_space<vmem>>, vector<1x8xf32>
    %85 = vector.broadcast %84 : vector<1x8xf32> to vector<286x8xf32>
    %86 = arith.addf %83, %85 : vector<286x8xf32>
    %c0_71 = arith.constant 0 : index
    %c0_72 = arith.constant 0 : index
    %87 = vector.load %arg12[%c0_71, %c0_72] : memref<1x8xf32, #tpu.memory_space<vmem>>, vector<1x8xf32>
    %c0_73 = arith.constant 0 : index
    %c0_74 = arith.constant 0 : index
    %88 = vector.load %arg13[%c0_73, %c0_74] : memref<1x8xf32, #tpu.memory_space<vmem>>, vector<1x8xf32>
    %89 = vector.broadcast %0 : vector<286x1xf32> to vector<286x8xf32>
    %90 = arith.mulf %86, %89 : vector<286x8xf32>
    %cst_75 = arith.constant dense<0.000000e+00> : vector<8xf32>
    %91 = vector.multi_reduction <add>, %90, %cst_75 [0] : vector<286x8xf32> to vector<8xf32>
    %92 = vector.shape_cast %91 : vector<8xf32> to vector<1x8xf32>
    %cst_76 = arith.constant dense<0.000000e+00> : vector<1x4xf32>
    %93 = tpu.matmul %92, %1, %cst_76 {dimension_numbers = #tpu.dot_dimension_numbers<[1], [0], [0], [1], [0, 0, 1, 1], [], []>} : vector<1x8xf32>, vector<8x4xf32>, vector<1x4xf32> -> vector<1x4xf32>
    %cst_77 = arith.constant 0.001953125 : f32
    %94 = vector.broadcast %cst_77 : f32 to vector<1x4xf32>
    %95 = arith.mulf %93, %94 : vector<1x4xf32>
    %cst_78 = arith.constant dense<0.000000e+00> : vector<1x8xf32>
    %96 = tpu.matmul %95, %2, %cst_78 {dimension_numbers = #tpu.dot_dimension_numbers<[1], [0], [0], [1], [0, 0, 1, 1], [], []>} : vector<1x4xf32>, vector<4x8xf32>, vector<1x8xf32> -> vector<1x8xf32>
    %97 = vector.broadcast %96 : vector<1x8xf32> to vector<286x8xf32>
    %98 = arith.subf %86, %97 : vector<286x8xf32>
    %99 = arith.mulf %98, %98 : vector<286x8xf32>
    %100 = vector.broadcast %0 : vector<286x1xf32> to vector<286x8xf32>
    %101 = arith.mulf %99, %100 : vector<286x8xf32>
    %cst_79 = arith.constant dense<0.000000e+00> : vector<8xf32>
    %102 = vector.multi_reduction <add>, %101, %cst_79 [0] : vector<286x8xf32> to vector<8xf32>
    %103 = vector.shape_cast %102 : vector<8xf32> to vector<1x8xf32>
    %cst_80 = arith.constant dense<0.000000e+00> : vector<1x4xf32>
    %104 = tpu.matmul %103, %1, %cst_80 {dimension_numbers = #tpu.dot_dimension_numbers<[1], [0], [0], [1], [0, 0, 1, 1], [], []>} : vector<1x8xf32>, vector<8x4xf32>, vector<1x4xf32> -> vector<1x4xf32>
    %cst_81 = arith.constant 0.001953125 : f32
    %105 = vector.broadcast %cst_81 : f32 to vector<1x4xf32>
    %106 = arith.mulf %104, %105 : vector<1x4xf32>
    %cst_82 = arith.constant dense<0.000000e+00> : vector<1x8xf32>
    %107 = tpu.matmul %106, %2, %cst_82 {dimension_numbers = #tpu.dot_dimension_numbers<[1], [0], [0], [1], [0, 0, 1, 1], [], []>} : vector<1x4xf32>, vector<4x8xf32>, vector<1x8xf32> -> vector<1x8xf32>
    %cst_83 = arith.constant 9.99999974E-6 : f32
    %108 = vector.broadcast %cst_83 : f32 to vector<1x8xf32>
    %109 = arith.addf %107, %108 : vector<1x8xf32>
    %110 = math.rsqrt %109 : vector<1x8xf32>
    %111 = vector.broadcast %110 : vector<1x8xf32> to vector<286x8xf32>
    %112 = arith.mulf %98, %111 : vector<286x8xf32>
    %113 = vector.broadcast %87 : vector<1x8xf32> to vector<286x8xf32>
    %114 = arith.mulf %112, %113 : vector<286x8xf32>
    %115 = vector.broadcast %88 : vector<1x8xf32> to vector<286x8xf32>
    %116 = arith.addf %114, %115 : vector<286x8xf32>
    %cst_84 = arith.constant 1.000000e+00 : f32
    %117 = vector.broadcast %cst_84 : f32 to vector<1x8xf32>
    %118 = arith.addf %15, %117 : vector<1x8xf32>
    %119 = vector.broadcast %118 : vector<1x8xf32> to vector<286x8xf32>
    %120 = arith.mulf %116, %119 : vector<286x8xf32>
    %121 = vector.broadcast %19 : vector<1x8xf32> to vector<286x8xf32>
    %122 = arith.addf %120, %121 : vector<286x8xf32>
    %cst_85 = arith.constant 0.000000e+00 : f32
    %123 = vector.broadcast %cst_85 : f32 to vector<286x8xf32>
    %124 = arith.subf %123, %122 : vector<286x8xf32>
    %125 = math.exp %124 : vector<286x8xf32>
    %cst_86 = arith.constant 1.000000e+00 : f32
    %126 = vector.broadcast %cst_86 : f32 to vector<286x8xf32>
    %127 = arith.addf %126, %125 : vector<286x8xf32>
    %128 = tpu.reciprocal %127 {approx = true} : vector<286x8xf32> -> vector<286x8xf32>
    %129 = arith.mulf %122, %128 : vector<286x8xf32>
    %cst_87 = arith.constant 0.000000e+00 : f32
    %130 = vector.broadcast %cst_87 : f32 to vector<324x8xf32>
    %c0_88 = arith.constant 0 : index
    %c0_89 = arith.constant 0 : index
    %131 = vector.load %arg21[%c0_88, %c0_89] : memref<324x8xf32, #tpu.memory_space<vmem>>, vector<324x8xf32>
    tpu.vector_store %arg21[%c0_88, %c0_89], %130 {strides = array<i32>} : memref<324x8xf32, #tpu.memory_space<vmem>>, vector<324x8xf32>,
    %132 = vector.broadcast %0 : vector<286x1xf32> to vector<286x8xf32>
    %133 = arith.mulf %129, %132 : vector<286x8xf32>
    %c19_90 = arith.constant 19 : index
    %c0_91 = arith.constant 0 : index
    %134 = vector.load %arg21[%c19_90, %c0_91] : memref<324x8xf32, #tpu.memory_space<vmem>>, vector<286x8xf32>
    tpu.vector_store %arg21[%c19_90, %c0_91], %133 {strides = array<i32>} : memref<324x8xf32, #tpu.memory_space<vmem>>, vector<286x8xf32>,
    %cst_92 = arith.constant 0.000000e+00 : f32
    %135 = vector.broadcast %cst_92 : f32 to vector<286x8xf32>
    %c0_93 = arith.constant 0 : index
    %c0_94 = arith.constant 0 : index
    %136 = vector.load %arg21[%c0_93, %c0_94] : memref<324x8xf32, #tpu.memory_space<vmem>>, vector<286x8xf32>
    %137 = arith.truncf %136 : vector<286x8xf32> to vector<286x8xbf16>
    %c0_95 = arith.constant 0 : index
    %c0_96 = arith.constant 0 : index
    %c0_97 = arith.constant 0 : index
    %138 = vector.load %arg14[%c0_95, %c0_96, %c0_97] : memref<9x8x8xbf16, #tpu.memory_space<vmem>>, vector<1x8x8xbf16>
    %139 = vector.shape_cast %138 : vector<1x8x8xbf16> to vector<8x8xbf16>
    %cst_98 = arith.constant dense<0.000000e+00> : vector<286x8xf32>
    %140 = tpu.matmul %137, %139, %cst_98 {dimension_numbers = #tpu.dot_dimension_numbers<[1], [0], [0], [1], [0, 0, 1, 1], [], []>} : vector<286x8xbf16>, vector<8x8xbf16>, vector<286x8xf32> -> vector<286x8xf32>
    %141 = arith.addf %135, %140 : vector<286x8xf32>
    %c1_99 = arith.constant 1 : index
    %c0_100 = arith.constant 0 : index
    %142 = vector.load %arg21[%c1_99, %c0_100] : memref<324x8xf32, #tpu.memory_space<vmem>>, vector<286x8xf32>
    %143 = arith.truncf %142 : vector<286x8xf32> to vector<286x8xbf16>
    %c1_101 = arith.constant 1 : index
    %c0_102 = arith.constant 0 : index
    %c0_103 = arith.constant 0 : index
    %144 = vector.load %arg14[%c1_101, %c0_102, %c0_103] : memref<9x8x8xbf16, #tpu.memory_space<vmem>>, vector<1x8x8xbf16>
    %145 = vector.shape_cast %144 : vector<1x8x8xbf16> to vector<8x8xbf16>
    %cst_104 = arith.constant dense<0.000000e+00> : vector<286x8xf32>
    %146 = tpu.matmul %143, %145, %cst_104 {dimension_numbers = #tpu.dot_dimension_numbers<[1], [0], [0], [1], [0, 0, 1, 1], [], []>} : vector<286x8xbf16>, vector<8x8xbf16>, vector<286x8xf32> -> vector<286x8xf32>
    %147 = arith.addf %141, %146 : vector<286x8xf32>
    %c2_105 = arith.constant 2 : index
    %c0_106 = arith.constant 0 : index
    %148 = vector.load %arg21[%c2_105, %c0_106] : memref<324x8xf32, #tpu.memory_space<vmem>>, vector<286x8xf32>
    %149 = arith.truncf %148 : vector<286x8xf32> to vector<286x8xbf16>
    %c2_107 = arith.constant 2 : index
    %c0_108 = arith.constant 0 : index
    %c0_109 = arith.constant 0 : index
    %150 = vector.load %arg14[%c2_107, %c0_108, %c0_109] : memref<9x8x8xbf16, #tpu.memory_space<vmem>>, vector<1x8x8xbf16>
    %151 = vector.shape_cast %150 : vector<1x8x8xbf16> to vector<8x8xbf16>
    %cst_110 = arith.constant dense<0.000000e+00> : vector<286x8xf32>
    %152 = tpu.matmul %149, %151, %cst_110 {dimension_numbers = #tpu.dot_dimension_numbers<[1], [0], [0], [1], [0, 0, 1, 1], [], []>} : vector<286x8xbf16>, vector<8x8xbf16>, vector<286x8xf32> -> vector<286x8xf32>
    %153 = arith.addf %147, %152 : vector<286x8xf32>
    %c18_111 = arith.constant 18 : index
    %c0_112 = arith.constant 0 : index
    %154 = vector.load %arg21[%c18_111, %c0_112] : memref<324x8xf32, #tpu.memory_space<vmem>>, vector<286x8xf32>
    %155 = arith.truncf %154 : vector<286x8xf32> to vector<286x8xbf16>
    %c3_113 = arith.constant 3 : index
    %c0_114 = arith.constant 0 : index
    %c0_115 = arith.constant 0 : index
    %156 = vector.load %arg14[%c3_113, %c0_114, %c0_115] : memref<9x8x8xbf16, #tpu.memory_space<vmem>>, vector<1x8x8xbf16>
    %157 = vector.shape_cast %156 : vector<1x8x8xbf16> to vector<8x8xbf16>
    %cst_116 = arith.constant dense<0.000000e+00> : vector<286x8xf32>
    %158 = tpu.matmul %155, %157, %cst_116 {dimension_numbers = #tpu.dot_dimension_numbers<[1], [0], [0], [1], [0, 0, 1, 1], [], []>} : vector<286x8xbf16>, vector<8x8xbf16>, vector<286x8xf32> -> vector<286x8xf32>
    %159 = arith.addf %153, %158 : vector<286x8xf32>
    %c19_117 = arith.constant 19 : index
    %c0_118 = arith.constant 0 : index
    %160 = vector.load %arg21[%c19_117, %c0_118] : memref<324x8xf32, #tpu.memory_space<vmem>>, vector<286x8xf32>
    %161 = arith.truncf %160 : vector<286x8xf32> to vector<286x8xbf16>
    %c4_119 = arith.constant 4 : index
    %c0_120 = arith.constant 0 : index
    %c0_121 = arith.constant 0 : index
    %162 = vector.load %arg14[%c4_119, %c0_120, %c0_121] : memref<9x8x8xbf16, #tpu.memory_space<vmem>>, vector<1x8x8xbf16>
    %163 = vector.shape_cast %162 : vector<1x8x8xbf16> to vector<8x8xbf16>
    %cst_122 = arith.constant dense<0.000000e+00> : vector<286x8xf32>
    %164 = tpu.matmul %161, %163, %cst_122 {dimension_numbers = #tpu.dot_dimension_numbers<[1], [0], [0], [1], [0, 0, 1, 1], [], []>} : vector<286x8xbf16>, vector<8x8xbf16>, vector<286x8xf32> -> vector<286x8xf32>
    %165 = arith.addf %159, %164 : vector<286x8xf32>
    %c20_123 = arith.constant 20 : index
    %c0_124 = arith.constant 0 : index
    %166 = vector.load %arg21[%c20_123, %c0_124] : memref<324x8xf32, #tpu.memory_space<vmem>>, vector<286x8xf32>
    %167 = arith.truncf %166 : vector<286x8xf32> to vector<286x8xbf16>
    %c5_125 = arith.constant 5 : index
    %c0_126 = arith.constant 0 : index
    %c0_127 = arith.constant 0 : index
    %168 = vector.load %arg14[%c5_125, %c0_126, %c0_127] : memref<9x8x8xbf16, #tpu.memory_space<vmem>>, vector<1x8x8xbf16>
    %169 = vector.shape_cast %168 : vector<1x8x8xbf16> to vector<8x8xbf16>
    %cst_128 = arith.constant dense<0.000000e+00> : vector<286x8xf32>
    %170 = tpu.matmul %167, %169, %cst_128 {dimension_numbers = #tpu.dot_dimension_numbers<[1], [0], [0], [1], [0, 0, 1, 1], [], []>} : vector<286x8xbf16>, vector<8x8xbf16>, vector<286x8xf32> -> vector<286x8xf32>
    %171 = arith.addf %165, %170 : vector<286x8xf32>
    %c36_129 = arith.constant 36 : index
    %c0_130 = arith.constant 0 : index
    %172 = vector.load %arg21[%c36_129, %c0_130] : memref<324x8xf32, #tpu.memory_space<vmem>>, vector<286x8xf32>
    %173 = arith.truncf %172 : vector<286x8xf32> to vector<286x8xbf16>
    %c6_131 = arith.constant 6 : index
    %c0_132 = arith.constant 0 : index
    %c0_133 = arith.constant 0 : index
    %174 = vector.load %arg14[%c6_131, %c0_132, %c0_133] : memref<9x8x8xbf16, #tpu.memory_space<vmem>>, vector<1x8x8xbf16>
    %175 = vector.shape_cast %174 : vector<1x8x8xbf16> to vector<8x8xbf16>
    %cst_134 = arith.constant dense<0.000000e+00> : vector<286x8xf32>
    %176 = tpu.matmul %173, %175, %cst_134 {dimension_numbers = #tpu.dot_dimension_numbers<[1], [0], [0], [1], [0, 0, 1, 1], [], []>} : vector<286x8xbf16>, vector<8x8xbf16>, vector<286x8xf32> -> vector<286x8xf32>
    %177 = arith.addf %171, %176 : vector<286x8xf32>
    %c37_135 = arith.constant 37 : index
    %c0_136 = arith.constant 0 : index
    %178 = vector.load %arg21[%c37_135, %c0_136] : memref<324x8xf32, #tpu.memory_space<vmem>>, vector<286x8xf32>
    %179 = arith.truncf %178 : vector<286x8xf32> to vector<286x8xbf16>
    %c7_137 = arith.constant 7 : index
    %c0_138 = arith.constant 0 : index
    %c0_139 = arith.constant 0 : index
    %180 = vector.load %arg14[%c7_137, %c0_138, %c0_139] : memref<9x8x8xbf16, #tpu.memory_space<vmem>>, vector<1x8x8xbf16>
    %181 = vector.shape_cast %180 : vector<1x8x8xbf16> to vector<8x8xbf16>
    %cst_140 = arith.constant dense<0.000000e+00> : vector<286x8xf32>
    %182 = tpu.matmul %179, %181, %cst_140 {dimension_numbers = #tpu.dot_dimension_numbers<[1], [0], [0], [1], [0, 0, 1, 1], [], []>} : vector<286x8xbf16>, vector<8x8xbf16>, vector<286x8xf32> -> vector<286x8xf32>
    %183 = arith.addf %177, %182 : vector<286x8xf32>
    %c38_141 = arith.constant 38 : index
    %c0_142 = arith.constant 0 : index
    %184 = vector.load %arg21[%c38_141, %c0_142] : memref<324x8xf32, #tpu.memory_space<vmem>>, vector<286x8xf32>
    %185 = arith.truncf %184 : vector<286x8xf32> to vector<286x8xbf16>
    %c8_143 = arith.constant 8 : index
    %c0_144 = arith.constant 0 : index
    %c0_145 = arith.constant 0 : index
    %186 = vector.load %arg14[%c8_143, %c0_144, %c0_145] : memref<9x8x8xbf16, #tpu.memory_space<vmem>>, vector<1x8x8xbf16>
    %187 = vector.shape_cast %186 : vector<1x8x8xbf16> to vector<8x8xbf16>
    %cst_146 = arith.constant dense<0.000000e+00> : vector<286x8xf32>
    %188 = tpu.matmul %185, %187, %cst_146 {dimension_numbers = #tpu.dot_dimension_numbers<[1], [0], [0], [1], [0, 0, 1, 1], [], []>} : vector<286x8xbf16>, vector<8x8xbf16>, vector<286x8xf32> -> vector<286x8xf32>
    %189 = arith.addf %183, %188 : vector<286x8xf32>
    %c0_147 = arith.constant 0 : index
    %c0_148 = arith.constant 0 : index
    %190 = vector.load %arg15[%c0_147, %c0_148] : memref<1x8xf32, #tpu.memory_space<vmem>>, vector<1x8xf32>
    %191 = vector.broadcast %190 : vector<1x8xf32> to vector<286x8xf32>
    %192 = arith.addf %189, %191 : vector<286x8xf32>
    %c0_149 = arith.constant 0 : index
    %c0_150 = arith.constant 0 : index
    %193 = vector.load %arg16[%c0_149, %c0_150] : memref<1x8xf32, #tpu.memory_space<vmem>>, vector<1x8xf32>
    %c0_151 = arith.constant 0 : index
    %c0_152 = arith.constant 0 : index
    %194 = vector.load %arg17[%c0_151, %c0_152] : memref<1x8xf32, #tpu.memory_space<vmem>>, vector<1x8xf32>
    %195 = vector.broadcast %0 : vector<286x1xf32> to vector<286x8xf32>
    %196 = arith.mulf %192, %195 : vector<286x8xf32>
    %cst_153 = arith.constant dense<0.000000e+00> : vector<8xf32>
    %197 = vector.multi_reduction <add>, %196, %cst_153 [0] : vector<286x8xf32> to vector<8xf32>
    %198 = vector.shape_cast %197 : vector<8xf32> to vector<1x8xf32>
    %cst_154 = arith.constant dense<0.000000e+00> : vector<1x4xf32>
    %199 = tpu.matmul %198, %1, %cst_154 {dimension_numbers = #tpu.dot_dimension_numbers<[1], [0], [0], [1], [0, 0, 1, 1], [], []>} : vector<1x8xf32>, vector<8x4xf32>, vector<1x4xf32> -> vector<1x4xf32>
    %cst_155 = arith.constant 0.001953125 : f32
    %200 = vector.broadcast %cst_155 : f32 to vector<1x4xf32>
    %201 = arith.mulf %199, %200 : vector<1x4xf32>
    %cst_156 = arith.constant dense<0.000000e+00> : vector<1x8xf32>
    %202 = tpu.matmul %201, %2, %cst_156 {dimension_numbers = #tpu.dot_dimension_numbers<[1], [0], [0], [1], [0, 0, 1, 1], [], []>} : vector<1x4xf32>, vector<4x8xf32>, vector<1x8xf32> -> vector<1x8xf32>
    %203 = vector.broadcast %202 : vector<1x8xf32> to vector<286x8xf32>
    %204 = arith.subf %192, %203 : vector<286x8xf32>
    %205 = arith.mulf %204, %204 : vector<286x8xf32>
    %206 = vector.broadcast %0 : vector<286x1xf32> to vector<286x8xf32>
    %207 = arith.mulf %205, %206 : vector<286x8xf32>
    %cst_157 = arith.constant dense<0.000000e+00> : vector<8xf32>
    %208 = vector.multi_reduction <add>, %207, %cst_157 [0] : vector<286x8xf32> to vector<8xf32>
    %209 = vector.shape_cast %208 : vector<8xf32> to vector<1x8xf32>
    %cst_158 = arith.constant dense<0.000000e+00> : vector<1x4xf32>
    %210 = tpu.matmul %209, %1, %cst_158 {dimension_numbers = #tpu.dot_dimension_numbers<[1], [0], [0], [1], [0, 0, 1, 1], [], []>} : vector<1x8xf32>, vector<8x4xf32>, vector<1x4xf32> -> vector<1x4xf32>
    %cst_159 = arith.constant 0.001953125 : f32
    %211 = vector.broadcast %cst_159 : f32 to vector<1x4xf32>
    %212 = arith.mulf %210, %211 : vector<1x4xf32>
    %cst_160 = arith.constant dense<0.000000e+00> : vector<1x8xf32>
    %213 = tpu.matmul %212, %2, %cst_160 {dimension_numbers = #tpu.dot_dimension_numbers<[1], [0], [0], [1], [0, 0, 1, 1], [], []>} : vector<1x4xf32>, vector<4x8xf32>, vector<1x8xf32> -> vector<1x8xf32>
    %cst_161 = arith.constant 9.99999974E-6 : f32
    %214 = vector.broadcast %cst_161 : f32 to vector<1x8xf32>
    %215 = arith.addf %213, %214 : vector<1x8xf32>
    %216 = math.rsqrt %215 : vector<1x8xf32>
    %217 = vector.broadcast %216 : vector<1x8xf32> to vector<286x8xf32>
    %218 = arith.mulf %204, %217 : vector<286x8xf32>
    %219 = vector.broadcast %193 : vector<1x8xf32> to vector<286x8xf32>
    %220 = arith.mulf %218, %219 : vector<286x8xf32>
    %221 = vector.broadcast %194 : vector<1x8xf32> to vector<286x8xf32>
    %222 = arith.addf %220, %221 : vector<286x8xf32>
    %cst_162 = arith.constant 0.000000e+00 : f32
    %223 = vector.broadcast %cst_162 : f32 to vector<286x8xf32>
    %224 = arith.subf %223, %222 : vector<286x8xf32>
    %225 = math.exp %224 : vector<286x8xf32>
    %cst_163 = arith.constant 1.000000e+00 : f32
    %226 = vector.broadcast %cst_163 : f32 to vector<286x8xf32>
    %227 = arith.addf %226, %225 : vector<286x8xf32>
    %228 = tpu.reciprocal %227 {approx = true} : vector<286x8xf32> -> vector<286x8xf32>
    %229 = arith.mulf %222, %228 : vector<286x8xf32>
    %c0_164 = arith.constant 0 : index
    %c19_165 = arith.constant 19 : index
    %c0_166 = arith.constant 0 : index
    %230 = vector.load %arg9[%c0_164, %c19_165, %c0_166] : memref<1x324x4xf32, #tpu.memory_space<vmem>>, vector<1x286x4xf32>
    %231 = vector.shape_cast %230 : vector<1x286x4xf32> to vector<286x4xf32>
    %232 = arith.truncf %231 : vector<286x4xf32> to vector<286x4xbf16>
    %c0_167 = arith.constant 0 : index
    %c0_168 = arith.constant 0 : index
    %233 = vector.load %arg18[%c0_167, %c0_168] : memref<4x8xbf16, #tpu.memory_space<vmem>>, vector<4x8xbf16>
    %cst_169 = arith.constant dense<0.000000e+00> : vector<286x8xf32>
    %234 = tpu.matmul %232, %233, %cst_169 {dimension_numbers = #tpu.dot_dimension_numbers<[1], [0], [0], [1], [0, 0, 1, 1], [], []>} : vector<286x4xbf16>, vector<4x8xbf16>, vector<286x8xf32> -> vector<286x8xf32>
    %c0_170 = arith.constant 0 : index
    %c0_171 = arith.constant 0 : index
    %235 = vector.load %arg19[%c0_170, %c0_171] : memref<1x8xf32, #tpu.memory_space<vmem>>, vector<1x8xf32>
    %236 = vector.broadcast %235 : vector<1x8xf32> to vector<286x8xf32>
    %237 = arith.addf %234, %236 : vector<286x8xf32>
    %238 = arith.addf %229, %237 : vector<286x8xf32>
    %c0_172 = arith.constant 0 : index
    %c0_173 = arith.constant 0 : index
    %c0_174 = arith.constant 0 : index
    %239 = vector.load %arg20[%c0_172, %c0_173, %c0_174] : memref<1x286x8xf32, #tpu.memory_space<vmem>>, vector<1x286x8xf32>
    %240 = vector.shape_cast %239 : vector<1x286x8xf32> to vector<286x8xf32>
    %241 = vector.shape_cast %238 : vector<286x8xf32> to vector<1x286x8xf32>
    tpu.vector_store %arg20[%c0_172, %c0_173, %c0_174], %241 {strides = array<i32>} : memref<1x286x8xf32, #tpu.memory_space<vmem>>, vector<1x286x8xf32>,
    return
  }
  func.func @transform_0(%arg0: i32) -> (i32, i32, i32) {
    %c0_i32 = arith.constant 0 : i32
    %c0_i32_0 = arith.constant 0 : i32
    %c0_i32_1 = arith.constant 0 : i32
    return %arg0, %c0_i32, %c0_i32_0 : i32, i32, i32
  }
  func.func @transform_1(%arg0: i32) -> (i32, i32) {
    %c0_i32 = arith.constant 0 : i32
    %c0_i32_0 = arith.constant 0 : i32
    %c0_i32_1 = arith.constant 0 : i32
    return %c0_i32, %c0_i32_0 : i32, i32
  }
  func.func @transform_2(%arg0: i32) -> (i32, i32) {
    %c0_i32 = arith.constant 0 : i32
    %c0_i32_0 = arith.constant 0 : i32
    %c0_i32_1 = arith.constant 0 : i32
    return %c0_i32, %c0_i32_0 : i32, i32
  }
  func.func @transform_3(%arg0: i32) -> (i32, i32) {
    %c0_i32 = arith.constant 0 : i32
    %c0_i32_0 = arith.constant 0 : i32
    %c0_i32_1 = arith.constant 0 : i32
    return %c0_i32, %c0_i32_0 : i32, i32
  }
  func.func @transform_4(%arg0: i32) -> (i32, i32) {
    %c0_i32 = arith.constant 0 : i32
    %c0_i32_0 = arith.constant 0 : i32
    %c0_i32_1 = arith.constant 0 : i32
    return %c0_i32, %c0_i32_0 : i32, i32
  }
  func.func @transform_5(%arg0: i32) -> (i32, i32) {
    %c0_i32 = arith.constant 0 : i32
    %c0_i32_0 = arith.constant 0 : i32
    %c0_i32_1 = arith.constant 0 : i32
    return %c0_i32, %c0_i32_0 : i32, i32
  }
  func.func @transform_6(%arg0: i32) -> (i32, i32) {
    %c0_i32 = arith.constant 0 : i32
    %c0_i32_0 = arith.constant 0 : i32
    %c0_i32_1 = arith.constant 0 : i32
    return %c0_i32, %c0_i32_0 : i32, i32
  }
  func.func @transform_7(%arg0: i32) -> (i32, i32) {
    %c0_i32 = arith.constant 0 : i32
    %c0_i32_0 = arith.constant 0 : i32
    %c0_i32_1 = arith.constant 0 : i32
    return %c0_i32, %c0_i32_0 : i32, i32
  }
  func.func @transform_8(%arg0: i32) -> (i32, i32, i32) {
    %c0_i32 = arith.constant 0 : i32
    %c0_i32_0 = arith.constant 0 : i32
    %c0_i32_1 = arith.constant 0 : i32
    return %arg0, %c0_i32, %c0_i32_0 : i32, i32, i32
  }
  func.func @transform_9(%arg0: i32) -> (i32, i32, i32) {
    %c0_i32 = arith.constant 0 : i32
    %c0_i32_0 = arith.constant 0 : i32
    %c0_i32_1 = arith.constant 0 : i32
    %c0_i32_2 = arith.constant 0 : i32
    return %c0_i32, %c0_i32_0, %c0_i32_1 : i32, i32, i32
  }
  func.func @transform_10(%arg0: i32) -> (i32, i32) {
    %c0_i32 = arith.constant 0 : i32
    %c0_i32_0 = arith.constant 0 : i32
    %c0_i32_1 = arith.constant 0 : i32
    return %c0_i32, %c0_i32_0 : i32, i32
  }
  func.func @transform_11(%arg0: i32) -> (i32, i32) {
    %c0_i32 = arith.constant 0 : i32
    %c0_i32_0 = arith.constant 0 : i32
    %c0_i32_1 = arith.constant 0 : i32
    return %c0_i32, %c0_i32_0 : i32, i32
  }
  func.func @transform_12(%arg0: i32) -> (i32, i32) {
    %c0_i32 = arith.constant 0 : i32
    %c0_i32_0 = arith.constant 0 : i32
    %c0_i32_1 = arith.constant 0 : i32
    return %c0_i32, %c0_i32_0 : i32, i32
  }
  func.func @transform_13(%arg0: i32) -> (i32, i32, i32) {
    %c0_i32 = arith.constant 0 : i32
    %c0_i32_0 = arith.constant 0 : i32
    %c0_i32_1 = arith.constant 0 : i32
    %c0_i32_2 = arith.constant 0 : i32
    return %c0_i32, %c0_i32_0, %c0_i32_1 : i32, i32, i32
  }
  func.func @transform_14(%arg0: i32) -> (i32, i32) {
    %c0_i32 = arith.constant 0 : i32
    %c0_i32_0 = arith.constant 0 : i32
    %c0_i32_1 = arith.constant 0 : i32
    return %c0_i32, %c0_i32_0 : i32, i32
  }
  func.func @transform_15(%arg0: i32) -> (i32, i32) {
    %c0_i32 = arith.constant 0 : i32
    %c0_i32_0 = arith.constant 0 : i32
    %c0_i32_1 = arith.constant 0 : i32
    return %c0_i32, %c0_i32_0 : i32, i32
  }
  func.func @transform_16(%arg0: i32) -> (i32, i32) {
    %c0_i32 = arith.constant 0 : i32
    %c0_i32_0 = arith.constant 0 : i32
    %c0_i32_1 = arith.constant 0 : i32
    return %c0_i32, %c0_i32_0 : i32, i32
  }
  func.func @transform_17(%arg0: i32) -> (i32, i32) {
    %c0_i32 = arith.constant 0 : i32
    %c0_i32_0 = arith.constant 0 : i32
    %c0_i32_1 = arith.constant 0 : i32
    return %c0_i32, %c0_i32_0 : i32, i32
  }
  func.func @transform_18(%arg0: i32) -> (i32, i32) {
    %c0_i32 = arith.constant 0 : i32
    %c0_i32_0 = arith.constant 0 : i32
    %c0_i32_1 = arith.constant 0 : i32
    return %c0_i32, %c0_i32_0 : i32, i32
  }
  func.func @transform_19(%arg0: i32) -> (i32, i32, i32) {
    %c0_i32 = arith.constant 0 : i32
    %c0_i32_0 = arith.constant 0 : i32
    %c0_i32_1 = arith.constant 0 : i32
    return %arg0, %c0_i32, %c0_i32_0 : i32, i32, i32
  }
}

</mosaic_0001>

<llo_original>
// kernel: resnet_block_forward.1
$region0: #{resnet_block_forward.1}
  #allocation0 [shape = 'u32[]', space=smem, size = 0x4, offset = 0x4, fixed_abs, tag = 'smem constant byte address 0x4 - core index']
  #allocation1 [shape = 'u32[144,128]{1,0:T(1,128)}', space=vmem, size = 0x12000, scoped, tag = 'internal scratch']
  #allocation2 [shape = 'f32[324,8]{1,0:T(8,128)}', space=vmem, size = 0x29000, scoped, tag = 'scratch operand']
  %s0 = inlined_call_operand.vmem [shape: f32[2,1,16], index: 0, kind: input, shape index: {}]
  %s1 = inlined_call_operand.vmem [shape: f32[16,8], index: 1, kind: input, shape index: {}]
  %s2 = inlined_call_operand.vmem [shape: f32[16,8], index: 2, kind: input, shape index: {}]
  %s3 = inlined_call_operand.vmem [shape: f32[1,8], index: 3, kind: input, shape index: {}]
  %s4 = inlined_call_operand.vmem [shape: f32[1,8], index: 4, kind: input, shape index: {}]
  %s5 = inlined_call_operand.vmem [shape: f32[286,1], index: 5, kind: input, shape index: {}]
  %s6 = inlined_call_operand.vmem [shape: f32[8,4], index: 6, kind: input, shape index: {}]
  %s7 = inlined_call_operand.vmem [shape: f32[4,8], index: 7, kind: input, shape index: {}]
  %s8 = inlined_call_operand.vmem [shape: f32[2,324,4], index: 8, kind: input, shape index: {}]
  %s9 = inlined_call_operand.vmem [shape: bf16[9,4,8], index: 9, kind: input, shape index: {}]
  %s10 = inlined_call_operand.vmem [shape: f32[1,8], index: 10, kind: input, shape index: {}]
  %s11 = inlined_call_operand.vmem [shape: f32[1,8], index: 11, kind: input, shape index: {}]
  %s12 = inlined_call_operand.vmem [shape: f32[1,8], index: 12, kind: input, shape index: {}]
  %s13 = inlined_call_operand.vmem [shape: bf16[9,8,8], index: 13, kind: input, shape index: {}]
  %s14 = inlined_call_operand.vmem [shape: f32[1,8], index: 14, kind: input, shape index: {}]
  %s15 = inlined_call_operand.vmem [shape: f32[1,8], index: 15, kind: input, shape index: {}]
  %s16 = inlined_call_operand.vmem [shape: f32[1,8], index: 16, kind: input, shape index: {}]
  %s17 = inlined_call_operand.vmem [shape: bf16[4,8], index: 17, kind: input, shape index: {}]
  %s18 = inlined_call_operand.vmem [shape: f32[1,8], index: 18, kind: input, shape index: {}]
  %s19 = inlined_call_operand.vmem [shape: f32[2,286,8], index: 19, kind: output, shape index: {}]
  %s20 = sld [smem:[#allocation0]]
  $region109: #{resnet_block_forward.1} parent=0
    _
  %s22 = ssub.s32 1, %s20
  %s23 = scalar_select 0, %s22, %s20
  loop: start=0, step=1, limit=4
  $region2: #{resnet_block_forward.1} parent=0 // loop_pre_header
    _
  $region3: #{resnet_block_forward.1} parent=0 // loop_header
    %s25 = sphi 0, %s29
    %p26 = scmp.ge.s32.totalorder %s25, 4
    %s35 = sphi 0, %s37
    %s38 = sphi 0, %s35
    %s39 = sphi 0, %s38
    %s55 = sphi 0, %s39
    %s59 = sphi 0, %s59
    %s61 = sphi 0, %s59
    %s62 = sphi 0, %s61
    %s76 = sphi 0, %s62
    %s80 = sphi 0, %s80
    %s82 = sphi 0, %s80
    %s83 = sphi 0, %s82
    %s97 = sphi 0, %s83
    %s101 = sphi 0, %s101
    %s103 = sphi 0, %s101
    %s104 = sphi 0, %s103
    %s118 = sphi 0, %s104
    %s122 = sphi 0, %s122
    %s124 = sphi 0, %s122
    %s125 = sphi 0, %s124
    %s139 = sphi 0, %s125
    %s143 = sphi 0, %s143
    %s145 = sphi 0, %s143
    %s146 = sphi 0, %s145
    %s160 = sphi 0, %s146
    %s164 = sphi 0, %s164
    %s166 = sphi 0, %s164
    %s167 = sphi 0, %s166
    %s181 = sphi 0, %s167
    %s185 = sphi 0, %s185
    %s187 = sphi 0, %s185
    %s188 = sphi 0, %s187
    %s202 = sphi 0, %s188
    %s208 = sphi 0, %s210
    %s211 = sphi 0, %s208
    %s212 = sphi 0, %s211
    %s228 = sphi 0, %s212
    %s232 = sphi 0, %s232
    %s234 = sphi 0, %s232
    %s235 = sphi 0, %s234
    %s249 = sphi 0, %s235
    %s253 = sphi 0, %s253
    %s255 = sphi 0, %s253
    %s256 = sphi 0, %s255
    %s270 = sphi 0, %s256
    %s274 = sphi 0, %s274
    %s276 = sphi 0, %s274
    %s277 = sphi 0, %s276
    %s291 = sphi 0, %s277
    %s295 = sphi 0, %s295
    %s297 = sphi 0, %s295
    %s298 = sphi 0, %s297
    %s312 = sphi 0, %s298
    %s316 = sphi 0, %s316
    %s318 = sphi 0, %s316
    %s319 = sphi 0, %s318
    %s333 = sphi 0, %s319
    %s337 = sphi 0, %s337
    %s339 = sphi 0, %s337
    %s340 = sphi 0, %s339
    %s354 = sphi 0, %s340
    %s358 = sphi 0, %s358
    %s360 = sphi 0, %s358
    %s361 = sphi 0, %s360
    %s375 = sphi 0, %s361
    %s379 = sphi 0, %s379
    %s381 = sphi 0, %s379
    %s382 = sphi 0, %s381
    %s396 = sphi 0, %s382
    %s400 = sphi 0, %s400
    %s402 = sphi 0, %s400
    %s403 = sphi 0, %s402
    %s417 = sphi 0, %s403
    %s421 = sphi 0, %s421
    %s423 = sphi 0, %s421
    %s424 = sphi 0, %s423
    %s438 = sphi 0, %s424
    %s444 = sphi 0, %s446
    %s447 = sphi 0, %s444
    %s448 = sphi 0, %s447
    %s464 = sphi 0, %s448
  $region4: #{resnet_block_forward.1} parent=0 // loop_header_branch
    %28 = sbr.rel (%p26) target = $region8
  $region5: #{resnet_block_forward.1} parent=0 // loop_body
    %s30 = ssub.s32 %s25, 1
    %s31 = ssub.s32 %s25, 2
    %s32 = sadd.s32 %s25, 1
    %s33 = ssub.s32 %s25, %s32
    %p34 = scmp.eq.s32.totalorder %s33, 0
    %s36 = sadd.s32 %s35, 1
    %s37 = scalar_select %p34, %s35, %s36
    %p40 = pneg %p34
    %p41 = scmp.eq.s32.totalorder %s25, 1
    %p42 = por %p40, %p41
    %p43 = scmp.ne.s32.totalorder %s35, %s38
    %p44 = scmp.eq.s32.totalorder %s25, 0
    %p45 = por %p43, %p44
    %p46 = scmp.ne.s32.totalorder %s35, %s38
    %p47 = scmp.eq.s32.totalorder %s30, 1
    %p48 = por %p46, %p47
    %p49 = scmp.ne.s32.totalorder %s38, %s39
    %p50 = scmp.eq.s32.totalorder %s30, 0
    %p51 = por %p49, %p50
    %p52 = scmp.ne.s32.totalorder %s38, %s39
    %p53 = scmp.eq.s32.totalorder %s31, 1
    %p54 = por %p52, %p53
    %p56 = scmp.ne.s32.totalorder %s39, %s55
    %p57 = scmp.eq.s32.totalorder %s31, 0
    %p58 = por %p56, %p57
    %s60 = sadd.s32 %s59, 1
    %p63 = scmp.eq.s32.totalorder %s25, 1
    %p64 = scmp.ne.s32.totalorder %s59, %s61
    %p65 = scmp.eq.s32.totalorder %s25, 0
    %p66 = por %p64, %p65
    %p67 = scmp.ne.s32.totalorder %s59, %s61
    %p68 = scmp.eq.s32.totalorder %s30, 1
    %p69 = por %p67, %p68
    %p70 = scmp.ne.s32.totalorder %s61, %s62
    %p71 = scmp.eq.s32.totalorder %s30, 0
    %p72 = por %p70, %p71
    %p73 = scmp.ne.s32.totalorder %s61, %s62
    %p74 = scmp.eq.s32.totalorder %s31, 1
    %p75 = por %p73, %p74
    %p77 = scmp.ne.s32.totalorder %s62, %s76
    %p78 = scmp.eq.s32.totalorder %s31, 0
    %p79 = por %p77, %p78
    %s81 = sadd.s32 %s80, 1
    %p84 = scmp.eq.s32.totalorder %s25, 1
    %p85 = scmp.ne.s32.totalorder %s80, %s82
    %p86 = scmp.eq.s32.totalorder %s25, 0
    %p87 = por %p85, %p86
    %p88 = scmp.ne.s32.totalorder %s80, %s82
    %p89 = scmp.eq.s32.totalorder %s30, 1
    %p90 = por %p88, %p89
    %p91 = scmp.ne.s32.totalorder %s82, %s83
    %p92 = scmp.eq.s32.totalorder %s30, 0
    %p93 = por %p91, %p92
    %p94 = scmp.ne.s32.totalorder %s82, %s83
    %p95 = scmp.eq.s32.totalorder %s31, 1
    %p96 = por %p94, %p95
    %p98 = scmp.ne.s32.totalorder %s83, %s97
    %p99 = scmp.eq.s32.totalorder %s31, 0
    %p100 = por %p98, %p99
    %s102 = sadd.s32 %s101, 1
    %p105 = scmp.eq.s32.totalorder %s25, 1
    %p106 = scmp.ne.s32.totalorder %s101, %s103
    %p107 = scmp.eq.s32.totalorder %s25, 0
    %p108 = por %p106, %p107
    %p109 = scmp.ne.s32.totalorder %s101, %s103
    %p110 = scmp.eq.s32.totalorder %s30, 1
    %p111 = por %p109, %p110
    %p112 = scmp.ne.s32.totalorder %s103, %s104
    %p113 = scmp.eq.s32.totalorder %s30, 0
    %p114 = por %p112, %p113
    %p115 = scmp.ne.s32.totalorder %s103, %s104
    %p116 = scmp.eq.s32.totalorder %s31, 1
    %p117 = por %p115, %p116
    %p119 = scmp.ne.s32.totalorder %s104, %s118
    %p120 = scmp.eq.s32.totalorder %s31, 0
    %p121 = por %p119, %p120
    %s123 = sadd.s32 %s122, 1
    %p126 = scmp.eq.s32.totalorder %s25, 1
    %p127 = scmp.ne.s32.totalorder %s122, %s124
    %p128 = scmp.eq.s32.totalorder %s25, 0
    %p129 = por %p127, %p128
    %p130 = scmp.ne.s32.totalorder %s122, %s124
    %p131 = scmp.eq.s32.totalorder %s30, 1
    %p132 = por %p130, %p131
    %p133 = scmp.ne.s32.totalorder %s124, %s125
    %p134 = scmp.eq.s32.totalorder %s30, 0
    %p135 = por %p133, %p134
    %p136 = scmp.ne.s32.totalorder %s124, %s125
    %p137 = scmp.eq.s32.totalorder %s31, 1
    %p138 = por %p136, %p137
    %p140 = scmp.ne.s32.totalorder %s125, %s139
    %p141 = scmp.eq.s32.totalorder %s31, 0
    %p142 = por %p140, %p141
    %s144 = sadd.s32 %s143, 1
    %p147 = scmp.eq.s32.totalorder %s25, 1
    %p148 = scmp.ne.s32.totalorder %s143, %s145
    %p149 = scmp.eq.s32.totalorder %s25, 0
    %p150 = por %p148, %p149
    %p151 = scmp.ne.s32.totalorder %s143, %s145
    %p152 = scmp.eq.s32.totalorder %s30, 1
    %p153 = por %p151, %p152
    %p154 = scmp.ne.s32.totalorder %s145, %s146
    %p155 = scmp.eq.s32.totalorder %s30, 0
    %p156 = por %p154, %p155
    %p157 = scmp.ne.s32.totalorder %s145, %s146
    %p158 = scmp.eq.s32.totalorder %s31, 1
    %p159 = por %p157, %p158
    %p161 = scmp.ne.s32.totalorder %s146, %s160
    %p162 = scmp.eq.s32.totalorder %s31, 0
    %p163 = por %p161, %p162
    %s165 = sadd.s32 %s164, 1
    %p168 = scmp.eq.s32.totalorder %s25, 1
    %p169 = scmp.ne.s32.totalorder %s164, %s166
    %p170 = scmp.eq.s32.totalorder %s25, 0
    %p171 = por %p169, %p170
    %p172 = scmp.ne.s32.totalorder %s164, %s166
    %p173 = scmp.eq.s32.totalorder %s30, 1
    %p174 = por %p172, %p173
    %p175 = scmp.ne.s32.totalorder %s166, %s167
    %p176 = scmp.eq.s32.totalorder %s30, 0
    %p177 = por %p175, %p176
    %p178 = scmp.ne.s32.totalorder %s166, %s167
    %p179 = scmp.eq.s32.totalorder %s31, 1
    %p180 = por %p178, %p179
    %p182 = scmp.ne.s32.totalorder %s167, %s181
    %p183 = scmp.eq.s32.totalorder %s31, 0
    %p184 = por %p182, %p183
    %s186 = sadd.s32 %s185, 1
    %p189 = scmp.eq.s32.totalorder %s25, 1
    %p190 = scmp.ne.s32.totalorder %s185, %s187
    %p191 = scmp.eq.s32.totalorder %s25, 0
    %p192 = por %p190, %p191
    %p193 = scmp.ne.s32.totalorder %s185, %s187
    %p194 = scmp.eq.s32.totalorder %s30, 1
    %p195 = por %p193, %p194
    %p196 = scmp.ne.s32.totalorder %s187, %s188
    %p197 = scmp.eq.s32.totalorder %s30, 0
    %p198 = por %p196, %p197
    %p199 = scmp.ne.s32.totalorder %s187, %s188
    %p200 = scmp.eq.s32.totalorder %s31, 1
    %p201 = por %p199, %p200
    %p203 = scmp.ne.s32.totalorder %s188, %s202
    %p204 = scmp.eq.s32.totalorder %s31, 0
    %p205 = por %p203, %p204
    %s206 = ssub.s32 %s25, %s32
    %p207 = scmp.eq.s32.totalorder %s206, 0
    %s209 = sadd.s32 %s208, 1
    %s210 = scalar_select %p207, %s208, %s209
    %p213 = pneg %p207
    %p214 = scmp.eq.s32.totalorder %s25, 1
    %p215 = por %p213, %p214
    %p216 = scmp.ne.s32.totalorder %s208, %s211
    %p217 = scmp.eq.s32.totalorder %s25, 0
    %p218 = por %p216, %p217
    %p219 = scmp.ne.s32.totalorder %s208, %s211
    %p220 = scmp.eq.s32.totalorder %s30, 1
    %p221 = por %p219, %p220
    %p222 = scmp.ne.s32.totalorder %s211, %s212
    %p223 = scmp.eq.s32.totalorder %s30, 0
    %p224 = por %p222, %p223
    %p225 = scmp.ne.s32.totalorder %s211, %s212
    %p226 = scmp.eq.s32.totalorder %s31, 1
    %p227 = por %p225, %p226
    %p229 = scmp.ne.s32.totalorder %s212, %s228
    %p230 = scmp.eq.s32.totalorder %s31, 0
    %p231 = por %p229, %p230
    %s233 = sadd.s32 %s232, 1
    %p236 = scmp.eq.s32.totalorder %s25, 1
    %p237 = scmp.ne.s32.totalorder %s232, %s234
    %p238 = scmp.eq.s32.totalorder %s25, 0
    %p239 = por %p237, %p238
    %p240 = scmp.ne.s32.totalorder %s232, %s234
    %p241 = scmp.eq.s32.totalorder %s30, 1
    %p242 = por %p240, %p241
    %p243 = scmp.ne.s32.totalorder %s234, %s235
    %p244 = scmp.eq.s32.totalorder %s30, 0
    %p245 = por %p243, %p244
    %p246 = scmp.ne.s32.totalorder %s234, %s235
    %p247 = scmp.eq.s32.totalorder %s31, 1
    %p248 = por %p246, %p247
    %p250 = scmp.ne.s32.totalorder %s235, %s249
    %p251 = scmp.eq.s32.totalorder %s31, 0
    %p252 = por %p250, %p251
    %s254 = sadd.s32 %s253, 1
    %p257 = scmp.eq.s32.totalorder %s25, 1
    %p258 = scmp.ne.s32.totalorder %s253, %s255
    %p259 = scmp.eq.s32.totalorder %s25, 0
    %p260 = por %p258, %p259
    %p261 = scmp.ne.s32.totalorder %s253, %s255
    %p262 = scmp.eq.s32.totalorder %s30, 1
    %p263 = por %p261, %p262
    %p264 = scmp.ne.s32.totalorder %s255, %s256
    %p265 = scmp.eq.s32.totalorder %s30, 0
    %p266 = por %p264, %p265
    %p267 = scmp.ne.s32.totalorder %s255, %s256
    %p268 = scmp.eq.s32.totalorder %s31, 1
    %p269 = por %p267, %p268
    %p271 = scmp.ne.s32.totalorder %s256, %s270
    %p272 = scmp.eq.s32.totalorder %s31, 0
    %p273 = por %p271, %p272
    %s275 = sadd.s32 %s274, 1
    %p278 = scmp.eq.s32.totalorder %s25, 1
    %p279 = scmp.ne.s32.totalorder %s274, %s276
    %p280 = scmp.eq.s32.totalorder %s25, 0
    %p281 = por %p279, %p280
    %p282 = scmp.ne.s32.totalorder %s274, %s276
    %p283 = scmp.eq.s32.totalorder %s30, 1
    %p284 = por %p282, %p283
    %p285 = scmp.ne.s32.totalorder %s276, %s277
    %p286 = scmp.eq.s32.totalorder %s30, 0
    %p287 = por %p285, %p286
    %p288 = scmp.ne.s32.totalorder %s276, %s277
    %p289 = scmp.eq.s32.totalorder %s31, 1
    %p290 = por %p288, %p289
    %p292 = scmp.ne.s32.totalorder %s277, %s291
    %p293 = scmp.eq.s32.totalorder %s31, 0
    %p294 = por %p292, %p293
    %s296 = sadd.s32 %s295, 1
    %p299 = scmp.eq.s32.totalorder %s25, 1
    %p300 = scmp.ne.s32.totalorder %s295, %s297
    %p301 = scmp.eq.s32.totalorder %s25, 0
    %p302 = por %p300, %p301
    %p303 = scmp.ne.s32.totalorder %s295, %s297
    %p304 = scmp.eq.s32.totalorder %s30, 1
    %p305 = por %p303, %p304
    %p306 = scmp.ne.s32.totalorder %s297, %s298
    %p307 = scmp.eq.s32.totalorder %s30, 0
    %p308 = por %p306, %p307
    %p309 = scmp.ne.s32.totalorder %s297, %s298
    %p310 = scmp.eq.s32.totalorder %s31, 1
    %p311 = por %p309, %p310
    %p313 = scmp.ne.s32.totalorder %s298, %s312
    %p314 = scmp.eq.s32.totalorder %s31, 0
    %p315 = por %p313, %p314
    %s317 = sadd.s32 %s316, 1
    %p320 = scmp.eq.s32.totalorder %s25, 1
    %p321 = scmp.ne.s32.totalorder %s316, %s318
    %p322 = scmp.eq.s32.totalorder %s25, 0
    %p323 = por %p321, %p322
    %p324 = scmp.ne.s32.totalorder %s316, %s318
    %p325 = scmp.eq.s32.totalorder %s30, 1
    %p326 = por %p324, %p325
    %p327 = scmp.ne.s32.totalorder %s318, %s319
    %p328 = scmp.eq.s32.totalorder %s30, 0
    %p329 = por %p327, %p328
    %p330 = scmp.ne.s32.totalorder %s318, %s319
    %p331 = scmp.eq.s32.totalorder %s31, 1
    %p332 = por %p330, %p331
    %p334 = scmp.ne.s32.totalorder %s319, %s333
    %p335 = scmp.eq.s32.totalorder %s31, 0
    %p336 = por %p334, %p335
    %s338 = sadd.s32 %s337, 1
    %p341 = scmp.eq.s32.totalorder %s25, 1
    %p342 = scmp.ne.s32.totalorder %s337, %s339
    %p343 = scmp.eq.s32.totalorder %s25, 0
    %p344 = por %p342, %p343
    %p345 = scmp.ne.s32.totalorder %s337, %s339
    %p346 = scmp.eq.s32.totalorder %s30, 1
    %p347 = por %p345, %p346
    %p348 = scmp.ne.s32.totalorder %s339, %s340
    %p349 = scmp.eq.s32.totalorder %s30, 0
    %p350 = por %p348, %p349
    %p351 = scmp.ne.s32.totalorder %s339, %s340
    %p352 = scmp.eq.s32.totalorder %s31, 1
    %p353 = por %p351, %p352
    %p355 = scmp.ne.s32.totalorder %s340, %s354
    %p356 = scmp.eq.s32.totalorder %s31, 0
    %p357 = por %p355, %p356
    %s359 = sadd.s32 %s358, 1
    %p362 = scmp.eq.s32.totalorder %s25, 1
    %p363 = scmp.ne.s32.totalorder %s358, %s360
    %p364 = scmp.eq.s32.totalorder %s25, 0
    %p365 = por %p363, %p364
    %p366 = scmp.ne.s32.totalorder %s358, %s360
    %p367 = scmp.eq.s32.totalorder %s30, 1
    %p368 = por %p366, %p367
    %p369 = scmp.ne.s32.totalorder %s360, %s361
    %p370 = scmp.eq.s32.totalorder %s30, 0
    %p371 = por %p369, %p370
    %p372 = scmp.ne.s32.totalorder %s360, %s361
    %p373 = scmp.eq.s32.totalorder %s31, 1
    %p374 = por %p372, %p373
    %p376 = scmp.ne.s32.totalorder %s361, %s375
    %p377 = scmp.eq.s32.totalorder %s31, 0
    %p378 = por %p376, %p377
    %s380 = sadd.s32 %s379, 1
    %p383 = scmp.eq.s32.totalorder %s25, 1
    %p384 = scmp.ne.s32.totalorder %s379, %s381
    %p385 = scmp.eq.s32.totalorder %s25, 0
    %p386 = por %p384, %p385
    %p387 = scmp.ne.s32.totalorder %s379, %s381
    %p388 = scmp.eq.s32.totalorder %s30, 1
    %p389 = por %p387, %p388
    %p390 = scmp.ne.s32.totalorder %s381, %s382
    %p391 = scmp.eq.s32.totalorder %s30, 0
    %p392 = por %p390, %p391
    %p393 = scmp.ne.s32.totalorder %s381, %s382
    %p394 = scmp.eq.s32.totalorder %s31, 1
    %p395 = por %p393, %p394
    %p397 = scmp.ne.s32.totalorder %s382, %s396
    %p398 = scmp.eq.s32.totalorder %s31, 0
    %p399 = por %p397, %p398
    %s401 = sadd.s32 %s400, 1
    %p404 = scmp.eq.s32.totalorder %s25, 1
    %p405 = scmp.ne.s32.totalorder %s400, %s402
    %p406 = scmp.eq.s32.totalorder %s25, 0
    %p407 = por %p405, %p406
    %p408 = scmp.ne.s32.totalorder %s400, %s402
    %p409 = scmp.eq.s32.totalorder %s30, 1
    %p410 = por %p408, %p409
    %p411 = scmp.ne.s32.totalorder %s402, %s403
    %p412 = scmp.eq.s32.totalorder %s30, 0
    %p413 = por %p411, %p412
    %p414 = scmp.ne.s32.totalorder %s402, %s403
    %p415 = scmp.eq.s32.totalorder %s31, 1
    %p416 = por %p414, %p415
    %p418 = scmp.ne.s32.totalorder %s403, %s417
    %p419 = scmp.eq.s32.totalorder %s31, 0
    %p420 = por %p418, %p419
    %s422 = sadd.s32 %s421, 1
    %p425 = scmp.eq.s32.totalorder %s25, 1
    %p426 = scmp.ne.s32.totalorder %s421, %s423
    %p427 = scmp.eq.s32.totalorder %s25, 0
    %p428 = por %p426, %p427
    %p429 = scmp.ne.s32.totalorder %s421, %s423
    %p430 = scmp.eq.s32.totalorder %s30, 1
    %p431 = por %p429, %p430
    %p432 = scmp.ne.s32.totalorder %s423, %s424
    %p433 = scmp.eq.s32.totalorder %s30, 0
    %p434 = por %p432, %p433
    %p435 = scmp.ne.s32.totalorder %s423, %s424
    %p436 = scmp.eq.s32.totalorder %s31, 1
    %p437 = por %p435, %p436
    %p439 = scmp.ne.s32.totalorder %s424, %s438
    %p440 = scmp.eq.s32.totalorder %s31, 0
    %p441 = por %p439, %p440
    %s442 = ssub.s32 %s25, %s32
    %p443 = scmp.eq.s32.totalorder %s442, 0
    %s445 = sadd.s32 %s444, 1
    %s446 = scalar_select %p443, %s444, %s445
    %p449 = pneg %p443
    %p450 = scmp.eq.s32.totalorder %s25, 1
    %p451 = por %p449, %p450
    %p452 = scmp.ne.s32.totalorder %s444, %s447
    %p453 = scmp.eq.s32.totalorder %s25, 0
    %p454 = por %p452, %p453
    %p455 = scmp.ne.s32.totalorder %s444, %s447
    %p456 = scmp.eq.s32.totalorder %s30, 1
    %p457 = por %p455, %p456
    %p458 = scmp.ne.s32.totalorder %s447, %s448
    %p459 = scmp.eq.s32.totalorder %s30, 0
    %p460 = por %p458, %p459
    %p461 = scmp.ne.s32.totalorder %s447, %s448
    %p462 = scmp.eq.s32.totalorder %s31, 1
    %p463 = por %p461, %p462
    %p465 = scmp.ne.s32.totalorder %s448, %s464
    %p466 = scmp.eq.s32.totalorder %s31, 0
    %p467 = por %p465, %p466
    %p468 = scmp.le.s32.totalorder 1, %s25
    %p469 = scmp.lt.s32.totalorder %s25, 3
    %p470 = pnand %p468, %p469
    %p471 = pneg %p470
    // Predicated region
    $region9: #{resnet_block_forward.1} parent=5 // pred_check
      _
    $region10: #{resnet_block_forward.1} parent=5 // pred_check_branch
      %473 = sbr.rel (%p470) target = $region12
    $region11: #{resnet_block_forward.1} parent=5 // pred_region
      %s474 = ssub.s32 %s25, 1
      // Predicated region
      $region13: #{resnet_block_forward.1} parent=11 // pred_check
        %p475 = pneg %p72
      $region14: #{resnet_block_forward.1} parent=11 // pred_check_branch
        %477 = sbr.rel (%p475) target = $region16
      $region15: #{resnet_block_forward.1} parent=11 // pred_region
        _
      $region16: #{resnet_block_forward.1} parent=11 // pred_fallthru
        _
      // Predicated region
      $region17: #{resnet_block_forward.1} parent=11 // pred_check
        %p478 = pneg %p93
      $region18: #{resnet_block_forward.1} parent=11 // pred_check_branch
        %480 = sbr.rel (%p478) target = $region20
      $region19: #{resnet_block_forward.1} parent=11 // pred_region
        _
      $region20: #{resnet_block_forward.1} parent=11 // pred_fallthru
        _
      // Predicated region
      $region21: #{resnet_block_forward.1} parent=11 // pred_check
        %p481 = pneg %p114
      $region22: #{resnet_block_forward.1} parent=11 // pred_check_branch
        %483 = sbr.rel (%p481) target = $region24
      $region23: #{resnet_block_forward.1} parent=11 // pred_region
        _
      $region24: #{resnet_block_forward.1} parent=11 // pred_fallthru
        _
      // Predicated region
      $region25: #{resnet_block_forward.1} parent=11 // pred_check
        %p484 = pneg %p135
      $region26: #{resnet_block_forward.1} parent=11 // pred_check_branch
        %486 = sbr.rel (%p484) target = $region28
      $region27: #{resnet_block_forward.1} parent=11 // pred_region
        _
      $region28: #{resnet_block_forward.1} parent=11 // pred_fallthru
        _
      // Predicated region
      $region29: #{resnet_block_forward.1} parent=11 // pred_check
        %p487 = pneg %p156
      $region30: #{resnet_block_forward.1} parent=11 // pred_check_branch
        %489 = sbr.rel (%p487) target = $region32
      $region31: #{resnet_block_forward.1} parent=11 // pred_region
        _
      $region32: #{resnet_block_forward.1} parent=11 // pred_fallthru
        _
      // Predicated region
      $region33: #{resnet_block_forward.1} parent=11 // pred_check
        %p490 = pneg %p177
      $region34: #{resnet_block_forward.1} parent=11 // pred_check_branch
        %492 = sbr.rel (%p490) target = $region36
      $region35: #{resnet_block_forward.1} parent=11 // pred_region
        _
      $region36: #{resnet_block_forward.1} parent=11 // pred_fallthru
        _
      // Predicated region
      $region37: #{resnet_block_forward.1} parent=11 // pred_check
        %p493 = pneg %p198
      $region38: #{resnet_block_forward.1} parent=11 // pred_check_branch
        %495 = sbr.rel (%p493) target = $region40
      $region39: #{resnet_block_forward.1} parent=11 // pred_region
        _
      $region40: #{resnet_block_forward.1} parent=11 // pred_fallthru
        _
      // Predicated region
      $region41: #{resnet_block_forward.1} parent=11 // pred_check
        %p496 = pneg %p245
      $region42: #{resnet_block_forward.1} parent=11 // pred_check_branch
        %498 = sbr.rel (%p496) target = $region44
      $region43: #{resnet_block_forward.1} parent=11 // pred_region
        _
      $region44: #{resnet_block_forward.1} parent=11 // pred_fallthru
        _
      // Predicated region
      $region45: #{resnet_block_forward.1} parent=11 // pred_check
        %p499 = pneg %p266
      $region46: #{resnet_block_forward.1} parent=11 // pred_check_branch
        %501 = sbr.rel (%p499) target = $region48
      $region47: #{resnet_block_forward.1} parent=11 // pred_region
        _
      $region48: #{resnet_block_forward.1} parent=11 // pred_fallthru
        _
      // Predicated region
      $region49: #{resnet_block_forward.1} parent=11 // pred_check
        %p502 = pneg %p287
      $region50: #{resnet_block_forward.1} parent=11 // pred_check_branch
        %504 = sbr.rel (%p502) target = $region52
      $region51: #{resnet_block_forward.1} parent=11 // pred_region
        _
      $region52: #{resnet_block_forward.1} parent=11 // pred_fallthru
        _
      // Predicated region
      $region53: #{resnet_block_forward.1} parent=11 // pred_check
        %p505 = pneg %p308
      $region54: #{resnet_block_forward.1} parent=11 // pred_check_branch
        %507 = sbr.rel (%p505) target = $region56
      $region55: #{resnet_block_forward.1} parent=11 // pred_region
        _
      $region56: #{resnet_block_forward.1} parent=11 // pred_fallthru
        _
      // Predicated region
      $region57: #{resnet_block_forward.1} parent=11 // pred_check
        %p508 = pneg %p329
      $region58: #{resnet_block_forward.1} parent=11 // pred_check_branch
        %510 = sbr.rel (%p508) target = $region60
      $region59: #{resnet_block_forward.1} parent=11 // pred_region
        _
      $region60: #{resnet_block_forward.1} parent=11 // pred_fallthru
        _
      // Predicated region
      $region61: #{resnet_block_forward.1} parent=11 // pred_check
        %p511 = pneg %p350
      $region62: #{resnet_block_forward.1} parent=11 // pred_check_branch
        %513 = sbr.rel (%p511) target = $region64
      $region63: #{resnet_block_forward.1} parent=11 // pred_region
        _
      $region64: #{resnet_block_forward.1} parent=11 // pred_fallthru
        _
      // Predicated region
      $region65: #{resnet_block_forward.1} parent=11 // pred_check
        %p514 = pneg %p371
      $region66: #{resnet_block_forward.1} parent=11 // pred_check_branch
        %516 = sbr.rel (%p514) target = $region68
      $region67: #{resnet_block_forward.1} parent=11 // pred_region
        _
      $region68: #{resnet_block_forward.1} parent=11 // pred_fallthru
        _
      // Predicated region
      $region69: #{resnet_block_forward.1} parent=11 // pred_check
        %p517 = pneg %p392
      $region70: #{resnet_block_forward.1} parent=11 // pred_check_branch
        %519 = sbr.rel (%p517) target = $region72
      $region71: #{resnet_block_forward.1} parent=11 // pred_region
        _
      $region72: #{resnet_block_forward.1} parent=11 // pred_fallthru
        _
      // Predicated region
      $region73: #{resnet_block_forward.1} parent=11 // pred_check
        %p520 = pneg %p413
      $region74: #{resnet_block_forward.1} parent=11 // pred_check_branch
        %522 = sbr.rel (%p520) target = $region76
      $region75: #{resnet_block_forward.1} parent=11 // pred_region
        _
      $region76: #{resnet_block_forward.1} parent=11 // pred_fallthru
        _
      // Predicated region
      $region77: #{resnet_block_forward.1} parent=11 // pred_check
        %p523 = pneg %p434
      $region78: #{resnet_block_forward.1} parent=11 // pred_check_branch
        %525 = sbr.rel (%p523) target = $region80
      $region79: #{resnet_block_forward.1} parent=11 // pred_region
        _
      $region80: #{resnet_block_forward.1} parent=11 // pred_fallthru
        _
    $region12: #{resnet_block_forward.1} parent=5 // pred_fallthru
      _
    %p526 = scmp.lt.s32.totalorder %s25, 2
    // Predicated region
    $region81: #{resnet_block_forward.1} parent=5 // pred_check
      %p527 = pneg %p526
    $region82: #{resnet_block_forward.1} parent=5 // pred_check_branch
      %529 = sbr.rel (%p527) target = $region84
    $region83: #{resnet_block_forward.1} parent=5 // pred_region
      // Predicated region
      $region85: #{resnet_block_forward.1} parent=83 // pred_check
        %p530 = pneg %p45
      $region86: #{resnet_block_forward.1} parent=83 // pred_check_branch
        %532 = sbr.rel (%p530) target = $region88
      $region87: #{resnet_block_forward.1} parent=83 // pred_region
        %p533 = scmp.lt.s32.totalorder %s25, 1
        %s534 = scalar_select %p533, %s25, 1
        %s535 = scalar_lea.vmem %s0, %s534
      $region88: #{resnet_block_forward.1} parent=83 // pred_fallthru
        _
      // Predicated region
      $region89: #{resnet_block_forward.1} parent=83 // pred_check
        %p536 = pneg %p218
      $region90: #{resnet_block_forward.1} parent=83 // pred_check_branch
        %538 = sbr.rel (%p536) target = $region92
      $region91: #{resnet_block_forward.1} parent=83 // pred_region
        %p539 = scmp.lt.s32.totalorder %s25, 1
        %s540 = scalar_select %p539, %s25, 1
        %s541 = smul.addr %s540, 41
        %s542 = smul.addr %s541, 8
        %s543 = scalar_lea.vmem %s8, %s542
      $region92: #{resnet_block_forward.1} parent=83 // pred_fallthru
        _
    $region84: #{resnet_block_forward.1} parent=5 // pred_fallthru
      _
    %p544 = scmp.le.s32.totalorder 1, %s25
    %p545 = scmp.lt.s32.totalorder %s25, 3
    %p546 = pnand %p544, %p545
    %p547 = pneg %p546
    // Predicated region
    $region93: #{resnet_block_forward.1} parent=5 // pred_check
      _
    $region94: #{resnet_block_forward.1} parent=5 // pred_check_branch
      %549 = sbr.rel (%p546) target = $region96
    $region95: #{resnet_block_forward.1} parent=5 // pred_region
      %s550 = ssub.s32 %s25, 1
      %p551 = scmp.lt.s32.totalorder %s30, 1
      %s552 = scalar_select %p551, %s30, 1
      %s553 = scalar_lea.vmem %s0, %s552
      %p554 = pneg %p51
      %p555 = pneg %p48
      %p556 = pneg %p72
      %p557 = pneg %p69
      %p558 = pneg %p93
      %p559 = pneg %p90
      %p560 = pneg %p114
      %p561 = pneg %p111
      %p562 = pneg %p135
      %p563 = pneg %p132
      %p564 = pneg %p156
      %p565 = pneg %p153
      %p566 = pneg %p177
      %p567 = pneg %p174
      %p568 = pneg %p198
      %p569 = pneg %p195
      %p570 = scmp.lt.s32.totalorder %s30, 1
      %s571 = scalar_select %p570, %s30, 1
      %s572 = smul.addr %s571, 41
      %s573 = smul.addr %s572, 8
      %s574 = scalar_lea.vmem %s8, %s573
      %p575 = pneg %p224
      %p576 = pneg %p221
      %p577 = pneg %p245
      %p578 = pneg %p242
      %p579 = pneg %p266
      %p580 = pneg %p263
      %p581 = pneg %p287
      %p582 = pneg %p284
      %p583 = pneg %p308
      %p584 = pneg %p305
      %p585 = pneg %p329
      %p586 = pneg %p326
      %p587 = pneg %p350
      %p588 = pneg %p347
      %p589 = pneg %p371
      %p590 = pneg %p368
      %p591 = pneg %p392
      %p592 = pneg %p389
      %p593 = pneg %p413
      %p594 = pneg %p410
      %p595 = pneg %p434
      %p596 = pneg %p431
      %p597 = pneg %p460
      %p598 = pneg %p457
      %p599 = scmp.lt.s32.totalorder %s30, 1
      %s600 = scalar_select %p599, %s30, 1
      %s601 = smul.addr %s600, 36
      %s602 = smul.addr %s601, 8
      %s603 = scalar_lea.vmem %s19, %s602
      %p604 = scmp.lt.s32.totalorder %s30, 1
      %s605 = scalar_select %p604, %s30, 1
      %s606 = scalar_lea.vmem %s0, %s605
      %p607 = scmp.lt.s32.totalorder %s30, 1
      %s608 = scalar_select %p607, %s30, 1
      %s609 = smul.addr %s608, 41
      %s610 = smul.addr %s609, 8
      %s611 = scalar_lea.vmem %s8, %s610
      %p612 = scmp.lt.s32.totalorder %s30, 1
      %s613 = scalar_select %p612, %s30, 1
      %s614 = smul.addr %s613, 36
      %s615 = smul.addr %s614, 8
      %s616 = scalar_lea.vmem %s19, %s615
      %v618 = vld [vmem:[%s5] sm:$0xff]
      %v619 = vld [vmem:[%s5 + $0x8] sm:$0xff]
      %v620 = vld [vmem:[%s5 + $0x10] sm:$0xff]
      %v621 = vld [vmem:[%s5 + $0x18] sm:$0xff]
      %v622 = vld [vmem:[%s5 + $0x20] sm:$0xff]
      %v623 = vld [vmem:[%s5 + $0x28] sm:$0xff]
      %v624 = vld [vmem:[%s5 + $0x30] sm:$0xff]
      %v625 = vld [vmem:[%s5 + $0x38] sm:$0xff]
      %v626 = vld [vmem:[%s5 + $0x40] sm:$0xff]
      %v627 = vld [vmem:[%s5 + $0x48] sm:$0xff]
      %v628 = vld [vmem:[%s5 + $0x50] sm:$0xff]
      %v629 = vld [vmem:[%s5 + $0x58] sm:$0xff]
      %v630 = vld [vmem:[%s5 + $0x60] sm:$0xff]
      %v631 = vld [vmem:[%s5 + $0x68] sm:$0xff]
      %v632 = vld [vmem:[%s5 + $0x70] sm:$0xff]
      %v633 = vld [vmem:[%s5 + $0x78] sm:$0xff]
      %v634 = vld [vmem:[%s5 + $0x80] sm:$0xff]
      %v635 = vld [vmem:[%s5 + $0x88] sm:$0xff]
      %v636 = vld [vmem:[%s5 + $0x90] sm:$0xff]
      %v637 = vld [vmem:[%s5 + $0x98] sm:$0xff]
      %v638 = vld [vmem:[%s5 + $0xa0] sm:$0xff]
      %v639 = vld [vmem:[%s5 + $0xa8] sm:$0xff]
      %v640 = vld [vmem:[%s5 + $0xb0] sm:$0xff]
      %v641 = vld [vmem:[%s5 + $0xb8] sm:$0xff]
      %v642 = vld [vmem:[%s5 + $0xc0] sm:$0xff]
      %v643 = vld [vmem:[%s5 + $0xc8] sm:$0xff]
      %v644 = vld [vmem:[%s5 + $0xd0] sm:$0xff]
      %v645 = vld [vmem:[%s5 + $0xd8] sm:$0xff]
      %v646 = vld [vmem:[%s5 + $0xe0] sm:$0xff]
      %v647 = vld [vmem:[%s5 + $0xe8] sm:$0xff]
      %v648 = vld [vmem:[%s5 + $0xf0] sm:$0xff]
      %v649 = vld [vmem:[%s5 + $0xf8] sm:$0xff]
      %v650 = vld [vmem:[%s5 + $0x100] sm:$0xff]
      %v651 = vld [vmem:[%s5 + $0x108] sm:$0xff]
      %v652 = vld [vmem:[%s5 + $0x110] sm:$0xff]
      %v653 = vld [vmem:[%s5 + $0x118] sm:$0x3f]
      %v654 = vld [vmem:[%s6] sm:$0xff]
      %v655 = vld [vmem:[%s7] sm:$0xf]
      %v656 = vld [vmem:[%s606] sm:$0x1]
      %v657 = vsub.f32 0.0, %v656
      %v658 = vmul.f32 %v657, 1.442695
      %v659 = vpow.pop %v658
      %v660 = vadd.f32 %v659, 1.0
      %v661 = vrcp.pop %v660
      %v662 = vmul.f32 %v656, %v661
      %v663 = vld [vmem:[%s1] sm:$0xff]
      %v664 = vld [vmem:[%s1 + $0x8] sm:$0xff]
      %v665 = vld [vmem:[%s3] sm:$0x1]
      %vm666 = vcmask 130048
      %v668 = vsel %vm666, %v662, 0
      %670 = vmatprep.subr.mxu0 0.0
      %671 = vmatpush1.msra.mxu0 0.0
      %672 = vmatprep.subr.mxu0 0.0
      %673 = vmatpush1.msra.mxu0 0.0
      %674 = vmatprep.subr.mxu0 0.0
      %675 = vmatpush1.msra.mxu0 0.0
      %676 = vmatprep.subr.mxu0 0.0
      %677 = vmatpush1.msra.mxu0 0.0
      %678 = vmatprep.subr.mxu0 0.0
      %679 = vmatpush1.msra.mxu0 0.0
      %680 = vmatprep.subr.mxu0 0.0
      %681 = vmatpush1.msra.mxu0 0.0
      %682 = vmatprep.subr.mxu0 0.0
      %683 = vmatpush1.msra.mxu0 0.0
      %684 = vmatprep.subr.mxu0 0.0
      %685 = vmatpush1.msra.mxu0 0.0
      %686 = vmatprep.subr.mxu0 0.0
      %687 = vmatpush1.msra.mxu0 0.0
      %688 = vmatprep.subr.mxu0 0.0
      %689 = vmatpush1.msra.mxu0 0.0
      %690 = vmatprep.subr.mxu0 0.0
      %691 = vmatpush1.msra.mxu0 0.0
      %692 = vmatprep.subr.mxu0 0.0
      %693 = vmatpush1.msra.mxu0 0.0
      %694 = vmatprep.subr.mxu0 0.0
      %695 = vmatpush1.msra.mxu0 0.0
      %696 = vmatprep.subr.mxu0 0.0
      %697 = vmatpush1.msra.mxu0 0.0
      %698 = vmatprep.subr.mxu0 0.0
      %699 = vmatpush1.msra.mxu0 %v664
      %700 = vmatprep.subr.mxu0 0.0
      %701 = vmatpush1.msra.mxu0 %v663
      %702 = vmatprep.subr.mxu0 0.0
      %703 = vmatpush2.msra.mxu0 0.0
      %704 = vmatprep.subr.mxu0 0.0
      %705 = vmatpush2.msra.mxu0 0.0
      %706 = vmatprep.subr.mxu0 0.0
      %707 = vmatpush2.msra.mxu0 0.0
      %708 = vmatprep.subr.mxu0 0.0
      %709 = vmatpush2.msra.mxu0 0.0
      %710 = vmatprep.subr.mxu0 0.0
      %711 = vmatpush2.msra.mxu0 0.0
      %712 = vmatprep.subr.mxu0 0.0
      %713 = vmatpush2.msra.mxu0 0.0
      %714 = vmatprep.subr.mxu0 0.0
      %715 = vmatpush2.msra.mxu0 0.0
      %716 = vmatprep.subr.mxu0 0.0
      %717 = vmatpush2.msra.mxu0 0.0
      %718 = vmatprep.subr.mxu0 0.0
      %719 = vmatpush2.msra.mxu0 0.0
      %720 = vmatprep.subr.mxu0 0.0
      %721 = vmatpush2.msra.mxu0 0.0
      %722 = vmatprep.subr.mxu0 0.0
      %723 = vmatpush2.msra.mxu0 0.0
      %724 = vmatprep.subr.mxu0 0.0
      %725 = vmatpush2.msra.mxu0 0.0
      %726 = vmatprep.subr.mxu0 0.0
      %727 = vmatpush2.msra.mxu0 0.0
      %728 = vmatprep.subr.mxu0 0.0
      %729 = vmatpush2.msra.mxu0 0.0
      %730 = vmatprep.subr.mxu0 0.0
      %731 = vmatpush2.msra.mxu0 0.0
      %732 = vmatprep.subr.mxu0 0.0
      %733 = vmatpush2.msra.mxu0 0.0
      %734 = vmatprep.mubr.f32.mxu0 0.0
      %735 = vmatmul.mubr.f32.gmra.mxu0 %v668
      %v736 = vpop.f32.mrf.mxu0
      %v737 = vadd.f32 %v665, %v736
      %v738 = vpop.f32.mrf.mxu0
      %739 = vdwg.mxu0
      %v740 = vld [vmem:[%s2] sm:$0xff]
      %v741 = vld [vmem:[%s2 + $0x8] sm:$0xff]
      %v742 = vld [vmem:[%s4] sm:$0x1]
      %743 = vmatprep.subr.mxu0 0.0
      %744 = vmatpush1.msra.mxu0 0.0
      %745 = vmatprep.subr.mxu0 0.0
      %746 = vmatpush1.msra.mxu0 0.0
      %747 = vmatprep.subr.mxu0 0.0
      %748 = vmatpush1.msra.mxu0 0.0
      %749 = vmatprep.subr.mxu0 0.0
      %750 = vmatpush1.msra.mxu0 0.0
      %751 = vmatprep.subr.mxu0 0.0
      %752 = vmatpush1.msra.mxu0 0.0
      %753 = vmatprep.subr.mxu0 0.0
      %754 = vmatpush1.msra.mxu0 0.0
      %755 = vmatprep.subr.mxu0 0.0
      %756 = vmatpush1.msra.mxu0 0.0
      %757 = vmatprep.subr.mxu0 0.0
      %758 = vmatpush1.msra.mxu0 0.0
      %759 = vmatprep.subr.mxu0 0.0
      %760 = vmatpush1.msra.mxu0 0.0
      %761 = vmatprep.subr.mxu0 0.0
      %762 = vmatpush1.msra.mxu0 0.0
      %763 = vmatprep.subr.mxu0 0.0
      %764 = vmatpush1.msra.mxu0 0.0
      %765 = vmatprep.subr.mxu0 0.0
      %766 = vmatpush1.msra.mxu0 0.0
      %767 = vmatprep.subr.mxu0 0.0
      %768 = vmatpush1.msra.mxu0 0.0
      %769 = vmatprep.subr.mxu0 0.0
      %770 = vmatpush1.msra.mxu0 0.0
      %771 = vmatprep.subr.mxu0 0.0
      %772 = vmatpush1.msra.mxu0 %v741
      %773 = vmatprep.subr.mxu0 0.0
      %774 = vmatpush1.msra.mxu0 %v740
      %775 = vmatprep.subr.mxu0 0.0
      %776 = vmatpush2.msra.mxu0 0.0
      %777 = vmatprep.subr.mxu0 0.0
      %778 = vmatpush2.msra.mxu0 0.0
      %779 = vmatprep.subr.mxu0 0.0
      %780 = vmatpush2.msra.mxu0 0.0
      %781 = vmatprep.subr.mxu0 0.0
      %782 = vmatpush2.msra.mxu0 0.0
      %783 = vmatprep.subr.mxu0 0.0
      %784 = vmatpush2.msra.mxu0 0.0
      %785 = vmatprep.subr.mxu0 0.0
      %786 = vmatpush2.msra.mxu0 0.0
      %787 = vmatprep.subr.mxu0 0.0
      %788 = vmatpush2.msra.mxu0 0.0
      %789 = vmatprep.subr.mxu0 0.0
      %790 = vmatpush2.msra.mxu0 0.0
      %791 = vmatprep.subr.mxu0 0.0
      %792 = vmatpush2.msra.mxu0 0.0
      %793 = vmatprep.subr.mxu0 0.0
      %794 = vmatpush2.msra.mxu0 0.0
      %795 = vmatprep.subr.mxu0 0.0
      %796 = vmatpush2.msra.mxu0 0.0
      %797 = vmatprep.subr.mxu0 0.0
      %798 = vmatpush2.msra.mxu0 0.0
      %799 = vmatprep.subr.mxu0 0.0
      %800 = vmatpush2.msra.mxu0 0.0
      %801 = vmatprep.subr.mxu0 0.0
      %802 = vmatpush2.msra.mxu0 0.0
      %803 = vmatprep.subr.mxu0 0.0
      %804 = vmatpush2.msra.mxu0 0.0
      %805 = vmatprep.subr.mxu0 0.0
      %806 = vmatpush2.msra.mxu0 0.0
      %807 = vmatprep.mubr.f32.mxu0 0.0
      %808 = vmatmul.mubr.f32.gmra.mxu0 %v668
      %v809 = vpop.f32.mrf.mxu0
      %v810 = vadd.f32 %v742, %v809
      %v811 = vpop.f32.mrf.mxu0
      %812 = vdwg.mxu0
      %v813 = vld [vmem:[%s611] sm:$0xff]
      %v814 = vld [vmem:[%s611 + $0x8] sm:$0xff]
      %v815 = vld [vmem:[%s611 + $0x10] sm:$0xff]
      %v816 = vld [vmem:[%s611 + $0x18] sm:$0xff]
      %v817 = vld [vmem:[%s611 + $0x20] sm:$0xff]
      %v818 = vld [vmem:[%s611 + $0x28] sm:$0xff]
      %v819 = vld [vmem:[%s611 + $0x30] sm:$0xff]
      %v820 = vld [vmem:[%s611 + $0x38] sm:$0xff]
      %v821 = vld [vmem:[%s611 + $0x40] sm:$0xff]
      %v822 = vld [vmem:[%s611 + $0x48] sm:$0xff]
      %v823 = vld [vmem:[%s611 + $0x50] sm:$0xff]
      %v824 = vld [vmem:[%s611 + $0x58] sm:$0xff]
      %v825 = vld [vmem:[%s611 + $0x60] sm:$0xff]
      %v826 = vld [vmem:[%s611 + $0x68] sm:$0xff]
      %v827 = vld [vmem:[%s611 + $0x70] sm:$0xff]
      %v828 = vld [vmem:[%s611 + $0x78] sm:$0xff]
      %v829 = vld [vmem:[%s611 + $0x80] sm:$0xff]
      %v830 = vld [vmem:[%s611 + $0x88] sm:$0xff]
      %v831 = vld [vmem:[%s611 + $0x90] sm:$0xff]
      %v832 = vld [vmem:[%s611 + $0x98] sm:$0xff]
      %v833 = vld [vmem:[%s611 + $0xa0] sm:$0xff]
      %v834 = vld [vmem:[%s611 + $0xa8] sm:$0xff]
      %v835 = vld [vmem:[%s611 + $0xb0] sm:$0xff]
      %v836 = vld [vmem:[%s611 + $0xb8] sm:$0xff]
      %v837 = vld [vmem:[%s611 + $0xc0] sm:$0xff]
      %v838 = vld [vmem:[%s611 + $0xc8] sm:$0xff]
      %v839 = vld [vmem:[%s611 + $0xd0] sm:$0xff]
      %v840 = vld [vmem:[%s611 + $0xd8] sm:$0xff]
      %v841 = vld [vmem:[%s611 + $0xe0] sm:$0xff]
      %v842 = vld [vmem:[%s611 + $0xe8] sm:$0xff]
      %v843 = vld [vmem:[%s611 + $0xf0] sm:$0xff]
      %v844 = vld [vmem:[%s611 + $0xf8] sm:$0xff]
      %v845 = vld [vmem:[%s611 + $0x100] sm:$0xff]
      %v846 = vld [vmem:[%s611 + $0x108] sm:$0xff]
      %v847 = vld [vmem:[%s611 + $0x110] sm:$0xff]
      %v848 = vld [vmem:[%s611 + $0x118] sm:$0x3f]
      %v849 = vpack.c.bf16 %v814, %v813
      %v850 = vpack.c.bf16 %v816, %v815
      %v851 = vpack.c.bf16 %v818, %v817
      %v852 = vpack.c.bf16 %v820, %v819
      %v853 = vpack.c.bf16 %v822, %v821
      %v854 = vpack.c.bf16 %v824, %v823
      %v855 = vpack.c.bf16 %v826, %v825
      %v856 = vpack.c.bf16 %v828, %v827
      %v857 = vpack.c.bf16 %v830, %v829
      %v858 = vpack.c.bf16 %v832, %v831
      %v859 = vpack.c.bf16 %v834, %v833
      %v860 = vpack.c.bf16 %v836, %v835
      %v861 = vpack.c.bf16 %v838, %v837
      %v862 = vpack.c.bf16 %v840, %v839
      %v863 = vpack.c.bf16 %v842, %v841
      %v864 = vpack.c.bf16 %v844, %v843
      %v865 = vpack.c.bf16 %v846, %v845
      %v866 = vpack.c.bf16 %v848, %v847
      %v867 = vld [vmem:[%s9] sm:$0x3]
      %v868 = vld [vmem:[%s611 + $0x1] sm:$0xff]
      %v869 = vld [vmem:[%s611 + $0x9] sm:$0xff]
      %v870 = vld [vmem:[%s611 + $0x11] sm:$0xff]
      %v871 = vld [vmem:[%s611 + $0x19] sm:$0xff]
      %v872 = vld [vmem:[%s611 + $0x21] sm:$0xff]
      %v873 = vld [vmem:[%s611 + $0x29] sm:$0xff]
      %v874 = vld [vmem:[%s611 + $0x31] sm:$0xff]
      %v875 = vld [vmem:[%s611 + $0x39] sm:$0xff]
      %v876 = vld [vmem:[%s611 + $0x41] sm:$0xff]
      %v877 = vld [vmem:[%s611 + $0x49] sm:$0xff]
      %v878 = vld [vmem:[%s611 + $0x51] sm:$0xff]
      %v879 = vld [vmem:[%s611 + $0x59] sm:$0xff]
      %v880 = vld [vmem:[%s611 + $0x61] sm:$0xff]
      %v881 = vld [vmem:[%s611 + $0x69] sm:$0xff]
      %v882 = vld [vmem:[%s611 + $0x71] sm:$0xff]
      %v883 = vld [vmem:[%s611 + $0x79] sm:$0xff]
      %v884 = vld [vmem:[%s611 + $0x81] sm:$0xff]
      %v885 = vld [vmem:[%s611 + $0x89] sm:$0xff]
      %v886 = vld [vmem:[%s611 + $0x91] sm:$0xff]
      %v887 = vld [vmem:[%s611 + $0x99] sm:$0xff]
      %v888 = vld [vmem:[%s611 + $0xa1] sm:$0xff]
      %v889 = vld [vmem:[%s611 + $0xa9] sm:$0xff]
      %v890 = vld [vmem:[%s611 + $0xb1] sm:$0xff]
      %v891 = vld [vmem:[%s611 + $0xb9] sm:$0xff]
      %v892 = vld [vmem:[%s611 + $0xc1] sm:$0xff]
      %v893 = vld [vmem:[%s611 + $0xc9] sm:$0xff]
      %v894 = vld [vmem:[%s611 + $0xd1] sm:$0xff]
      %v895 = vld [vmem:[%s611 + $0xd9] sm:$0xff]
      %v896 = vld [vmem:[%s611 + $0xe1] sm:$0xff]
      %v897 = vld [vmem:[%s611 + $0xe9] sm:$0xff]
      %v898 = vld [vmem:[%s611 + $0xf1] sm:$0xff]
      %v899 = vld [vmem:[%s611 + $0xf9] sm:$0xff]
      %v900 = vld [vmem:[%s611 + $0x101] sm:$0xff]
      %v901 = vld [vmem:[%s611 + $0x109] sm:$0xff]
      %v902 = vld [vmem:[%s611 + $0x111] sm:$0xff]
      %v903 = vld [vmem:[%s611 + $0x119] sm:$0x3f]
      %v904 = vpack.c.bf16 %v869, %v868
      %v905 = vpack.c.bf16 %v871, %v870
      %v906 = vpack.c.bf16 %v873, %v872
      %v907 = vpack.c.bf16 %v875, %v874
      %v908 = vpack.c.bf16 %v877, %v876
      %v909 = vpack.c.bf16 %v879, %v878
      %v910 = vpack.c.bf16 %v881, %v880
      %v911 = vpack.c.bf16 %v883, %v882
      %v912 = vpack.c.bf16 %v885, %v884
      %v913 = vpack.c.bf16 %v887, %v886
      %v914 = vpack.c.bf16 %v889, %v888
      %v915 = vpack.c.bf16 %v891, %v890
      %v916 = vpack.c.bf16 %v893, %v892
      %v917 = vpack.c.bf16 %v895, %v894
      %v918 = vpack.c.bf16 %v897, %v896
      %v919 = vpack.c.bf16 %v899, %v898
      %v920 = vpack.c.bf16 %v901, %v900
      %v921 = vpack.c.bf16 %v903, %v902
      %s922 = scalar_lea.vmem %s9, 2
      %v923 = vld [vmem:[%s922] sm:$0x3]
      %vm924 = vcmask 31744
      %v926 = vsel %vm924, %v904, 0
      %v929 = vsel %vm924, %v905, 0
      %v932 = vsel %vm924, %v906, 0
      %v935 = vsel %vm924, %v907, 0
      %v938 = vsel %vm924, %v908, 0
      %v941 = vsel %vm924, %v909, 0
      %v944 = vsel %vm924, %v910, 0
      %v947 = vsel %vm924, %v911, 0
      %v950 = vsel %vm924, %v912, 0
      %v953 = vsel %vm924, %v913, 0
      %v956 = vsel %vm924, %v914, 0
      %v959 = vsel %vm924, %v915, 0
      %v962 = vsel %vm924, %v916, 0
      %v965 = vsel %vm924, %v917, 0
      %v968 = vsel %vm924, %v918, 0
      %v971 = vsel %vm924, %v919, 0
      %v974 = vsel %vm924, %v920, 0
      %v977 = vsel %vm924, %v921, 0
      %vm979 = vcmask 1041408
      %v981 = vsel %vm979, %v923, 0
      %983 = vmatprep.subr.bf16.mxu0 0
      %984 = vmatpush1.bf16.msra.mxu0 0
      %985 = vmatprep.subr.bf16.mxu0 0
      %986 = vmatpush1.bf16.msra.mxu0 0
      %987 = vmatprep.subr.bf16.mxu0 0
      %988 = vmatpush1.bf16.msra.mxu0 0
      %989 = vmatprep.subr.bf16.mxu0 0
      %990 = vmatpush1.bf16.msra.mxu0 0
      %991 = vmatprep.subr.bf16.mxu0 0
      %992 = vmatpush1.bf16.msra.mxu0 0
      %993 = vmatprep.subr.bf16.mxu0 0
      %994 = vmatpush1.bf16.msra.mxu0 0
      %995 = vmatprep.subr.bf16.mxu0 0
      %996 = vmatpush1.bf16.msra.mxu0 0
      %997 = vmatprep.subr.bf16.mxu0 0
      %998 = vmatpush1.bf16.msra.mxu0 %v981
      %999 = vmatprep.subr.bf16.mxu0 0
      %1000 = vmatpush2.bf16.msra.mxu0 0
      %1001 = vmatprep.subr.bf16.mxu0 0
      %1002 = vmatpush2.bf16.msra.mxu0 0
      %1003 = vmatprep.subr.bf16.mxu0 0
      %1004 = vmatpush2.bf16.msra.mxu0 0
      %1005 = vmatprep.subr.bf16.mxu0 0
      %1006 = vmatpush2.bf16.msra.mxu0 0
      %1007 = vmatprep.subr.bf16.mxu0 0
      %1008 = vmatpush2.bf16.msra.mxu0 0
      %1009 = vmatprep.subr.bf16.mxu0 0
      %1010 = vmatpush2.bf16.msra.mxu0 0
      %1011 = vmatprep.subr.bf16.mxu0 0
      %1012 = vmatpush2.bf16.msra.mxu0 0
      %1013 = vmatprep.subr.bf16.mxu0 0
      %1014 = vmatpush2.bf16.msra.mxu0 0
      %1015 = vmatprep.mubr.bf16.mxu0 0
      %1016 = vmatmul.mubr.bf16.gmra.mxu0 %v926
      %v1017 = vpop.f32.mrf.mxu0
      %v1018 = vadd.f32 0.0, %v1017
      %v1019 = vpop.f32.mrf.mxu0
      %v1020 = vpop.f32.mrf.mxu0
      %v1021 = vadd.f32 0.0, %v1020
      %v1022 = vpop.f32.mrf.mxu0
      %1023 = vmatprep.mubr.bf16.mxu0 0
      %1024 = vmatmul.mubr.bf16.gmra.mxu0 %v929
      %v1025 = vpop.f32.mrf.mxu0
      %v1026 = vadd.f32 0.0, %v1025
      %v1027 = vpop.f32.mrf.mxu0
      %v1028 = vpop.f32.mrf.mxu0
      %v1029 = vadd.f32 0.0, %v1028
      %v1030 = vpop.f32.mrf.mxu0
      %1031 = vmatprep.mubr.bf16.mxu0 0
      %1032 = vmatmul.mubr.bf16.gmra.mxu0 %v932
      %v1033 = vpop.f32.mrf.mxu0
      %v1034 = vadd.f32 0.0, %v1033
      %v1035 = vpop.f32.mrf.mxu0
      %v1036 = vpop.f32.mrf.mxu0
      %v1037 = vadd.f32 0.0, %v1036
      %v1038 = vpop.f32.mrf.mxu0
      %1039 = vmatprep.mubr.bf16.mxu0 0
      %1040 = vmatmul.mubr.bf16.gmra.mxu0 %v935
      %v1041 = vpop.f32.mrf.mxu0
      %v1042 = vadd.f32 0.0, %v1041
      %v1043 = vpop.f32.mrf.mxu0
      %v1044 = vpop.f32.mrf.mxu0
      %v1045 = vadd.f32 0.0, %v1044
      %v1046 = vpop.f32.mrf.mxu0
      %1047 = vmatprep.mubr.bf16.mxu0 0
      %1048 = vmatmul.mubr.bf16.gmra.mxu0 %v938
      %v1049 = vpop.f32.mrf.mxu0
      %v1050 = vadd.f32 0.0, %v1049
      %v1051 = vpop.f32.mrf.mxu0
      %v1052 = vpop.f32.mrf.mxu0
      %v1053 = vadd.f32 0.0, %v1052
      %v1054 = vpop.f32.mrf.mxu0
      %1055 = vmatprep.mubr.bf16.mxu0 0
      %1056 = vmatmul.mubr.bf16.gmra.mxu0 %v941
      %v1057 = vpop.f32.mrf.mxu0
      %v1058 = vadd.f32 0.0, %v1057
      %v1059 = vpop.f32.mrf.mxu0
      %v1060 = vpop.f32.mrf.mxu0
      %v1061 = vadd.f32 0.0, %v1060
      %v1062 = vpop.f32.mrf.mxu0
      %1063 = vmatprep.mubr.bf16.mxu0 0
      %1064 = vmatmul.mubr.bf16.gmra.mxu0 %v944
      %v1065 = vpop.f32.mrf.mxu0
      %v1066 = vadd.f32 0.0, %v1065
      %v1067 = vpop.f32.mrf.mxu0
      %v1068 = vpop.f32.mrf.mxu0
      %v1069 = vadd.f32 0.0, %v1068
      %v1070 = vpop.f32.mrf.mxu0
      %1071 = vmatprep.mubr.bf16.mxu0 0
      %1072 = vmatmul.mubr.bf16.gmra.mxu0 %v947
      %v1073 = vpop.f32.mrf.mxu0
      %v1074 = vadd.f32 0.0, %v1073
      %v1075 = vpop.f32.mrf.mxu0
      %v1076 = vpop.f32.mrf.mxu0
      %v1077 = vadd.f32 0.0, %v1076
      %v1078 = vpop.f32.mrf.mxu0
      %1079 = vmatprep.mubr.bf16.mxu0 0
      %1080 = vmatmul.mubr.bf16.gmra.mxu0 %v950
      %v1081 = vpop.f32.mrf.mxu0
      %v1082 = vadd.f32 0.0, %v1081
      %v1083 = vpop.f32.mrf.mxu0
      %v1084 = vpop.f32.mrf.mxu0
      %v1085 = vadd.f32 0.0, %v1084
      %v1086 = vpop.f32.mrf.mxu0
      %1087 = vmatprep.mubr.bf16.mxu0 0
      %1088 = vmatmul.mubr.bf16.gmra.mxu0 %v953
      %v1089 = vpop.f32.mrf.mxu0
      %v1090 = vadd.f32 0.0, %v1089
      %v1091 = vpop.f32.mrf.mxu0
      %v1092 = vpop.f32.mrf.mxu0
      %v1093 = vadd.f32 0.0, %v1092
      %v1094 = vpop.f32.mrf.mxu0
      %1095 = vmatprep.mubr.bf16.mxu0 0
      %1096 = vmatmul.mubr.bf16.gmra.mxu0 %v956
      %v1097 = vpop.f32.mrf.mxu0
      %v1098 = vadd.f32 0.0, %v1097
      %v1099 = vpop.f32.mrf.mxu0
      %v1100 = vpop.f32.mrf.mxu0
      %v1101 = vadd.f32 0.0, %v1100
      %v1102 = vpop.f32.mrf.mxu0
      %1103 = vmatprep.mubr.bf16.mxu0 0
      %1104 = vmatmul.mubr.bf16.gmra.mxu0 %v959
      %v1105 = vpop.f32.mrf.mxu0
      %v1106 = vadd.f32 0.0, %v1105
      %v1107 = vpop.f32.mrf.mxu0
      %v1108 = vpop.f32.mrf.mxu0
      %v1109 = vadd.f32 0.0, %v1108
      %v1110 = vpop.f32.mrf.mxu0
      %1111 = vmatprep.mubr.bf16.mxu0 0
      %1112 = vmatmul.mubr.bf16.gmra.mxu0 %v962
      %v1113 = vpop.f32.mrf.mxu0
      %v1114 = vadd.f32 0.0, %v1113
      %v1115 = vpop.f32.mrf.mxu0
      %v1116 = vpop.f32.mrf.mxu0
      %v1117 = vadd.f32 0.0, %v1116
      %v1118 = vpop.f32.mrf.mxu0
      %1119 = vmatprep.mubr.bf16.mxu0 0
      %1120 = vmatmul.mubr.bf16.gmra.mxu0 %v965
      %v1121 = vpop.f32.mrf.mxu0
      %v1122 = vadd.f32 0.0, %v1121
      %v1123 = vpop.f32.mrf.mxu0
      %v1124 = vpop.f32.mrf.mxu0
      %v1125 = vadd.f32 0.0, %v1124
      %v1126 = vpop.f32.mrf.mxu0
      %1127 = vmatprep.mubr.bf16.mxu0 0
      %1128 = vmatmul.mubr.bf16.gmra.mxu0 %v968
      %v1129 = vpop.f32.mrf.mxu0
      %v1130 = vadd.f32 0.0, %v1129
      %v1131 = vpop.f32.mrf.mxu0
      %v1132 = vpop.f32.mrf.mxu0
      %v1133 = vadd.f32 0.0, %v1132
      %v1134 = vpop.f32.mrf.mxu0
      %1135 = vmatprep.mubr.bf16.mxu0 0
      %1136 = vmatmul.mubr.bf16.gmra.mxu0 %v971
      %v1137 = vpop.f32.mrf.mxu0
      %v1138 = vadd.f32 0.0, %v1137
      %v1139 = vpop.f32.mrf.mxu0
      %v1140 = vpop.f32.mrf.mxu0
      %v1141 = vadd.f32 0.0, %v1140
      %v1142 = vpop.f32.mrf.mxu0
      %1143 = vmatprep.mubr.bf16.mxu0 0
      %1144 = vmatmul.mubr.bf16.gmra.mxu0 %v974
      %v1145 = vpop.f32.mrf.mxu0
      %v1146 = vadd.f32 0.0, %v1145
      %v1147 = vpop.f32.mrf.mxu0
      %v1148 = vpop.f32.mrf.mxu0
      %v1149 = vadd.f32 0.0, %v1148
      %v1150 = vpop.f32.mrf.mxu0
      %1151 = vmatprep.mubr.bf16.mxu0 0
      %1152 = vmatmul.mubr.bf16.gmra.mxu0 %v977
      %v1153 = vpop.f32.mrf.mxu0
      %v1154 = vadd.f32 0.0, %v1153
      %v1155 = vpop.f32.mrf.mxu0
      %v1156 = vpop.f32.mrf.mxu0
      %v1157 = vadd.f32 0.0, %v1156
      %v1158 = vpop.f32.mrf.mxu0
      %1159 = vdwg.mxu0
      %v1161 = vsel %vm924, %v849, 0
      %v1164 = vsel %vm924, %v850, 0
      %v1167 = vsel %vm924, %v851, 0
      %v1170 = vsel %vm924, %v852, 0
      %v1173 = vsel %vm924, %v853, 0
      %v1176 = vsel %vm924, %v854, 0
      %v1179 = vsel %vm924, %v855, 0
      %v1182 = vsel %vm924, %v856, 0
      %v1185 = vsel %vm924, %v857, 0
      %v1188 = vsel %vm924, %v858, 0
      %v1191 = vsel %vm924, %v859, 0
      %v1194 = vsel %vm924, %v860, 0
      %v1197 = vsel %vm924, %v861, 0
      %v1200 = vsel %vm924, %v862, 0
      %v1203 = vsel %vm924, %v863, 0
      %v1206 = vsel %vm924, %v864, 0
      %v1209 = vsel %vm924, %v865, 0
      %v1212 = vsel %vm924, %v866, 0
      %v1215 = vsel %vm979, %v867, 0
      %1217 = vmatprep.subr.bf16.mxu0 0
      %1218 = vmatpush1.bf16.msra.mxu0 0
      %1219 = vmatprep.subr.bf16.mxu0 0
      %1220 = vmatpush1.bf16.msra.mxu0 0
      %1221 = vmatprep.subr.bf16.mxu0 0
      %1222 = vmatpush1.bf16.msra.mxu0 0
      %1223 = vmatprep.subr.bf16.mxu0 0
      %1224 = vmatpush1.bf16.msra.mxu0 0
      %1225 = vmatprep.subr.bf16.mxu0 0
      %1226 = vmatpush1.bf16.msra.mxu0 0
      %1227 = vmatprep.subr.bf16.mxu0 0
      %1228 = vmatpush1.bf16.msra.mxu0 0
      %1229 = vmatprep.subr.bf16.mxu0 0
      %1230 = vmatpush1.bf16.msra.mxu0 0
      %1231 = vmatprep.subr.bf16.mxu0 0
      %1232 = vmatpush1.bf16.msra.mxu0 %v1215
      %1233 = vmatprep.subr.bf16.mxu0 0
      %1234 = vmatpush2.bf16.msra.mxu0 0
      %1235 = vmatprep.subr.bf16.mxu0 0
      %1236 = vmatpush2.bf16.msra.mxu0 0
      %1237 = vmatprep.subr.bf16.mxu0 0
      %1238 = vmatpush2.bf16.msra.mxu0 0
      %1239 = vmatprep.subr.bf16.mxu0 0
      %1240 = vmatpush2.bf16.msra.mxu0 0
      %1241 = vmatprep.subr.bf16.mxu0 0
      %1242 = vmatpush2.bf16.msra.mxu0 0
      %1243 = vmatprep.subr.bf16.mxu0 0
      %1244 = vmatpush2.bf16.msra.mxu0 0
      %1245 = vmatprep.subr.bf16.mxu0 0
      %1246 = vmatpush2.bf16.msra.mxu0 0
      %1247 = vmatprep.subr.bf16.mxu0 0
      %1248 = vmatpush2.bf16.msra.mxu0 0
      %1249 = vmatprep.mubr.bf16.mxu0 0
      %1250 = vmatmul.mubr.bf16.gmra.mxu0 %v1161
      %v1251 = vpop.f32.mrf.mxu0
      %v1252 = vadd.f32 %v1018, %v1251
      %v1253 = vpop.f32.mrf.mxu0
      %v1254 = vpop.f32.mrf.mxu0
      %v1255 = vadd.f32 %v1021, %v1254
      %v1256 = vpop.f32.mrf.mxu0
      %1257 = vmatprep.mubr.bf16.mxu0 0
      %1258 = vmatmul.mubr.bf16.gmra.mxu0 %v1164
      %v1259 = vpop.f32.mrf.mxu0
      %v1260 = vadd.f32 %v1026, %v1259
      %v1261 = vpop.f32.mrf.mxu0
      %v1262 = vpop.f32.mrf.mxu0
      %v1263 = vadd.f32 %v1029, %v1262
      %v1264 = vpop.f32.mrf.mxu0
      %1265 = vmatprep.mubr.bf16.mxu0 0
      %1266 = vmatmul.mubr.bf16.gmra.mxu0 %v1167
      %v1267 = vpop.f32.mrf.mxu0
      %v1268 = vadd.f32 %v1034, %v1267
      %v1269 = vpop.f32.mrf.mxu0
      %v1270 = vpop.f32.mrf.mxu0
      %v1271 = vadd.f32 %v1037, %v1270
      %v1272 = vpop.f32.mrf.mxu0
      %1273 = vmatprep.mubr.bf16.mxu0 0
      %1274 = vmatmul.mubr.bf16.gmra.mxu0 %v1170
      %v1275 = vpop.f32.mrf.mxu0
      %v1276 = vadd.f32 %v1042, %v1275
      %v1277 = vpop.f32.mrf.mxu0
      %v1278 = vpop.f32.mrf.mxu0
      %v1279 = vadd.f32 %v1045, %v1278
      %v1280 = vpop.f32.mrf.mxu0
      %1281 = vmatprep.mubr.bf16.mxu0 0
      %1282 = vmatmul.mubr.bf16.gmra.mxu0 %v1173
      %v1283 = vpop.f32.mrf.mxu0
      %v1284 = vadd.f32 %v1050, %v1283
      %v1285 = vpop.f32.mrf.mxu0
      %v1286 = vpop.f32.mrf.mxu0
      %v1287 = vadd.f32 %v1053, %v1286
      %v1288 = vpop.f32.mrf.mxu0
      %1289 = vmatprep.mubr.bf16.mxu0 0
      %1290 = vmatmul.mubr.bf16.gmra.mxu0 %v1176
      %v1291 = vpop.f32.mrf.mxu0
      %v1292 = vadd.f32 %v1058, %v1291
      %v1293 = vpop.f32.mrf.mxu0
      %v1294 = vpop.f32.mrf.mxu0
      %v1295 = vadd.f32 %v1061, %v1294
      %v1296 = vpop.f32.mrf.mxu0
      %1297 = vmatprep.mubr.bf16.mxu0 0
      %1298 = vmatmul.mubr.bf16.gmra.mxu0 %v1179
      %v1299 = vpop.f32.mrf.mxu0
      %v1300 = vadd.f32 %v1066, %v1299
      %v1301 = vpop.f32.mrf.mxu0
      %v1302 = vpop.f32.mrf.mxu0
      %v1303 = vadd.f32 %v1069, %v1302
      %v1304 = vpop.f32.mrf.mxu0
      %1305 = vmatprep.mubr.bf16.mxu0 0
      %1306 = vmatmul.mubr.bf16.gmra.mxu0 %v1182
      %v1307 = vpop.f32.mrf.mxu0
      %v1308 = vadd.f32 %v1074, %v1307
      %v1309 = vpop.f32.mrf.mxu0
      %v1310 = vpop.f32.mrf.mxu0
      %v1311 = vadd.f32 %v1077, %v1310
      %v1312 = vpop.f32.mrf.mxu0
      %1313 = vmatprep.mubr.bf16.mxu0 0
      %1314 = vmatmul.mubr.bf16.gmra.mxu0 %v1185
      %v1315 = vpop.f32.mrf.mxu0
      %v1316 = vadd.f32 %v1082, %v1315
      %v1317 = vpop.f32.mrf.mxu0
      %v1318 = vpop.f32.mrf.mxu0
      %v1319 = vadd.f32 %v1085, %v1318
      %v1320 = vpop.f32.mrf.mxu0
      %1321 = vmatprep.mubr.bf16.mxu0 0
      %1322 = vmatmul.mubr.bf16.gmra.mxu0 %v1188
      %v1323 = vpop.f32.mrf.mxu0
      %v1324 = vadd.f32 %v1090, %v1323
      %v1325 = vpop.f32.mrf.mxu0
      %v1326 = vpop.f32.mrf.mxu0
      %v1327 = vadd.f32 %v1093, %v1326
      %v1328 = vpop.f32.mrf.mxu0
      %1329 = vmatprep.mubr.bf16.mxu0 0
      %1330 = vmatmul.mubr.bf16.gmra.mxu0 %v1191
      %v1331 = vpop.f32.mrf.mxu0
      %v1332 = vadd.f32 %v1098, %v1331
      %v1333 = vpop.f32.mrf.mxu0
      %v1334 = vpop.f32.mrf.mxu0
      %v1335 = vadd.f32 %v1101, %v1334
      %v1336 = vpop.f32.mrf.mxu0
      %1337 = vmatprep.mubr.bf16.mxu0 0
      %1338 = vmatmul.mubr.bf16.gmra.mxu0 %v1194
      %v1339 = vpop.f32.mrf.mxu0
      %v1340 = vadd.f32 %v1106, %v1339
      %v1341 = vpop.f32.mrf.mxu0
      %v1342 = vpop.f32.mrf.mxu0
      %v1343 = vadd.f32 %v1109, %v1342
      %v1344 = vpop.f32.mrf.mxu0
      %1345 = vmatprep.mubr.bf16.mxu0 0
      %1346 = vmatmul.mubr.bf16.gmra.mxu0 %v1197
      %v1347 = vpop.f32.mrf.mxu0
      %v1348 = vadd.f32 %v1114, %v1347
      %v1349 = vpop.f32.mrf.mxu0
      %v1350 = vpop.f32.mrf.mxu0
      %v1351 = vadd.f32 %v1117, %v1350
      %v1352 = vpop.f32.mrf.mxu0
      %1353 = vmatprep.mubr.bf16.mxu0 0
      %1354 = vmatmul.mubr.bf16.gmra.mxu0 %v1200
      %v1355 = vpop.f32.mrf.mxu0
      %v1356 = vadd.f32 %v1122, %v1355
      %v1357 = vpop.f32.mrf.mxu0
      %v1358 = vpop.f32.mrf.mxu0
      %v1359 = vadd.f32 %v1125, %v1358
      %v1360 = vpop.f32.mrf.mxu0
      %1361 = vmatprep.mubr.bf16.mxu0 0
      %1362 = vmatmul.mubr.bf16.gmra.mxu0 %v1203
      %v1363 = vpop.f32.mrf.mxu0
      %v1364 = vadd.f32 %v1130, %v1363
      %v1365 = vpop.f32.mrf.mxu0
      %v1366 = vpop.f32.mrf.mxu0
      %v1367 = vadd.f32 %v1133, %v1366
      %v1368 = vpop.f32.mrf.mxu0
      %1369 = vmatprep.mubr.bf16.mxu0 0
      %1370 = vmatmul.mubr.bf16.gmra.mxu0 %v1206
      %v1371 = vpop.f32.mrf.mxu0
      %v1372 = vadd.f32 %v1138, %v1371
      %v1373 = vpop.f32.mrf.mxu0
      %v1374 = vpop.f32.mrf.mxu0
      %v1375 = vadd.f32 %v1141, %v1374
      %v1376 = vpop.f32.mrf.mxu0
      %1377 = vmatprep.mubr.bf16.mxu0 0
      %1378 = vmatmul.mubr.bf16.gmra.mxu0 %v1209
      %v1379 = vpop.f32.mrf.mxu0
      %v1380 = vadd.f32 %v1146, %v1379
      %v1381 = vpop.f32.mrf.mxu0
      %v1382 = vpop.f32.mrf.mxu0
      %v1383 = vadd.f32 %v1149, %v1382
      %v1384 = vpop.f32.mrf.mxu0
      %1385 = vmatprep.mubr.bf16.mxu0 0
      %1386 = vmatmul.mubr.bf16.gmra.mxu0 %v1212
      %v1387 = vpop.f32.mrf.mxu0
      %v1388 = vadd.f32 %v1154, %v1387
      %v1389 = vpop.f32.mrf.mxu0
      %v1390 = vpop.f32.mrf.mxu0
      %v1391 = vadd.f32 %v1157, %v1390
      %v1392 = vpop.f32.mrf.mxu0
      %1393 = vdwg.mxu0
      %v1394 = vld [vmem:[%s611 + $0x2] sm:$0xff]
      %v1395 = vld [vmem:[%s611 + $0xa] sm:$0xff]
      %v1396 = vld [vmem:[%s611 + $0x12] sm:$0xff]
      %v1397 = vld [vmem:[%s611 + $0x1a] sm:$0xff]
      %v1398 = vld [vmem:[%s611 + $0x22] sm:$0xff]
      %v1399 = vld [vmem:[%s611 + $0x2a] sm:$0xff]
      %v1400 = vld [vmem:[%s611 + $0x32] sm:$0xff]
      %v1401 = vld [vmem:[%s611 + $0x3a] sm:$0xff]
      %v1402 = vld [vmem:[%s611 + $0x42] sm:$0xff]
      %v1403 = vld [vmem:[%s611 + $0x4a] sm:$0xff]
      %v1404 = vld [vmem:[%s611 + $0x52] sm:$0xff]
      %v1405 = vld [vmem:[%s611 + $0x5a] sm:$0xff]
      %v1406 = vld [vmem:[%s611 + $0x62] sm:$0xff]
      %v1407 = vld [vmem:[%s611 + $0x6a] sm:$0xff]
      %v1408 = vld [vmem:[%s611 + $0x72] sm:$0xff]
      %v1409 = vld [vmem:[%s611 + $0x7a] sm:$0xff]
      %v1410 = vld [vmem:[%s611 + $0x82] sm:$0xff]
      %v1411 = vld [vmem:[%s611 + $0x8a] sm:$0xff]
      %v1412 = vld [vmem:[%s611 + $0x92] sm:$0xff]
      %v1413 = vld [vmem:[%s611 + $0x9a] sm:$0xff]
      %v1414 = vld [vmem:[%s611 + $0xa2] sm:$0xff]
      %v1415 = vld [vmem:[%s611 + $0xaa] sm:$0xff]
      %v1416 = vld [vmem:[%s611 + $0xb2] sm:$0xff]
      %v1417 = vld [vmem:[%s611 + $0xba] sm:$0xff]
      %v1418 = vld [vmem:[%s611 + $0xc2] sm:$0xff]
      %v1419 = vld [vmem:[%s611 + $0xca] sm:$0xff]
      %v1420 = vld [vmem:[%s611 + $0xd2] sm:$0xff]
      %v1421 = vld [vmem:[%s611 + $0xda] sm:$0xff]
      %v1422 = vld [vmem:[%s611 + $0xe2] sm:$0xff]
      %v1423 = vld [vmem:[%s611 + $0xea] sm:$0xff]
      %v1424 = vld [vmem:[%s611 + $0xf2] sm:$0xff]
      %v1425 = vld [vmem:[%s611 + $0xfa] sm:$0xff]
      %v1426 = vld [vmem:[%s611 + $0x102] sm:$0xff]
      %v1427 = vld [vmem:[%s611 + $0x10a] sm:$0xff]
      %v1428 = vld [vmem:[%s611 + $0x112] sm:$0xff]
      %v1429 = vld [vmem:[%s611 + $0x11a] sm:$0x3f]
      %v1430 = vpack.c.bf16 %v1395, %v1394
      %v1431 = vpack.c.bf16 %v1397, %v1396
      %v1432 = vpack.c.bf16 %v1399, %v1398
      %v1433 = vpack.c.bf16 %v1401, %v1400
      %v1434 = vpack.c.bf16 %v1403, %v1402
      %v1435 = vpack.c.bf16 %v1405, %v1404
      %v1436 = vpack.c.bf16 %v1407, %v1406
      %v1437 = vpack.c.bf16 %v1409, %v1408
      %v1438 = vpack.c.bf16 %v1411, %v1410
      %v1439 = vpack.c.bf16 %v1413, %v1412
      %v1440 = vpack.c.bf16 %v1415, %v1414
      %v1441 = vpack.c.bf16 %v1417, %v1416
      %v1442 = vpack.c.bf16 %v1419, %v1418
      %v1443 = vpack.c.bf16 %v1421, %v1420
      %v1444 = vpack.c.bf16 %v1423, %v1422
      %v1445 = vpack.c.bf16 %v1425, %v1424
      %v1446 = vpack.c.bf16 %v1427, %v1426
      %v1447 = vpack.c.bf16 %v1429, %v1428
      %s1448 = scalar_lea.vmem %s9, 4
      %v1449 = vld [vmem:[%s1448] sm:$0x3]
      %v1451 = vsel %vm924, %v1430, 0
      %v1454 = vsel %vm924, %v1431, 0
      %v1457 = vsel %vm924, %v1432, 0
      %v1460 = vsel %vm924, %v1433, 0
      %v1463 = vsel %vm924, %v1434, 0
      %v1466 = vsel %vm924, %v1435, 0
      %v1469 = vsel %vm924, %v1436, 0
      %v1472 = vsel %vm924, %v1437, 0
      %v1475 = vsel %vm924, %v1438, 0
      %v1478 = vsel %vm924, %v1439, 0
      %v1481 = vsel %vm924, %v1440, 0
      %v1484 = vsel %vm924, %v1441, 0
      %v1487 = vsel %vm924, %v1442, 0
      %v1490 = vsel %vm924, %v1443, 0
      %v1493 = vsel %vm924, %v1444, 0
      %v1496 = vsel %vm924, %v1445, 0
      %v1499 = vsel %vm924, %v1446, 0
      %v1502 = vsel %vm924, %v1447, 0
      %v1505 = vsel %vm979, %v1449, 0
      %1507 = vmatprep.subr.bf16.mxu0 0
      %1508 = vmatpush1.bf16.msra.mxu0 0
      %1509 = vmatprep.subr.bf16.mxu0 0
      %1510 = vmatpush1.bf16.msra.mxu0 0
      %1511 = vmatprep.subr.bf16.mxu0 0
      %1512 = vmatpush1.bf16.msra.mxu0 0
      %1513 = vmatprep.subr.bf16.mxu0 0
      %1514 = vmatpush1.bf16.msra.mxu0 0
      %1515 = vmatprep.subr.bf16.mxu0 0
      %1516 = vmatpush1.bf16.msra.mxu0 0
      %1517 = vmatprep.subr.bf16.mxu0 0
      %1518 = vmatpush1.bf16.msra.mxu0 0
      %1519 = vmatprep.subr.bf16.mxu0 0
      %1520 = vmatpush1.bf16.msra.mxu0 0
      %1521 = vmatprep.subr.bf16.mxu0 0
      %1522 = vmatpush1.bf16.msra.mxu0 %v1505
      %1523 = vmatprep.subr.bf16.mxu0 0
      %1524 = vmatpush2.bf16.msra.mxu0 0
      %1525 = vmatprep.subr.bf16.mxu0 0
      %1526 = vmatpush2.bf16.msra.mxu0 0
      %1527 = vmatprep.subr.bf16.mxu0 0
      %1528 = vmatpush2.bf16.msra.mxu0 0
      %1529 = vmatprep.subr.bf16.mxu0 0
      %1530 = vmatpush2.bf16.msra.mxu0 0
      %1531 = vmatprep.subr.bf16.mxu0 0
      %1532 = vmatpush2.bf16.msra.mxu0 0
      %1533 = vmatprep.subr.bf16.mxu0 0
      %1534 = vmatpush2.bf16.msra.mxu0 0
      %1535 = vmatprep.subr.bf16.mxu0 0
      %1536 = vmatpush2.bf16.msra.mxu0 0
      %1537 = vmatprep.subr.bf16.mxu0 0
      %1538 = vmatpush2.bf16.msra.mxu0 0
      %1539 = vmatprep.mubr.bf16.mxu0 0
      %1540 = vmatmul.mubr.bf16.gmra.mxu0 %v1451
      %v1541 = vpop.f32.mrf.mxu0
      %v1542 = vadd.f32 0.0, %v1541
      %v1543 = vpop.f32.mrf.mxu0
      %v1544 = vpop.f32.mrf.mxu0
      %v1545 = vadd.f32 0.0, %v1544
      %v1546 = vpop.f32.mrf.mxu0
      %1547 = vmatprep.mubr.bf16.mxu0 0
      %1548 = vmatmul.mubr.bf16.gmra.mxu0 %v1454
      %v1549 = vpop.f32.mrf.mxu0
      %v1550 = vadd.f32 0.0, %v1549
      %v1551 = vpop.f32.mrf.mxu0
      %v1552 = vpop.f32.mrf.mxu0
      %v1553 = vadd.f32 0.0, %v1552
      %v1554 = vpop.f32.mrf.mxu0
      %1555 = vmatprep.mubr.bf16.mxu0 0
      %1556 = vmatmul.mubr.bf16.gmra.mxu0 %v1457
      %v1557 = vpop.f32.mrf.mxu0
      %v1558 = vadd.f32 0.0, %v1557
      %v1559 = vpop.f32.mrf.mxu0
      %v1560 = vpop.f32.mrf.mxu0
      %v1561 = vadd.f32 0.0, %v1560
      %v1562 = vpop.f32.mrf.mxu0
      %1563 = vmatprep.mubr.bf16.mxu0 0
      %1564 = vmatmul.mubr.bf16.gmra.mxu0 %v1460
      %v1565 = vpop.f32.mrf.mxu0
      %v1566 = vadd.f32 0.0, %v1565
      %v1567 = vpop.f32.mrf.mxu0
      %v1568 = vpop.f32.mrf.mxu0
      %v1569 = vadd.f32 0.0, %v1568
      %v1570 = vpop.f32.mrf.mxu0
      %1571 = vmatprep.mubr.bf16.mxu0 0
      %1572 = vmatmul.mubr.bf16.gmra.mxu0 %v1463
      %v1573 = vpop.f32.mrf.mxu0
      %v1574 = vadd.f32 0.0, %v1573
      %v1575 = vpop.f32.mrf.mxu0
      %v1576 = vpop.f32.mrf.mxu0
      %v1577 = vadd.f32 0.0, %v1576
      %v1578 = vpop.f32.mrf.mxu0
      %1579 = vmatprep.mubr.bf16.mxu0 0
      %1580 = vmatmul.mubr.bf16.gmra.mxu0 %v1466
      %v1581 = vpop.f32.mrf.mxu0
      %v1582 = vadd.f32 0.0, %v1581
      %v1583 = vpop.f32.mrf.mxu0
      %v1584 = vpop.f32.mrf.mxu0
      %v1585 = vadd.f32 0.0, %v1584
      %v1586 = vpop.f32.mrf.mxu0
      %1587 = vmatprep.mubr.bf16.mxu0 0
      %1588 = vmatmul.mubr.bf16.gmra.mxu0 %v1469
      %v1589 = vpop.f32.mrf.mxu0
      %v1590 = vadd.f32 0.0, %v1589
      %v1591 = vpop.f32.mrf.mxu0
      %v1592 = vpop.f32.mrf.mxu0
      %v1593 = vadd.f32 0.0, %v1592
      %v1594 = vpop.f32.mrf.mxu0
      %1595 = vmatprep.mubr.bf16.mxu0 0
      %1596 = vmatmul.mubr.bf16.gmra.mxu0 %v1472
      %v1597 = vpop.f32.mrf.mxu0
      %v1598 = vadd.f32 0.0, %v1597
      %v1599 = vpop.f32.mrf.mxu0
      %v1600 = vpop.f32.mrf.mxu0
      %v1601 = vadd.f32 0.0, %v1600
      %v1602 = vpop.f32.mrf.mxu0
      %1603 = vmatprep.mubr.bf16.mxu0 0
      %1604 = vmatmul.mubr.bf16.gmra.mxu0 %v1475
      %v1605 = vpop.f32.mrf.mxu0
      %v1606 = vadd.f32 0.0, %v1605
      %v1607 = vpop.f32.mrf.mxu0
      %v1608 = vpop.f32.mrf.mxu0
      %v1609 = vadd.f32 0.0, %v1608
      %v1610 = vpop.f32.mrf.mxu0
      %1611 = vmatprep.mubr.bf16.mxu0 0
      %1612 = vmatmul.mubr.bf16.gmra.mxu0 %v1478
      %v1613 = vpop.f32.mrf.mxu0
      %v1614 = vadd.f32 0.0, %v1613
      %v1615 = vpop.f32.mrf.mxu0
      %v1616 = vpop.f32.mrf.mxu0
      %v1617 = vadd.f32 0.0, %v1616
      %v1618 = vpop.f32.mrf.mxu0
      %1619 = vmatprep.mubr.bf16.mxu0 0
      %1620 = vmatmul.mubr.bf16.gmra.mxu0 %v1481
      %v1621 = vpop.f32.mrf.mxu0
      %v1622 = vadd.f32 0.0, %v1621
      %v1623 = vpop.f32.mrf.mxu0
      %v1624 = vpop.f32.mrf.mxu0
      %v1625 = vadd.f32 0.0, %v1624
      %v1626 = vpop.f32.mrf.mxu0
      %1627 = vmatprep.mubr.bf16.mxu0 0
      %1628 = vmatmul.mubr.bf16.gmra.mxu0 %v1484
      %v1629 = vpop.f32.mrf.mxu0
      %v1630 = vadd.f32 0.0, %v1629
      %v1631 = vpop.f32.mrf.mxu0
      %v1632 = vpop.f32.mrf.mxu0
      %v1633 = vadd.f32 0.0, %v1632
      %v1634 = vpop.f32.mrf.mxu0
      %1635 = vmatprep.mubr.bf16.mxu0 0
      %1636 = vmatmul.mubr.bf16.gmra.mxu0 %v1487
      %v1637 = vpop.f32.mrf.mxu0
      %v1638 = vadd.f32 0.0, %v1637
      %v1639 = vpop.f32.mrf.mxu0
      %v1640 = vpop.f32.mrf.mxu0
      %v1641 = vadd.f32 0.0, %v1640
      %v1642 = vpop.f32.mrf.mxu0
      %1643 = vmatprep.mubr.bf16.mxu0 0
      %1644 = vmatmul.mubr.bf16.gmra.mxu0 %v1490
      %v1645 = vpop.f32.mrf.mxu0
      %v1646 = vadd.f32 0.0, %v1645
      %v1647 = vpop.f32.mrf.mxu0
      %v1648 = vpop.f32.mrf.mxu0
      %v1649 = vadd.f32 0.0, %v1648
      %v1650 = vpop.f32.mrf.mxu0
      %1651 = vmatprep.mubr.bf16.mxu0 0
      %1652 = vmatmul.mubr.bf16.gmra.mxu0 %v1493
      %v1653 = vpop.f32.mrf.mxu0
      %v1654 = vadd.f32 0.0, %v1653
      %v1655 = vpop.f32.mrf.mxu0
      %v1656 = vpop.f32.mrf.mxu0
      %v1657 = vadd.f32 0.0, %v1656
      %v1658 = vpop.f32.mrf.mxu0
      %1659 = vmatprep.mubr.bf16.mxu0 0
      %1660 = vmatmul.mubr.bf16.gmra.mxu0 %v1496
      %v1661 = vpop.f32.mrf.mxu0
      %v1662 = vadd.f32 0.0, %v1661
      %v1663 = vpop.f32.mrf.mxu0
      %v1664 = vpop.f32.mrf.mxu0
      %v1665 = vadd.f32 0.0, %v1664
      %v1666 = vpop.f32.mrf.mxu0
      %1667 = vmatprep.mubr.bf16.mxu0 0
      %1668 = vmatmul.mubr.bf16.gmra.mxu0 %v1499
      %v1669 = vpop.f32.mrf.mxu0
      %v1670 = vadd.f32 0.0, %v1669
      %v1671 = vpop.f32.mrf.mxu0
      %v1672 = vpop.f32.mrf.mxu0
      %v1673 = vadd.f32 0.0, %v1672
      %v1674 = vpop.f32.mrf.mxu0
      %1675 = vmatprep.mubr.bf16.mxu0 0
      %1676 = vmatmul.mubr.bf16.gmra.mxu0 %v1502
      %v1677 = vpop.f32.mrf.mxu0
      %v1678 = vadd.f32 0.0, %v1677
      %v1679 = vpop.f32.mrf.mxu0
      %v1680 = vpop.f32.mrf.mxu0
      %v1681 = vadd.f32 0.0, %v1680
      %v1682 = vpop.f32.mrf.mxu0
      %1683 = vdwg.mxu0
      %v1684 = vadd.f32 %v1252, %v1542
      %v1685 = vadd.f32 %v1255, %v1545
      %v1686 = vadd.f32 %v1260, %v1550
      %v1687 = vadd.f32 %v1263, %v1553
      %v1688 = vadd.f32 %v1268, %v1558
      %v1689 = vadd.f32 %v1271, %v1561
      %v1690 = vadd.f32 %v1276, %v1566
      %v1691 = vadd.f32 %v1279, %v1569
      %v1692 = vadd.f32 %v1284, %v1574
      %v1693 = vadd.f32 %v1287, %v1577
      %v1694 = vadd.f32 %v1292, %v1582
      %v1695 = vadd.f32 %v1295, %v1585
      %v1696 = vadd.f32 %v1300, %v1590
      %v1697 = vadd.f32 %v1303, %v1593
      %v1698 = vadd.f32 %v1308, %v1598
      %v1699 = vadd.f32 %v1311, %v1601
      %v1700 = vadd.f32 %v1316, %v1606
      %v1701 = vadd.f32 %v1319, %v1609
      %v1702 = vadd.f32 %v1324, %v1614
      %v1703 = vadd.f32 %v1327, %v1617
      %v1704 = vadd.f32 %v1332, %v1622
      %v1705 = vadd.f32 %v1335, %v1625
      %v1706 = vadd.f32 %v1340, %v1630
      %v1707 = vadd.f32 %v1343, %v1633
      %v1708 = vadd.f32 %v1348, %v1638
      %v1709 = vadd.f32 %v1351, %v1641
      %v1710 = vadd.f32 %v1356, %v1646
      %v1711 = vadd.f32 %v1359, %v1649
      %v1712 = vadd.f32 %v1364, %v1654
      %v1713 = vadd.f32 %v1367, %v1657
      %v1714 = vadd.f32 %v1372, %v1662
      %v1715 = vadd.f32 %v1375, %v1665
      %v1716 = vadd.f32 %v1380, %v1670
      %v1717 = vadd.f32 %v1383, %v1673
      %v1718 = vadd.f32 %v1388, %v1678
      %v1719 = vadd.f32 %v1391, %v1681
      %v1720 = vld [vmem:[%s611 + $0x12] sm:$0xff]
      %v1721 = vld [vmem:[%s611 + $0x1a] sm:$0xff]
      %v1722 = vld [vmem:[%s611 + $0x22] sm:$0xff]
      %v1723 = vld [vmem:[%s611 + $0x2a] sm:$0xff]
      %v1724 = vld [vmem:[%s611 + $0x32] sm:$0xff]
      %v1725 = vld [vmem:[%s611 + $0x3a] sm:$0xff]
      %v1726 = vld [vmem:[%s611 + $0x42] sm:$0xff]
      %v1727 = vld [vmem:[%s611 + $0x4a] sm:$0xff]
      %v1728 = vld [vmem:[%s611 + $0x52] sm:$0xff]
      %v1729 = vld [vmem:[%s611 + $0x5a] sm:$0xff]
      %v1730 = vld [vmem:[%s611 + $0x62] sm:$0xff]
      %v1731 = vld [vmem:[%s611 + $0x6a] sm:$0xff]
      %v1732 = vld [vmem:[%s611 + $0x72] sm:$0xff]
      %v1733 = vld [vmem:[%s611 + $0x7a] sm:$0xff]
      %v1734 = vld [vmem:[%s611 + $0x82] sm:$0xff]
      %v1735 = vld [vmem:[%s611 + $0x8a] sm:$0xff]
      %v1736 = vld [vmem:[%s611 + $0x92] sm:$0xff]
      %v1737 = vld [vmem:[%s611 + $0x9a] sm:$0xff]
      %v1738 = vld [vmem:[%s611 + $0xa2] sm:$0xff]
      %v1739 = vld [vmem:[%s611 + $0xaa] sm:$0xff]
      %v1740 = vld [vmem:[%s611 + $0xb2] sm:$0xff]
      %v1741 = vld [vmem:[%s611 + $0xba] sm:$0xff]
      %v1742 = vld [vmem:[%s611 + $0xc2] sm:$0xff]
      %v1743 = vld [vmem:[%s611 + $0xca] sm:$0xff]
      %v1744 = vld [vmem:[%s611 + $0xd2] sm:$0xff]
      %v1745 = vld [vmem:[%s611 + $0xda] sm:$0xff]
      %v1746 = vld [vmem:[%s611 + $0xe2] sm:$0xff]
      %v1747 = vld [vmem:[%s611 + $0xea] sm:$0xff]
      %v1748 = vld [vmem:[%s611 + $0xf2] sm:$0xff]
      %v1749 = vld [vmem:[%s611 + $0xfa] sm:$0xff]
      %v1750 = vld [vmem:[%s611 + $0x102] sm:$0xff]
      %v1751 = vld [vmem:[%s611 + $0x10a] sm:$0xff]
      %v1752 = vld [vmem:[%s611 + $0x112] sm:$0xff]
      %v1753 = vld [vmem:[%s611 + $0x11a] sm:$0xff]
      %v1754 = vld [vmem:[%s611 + $0x122] sm:$0xff]
      %v1755 = vld [vmem:[%s611 + $0x12a] sm:$0x3f]
      %v1756 = vpack.c.bf16 %v1721, %v1720
      %v1757 = vpack.c.bf16 %v1723, %v1722
      %v1758 = vpack.c.bf16 %v1725, %v1724
      %v1759 = vpack.c.bf16 %v1727, %v1726
      %v1760 = vpack.c.bf16 %v1729, %v1728
      %v1761 = vpack.c.bf16 %v1731, %v1730
      %v1762 = vpack.c.bf16 %v1733, %v1732
      %v1763 = vpack.c.bf16 %v1735, %v1734
      %v1764 = vpack.c.bf16 %v1737, %v1736
      %v1765 = vpack.c.bf16 %v1739, %v1738
      %v1766 = vpack.c.bf16 %v1741, %v1740
      %v1767 = vpack.c.bf16 %v1743, %v1742
      %v1768 = vpack.c.bf16 %v1745, %v1744
      %v1769 = vpack.c.bf16 %v1747, %v1746
      %v1770 = vpack.c.bf16 %v1749, %v1748
      %v1771 = vpack.c.bf16 %v1751, %v1750
      %v1772 = vpack.c.bf16 %v1753, %v1752
      %v1773 = vpack.c.bf16 %v1755, %v1754
      %s1774 = scalar_lea.vmem %s9, 6
      %v1775 = vld [vmem:[%s1774] sm:$0x3]
      %v1777 = vsel %vm924, %v1756, 0
      %v1780 = vsel %vm924, %v1757, 0
      %v1783 = vsel %vm924, %v1758, 0
      %v1786 = vsel %vm924, %v1759, 0
      %v1789 = vsel %vm924, %v1760, 0
      %v1792 = vsel %vm924, %v1761, 0
      %v1795 = vsel %vm924, %v1762, 0
      %v1798 = vsel %vm924, %v1763, 0
      %v1801 = vsel %vm924, %v1764, 0
      %v1804 = vsel %vm924, %v1765, 0
      %v1807 = vsel %vm924, %v1766, 0
      %v1810 = vsel %vm924, %v1767, 0
      %v1813 = vsel %vm924, %v1768, 0
      %v1816 = vsel %vm924, %v1769, 0
      %v1819 = vsel %vm924, %v1770, 0
      %v1822 = vsel %vm924, %v1771, 0
      %v1825 = vsel %vm924, %v1772, 0
      %v1828 = vsel %vm924, %v1773, 0
      %v1831 = vsel %vm979, %v1775, 0
      %1833 = vmatprep.subr.bf16.mxu0 0
      %1834 = vmatpush1.bf16.msra.mxu0 0
      %1835 = vmatprep.subr.bf16.mxu0 0
      %1836 = vmatpush1.bf16.msra.mxu0 0
      %1837 = vmatprep.subr.bf16.mxu0 0
      %1838 = vmatpush1.bf16.msra.mxu0 0
      %1839 = vmatprep.subr.bf16.mxu0 0
      %1840 = vmatpush1.bf16.msra.mxu0 0
      %1841 = vmatprep.subr.bf16.mxu0 0
      %1842 = vmatpush1.bf16.msra.mxu0 0
      %1843 = vmatprep.subr.bf16.mxu0 0
      %1844 = vmatpush1.bf16.msra.mxu0 0
      %1845 = vmatprep.subr.bf16.mxu0 0
      %1846 = vmatpush1.bf16.msra.mxu0 0
      %1847 = vmatprep.subr.bf16.mxu0 0
      %1848 = vmatpush1.bf16.msra.mxu0 %v1831
      %1849 = vmatprep.subr.bf16.mxu0 0
      %1850 = vmatpush2.bf16.msra.mxu0 0
      %1851 = vmatprep.subr.bf16.mxu0 0
      %1852 = vmatpush2.bf16.msra.mxu0 0
      %1853 = vmatprep.subr.bf16.mxu0 0
      %1854 = vmatpush2.bf16.msra.mxu0 0
      %1855 = vmatprep.subr.bf16.mxu0 0
      %1856 = vmatpush2.bf16.msra.mxu0 0
      %1857 = vmatprep.subr.bf16.mxu0 0
      %1858 = vmatpush2.bf16.msra.mxu0 0
      %1859 = vmatprep.subr.bf16.mxu0 0
      %1860 = vmatpush2.bf16.msra.mxu0 0
      %1861 = vmatprep.subr.bf16.mxu0 0
      %1862 = vmatpush2.bf16.msra.mxu0 0
      %1863 = vmatprep.subr.bf16.mxu0 0
      %1864 = vmatpush2.bf16.msra.mxu0 0
      %1865 = vmatprep.mubr.bf16.mxu0 0
      %1866 = vmatmul.mubr.bf16.gmra.mxu0 %v1777
      %v1867 = vpop.f32.mrf.mxu0
      %v1868 = vadd.f32 0.0, %v1867
      %v1869 = vpop.f32.mrf.mxu0
      %v1870 = vpop.f32.mrf.mxu0
      %v1871 = vadd.f32 0.0, %v1870
      %v1872 = vpop.f32.mrf.mxu0
      %1873 = vmatprep.mubr.bf16.mxu0 0
      %1874 = vmatmul.mubr.bf16.gmra.mxu0 %v1780
      %v1875 = vpop.f32.mrf.mxu0
      %v1876 = vadd.f32 0.0, %v1875
      %v1877 = vpop.f32.mrf.mxu0
      %v1878 = vpop.f32.mrf.mxu0
      %v1879 = vadd.f32 0.0, %v1878
      %v1880 = vpop.f32.mrf.mxu0
      %1881 = vmatprep.mubr.bf16.mxu0 0
      %1882 = vmatmul.mubr.bf16.gmra.mxu0 %v1783
      %v1883 = vpop.f32.mrf.mxu0
      %v1884 = vadd.f32 0.0, %v1883
      %v1885 = vpop.f32.mrf.mxu0
      %v1886 = vpop.f32.mrf.mxu0
      %v1887 = vadd.f32 0.0, %v1886
      %v1888 = vpop.f32.mrf.mxu0
      %1889 = vmatprep.mubr.bf16.mxu0 0
      %1890 = vmatmul.mubr.bf16.gmra.mxu0 %v1786
      %v1891 = vpop.f32.mrf.mxu0
      %v1892 = vadd.f32 0.0, %v1891
      %v1893 = vpop.f32.mrf.mxu0
      %v1894 = vpop.f32.mrf.mxu0
      %v1895 = vadd.f32 0.0, %v1894
      %v1896 = vpop.f32.mrf.mxu0
      %1897 = vmatprep.mubr.bf16.mxu0 0
      %1898 = vmatmul.mubr.bf16.gmra.mxu0 %v1789
      %v1899 = vpop.f32.mrf.mxu0
      %v1900 = vadd.f32 0.0, %v1899
      %v1901 = vpop.f32.mrf.mxu0
      %v1902 = vpop.f32.mrf.mxu0
      %v1903 = vadd.f32 0.0, %v1902
      %v1904 = vpop.f32.mrf.mxu0
      %1905 = vmatprep.mubr.bf16.mxu0 0
      %1906 = vmatmul.mubr.bf16.gmra.mxu0 %v1792
      %v1907 = vpop.f32.mrf.mxu0
      %v1908 = vadd.f32 0.0, %v1907
      %v1909 = vpop.f32.mrf.mxu0
      %v1910 = vpop.f32.mrf.mxu0
      %v1911 = vadd.f32 0.0, %v1910
      %v1912 = vpop.f32.mrf.mxu0
      %1913 = vmatprep.mubr.bf16.mxu0 0
      %1914 = vmatmul.mubr.bf16.gmra.mxu0 %v1795
      %v1915 = vpop.f32.mrf.mxu0
      %v1916 = vadd.f32 0.0, %v1915
      %v1917 = vpop.f32.mrf.mxu0
      %v1918 = vpop.f32.mrf.mxu0
      %v1919 = vadd.f32 0.0, %v1918
      %v1920 = vpop.f32.mrf.mxu0
      %1921 = vmatprep.mubr.bf16.mxu0 0
      %1922 = vmatmul.mubr.bf16.gmra.mxu0 %v1798
      %v1923 = vpop.f32.mrf.mxu0
      %v1924 = vadd.f32 0.0, %v1923
      %v1925 = vpop.f32.mrf.mxu0
      %v1926 = vpop.f32.mrf.mxu0
      %v1927 = vadd.f32 0.0, %v1926
      %v1928 = vpop.f32.mrf.mxu0
      %1929 = vmatprep.mubr.bf16.mxu0 0
      %1930 = vmatmul.mubr.bf16.gmra.mxu0 %v1801
      %v1931 = vpop.f32.mrf.mxu0
      %v1932 = vadd.f32 0.0, %v1931
      %v1933 = vpop.f32.mrf.mxu0
      %v1934 = vpop.f32.mrf.mxu0
      %v1935 = vadd.f32 0.0, %v1934
      %v1936 = vpop.f32.mrf.mxu0
      %1937 = vmatprep.mubr.bf16.mxu0 0
      %1938 = vmatmul.mubr.bf16.gmra.mxu0 %v1804
      %v1939 = vpop.f32.mrf.mxu0
      %v1940 = vadd.f32 0.0, %v1939
      %v1941 = vpop.f32.mrf.mxu0
      %v1942 = vpop.f32.mrf.mxu0
      %v1943 = vadd.f32 0.0, %v1942
      %v1944 = vpop.f32.mrf.mxu0
      %1945 = vmatprep.mubr.bf16.mxu0 0
      %1946 = vmatmul.mubr.bf16.gmra.mxu0 %v1807
      %v1947 = vpop.f32.mrf.mxu0
      %v1948 = vadd.f32 0.0, %v1947
      %v1949 = vpop.f32.mrf.mxu0
      %v1950 = vpop.f32.mrf.mxu0
      %v1951 = vadd.f32 0.0, %v1950
      %v1952 = vpop.f32.mrf.mxu0
      %1953 = vmatprep.mubr.bf16.mxu0 0
      %1954 = vmatmul.mubr.bf16.gmra.mxu0 %v1810
      %v1955 = vpop.f32.mrf.mxu0
      %v1956 = vadd.f32 0.0, %v1955
      %v1957 = vpop.f32.mrf.mxu0
      %v1958 = vpop.f32.mrf.mxu0
      %v1959 = vadd.f32 0.0, %v1958
      %v1960 = vpop.f32.mrf.mxu0
      %1961 = vmatprep.mubr.bf16.mxu0 0
      %1962 = vmatmul.mubr.bf16.gmra.mxu0 %v1813
      %v1963 = vpop.f32.mrf.mxu0
      %v1964 = vadd.f32 0.0, %v1963
      %v1965 = vpop.f32.mrf.mxu0
      %v1966 = vpop.f32.mrf.mxu0
      %v1967 = vadd.f32 0.0, %v1966
      %v1968 = vpop.f32.mrf.mxu0
      %1969 = vmatprep.mubr.bf16.mxu0 0
      %1970 = vmatmul.mubr.bf16.gmra.mxu0 %v1816
      %v1971 = vpop.f32.mrf.mxu0
      %v1972 = vadd.f32 0.0, %v1971
      %v1973 = vpop.f32.mrf.mxu0
      %v1974 = vpop.f32.mrf.mxu0
      %v1975 = vadd.f32 0.0, %v1974
      %v1976 = vpop.f32.mrf.mxu0
      %1977 = vmatprep.mubr.bf16.mxu0 0
      %1978 = vmatmul.mubr.bf16.gmra.mxu0 %v1819
      %v1979 = vpop.f32.mrf.mxu0
      %v1980 = vadd.f32 0.0, %v1979
      %v1981 = vpop.f32.mrf.mxu0
      %v1982 = vpop.f32.mrf.mxu0
      %v1983 = vadd.f32 0.0, %v1982
      %v1984 = vpop.f32.mrf.mxu0
      %1985 = vmatprep.mubr.bf16.mxu0 0
      %1986 = vmatmul.mubr.bf16.gmra.mxu0 %v1822
      %v1987 = vpop.f32.mrf.mxu0
      %v1988 = vadd.f32 0.0, %v1987
      %v1989 = vpop.f32.mrf.mxu0
      %v1990 = vpop.f32.mrf.mxu0
      %v1991 = vadd.f32 0.0, %v1990
      %v1992 = vpop.f32.mrf.mxu0
      %1993 = vmatprep.mubr.bf16.mxu0 0
      %1994 = vmatmul.mubr.bf16.gmra.mxu0 %v1825
      %v1995 = vpop.f32.mrf.mxu0
      %v1996 = vadd.f32 0.0, %v1995
      %v1997 = vpop.f32.mrf.mxu0
      %v1998 = vpop.f32.mrf.mxu0
      %v1999 = vadd.f32 0.0, %v1998
      %v2000 = vpop.f32.mrf.mxu0
      %2001 = vmatprep.mubr.bf16.mxu0 0
      %2002 = vmatmul.mubr.bf16.gmra.mxu0 %v1828
      %v2003 = vpop.f32.mrf.mxu0
      %v2004 = vadd.f32 0.0, %v2003
      %v2005 = vpop.f32.mrf.mxu0
      %v2006 = vpop.f32.mrf.mxu0
      %v2007 = vadd.f32 0.0, %v2006
      %v2008 = vpop.f32.mrf.mxu0
      %2009 = vdwg.mxu0
      %v2010 = vadd.f32 %v1684, %v1868
      %v2011 = vadd.f32 %v1685, %v1871
      %v2012 = vadd.f32 %v1686, %v1876
      %v2013 = vadd.f32 %v1687, %v1879
      %v2014 = vadd.f32 %v1688, %v1884
      %v2015 = vadd.f32 %v1689, %v1887
      %v2016 = vadd.f32 %v1690, %v1892
      %v2017 = vadd.f32 %v1691, %v1895
      %v2018 = vadd.f32 %v1692, %v1900
      %v2019 = vadd.f32 %v1693, %v1903
      %v2020 = vadd.f32 %v1694, %v1908
      %v2021 = vadd.f32 %v1695, %v1911
      %v2022 = vadd.f32 %v1696, %v1916
      %v2023 = vadd.f32 %v1697, %v1919
      %v2024 = vadd.f32 %v1698, %v1924
      %v2025 = vadd.f32 %v1699, %v1927
      %v2026 = vadd.f32 %v1700, %v1932
      %v2027 = vadd.f32 %v1701, %v1935
      %v2028 = vadd.f32 %v1702, %v1940
      %v2029 = vadd.f32 %v1703, %v1943
      %v2030 = vadd.f32 %v1704, %v1948
      %v2031 = vadd.f32 %v1705, %v1951
      %v2032 = vadd.f32 %v1706, %v1956
      %v2033 = vadd.f32 %v1707, %v1959
      %v2034 = vadd.f32 %v1708, %v1964
      %v2035 = vadd.f32 %v1709, %v1967
      %v2036 = vadd.f32 %v1710, %v1972
      %v2037 = vadd.f32 %v1711, %v1975
      %v2038 = vadd.f32 %v1712, %v1980
      %v2039 = vadd.f32 %v1713, %v1983
      %v2040 = vadd.f32 %v1714, %v1988
      %v2041 = vadd.f32 %v1715, %v1991
      %v2042 = vadd.f32 %v1716, %v1996
      %v2043 = vadd.f32 %v1717, %v1999
      %v2044 = vadd.f32 %v1718, %v2004
      %v2045 = vadd.f32 %v1719, %v2007
      %v2046 = vld [vmem:[%s611 + $0x13] sm:$0xff]
      %v2047 = vld [vmem:[%s611 + $0x1b] sm:$0xff]
      %v2048 = vld [vmem:[%s611 + $0x23] sm:$0xff]
      %v2049 = vld [vmem:[%s611 + $0x2b] sm:$0xff]
      %v2050 = vld [vmem:[%s611 + $0x33] sm:$0xff]
      %v2051 = vld [vmem:[%s611 + $0x3b] sm:$0xff]
      %v2052 = vld [vmem:[%s611 + $0x43] sm:$0xff]
      %v2053 = vld [vmem:[%s611 + $0x4b] sm:$0xff]
      %v2054 = vld [vmem:[%s611 + $0x53] sm:$0xff]
      %v2055 = vld [vmem:[%s611 + $0x5b] sm:$0xff]
      %v2056 = vld [vmem:[%s611 + $0x63] sm:$0xff]
      %v2057 = vld [vmem:[%s611 + $0x6b] sm:$0xff]
      %v2058 = vld [vmem:[%s611 + $0x73] sm:$0xff]
      %v2059 = vld [vmem:[%s611 + $0x7b] sm:$0xff]
      %v2060 = vld [vmem:[%s611 + $0x83] sm:$0xff]
      %v2061 = vld [vmem:[%s611 + $0x8b] sm:$0xff]
      %v2062 = vld [vmem:[%s611 + $0x93] sm:$0xff]
      %v2063 = vld [vmem:[%s611 + $0x9b] sm:$0xff]
      %v2064 = vld [vmem:[%s611 + $0xa3] sm:$0xff]
      %v2065 = vld [vmem:[%s611 + $0xab] sm:$0xff]
      %v2066 = vld [vmem:[%s611 + $0xb3] sm:$0xff]
      %v2067 = vld [vmem:[%s611 + $0xbb] sm:$0xff]
      %v2068 = vld [vmem:[%s611 + $0xc3] sm:$0xff]
      %v2069 = vld [vmem:[%s611 + $0xcb] sm:$0xff]
      %v2070 = vld [vmem:[%s611 + $0xd3] sm:$0xff]
      %v2071 = vld [vmem:[%s611 + $0xdb] sm:$0xff]
      %v2072 = vld [vmem:[%s611 + $0xe3] sm:$0xff]
      %v2073 = vld [vmem:[%s611 + $0xeb] sm:$0xff]
      %v2074 = vld [vmem:[%s611 + $0xf3] sm:$0xff]
      %v2075 = vld [vmem:[%s611 + $0xfb] sm:$0xff]
      %v2076 = vld [vmem:[%s611 + $0x103] sm:$0xff]
      %v2077 = vld [vmem:[%s611 + $0x10b] sm:$0xff]
      %v2078 = vld [vmem:[%s611 + $0x113] sm:$0xff]
      %v2079 = vld [vmem:[%s611 + $0x11b] sm:$0xff]
      %v2080 = vld [vmem:[%s611 + $0x123] sm:$0xff]
      %v2081 = vld [vmem:[%s611 + $0x12b] sm:$0x3f]
      %v2082 = vpack.c.bf16 %v2047, %v2046
      %v2083 = vpack.c.bf16 %v2049, %v2048
      %v2084 = vpack.c.bf16 %v2051, %v2050
      %v2085 = vpack.c.bf16 %v2053, %v2052
      %v2086 = vpack.c.bf16 %v2055, %v2054
      %v2087 = vpack.c.bf16 %v2057, %v2056
      %v2088 = vpack.c.bf16 %v2059, %v2058
      %v2089 = vpack.c.bf16 %v2061, %v2060
      %v2090 = vpack.c.bf16 %v2063, %v2062
      %v2091 = vpack.c.bf16 %v2065, %v2064
      %v2092 = vpack.c.bf16 %v2067, %v2066
      %v2093 = vpack.c.bf16 %v2069, %v2068
      %v2094 = vpack.c.bf16 %v2071, %v2070
      %v2095 = vpack.c.bf16 %v2073, %v2072
      %v2096 = vpack.c.bf16 %v2075, %v2074
      %v2097 = vpack.c.bf16 %v2077, %v2076
      %v2098 = vpack.c.bf16 %v2079, %v2078
      %v2099 = vpack.c.bf16 %v2081, %v2080
      %s2100 = scalar_lea.vmem %s9, 8
      %v2101 = vld [vmem:[%s2100] sm:$0x3]
      %v2103 = vsel %vm924, %v2082, 0
      %v2106 = vsel %vm924, %v2083, 0
      %v2109 = vsel %vm924, %v2084, 0
      %v2112 = vsel %vm924, %v2085, 0
      %v2115 = vsel %vm924, %v2086, 0
      %v2118 = vsel %vm924, %v2087, 0
      %v2121 = vsel %vm924, %v2088, 0
      %v2124 = vsel %vm924, %v2089, 0
      %v2127 = vsel %vm924, %v2090, 0
      %v2130 = vsel %vm924, %v2091, 0
      %v2133 = vsel %vm924, %v2092, 0
      %v2136 = vsel %vm924, %v2093, 0
      %v2139 = vsel %vm924, %v2094, 0
      %v2142 = vsel %vm924, %v2095, 0
      %v2145 = vsel %vm924, %v2096, 0
      %v2148 = vsel %vm924, %v2097, 0
      %v2151 = vsel %vm924, %v2098, 0
      %v2154 = vsel %vm924, %v2099, 0
      %v2157 = vsel %vm979, %v2101, 0
      %2159 = vmatprep.subr.bf16.mxu0 0
      %2160 = vmatpush1.bf16.msra.mxu0 0
      %2161 = vmatprep.subr.bf16.mxu0 0
      %2162 = vmatpush1.bf16.msra.mxu0 0
      %2163 = vmatprep.subr.bf16.mxu0 0
      %2164 = vmatpush1.bf16.msra.mxu0 0
      %2165 = vmatprep.subr.bf16.mxu0 0
      %2166 = vmatpush1.bf16.msra.mxu0 0
      %2167 = vmatprep.subr.bf16.mxu0 0
      %2168 = vmatpush1.bf16.msra.mxu0 0
      %2169 = vmatprep.subr.bf16.mxu0 0
      %2170 = vmatpush1.bf16.msra.mxu0 0
      %2171 = vmatprep.subr.bf16.mxu0 0
      %2172 = vmatpush1.bf16.msra.mxu0 0
      %2173 = vmatprep.subr.bf16.mxu0 0
      %2174 = vmatpush1.bf16.msra.mxu0 %v2157
      %2175 = vmatprep.subr.bf16.mxu0 0
      %2176 = vmatpush2.bf16.msra.mxu0 0
      %2177 = vmatprep.subr.bf16.mxu0 0
      %2178 = vmatpush2.bf16.msra.mxu0 0
      %2179 = vmatprep.subr.bf16.mxu0 0
      %2180 = vmatpush2.bf16.msra.mxu0 0
      %2181 = vmatprep.subr.bf16.mxu0 0
      %2182 = vmatpush2.bf16.msra.mxu0 0
      %2183 = vmatprep.subr.bf16.mxu0 0
      %2184 = vmatpush2.bf16.msra.mxu0 0
      %2185 = vmatprep.subr.bf16.mxu0 0
      %2186 = vmatpush2.bf16.msra.mxu0 0
      %2187 = vmatprep.subr.bf16.mxu0 0
      %2188 = vmatpush2.bf16.msra.mxu0 0
      %2189 = vmatprep.subr.bf16.mxu0 0
      %2190 = vmatpush2.bf16.msra.mxu0 0
      %2191 = vmatprep.mubr.bf16.mxu0 0
      %2192 = vmatmul.mubr.bf16.gmra.mxu0 %v2103
      %v2193 = vpop.f32.mrf.mxu0
      %v2194 = vadd.f32 0.0, %v2193
      %v2195 = vpop.f32.mrf.mxu0
      %v2196 = vpop.f32.mrf.mxu0
      %v2197 = vadd.f32 0.0, %v2196
      %v2198 = vpop.f32.mrf.mxu0
      %2199 = vmatprep.mubr.bf16.mxu0 0
      %2200 = vmatmul.mubr.bf16.gmra.mxu0 %v2106
      %v2201 = vpop.f32.mrf.mxu0
      %v2202 = vadd.f32 0.0, %v2201
      %v2203 = vpop.f32.mrf.mxu0
      %v2204 = vpop.f32.mrf.mxu0
      %v2205 = vadd.f32 0.0, %v2204
      %v2206 = vpop.f32.mrf.mxu0
      %2207 = vmatprep.mubr.bf16.mxu0 0
      %2208 = vmatmul.mubr.bf16.gmra.mxu0 %v2109
      %v2209 = vpop.f32.mrf.mxu0
      %v2210 = vadd.f32 0.0, %v2209
      %v2211 = vpop.f32.mrf.mxu0
      %v2212 = vpop.f32.mrf.mxu0
      %v2213 = vadd.f32 0.0, %v2212
      %v2214 = vpop.f32.mrf.mxu0
      %2215 = vmatprep.mubr.bf16.mxu0 0
      %2216 = vmatmul.mubr.bf16.gmra.mxu0 %v2112
      %v2217 = vpop.f32.mrf.mxu0
      %v2218 = vadd.f32 0.0, %v2217
      %v2219 = vpop.f32.mrf.mxu0
      %v2220 = vpop.f32.mrf.mxu0
      %v2221 = vadd.f32 0.0, %v2220
      %v2222 = vpop.f32.mrf.mxu0
      %2223 = vmatprep.mubr.bf16.mxu0 0
      %2224 = vmatmul.mubr.bf16.gmra.mxu0 %v2115
      %v2225 = vpop.f32.mrf.mxu0
      %v2226 = vadd.f32 0.0, %v2225
      %v2227 = vpop.f32.mrf.mxu0
      %v2228 = vpop.f32.mrf.mxu0
      %v2229 = vadd.f32 0.0, %v2228
      %v2230 = vpop.f32.mrf.mxu0
      %2231 = vmatprep.mubr.bf16.mxu0 0
      %2232 = vmatmul.mubr.bf16.gmra.mxu0 %v2118
      %v2233 = vpop.f32.mrf.mxu0
      %v2234 = vadd.f32 0.0, %v2233
      %v2235 = vpop.f32.mrf.mxu0
      %v2236 = vpop.f32.mrf.mxu0
      %v2237 = vadd.f32 0.0, %v2236
      %v2238 = vpop.f32.mrf.mxu0
      %2239 = vmatprep.mubr.bf16.mxu0 0
      %2240 = vmatmul.mubr.bf16.gmra.mxu0 %v2121
      %v2241 = vpop.f32.mrf.mxu0
      %v2242 = vadd.f32 0.0, %v2241
      %v2243 = vpop.f32.mrf.mxu0
      %v2244 = vpop.f32.mrf.mxu0
      %v2245 = vadd.f32 0.0, %v2244
      %v2246 = vpop.f32.mrf.mxu0
      %2247 = vmatprep.mubr.bf16.mxu0 0
      %2248 = vmatmul.mubr.bf16.gmra.mxu0 %v2124
      %v2249 = vpop.f32.mrf.mxu0
      %v2250 = vadd.f32 0.0, %v2249
      %v2251 = vpop.f32.mrf.mxu0
      %v2252 = vpop.f32.mrf.mxu0
      %v2253 = vadd.f32 0.0, %v2252
      %v2254 = vpop.f32.mrf.mxu0
      %2255 = vmatprep.mubr.bf16.mxu0 0
      %2256 = vmatmul.mubr.bf16.gmra.mxu0 %v2127
      %v2257 = vpop.f32.mrf.mxu0
      %v2258 = vadd.f32 0.0, %v2257
      %v2259 = vpop.f32.mrf.mxu0
      %v2260 = vpop.f32.mrf.mxu0
      %v2261 = vadd.f32 0.0, %v2260
      %v2262 = vpop.f32.mrf.mxu0
      %2263 = vmatprep.mubr.bf16.mxu0 0
      %2264 = vmatmul.mubr.bf16.gmra.mxu0 %v2130
      %v2265 = vpop.f32.mrf.mxu0
      %v2266 = vadd.f32 0.0, %v2265
      %v2267 = vpop.f32.mrf.mxu0
      %v2268 = vpop.f32.mrf.mxu0
      %v2269 = vadd.f32 0.0, %v2268
      %v2270 = vpop.f32.mrf.mxu0
      %2271 = vmatprep.mubr.bf16.mxu0 0
      %2272 = vmatmul.mubr.bf16.gmra.mxu0 %v2133
      %v2273 = vpop.f32.mrf.mxu0
      %v2274 = vadd.f32 0.0, %v2273
      %v2275 = vpop.f32.mrf.mxu0
      %v2276 = vpop.f32.mrf.mxu0
      %v2277 = vadd.f32 0.0, %v2276
      %v2278 = vpop.f32.mrf.mxu0
      %2279 = vmatprep.mubr.bf16.mxu0 0
      %2280 = vmatmul.mubr.bf16.gmra.mxu0 %v2136
      %v2281 = vpop.f32.mrf.mxu0
      %v2282 = vadd.f32 0.0, %v2281
      %v2283 = vpop.f32.mrf.mxu0
      %v2284 = vpop.f32.mrf.mxu0
      %v2285 = vadd.f32 0.0, %v2284
      %v2286 = vpop.f32.mrf.mxu0
      %2287 = vmatprep.mubr.bf16.mxu0 0
      %2288 = vmatmul.mubr.bf16.gmra.mxu0 %v2139
      %v2289 = vpop.f32.mrf.mxu0
      %v2290 = vadd.f32 0.0, %v2289
      %v2291 = vpop.f32.mrf.mxu0
      %v2292 = vpop.f32.mrf.mxu0
      %v2293 = vadd.f32 0.0, %v2292
      %v2294 = vpop.f32.mrf.mxu0
      %2295 = vmatprep.mubr.bf16.mxu0 0
      %2296 = vmatmul.mubr.bf16.gmra.mxu0 %v2142
      %v2297 = vpop.f32.mrf.mxu0
      %v2298 = vadd.f32 0.0, %v2297
      %v2299 = vpop.f32.mrf.mxu0
      %v2300 = vpop.f32.mrf.mxu0
      %v2301 = vadd.f32 0.0, %v2300
      %v2302 = vpop.f32.mrf.mxu0
      %2303 = vmatprep.mubr.bf16.mxu0 0
      %2304 = vmatmul.mubr.bf16.gmra.mxu0 %v2145
      %v2305 = vpop.f32.mrf.mxu0
      %v2306 = vadd.f32 0.0, %v2305
      %v2307 = vpop.f32.mrf.mxu0
      %v2308 = vpop.f32.mrf.mxu0
      %v2309 = vadd.f32 0.0, %v2308
      %v2310 = vpop.f32.mrf.mxu0
      %2311 = vmatprep.mubr.bf16.mxu0 0
      %2312 = vmatmul.mubr.bf16.gmra.mxu0 %v2148
      %v2313 = vpop.f32.mrf.mxu0
      %v2314 = vadd.f32 0.0, %v2313
      %v2315 = vpop.f32.mrf.mxu0
      %v2316 = vpop.f32.mrf.mxu0
      %v2317 = vadd.f32 0.0, %v2316
      %v2318 = vpop.f32.mrf.mxu0
      %2319 = vmatprep.mubr.bf16.mxu0 0
      %2320 = vmatmul.mubr.bf16.gmra.mxu0 %v2151
      %v2321 = vpop.f32.mrf.mxu0
      %v2322 = vadd.f32 0.0, %v2321
      %v2323 = vpop.f32.mrf.mxu0
      %v2324 = vpop.f32.mrf.mxu0
      %v2325 = vadd.f32 0.0, %v2324
      %v2326 = vpop.f32.mrf.mxu0
      %2327 = vmatprep.mubr.bf16.mxu0 0
      %2328 = vmatmul.mubr.bf16.gmra.mxu0 %v2154
      %v2329 = vpop.f32.mrf.mxu0
      %v2330 = vadd.f32 0.0, %v2329
      %v2331 = vpop.f32.mrf.mxu0
      %v2332 = vpop.f32.mrf.mxu0
      %v2333 = vadd.f32 0.0, %v2332
      %v2334 = vpop.f32.mrf.mxu0
      %2335 = vdwg.mxu0
      %v2336 = vadd.f32 %v2010, %v2194
      %v2337 = vadd.f32 %v2011, %v2197
      %v2338 = vadd.f32 %v2012, %v2202
      %v2339 = vadd.f32 %v2013, %v2205
      %v2340 = vadd.f32 %v2014, %v2210
      %v2341 = vadd.f32 %v2015, %v2213
      %v2342 = vadd.f32 %v2016, %v2218
      %v2343 = vadd.f32 %v2017, %v2221
      %v2344 = vadd.f32 %v2018, %v2226
      %v2345 = vadd.f32 %v2019, %v2229
      %v2346 = vadd.f32 %v2020, %v2234
      %v2347 = vadd.f32 %v2021, %v2237
      %v2348 = vadd.f32 %v2022, %v2242
      %v2349 = vadd.f32 %v2023, %v2245
      %v2350 = vadd.f32 %v2024, %v2250
      %v2351 = vadd.f32 %v2025, %v2253
      %v2352 = vadd.f32 %v2026, %v2258
      %v2353 = vadd.f32 %v2027, %v2261
      %v2354 = vadd.f32 %v2028, %v2266
      %v2355 = vadd.f32 %v2029, %v2269
      %v2356 = vadd.f32 %v2030, %v2274
      %v2357 = vadd.f32 %v2031, %v2277
      %v2358 = vadd.f32 %v2032, %v2282
      %v2359 = vadd.f32 %v2033, %v2285
      %v2360 = vadd.f32 %v2034, %v2290
      %v2361 = vadd.f32 %v2035, %v2293
      %v2362 = vadd.f32 %v2036, %v2298
      %v2363 = vadd.f32 %v2037, %v2301
      %v2364 = vadd.f32 %v2038, %v2306
      %v2365 = vadd.f32 %v2039, %v2309
      %v2366 = vadd.f32 %v2040, %v2314
      %v2367 = vadd.f32 %v2041, %v2317
      %v2368 = vadd.f32 %v2042, %v2322
      %v2369 = vadd.f32 %v2043, %v2325
      %v2370 = vadd.f32 %v2044, %v2330
      %v2371 = vadd.f32 %v2045, %v2333
      %v2372 = vld [vmem:[%s611 + $0x14] sm:$0xff]
      %v2373 = vld [vmem:[%s611 + $0x1c] sm:$0xff]
      %v2374 = vld [vmem:[%s611 + $0x24] sm:$0xff]
      %v2375 = vld [vmem:[%s611 + $0x2c] sm:$0xff]
      %v2376 = vld [vmem:[%s611 + $0x34] sm:$0xff]
      %v2377 = vld [vmem:[%s611 + $0x3c] sm:$0xff]
      %v2378 = vld [vmem:[%s611 + $0x44] sm:$0xff]
      %v2379 = vld [vmem:[%s611 + $0x4c] sm:$0xff]
      %v2380 = vld [vmem:[%s611 + $0x54] sm:$0xff]
      %v2381 = vld [vmem:[%s611 + $0x5c] sm:$0xff]
      %v2382 = vld [vmem:[%s611 + $0x64] sm:$0xff]
      %v2383 = vld [vmem:[%s611 + $0x6c] sm:$0xff]
      %v2384 = vld [vmem:[%s611 + $0x74] sm:$0xff]
      %v2385 = vld [vmem:[%s611 + $0x7c] sm:$0xff]
      %v2386 = vld [vmem:[%s611 + $0x84] sm:$0xff]
      %v2387 = vld [vmem:[%s611 + $0x8c] sm:$0xff]
      %v2388 = vld [vmem:[%s611 + $0x94] sm:$0xff]
      %v2389 = vld [vmem:[%s611 + $0x9c] sm:$0xff]
      %v2390 = vld [vmem:[%s611 + $0xa4] sm:$0xff]
      %v2391 = vld [vmem:[%s611 + $0xac] sm:$0xff]
      %v2392 = vld [vmem:[%s611 + $0xb4] sm:$0xff]
      %v2393 = vld [vmem:[%s611 + $0xbc] sm:$0xff]
      %v2394 = vld [vmem:[%s611 + $0xc4] sm:$0xff]
      %v2395 = vld [vmem:[%s611 + $0xcc] sm:$0xff]
      %v2396 = vld [vmem:[%s611 + $0xd4] sm:$0xff]
      %v2397 = vld [vmem:[%s611 + $0xdc] sm:$0xff]
      %v2398 = vld [vmem:[%s611 + $0xe4] sm:$0xff]
      %v2399 = vld [vmem:[%s611 + $0xec] sm:$0xff]
      %v2400 = vld [vmem:[%s611 + $0xf4] sm:$0xff]
      %v2401 = vld [vmem:[%s611 + $0xfc] sm:$0xff]
      %v2402 = vld [vmem:[%s611 + $0x104] sm:$0xff]
      %v2403 = vld [vmem:[%s611 + $0x10c] sm:$0xff]
      %v2404 = vld [vmem:[%s611 + $0x114] sm:$0xff]
      %v2405 = vld [vmem:[%s611 + $0x11c] sm:$0xff]
      %v2406 = vld [vmem:[%s611 + $0x124] sm:$0xff]
      %v2407 = vld [vmem:[%s611 + $0x12c] sm:$0x3f]
      %v2408 = vpack.c.bf16 %v2373, %v2372
      %v2409 = vpack.c.bf16 %v2375, %v2374
      %v2410 = vpack.c.bf16 %v2377, %v2376
      %v2411 = vpack.c.bf16 %v2379, %v2378
      %v2412 = vpack.c.bf16 %v2381, %v2380
      %v2413 = vpack.c.bf16 %v2383, %v2382
      %v2414 = vpack.c.bf16 %v2385, %v2384
      %v2415 = vpack.c.bf16 %v2387, %v2386
      %v2416 = vpack.c.bf16 %v2389, %v2388
      %v2417 = vpack.c.bf16 %v2391, %v2390
      %v2418 = vpack.c.bf16 %v2393, %v2392
      %v2419 = vpack.c.bf16 %v2395, %v2394
      %v2420 = vpack.c.bf16 %v2397, %v2396
      %v2421 = vpack.c.bf16 %v2399, %v2398
      %v2422 = vpack.c.bf16 %v2401, %v2400
      %v2423 = vpack.c.bf16 %v2403, %v2402
      %v2424 = vpack.c.bf16 %v2405, %v2404
      %v2425 = vpack.c.bf16 %v2407, %v2406
      %s2426 = scalar_lea.vmem %s9, 10
      %v2427 = vld [vmem:[%s2426] sm:$0x3]
      %v2429 = vsel %vm924, %v2408, 0
      %v2432 = vsel %vm924, %v2409, 0
      %v2435 = vsel %vm924, %v2410, 0
      %v2438 = vsel %vm924, %v2411, 0
      %v2441 = vsel %vm924, %v2412, 0
      %v2444 = vsel %vm924, %v2413, 0
      %v2447 = vsel %vm924, %v2414, 0
      %v2450 = vsel %vm924, %v2415, 0
      %v2453 = vsel %vm924, %v2416, 0
      %v2456 = vsel %vm924, %v2417, 0
      %v2459 = vsel %vm924, %v2418, 0
      %v2462 = vsel %vm924, %v2419, 0
      %v2465 = vsel %vm924, %v2420, 0
      %v2468 = vsel %vm924, %v2421, 0
      %v2471 = vsel %vm924, %v2422, 0
      %v2474 = vsel %vm924, %v2423, 0
      %v2477 = vsel %vm924, %v2424, 0
      %v2480 = vsel %vm924, %v2425, 0
      %v2483 = vsel %vm979, %v2427, 0
      %2485 = vmatprep.subr.bf16.mxu0 0
      %2486 = vmatpush1.bf16.msra.mxu0 0
      %2487 = vmatprep.subr.bf16.mxu0 0
      %2488 = vmatpush1.bf16.msra.mxu0 0
      %2489 = vmatprep.subr.bf16.mxu0 0
      %2490 = vmatpush1.bf16.msra.mxu0 0
      %2491 = vmatprep.subr.bf16.mxu0 0
      %2492 = vmatpush1.bf16.msra.mxu0 0
      %2493 = vmatprep.subr.bf16.mxu0 0
      %2494 = vmatpush1.bf16.msra.mxu0 0
      %2495 = vmatprep.subr.bf16.mxu0 0
      %2496 = vmatpush1.bf16.msra.mxu0 0
      %2497 = vmatprep.subr.bf16.mxu0 0
      %2498 = vmatpush1.bf16.msra.mxu0 0
      %2499 = vmatprep.subr.bf16.mxu0 0
      %2500 = vmatpush1.bf16.msra.mxu0 %v2483
      %2501 = vmatprep.subr.bf16.mxu0 0
      %2502 = vmatpush2.bf16.msra.mxu0 0
      %2503 = vmatprep.subr.bf16.mxu0 0
      %2504 = vmatpush2.bf16.msra.mxu0 0
      %2505 = vmatprep.subr.bf16.mxu0 0
      %2506 = vmatpush2.bf16.msra.mxu0 0
      %2507 = vmatprep.subr.bf16.mxu0 0
      %2508 = vmatpush2.bf16.msra.mxu0 0
      %2509 = vmatprep.subr.bf16.mxu0 0
      %2510 = vmatpush2.bf16.msra.mxu0 0
      %2511 = vmatprep.subr.bf16.mxu0 0
      %2512 = vmatpush2.bf16.msra.mxu0 0
      %2513 = vmatprep.subr.bf16.mxu0 0
      %2514 = vmatpush2.bf16.msra.mxu0 0
      %2515 = vmatprep.subr.bf16.mxu0 0
      %2516 = vmatpush2.bf16.msra.mxu0 0
      %2517 = vmatprep.mubr.bf16.mxu0 0
      %2518 = vmatmul.mubr.bf16.gmra.mxu0 %v2429
      %v2519 = vpop.f32.mrf.mxu0
      %v2520 = vadd.f32 0.0, %v2519
      %v2521 = vpop.f32.mrf.mxu0
      %v2522 = vpop.f32.mrf.mxu0
      %v2523 = vadd.f32 0.0, %v2522
      %v2524 = vpop.f32.mrf.mxu0
      %2525 = vmatprep.mubr.bf16.mxu0 0
      %2526 = vmatmul.mubr.bf16.gmra.mxu0 %v2432
      %v2527 = vpop.f32.mrf.mxu0
      %v2528 = vadd.f32 0.0, %v2527
      %v2529 = vpop.f32.mrf.mxu0
      %v2530 = vpop.f32.mrf.mxu0
      %v2531 = vadd.f32 0.0, %v2530
      %v2532 = vpop.f32.mrf.mxu0
      %2533 = vmatprep.mubr.bf16.mxu0 0
      %2534 = vmatmul.mubr.bf16.gmra.mxu0 %v2435
      %v2535 = vpop.f32.mrf.mxu0
      %v2536 = vadd.f32 0.0, %v2535
      %v2537 = vpop.f32.mrf.mxu0
      %v2538 = vpop.f32.mrf.mxu0
      %v2539 = vadd.f32 0.0, %v2538
      %v2540 = vpop.f32.mrf.mxu0
      %2541 = vmatprep.mubr.bf16.mxu0 0
      %2542 = vmatmul.mubr.bf16.gmra.mxu0 %v2438
      %v2543 = vpop.f32.mrf.mxu0
      %v2544 = vadd.f32 0.0, %v2543
      %v2545 = vpop.f32.mrf.mxu0
      %v2546 = vpop.f32.mrf.mxu0
      %v2547 = vadd.f32 0.0, %v2546
      %v2548 = vpop.f32.mrf.mxu0
      %2549 = vmatprep.mubr.bf16.mxu0 0
      %2550 = vmatmul.mubr.bf16.gmra.mxu0 %v2441
      %v2551 = vpop.f32.mrf.mxu0
      %v2552 = vadd.f32 0.0, %v2551
      %v2553 = vpop.f32.mrf.mxu0
      %v2554 = vpop.f32.mrf.mxu0
      %v2555 = vadd.f32 0.0, %v2554
      %v2556 = vpop.f32.mrf.mxu0
      %2557 = vmatprep.mubr.bf16.mxu0 0
      %2558 = vmatmul.mubr.bf16.gmra.mxu0 %v2444
      %v2559 = vpop.f32.mrf.mxu0
      %v2560 = vadd.f32 0.0, %v2559
      %v2561 = vpop.f32.mrf.mxu0
      %v2562 = vpop.f32.mrf.mxu0
      %v2563 = vadd.f32 0.0, %v2562
      %v2564 = vpop.f32.mrf.mxu0
      %2565 = vmatprep.mubr.bf16.mxu0 0
      %2566 = vmatmul.mubr.bf16.gmra.mxu0 %v2447
      %v2567 = vpop.f32.mrf.mxu0
      %v2568 = vadd.f32 0.0, %v2567
      %v2569 = vpop.f32.mrf.mxu0
      %v2570 = vpop.f32.mrf.mxu0
      %v2571 = vadd.f32 0.0, %v2570
      %v2572 = vpop.f32.mrf.mxu0
      %2573 = vmatprep.mubr.bf16.mxu0 0
      %2574 = vmatmul.mubr.bf16.gmra.mxu0 %v2450
      %v2575 = vpop.f32.mrf.mxu0
      %v2576 = vadd.f32 0.0, %v2575
      %v2577 = vpop.f32.mrf.mxu0
      %v2578 = vpop.f32.mrf.mxu0
      %v2579 = vadd.f32 0.0, %v2578
      %v2580 = vpop.f32.mrf.mxu0
      %2581 = vmatprep.mubr.bf16.mxu0 0
      %2582 = vmatmul.mubr.bf16.gmra.mxu0 %v2453
      %v2583 = vpop.f32.mrf.mxu0
      %v2584 = vadd.f32 0.0, %v2583
      %v2585 = vpop.f32.mrf.mxu0
      %v2586 = vpop.f32.mrf.mxu0
      %v2587 = vadd.f32 0.0, %v2586
      %v2588 = vpop.f32.mrf.mxu0
      %2589 = vmatprep.mubr.bf16.mxu0 0
      %2590 = vmatmul.mubr.bf16.gmra.mxu0 %v2456
      %v2591 = vpop.f32.mrf.mxu0
      %v2592 = vadd.f32 0.0, %v2591
      %v2593 = vpop.f32.mrf.mxu0
      %v2594 = vpop.f32.mrf.mxu0
      %v2595 = vadd.f32 0.0, %v2594
      %v2596 = vpop.f32.mrf.mxu0
      %2597 = vmatprep.mubr.bf16.mxu0 0
      %2598 = vmatmul.mubr.bf16.gmra.mxu0 %v2459
      %v2599 = vpop.f32.mrf.mxu0
      %v2600 = vadd.f32 0.0, %v2599
      %v2601 = vpop.f32.mrf.mxu0
      %v2602 = vpop.f32.mrf.mxu0
      %v2603 = vadd.f32 0.0, %v2602
      %v2604 = vpop.f32.mrf.mxu0
      %2605 = vmatprep.mubr.bf16.mxu0 0
      %2606 = vmatmul.mubr.bf16.gmra.mxu0 %v2462
      %v2607 = vpop.f32.mrf.mxu0
      %v2608 = vadd.f32 0.0, %v2607
      %v2609 = vpop.f32.mrf.mxu0
      %v2610 = vpop.f32.mrf.mxu0
      %v2611 = vadd.f32 0.0, %v2610
      %v2612 = vpop.f32.mrf.mxu0
      %2613 = vmatprep.mubr.bf16.mxu0 0
      %2614 = vmatmul.mubr.bf16.gmra.mxu0 %v2465
      %v2615 = vpop.f32.mrf.mxu0
      %v2616 = vadd.f32 0.0, %v2615
      %v2617 = vpop.f32.mrf.mxu0
      %v2618 = vpop.f32.mrf.mxu0
      %v2619 = vadd.f32 0.0, %v2618
      %v2620 = vpop.f32.mrf.mxu0
      %2621 = vmatprep.mubr.bf16.mxu0 0
      %2622 = vmatmul.mubr.bf16.gmra.mxu0 %v2468
      %v2623 = vpop.f32.mrf.mxu0
      %v2624 = vadd.f32 0.0, %v2623
      %v2625 = vpop.f32.mrf.mxu0
      %v2626 = vpop.f32.mrf.mxu0
      %v2627 = vadd.f32 0.0, %v2626
      %v2628 = vpop.f32.mrf.mxu0
      %2629 = vmatprep.mubr.bf16.mxu0 0
      %2630 = vmatmul.mubr.bf16.gmra.mxu0 %v2471
      %v2631 = vpop.f32.mrf.mxu0
      %v2632 = vadd.f32 0.0, %v2631
      %v2633 = vpop.f32.mrf.mxu0
      %v2634 = vpop.f32.mrf.mxu0
      %v2635 = vadd.f32 0.0, %v2634
      %v2636 = vpop.f32.mrf.mxu0
      %2637 = vmatprep.mubr.bf16.mxu0 0
      %2638 = vmatmul.mubr.bf16.gmra.mxu0 %v2474
      %v2639 = vpop.f32.mrf.mxu0
      %v2640 = vadd.f32 0.0, %v2639
      %v2641 = vpop.f32.mrf.mxu0
      %v2642 = vpop.f32.mrf.mxu0
      %v2643 = vadd.f32 0.0, %v2642
      %v2644 = vpop.f32.mrf.mxu0
      %2645 = vmatprep.mubr.bf16.mxu0 0
      %2646 = vmatmul.mubr.bf16.gmra.mxu0 %v2477
      %v2647 = vpop.f32.mrf.mxu0
      %v2648 = vadd.f32 0.0, %v2647
      %v2649 = vpop.f32.mrf.mxu0
      %v2650 = vpop.f32.mrf.mxu0
      %v2651 = vadd.f32 0.0, %v2650
      %v2652 = vpop.f32.mrf.mxu0
      %2653 = vmatprep.mubr.bf16.mxu0 0
      %2654 = vmatmul.mubr.bf16.gmra.mxu0 %v2480
      %v2655 = vpop.f32.mrf.mxu0
      %v2656 = vadd.f32 0.0, %v2655
      %v2657 = vpop.f32.mrf.mxu0
      %v2658 = vpop.f32.mrf.mxu0
      %v2659 = vadd.f32 0.0, %v2658
      %v2660 = vpop.f32.mrf.mxu0
      %2661 = vdwg.mxu0
      %v2662 = vadd.f32 %v2336, %v2520
      %v2663 = vadd.f32 %v2337, %v2523
      %v2664 = vadd.f32 %v2338, %v2528
      %v2665 = vadd.f32 %v2339, %v2531
      %v2666 = vadd.f32 %v2340, %v2536
      %v2667 = vadd.f32 %v2341, %v2539
      %v2668 = vadd.f32 %v2342, %v2544
      %v2669 = vadd.f32 %v2343, %v2547
      %v2670 = vadd.f32 %v2344, %v2552
      %v2671 = vadd.f32 %v2345, %v2555
      %v2672 = vadd.f32 %v2346, %v2560
      %v2673 = vadd.f32 %v2347, %v2563
      %v2674 = vadd.f32 %v2348, %v2568
      %v2675 = vadd.f32 %v2349, %v2571
      %v2676 = vadd.f32 %v2350, %v2576
      %v2677 = vadd.f32 %v2351, %v2579
      %v2678 = vadd.f32 %v2352, %v2584
      %v2679 = vadd.f32 %v2353, %v2587
      %v2680 = vadd.f32 %v2354, %v2592
      %v2681 = vadd.f32 %v2355, %v2595
      %v2682 = vadd.f32 %v2356, %v2600
      %v2683 = vadd.f32 %v2357, %v2603
      %v2684 = vadd.f32 %v2358, %v2608
      %v2685 = vadd.f32 %v2359, %v2611
      %v2686 = vadd.f32 %v2360, %v2616
      %v2687 = vadd.f32 %v2361, %v2619
      %v2688 = vadd.f32 %v2362, %v2624
      %v2689 = vadd.f32 %v2363, %v2627
      %v2690 = vadd.f32 %v2364, %v2632
      %v2691 = vadd.f32 %v2365, %v2635
      %v2692 = vadd.f32 %v2366, %v2640
      %v2693 = vadd.f32 %v2367, %v2643
      %v2694 = vadd.f32 %v2368, %v2648
      %v2695 = vadd.f32 %v2369, %v2651
      %v2696 = vadd.f32 %v2370, %v2656
      %v2697 = vadd.f32 %v2371, %v2659
      %v2698 = vld [vmem:[%s611 + $0x24] sm:$0xff]
      %v2699 = vld [vmem:[%s611 + $0x2c] sm:$0xff]
      %v2700 = vld [vmem:[%s611 + $0x34] sm:$0xff]
      %v2701 = vld [vmem:[%s611 + $0x3c] sm:$0xff]
      %v2702 = vld [vmem:[%s611 + $0x44] sm:$0xff]
      %v2703 = vld [vmem:[%s611 + $0x4c] sm:$0xff]
      %v2704 = vld [vmem:[%s611 + $0x54] sm:$0xff]
      %v2705 = vld [vmem:[%s611 + $0x5c] sm:$0xff]
      %v2706 = vld [vmem:[%s611 + $0x64] sm:$0xff]
      %v2707 = vld [vmem:[%s611 + $0x6c] sm:$0xff]
      %v2708 = vld [vmem:[%s611 + $0x74] sm:$0xff]
      %v2709 = vld [vmem:[%s611 + $0x7c] sm:$0xff]
      %v2710 = vld [vmem:[%s611 + $0x84] sm:$0xff]
      %v2711 = vld [vmem:[%s611 + $0x8c] sm:$0xff]
      %v2712 = vld [vmem:[%s611 + $0x94] sm:$0xff]
      %v2713 = vld [vmem:[%s611 + $0x9c] sm:$0xff]
      %v2714 = vld [vmem:[%s611 + $0xa4] sm:$0xff]
      %v2715 = vld [vmem:[%s611 + $0xac] sm:$0xff]
      %v2716 = vld [vmem:[%s611 + $0xb4] sm:$0xff]
      %v2717 = vld [vmem:[%s611 + $0xbc] sm:$0xff]
      %v2718 = vld [vmem:[%s611 + $0xc4] sm:$0xff]
      %v2719 = vld [vmem:[%s611 + $0xcc] sm:$0xff]
      %v2720 = vld [vmem:[%s611 + $0xd4] sm:$0xff]
      %v2721 = vld [vmem:[%s611 + $0xdc] sm:$0xff]
      %v2722 = vld [vmem:[%s611 + $0xe4] sm:$0xff]
      %v2723 = vld [vmem:[%s611 + $0xec] sm:$0xff]
      %v2724 = vld [vmem:[%s611 + $0xf4] sm:$0xff]
      %v2725 = vld [vmem:[%s611 + $0xfc] sm:$0xff]
      %v2726 = vld [vmem:[%s611 + $0x104] sm:$0xff]
      %v2727 = vld [vmem:[%s611 + $0x10c] sm:$0xff]
      %v2728 = vld [vmem:[%s611 + $0x114] sm:$0xff]
      %v2729 = vld [vmem:[%s611 + $0x11c] sm:$0xff]
      %v2730 = vld [vmem:[%s611 + $0x124] sm:$0xff]
      %v2731 = vld [vmem:[%s611 + $0x12c] sm:$0xff]
      %v2732 = vld [vmem:[%s611 + $0x134] sm:$0xff]
      %v2733 = vld [vmem:[%s611 + $0x13c] sm:$0x3f]
      %v2734 = vpack.c.bf16 %v2699, %v2698
      %v2735 = vpack.c.bf16 %v2701, %v2700
      %v2736 = vpack.c.bf16 %v2703, %v2702
      %v2737 = vpack.c.bf16 %v2705, %v2704
      %v2738 = vpack.c.bf16 %v2707, %v2706
      %v2739 = vpack.c.bf16 %v2709, %v2708
      %v2740 = vpack.c.bf16 %v2711, %v2710
      %v2741 = vpack.c.bf16 %v2713, %v2712
      %v2742 = vpack.c.bf16 %v2715, %v2714
      %v2743 = vpack.c.bf16 %v2717, %v2716
      %v2744 = vpack.c.bf16 %v2719, %v2718
      %v2745 = vpack.c.bf16 %v2721, %v2720
      %v2746 = vpack.c.bf16 %v2723, %v2722
      %v2747 = vpack.c.bf16 %v2725, %v2724
      %v2748 = vpack.c.bf16 %v2727, %v2726
      %v2749 = vpack.c.bf16 %v2729, %v2728
      %v2750 = vpack.c.bf16 %v2731, %v2730
      %v2751 = vpack.c.bf16 %v2733, %v2732
      %s2752 = scalar_lea.vmem %s9, 12
      %v2753 = vld [vmem:[%s2752] sm:$0x3]
      %v2755 = vsel %vm924, %v2734, 0
      %v2758 = vsel %vm924, %v2735, 0
      %v2761 = vsel %vm924, %v2736, 0
      %v2764 = vsel %vm924, %v2737, 0
      %v2767 = vsel %vm924, %v2738, 0
      %v2770 = vsel %vm924, %v2739, 0
      %v2773 = vsel %vm924, %v2740, 0
      %v2776 = vsel %vm924, %v2741, 0
      %v2779 = vsel %vm924, %v2742, 0
      %v2782 = vsel %vm924, %v2743, 0
      %v2785 = vsel %vm924, %v2744, 0
      %v2788 = vsel %vm924, %v2745, 0
      %v2791 = vsel %vm924, %v2746, 0
      %v2794 = vsel %vm924, %v2747, 0
      %v2797 = vsel %vm924, %v2748, 0
      %v2800 = vsel %vm924, %v2749, 0
      %v2803 = vsel %vm924, %v2750, 0
      %v2806 = vsel %vm924, %v2751, 0
      %v2809 = vsel %vm979, %v2753, 0
      %2811 = vmatprep.subr.bf16.mxu0 0
      %2812 = vmatpush1.bf16.msra.mxu0 0
      %2813 = vmatprep.subr.bf16.mxu0 0
      %2814 = vmatpush1.bf16.msra.mxu0 0
      %2815 = vmatprep.subr.bf16.mxu0 0
      %2816 = vmatpush1.bf16.msra.mxu0 0
      %2817 = vmatprep.subr.bf16.mxu0 0
      %2818 = vmatpush1.bf16.msra.mxu0 0
      %2819 = vmatprep.subr.bf16.mxu0 0
      %2820 = vmatpush1.bf16.msra.mxu0 0
      %2821 = vmatprep.subr.bf16.mxu0 0
      %2822 = vmatpush1.bf16.msra.mxu0 0
      %2823 = vmatprep.subr.bf16.mxu0 0
      %2824 = vmatpush1.bf16.msra.mxu0 0
      %2825 = vmatprep.subr.bf16.mxu0 0
      %2826 = vmatpush1.bf16.msra.mxu0 %v2809
      %2827 = vmatprep.subr.bf16.mxu0 0
      %2828 = vmatpush2.bf16.msra.mxu0 0
      %2829 = vmatprep.subr.bf16.mxu0 0
      %2830 = vmatpush2.bf16.msra.mxu0 0
      %2831 = vmatprep.subr.bf16.mxu0 0
      %2832 = vmatpush2.bf16.msra.mxu0 0
      %2833 = vmatprep.subr.bf16.mxu0 0
      %2834 = vmatpush2.bf16.msra.mxu0 0
      %2835 = vmatprep.subr.bf16.mxu0 0
      %2836 = vmatpush2.bf16.msra.mxu0 0
      %2837 = vmatprep.subr.bf16.mxu0 0
      %2838 = vmatpush2.bf16.msra.mxu0 0
      %2839 = vmatprep.subr.bf16.mxu0 0
      %2840 = vmatpush2.bf16.msra.mxu0 0
      %2841 = vmatprep.subr.bf16.mxu0 0
      %2842 = vmatpush2.bf16.msra.mxu0 0
      %2843 = vmatprep.mubr.bf16.mxu0 0
      %2844 = vmatmul.mubr.bf16.gmra.mxu0 %v2755
      %v2845 = vpop.f32.mrf.mxu0
      %v2846 = vadd.f32 0.0, %v2845
      %v2847 = vpop.f32.mrf.mxu0
      %v2848 = vpop.f32.mrf.mxu0
      %v2849 = vadd.f32 0.0, %v2848
      %v2850 = vpop.f32.mrf.mxu0
      %2851 = vmatprep.mubr.bf16.mxu0 0
      %2852 = vmatmul.mubr.bf16.gmra.mxu0 %v2758
      %v2853 = vpop.f32.mrf.mxu0
      %v2854 = vadd.f32 0.0, %v2853
      %v2855 = vpop.f32.mrf.mxu0
      %v2856 = vpop.f32.mrf.mxu0
      %v2857 = vadd.f32 0.0, %v2856
      %v2858 = vpop.f32.mrf.mxu0
      %2859 = vmatprep.mubr.bf16.mxu0 0
      %2860 = vmatmul.mubr.bf16.gmra.mxu0 %v2761
      %v2861 = vpop.f32.mrf.mxu0
      %v2862 = vadd.f32 0.0, %v2861
      %v2863 = vpop.f32.mrf.mxu0
      %v2864 = vpop.f32.mrf.mxu0
      %v2865 = vadd.f32 0.0, %v2864
      %v2866 = vpop.f32.mrf.mxu0
      %2867 = vmatprep.mubr.bf16.mxu0 0
      %2868 = vmatmul.mubr.bf16.gmra.mxu0 %v2764
      %v2869 = vpop.f32.mrf.mxu0
      %v2870 = vadd.f32 0.0, %v2869
      %v2871 = vpop.f32.mrf.mxu0
      %v2872 = vpop.f32.mrf.mxu0
      %v2873 = vadd.f32 0.0, %v2872
      %v2874 = vpop.f32.mrf.mxu0
      %2875 = vmatprep.mubr.bf16.mxu0 0
      %2876 = vmatmul.mubr.bf16.gmra.mxu0 %v2767
      %v2877 = vpop.f32.mrf.mxu0
      %v2878 = vadd.f32 0.0, %v2877
      %v2879 = vpop.f32.mrf.mxu0
      %v2880 = vpop.f32.mrf.mxu0
      %v2881 = vadd.f32 0.0, %v2880
      %v2882 = vpop.f32.mrf.mxu0
      %2883 = vmatprep.mubr.bf16.mxu0 0
      %2884 = vmatmul.mubr.bf16.gmra.mxu0 %v2770
      %v2885 = vpop.f32.mrf.mxu0
      %v2886 = vadd.f32 0.0, %v2885
      %v2887 = vpop.f32.mrf.mxu0
      %v2888 = vpop.f32.mrf.mxu0
      %v2889 = vadd.f32 0.0, %v2888
      %v2890 = vpop.f32.mrf.mxu0
      %2891 = vmatprep.mubr.bf16.mxu0 0
      %2892 = vmatmul.mubr.bf16.gmra.mxu0 %v2773
      %v2893 = vpop.f32.mrf.mxu0
      %v2894 = vadd.f32 0.0, %v2893
      %v2895 = vpop.f32.mrf.mxu0
      %v2896 = vpop.f32.mrf.mxu0
      %v2897 = vadd.f32 0.0, %v2896
      %v2898 = vpop.f32.mrf.mxu0
      %2899 = vmatprep.mubr.bf16.mxu0 0
      %2900 = vmatmul.mubr.bf16.gmra.mxu0 %v2776
      %v2901 = vpop.f32.mrf.mxu0
      %v2902 = vadd.f32 0.0, %v2901
      %v2903 = vpop.f32.mrf.mxu0
      %v2904 = vpop.f32.mrf.mxu0
      %v2905 = vadd.f32 0.0, %v2904
      %v2906 = vpop.f32.mrf.mxu0
      %2907 = vmatprep.mubr.bf16.mxu0 0
      %2908 = vmatmul.mubr.bf16.gmra.mxu0 %v2779
      %v2909 = vpop.f32.mrf.mxu0
      %v2910 = vadd.f32 0.0, %v2909
      %v2911 = vpop.f32.mrf.mxu0
      %v2912 = vpop.f32.mrf.mxu0
      %v2913 = vadd.f32 0.0, %v2912
      %v2914 = vpop.f32.mrf.mxu0
      %2915 = vmatprep.mubr.bf16.mxu0 0
      %2916 = vmatmul.mubr.bf16.gmra.mxu0 %v2782
      %v2917 = vpop.f32.mrf.mxu0
      %v2918 = vadd.f32 0.0, %v2917
      %v2919 = vpop.f32.mrf.mxu0
      %v2920 = vpop.f32.mrf.mxu0
      %v2921 = vadd.f32 0.0, %v2920
      %v2922 = vpop.f32.mrf.mxu0
      %2923 = vmatprep.mubr.bf16.mxu0 0
      %2924 = vmatmul.mubr.bf16.gmra.mxu0 %v2785
      %v2925 = vpop.f32.mrf.mxu0
      %v2926 = vadd.f32 0.0, %v2925
      %v2927 = vpop.f32.mrf.mxu0
      %v2928 = vpop.f32.mrf.mxu0
      %v2929 = vadd.f32 0.0, %v2928
      %v2930 = vpop.f32.mrf.mxu0
      %2931 = vmatprep.mubr.bf16.mxu0 0
      %2932 = vmatmul.mubr.bf16.gmra.mxu0 %v2788
      %v2933 = vpop.f32.mrf.mxu0
      %v2934 = vadd.f32 0.0, %v2933
      %v2935 = vpop.f32.mrf.mxu0
      %v2936 = vpop.f32.mrf.mxu0
      %v2937 = vadd.f32 0.0, %v2936
      %v2938 = vpop.f32.mrf.mxu0
      %2939 = vmatprep.mubr.bf16.mxu0 0
      %2940 = vmatmul.mubr.bf16.gmra.mxu0 %v2791
      %v2941 = vpop.f32.mrf.mxu0
      %v2942 = vadd.f32 0.0, %v2941
      %v2943 = vpop.f32.mrf.mxu0
      %v2944 = vpop.f32.mrf.mxu0
      %v2945 = vadd.f32 0.0, %v2944
      %v2946 = vpop.f32.mrf.mxu0
      %2947 = vmatprep.mubr.bf16.mxu0 0
      %2948 = vmatmul.mubr.bf16.gmra.mxu0 %v2794
      %v2949 = vpop.f32.mrf.mxu0
      %v2950 = vadd.f32 0.0, %v2949
      %v2951 = vpop.f32.mrf.mxu0
      %v2952 = vpop.f32.mrf.mxu0
      %v2953 = vadd.f32 0.0, %v2952
      %v2954 = vpop.f32.mrf.mxu0
      %2955 = vmatprep.mubr.bf16.mxu0 0
      %2956 = vmatmul.mubr.bf16.gmra.mxu0 %v2797
      %v2957 = vpop.f32.mrf.mxu0
      %v2958 = vadd.f32 0.0, %v2957
      %v2959 = vpop.f32.mrf.mxu0
      %v2960 = vpop.f32.mrf.mxu0
      %v2961 = vadd.f32 0.0, %v2960
      %v2962 = vpop.f32.mrf.mxu0
      %2963 = vmatprep.mubr.bf16.mxu0 0
      %2964 = vmatmul.mubr.bf16.gmra.mxu0 %v2800
      %v2965 = vpop.f32.mrf.mxu0
      %v2966 = vadd.f32 0.0, %v2965
      %v2967 = vpop.f32.mrf.mxu0
      %v2968 = vpop.f32.mrf.mxu0
      %v2969 = vadd.f32 0.0, %v2968
      %v2970 = vpop.f32.mrf.mxu0
      %2971 = vmatprep.mubr.bf16.mxu0 0
      %2972 = vmatmul.mubr.bf16.gmra.mxu0 %v2803
      %v2973 = vpop.f32.mrf.mxu0
      %v2974 = vadd.f32 0.0, %v2973
      %v2975 = vpop.f32.mrf.mxu0
      %v2976 = vpop.f32.mrf.mxu0
      %v2977 = vadd.f32 0.0, %v2976
      %v2978 = vpop.f32.mrf.mxu0
      %2979 = vmatprep.mubr.bf16.mxu0 0
      %2980 = vmatmul.mubr.bf16.gmra.mxu0 %v2806
      %v2981 = vpop.f32.mrf.mxu0
      %v2982 = vadd.f32 0.0, %v2981
      %v2983 = vpop.f32.mrf.mxu0
      %v2984 = vpop.f32.mrf.mxu0
      %v2985 = vadd.f32 0.0, %v2984
      %v2986 = vpop.f32.mrf.mxu0
      %2987 = vdwg.mxu0
      %v2988 = vadd.f32 %v2662, %v2846
      %v2989 = vadd.f32 %v2663, %v2849
      %v2990 = vadd.f32 %v2664, %v2854
      %v2991 = vadd.f32 %v2665, %v2857
      %v2992 = vadd.f32 %v2666, %v2862
      %v2993 = vadd.f32 %v2667, %v2865
      %v2994 = vadd.f32 %v2668, %v2870
      %v2995 = vadd.f32 %v2669, %v2873
      %v2996 = vadd.f32 %v2670, %v2878
      %v2997 = vadd.f32 %v2671, %v2881
      %v2998 = vadd.f32 %v2672, %v2886
      %v2999 = vadd.f32 %v2673, %v2889
      %v3000 = vadd.f32 %v2674, %v2894
      %v3001 = vadd.f32 %v2675, %v2897
      %v3002 = vadd.f32 %v2676, %v2902
      %v3003 = vadd.f32 %v2677, %v2905
      %v3004 = vadd.f32 %v2678, %v2910
      %v3005 = vadd.f32 %v2679, %v2913
      %v3006 = vadd.f32 %v2680, %v2918
      %v3007 = vadd.f32 %v2681, %v2921
      %v3008 = vadd.f32 %v2682, %v2926
      %v3009 = vadd.f32 %v2683, %v2929
      %v3010 = vadd.f32 %v2684, %v2934
      %v3011 = vadd.f32 %v2685, %v2937
      %v3012 = vadd.f32 %v2686, %v2942
      %v3013 = vadd.f32 %v2687, %v2945
      %v3014 = vadd.f32 %v2688, %v2950
      %v3015 = vadd.f32 %v2689, %v2953
      %v3016 = vadd.f32 %v2690, %v2958
      %v3017 = vadd.f32 %v2691, %v2961
      %v3018 = vadd.f32 %v2692, %v2966
      %v3019 = vadd.f32 %v2693, %v2969
      %v3020 = vadd.f32 %v2694, %v2974
      %v3021 = vadd.f32 %v2695, %v2977
      %v3022 = vadd.f32 %v2696, %v2982
      %v3023 = vadd.f32 %v2697, %v2985
      %v3024 = vld [vmem:[%s611 + $0x25] sm:$0xff]
      %v3025 = vld [vmem:[%s611 + $0x2d] sm:$0xff]
      %v3026 = vld [vmem:[%s611 + $0x35] sm:$0xff]
      %v3027 = vld [vmem:[%s611 + $0x3d] sm:$0xff]
      %v3028 = vld [vmem:[%s611 + $0x45] sm:$0xff]
      %v3029 = vld [vmem:[%s611 + $0x4d] sm:$0xff]
      %v3030 = vld [vmem:[%s611 + $0x55] sm:$0xff]
      %v3031 = vld [vmem:[%s611 + $0x5d] sm:$0xff]
      %v3032 = vld [vmem:[%s611 + $0x65] sm:$0xff]
      %v3033 = vld [vmem:[%s611 + $0x6d] sm:$0xff]
      %v3034 = vld [vmem:[%s611 + $0x75] sm:$0xff]
      %v3035 = vld [vmem:[%s611 + $0x7d] sm:$0xff]
      %v3036 = vld [vmem:[%s611 + $0x85] sm:$0xff]
      %v3037 = vld [vmem:[%s611 + $0x8d] sm:$0xff]
      %v3038 = vld [vmem:[%s611 + $0x95] sm:$0xff]
      %v3039 = vld [vmem:[%s611 + $0x9d] sm:$0xff]
      %v3040 = vld [vmem:[%s611 + $0xa5] sm:$0xff]
      %v3041 = vld [vmem:[%s611 + $0xad] sm:$0xff]
      %v3042 = vld [vmem:[%s611 + $0xb5] sm:$0xff]
      %v3043 = vld [vmem:[%s611 + $0xbd] sm:$0xff]
      %v3044 = vld [vmem:[%s611 + $0xc5] sm:$0xff]
      %v3045 = vld [vmem:[%s611 + $0xcd] sm:$0xff]
      %v3046 = vld [vmem:[%s611 + $0xd5] sm:$0xff]
      %v3047 = vld [vmem:[%s611 + $0xdd] sm:$0xff]
      %v3048 = vld [vmem:[%s611 + $0xe5] sm:$0xff]
      %v3049 = vld [vmem:[%s611 + $0xed] sm:$0xff]
      %v3050 = vld [vmem:[%s611 + $0xf5] sm:$0xff]
      %v3051 = vld [vmem:[%s611 + $0xfd] sm:$0xff]
      %v3052 = vld [vmem:[%s611 + $0x105] sm:$0xff]
      %v3053 = vld [vmem:[%s611 + $0x10d] sm:$0xff]
      %v3054 = vld [vmem:[%s611 + $0x115] sm:$0xff]
      %v3055 = vld [vmem:[%s611 + $0x11d] sm:$0xff]
      %v3056 = vld [vmem:[%s611 + $0x125] sm:$0xff]
      %v3057 = vld [vmem:[%s611 + $0x12d] sm:$0xff]
      %v3058 = vld [vmem:[%s611 + $0x135] sm:$0xff]
      %v3059 = vld [vmem:[%s611 + $0x13d] sm:$0x3f]
      %v3060 = vpack.c.bf16 %v3025, %v3024
      %v3061 = vpack.c.bf16 %v3027, %v3026
      %v3062 = vpack.c.bf16 %v3029, %v3028
      %v3063 = vpack.c.bf16 %v3031, %v3030
      %v3064 = vpack.c.bf16 %v3033, %v3032
      %v3065 = vpack.c.bf16 %v3035, %v3034
      %v3066 = vpack.c.bf16 %v3037, %v3036
      %v3067 = vpack.c.bf16 %v3039, %v3038
      %v3068 = vpack.c.bf16 %v3041, %v3040
      %v3069 = vpack.c.bf16 %v3043, %v3042
      %v3070 = vpack.c.bf16 %v3045, %v3044
      %v3071 = vpack.c.bf16 %v3047, %v3046
      %v3072 = vpack.c.bf16 %v3049, %v3048
      %v3073 = vpack.c.bf16 %v3051, %v3050
      %v3074 = vpack.c.bf16 %v3053, %v3052
      %v3075 = vpack.c.bf16 %v3055, %v3054
      %v3076 = vpack.c.bf16 %v3057, %v3056
      %v3077 = vpack.c.bf16 %v3059, %v3058
      %s3078 = scalar_lea.vmem %s9, 14
      %v3079 = vld [vmem:[%s3078] sm:$0x3]
      %v3081 = vsel %vm924, %v3060, 0
      %v3084 = vsel %vm924, %v3061, 0
      %v3087 = vsel %vm924, %v3062, 0
      %v3090 = vsel %vm924, %v3063, 0
      %v3093 = vsel %vm924, %v3064, 0
      %v3096 = vsel %vm924, %v3065, 0
      %v3099 = vsel %vm924, %v3066, 0
      %v3102 = vsel %vm924, %v3067, 0
      %v3105 = vsel %vm924, %v3068, 0
      %v3108 = vsel %vm924, %v3069, 0
      %v3111 = vsel %vm924, %v3070, 0
      %v3114 = vsel %vm924, %v3071, 0
      %v3117 = vsel %vm924, %v3072, 0
      %v3120 = vsel %vm924, %v3073, 0
      %v3123 = vsel %vm924, %v3074, 0
      %v3126 = vsel %vm924, %v3075, 0
      %v3129 = vsel %vm924, %v3076, 0
      %v3132 = vsel %vm924, %v3077, 0
      %v3135 = vsel %vm979, %v3079, 0
      %3137 = vmatprep.subr.bf16.mxu0 0
      %3138 = vmatpush1.bf16.msra.mxu0 0
      %3139 = vmatprep.subr.bf16.mxu0 0
      %3140 = vmatpush1.bf16.msra.mxu0 0
      %3141 = vmatprep.subr.bf16.mxu0 0
      %3142 = vmatpush1.bf16.msra.mxu0 0
      %3143 = vmatprep.subr.bf16.mxu0 0
      %3144 = vmatpush1.bf16.msra.mxu0 0
      %3145 = vmatprep.subr.bf16.mxu0 0
      %3146 = vmatpush1.bf16.msra.mxu0 0
      %3147 = vmatprep.subr.bf16.mxu0 0
      %3148 = vmatpush1.bf16.msra.mxu0 0
      %3149 = vmatprep.subr.bf16.mxu0 0
      %3150 = vmatpush1.bf16.msra.mxu0 0
      %3151 = vmatprep.subr.bf16.mxu0 0
      %3152 = vmatpush1.bf16.msra.mxu0 %v3135
      %3153 = vmatprep.subr.bf16.mxu0 0
      %3154 = vmatpush2.bf16.msra.mxu0 0
      %3155 = vmatprep.subr.bf16.mxu0 0
      %3156 = vmatpush2.bf16.msra.mxu0 0
      %3157 = vmatprep.subr.bf16.mxu0 0
      %3158 = vmatpush2.bf16.msra.mxu0 0
      %3159 = vmatprep.subr.bf16.mxu0 0
      %3160 = vmatpush2.bf16.msra.mxu0 0
      %3161 = vmatprep.subr.bf16.mxu0 0
      %3162 = vmatpush2.bf16.msra.mxu0 0
      %3163 = vmatprep.subr.bf16.mxu0 0
      %3164 = vmatpush2.bf16.msra.mxu0 0
      %3165 = vmatprep.subr.bf16.mxu0 0
      %3166 = vmatpush2.bf16.msra.mxu0 0
      %3167 = vmatprep.subr.bf16.mxu0 0
      %3168 = vmatpush2.bf16.msra.mxu0 0
      %3169 = vmatprep.mubr.bf16.mxu0 0
      %3170 = vmatmul.mubr.bf16.gmra.mxu0 %v3081
      %v3171 = vpop.f32.mrf.mxu0
      %v3172 = vadd.f32 0.0, %v3171
      %v3173 = vpop.f32.mrf.mxu0
      %v3174 = vpop.f32.mrf.mxu0
      %v3175 = vadd.f32 0.0, %v3174
      %v3176 = vpop.f32.mrf.mxu0
      %3177 = vmatprep.mubr.bf16.mxu0 0
      %3178 = vmatmul.mubr.bf16.gmra.mxu0 %v3084
      %v3179 = vpop.f32.mrf.mxu0
      %v3180 = vadd.f32 0.0, %v3179
      %v3181 = vpop.f32.mrf.mxu0
      %v3182 = vpop.f32.mrf.mxu0
      %v3183 = vadd.f32 0.0, %v3182
      %v3184 = vpop.f32.mrf.mxu0
      %3185 = vmatprep.mubr.bf16.mxu0 0
      %3186 = vmatmul.mubr.bf16.gmra.mxu0 %v3087
      %v3187 = vpop.f32.mrf.mxu0
      %v3188 = vadd.f32 0.0, %v3187
      %v3189 = vpop.f32.mrf.mxu0
      %v3190 = vpop.f32.mrf.mxu0
      %v3191 = vadd.f32 0.0, %v3190
      %v3192 = vpop.f32.mrf.mxu0
      %3193 = vmatprep.mubr.bf16.mxu0 0
      %3194 = vmatmul.mubr.bf16.gmra.mxu0 %v3090
      %v3195 = vpop.f32.mrf.mxu0
      %v3196 = vadd.f32 0.0, %v3195
      %v3197 = vpop.f32.mrf.mxu0
      %v3198 = vpop.f32.mrf.mxu0
      %v3199 = vadd.f32 0.0, %v3198
      %v3200 = vpop.f32.mrf.mxu0
      %3201 = vmatprep.mubr.bf16.mxu0 0
      %3202 = vmatmul.mubr.bf16.gmra.mxu0 %v3093
      %v3203 = vpop.f32.mrf.mxu0
      %v3204 = vadd.f32 0.0, %v3203
      %v3205 = vpop.f32.mrf.mxu0
      %v3206 = vpop.f32.mrf.mxu0
      %v3207 = vadd.f32 0.0, %v3206
      %v3208 = vpop.f32.mrf.mxu0
      %3209 = vmatprep.mubr.bf16.mxu0 0
      %3210 = vmatmul.mubr.bf16.gmra.mxu0 %v3096
      %v3211 = vpop.f32.mrf.mxu0
      %v3212 = vadd.f32 0.0, %v3211
      %v3213 = vpop.f32.mrf.mxu0
      %v3214 = vpop.f32.mrf.mxu0
      %v3215 = vadd.f32 0.0, %v3214
      %v3216 = vpop.f32.mrf.mxu0
      %3217 = vmatprep.mubr.bf16.mxu0 0
      %3218 = vmatmul.mubr.bf16.gmra.mxu0 %v3099
      %v3219 = vpop.f32.mrf.mxu0
      %v3220 = vadd.f32 0.0, %v3219
      %v3221 = vpop.f32.mrf.mxu0
      %v3222 = vpop.f32.mrf.mxu0
      %v3223 = vadd.f32 0.0, %v3222
      %v3224 = vpop.f32.mrf.mxu0
      %3225 = vmatprep.mubr.bf16.mxu0 0
      %3226 = vmatmul.mubr.bf16.gmra.mxu0 %v3102
      %v3227 = vpop.f32.mrf.mxu0
      %v3228 = vadd.f32 0.0, %v3227
      %v3229 = vpop.f32.mrf.mxu0
      %v3230 = vpop.f32.mrf.mxu0
      %v3231 = vadd.f32 0.0, %v3230
      %v3232 = vpop.f32.mrf.mxu0
      %3233 = vmatprep.mubr.bf16.mxu0 0
      %3234 = vmatmul.mubr.bf16.gmra.mxu0 %v3105
      %v3235 = vpop.f32.mrf.mxu0
      %v3236 = vadd.f32 0.0, %v3235
      %v3237 = vpop.f32.mrf.mxu0
      %v3238 = vpop.f32.mrf.mxu0
      %v3239 = vadd.f32 0.0, %v3238
      %v3240 = vpop.f32.mrf.mxu0
      %3241 = vmatprep.mubr.bf16.mxu0 0
      %3242 = vmatmul.mubr.bf16.gmra.mxu0 %v3108
      %v3243 = vpop.f32.mrf.mxu0
      %v3244 = vadd.f32 0.0, %v3243
      %v3245 = vpop.f32.mrf.mxu0
      %v3246 = vpop.f32.mrf.mxu0
      %v3247 = vadd.f32 0.0, %v3246
      %v3248 = vpop.f32.mrf.mxu0
      %3249 = vmatprep.mubr.bf16.mxu0 0
      %3250 = vmatmul.mubr.bf16.gmra.mxu0 %v3111
      %v3251 = vpop.f32.mrf.mxu0
      %v3252 = vadd.f32 0.0, %v3251
      %v3253 = vpop.f32.mrf.mxu0
      %v3254 = vpop.f32.mrf.mxu0
      %v3255 = vadd.f32 0.0, %v3254
      %v3256 = vpop.f32.mrf.mxu0
      %3257 = vmatprep.mubr.bf16.mxu0 0
      %3258 = vmatmul.mubr.bf16.gmra.mxu0 %v3114
      %v3259 = vpop.f32.mrf.mxu0
      %v3260 = vadd.f32 0.0, %v3259
      %v3261 = vpop.f32.mrf.mxu0
      %v3262 = vpop.f32.mrf.mxu0
      %v3263 = vadd.f32 0.0, %v3262
      %v3264 = vpop.f32.mrf.mxu0
      %3265 = vmatprep.mubr.bf16.mxu0 0
      %3266 = vmatmul.mubr.bf16.gmra.mxu0 %v3117
      %v3267 = vpop.f32.mrf.mxu0
      %v3268 = vadd.f32 0.0, %v3267
      %v3269 = vpop.f32.mrf.mxu0
      %v3270 = vpop.f32.mrf.mxu0
      %v3271 = vadd.f32 0.0, %v3270
      %v3272 = vpop.f32.mrf.mxu0
      %3273 = vmatprep.mubr.bf16.mxu0 0
      %3274 = vmatmul.mubr.bf16.gmra.mxu0 %v3120
      %v3275 = vpop.f32.mrf.mxu0
      %v3276 = vadd.f32 0.0, %v3275
      %v3277 = vpop.f32.mrf.mxu0
      %v3278 = vpop.f32.mrf.mxu0
      %v3279 = vadd.f32 0.0, %v3278
      %v3280 = vpop.f32.mrf.mxu0
      %3281 = vmatprep.mubr.bf16.mxu0 0
      %3282 = vmatmul.mubr.bf16.gmra.mxu0 %v3123
      %v3283 = vpop.f32.mrf.mxu0
      %v3284 = vadd.f32 0.0, %v3283
      %v3285 = vpop.f32.mrf.mxu0
      %v3286 = vpop.f32.mrf.mxu0
      %v3287 = vadd.f32 0.0, %v3286
      %v3288 = vpop.f32.mrf.mxu0
      %3289 = vmatprep.mubr.bf16.mxu0 0
      %3290 = vmatmul.mubr.bf16.gmra.mxu0 %v3126
      %v3291 = vpop.f32.mrf.mxu0
      %v3292 = vadd.f32 0.0, %v3291
      %v3293 = vpop.f32.mrf.mxu0
      %v3294 = vpop.f32.mrf.mxu0
      %v3295 = vadd.f32 0.0, %v3294
      %v3296 = vpop.f32.mrf.mxu0
      %3297 = vmatprep.mubr.bf16.mxu0 0
      %3298 = vmatmul.mubr.bf16.gmra.mxu0 %v3129
      %v3299 = vpop.f32.mrf.mxu0
      %v3300 = vadd.f32 0.0, %v3299
      %v3301 = vpop.f32.mrf.mxu0
      %v3302 = vpop.f32.mrf.mxu0
      %v3303 = vadd.f32 0.0, %v3302
      %v3304 = vpop.f32.mrf.mxu0
      %3305 = vmatprep.mubr.bf16.mxu0 0
      %3306 = vmatmul.mubr.bf16.gmra.mxu0 %v3132
      %v3307 = vpop.f32.mrf.mxu0
      %v3308 = vadd.f32 0.0, %v3307
      %v3309 = vpop.f32.mrf.mxu0
      %v3310 = vpop.f32.mrf.mxu0
      %v3311 = vadd.f32 0.0, %v3310
      %v3312 = vpop.f32.mrf.mxu0
      %3313 = vdwg.mxu0
      %v3314 = vadd.f32 %v2988, %v3172
      %v3315 = vadd.f32 %v2989, %v3175
      %v3316 = vadd.f32 %v2990, %v3180
      %v3317 = vadd.f32 %v2991, %v3183
      %v3318 = vadd.f32 %v2992, %v3188
      %v3319 = vadd.f32 %v2993, %v3191
      %v3320 = vadd.f32 %v2994, %v3196
      %v3321 = vadd.f32 %v2995, %v3199
      %v3322 = vadd.f32 %v2996, %v3204
      %v3323 = vadd.f32 %v2997, %v3207
      %v3324 = vadd.f32 %v2998, %v3212
      %v3325 = vadd.f32 %v2999, %v3215
      %v3326 = vadd.f32 %v3000, %v3220
      %v3327 = vadd.f32 %v3001, %v3223
      %v3328 = vadd.f32 %v3002, %v3228
      %v3329 = vadd.f32 %v3003, %v3231
      %v3330 = vadd.f32 %v3004, %v3236
      %v3331 = vadd.f32 %v3005, %v3239
      %v3332 = vadd.f32 %v3006, %v3244
      %v3333 = vadd.f32 %v3007, %v3247
      %v3334 = vadd.f32 %v3008, %v3252
      %v3335 = vadd.f32 %v3009, %v3255
      %v3336 = vadd.f32 %v3010, %v3260
      %v3337 = vadd.f32 %v3011, %v3263
      %v3338 = vadd.f32 %v3012, %v3268
      %v3339 = vadd.f32 %v3013, %v3271
      %v3340 = vadd.f32 %v3014, %v3276
      %v3341 = vadd.f32 %v3015, %v3279
      %v3342 = vadd.f32 %v3016, %v3284
      %v3343 = vadd.f32 %v3017, %v3287
      %v3344 = vadd.f32 %v3018, %v3292
      %v3345 = vadd.f32 %v3019, %v3295
      %v3346 = vadd.f32 %v3020, %v3300
      %v3347 = vadd.f32 %v3021, %v3303
      %v3348 = vadd.f32 %v3022, %v3308
      %v3349 = vadd.f32 %v3023, %v3311
      %v3350 = vld [vmem:[%s611 + $0x26] sm:$0xff]
      %v3351 = vld [vmem:[%s611 + $0x2e] sm:$0xff]
      %v3352 = vld [vmem:[%s611 + $0x36] sm:$0xff]
      %v3353 = vld [vmem:[%s611 + $0x3e] sm:$0xff]
      %v3354 = vld [vmem:[%s611 + $0x46] sm:$0xff]
      %v3355 = vld [vmem:[%s611 + $0x4e] sm:$0xff]
      %v3356 = vld [vmem:[%s611 + $0x56] sm:$0xff]
      %v3357 = vld [vmem:[%s611 + $0x5e] sm:$0xff]
      %v3358 = vld [vmem:[%s611 + $0x66] sm:$0xff]
      %v3359 = vld [vmem:[%s611 + $0x6e] sm:$0xff]
      %v3360 = vld [vmem:[%s611 + $0x76] sm:$0xff]
      %v3361 = vld [vmem:[%s611 + $0x7e] sm:$0xff]
      %v3362 = vld [vmem:[%s611 + $0x86] sm:$0xff]
      %v3363 = vld [vmem:[%s611 + $0x8e] sm:$0xff]
      %v3364 = vld [vmem:[%s611 + $0x96] sm:$0xff]
      %v3365 = vld [vmem:[%s611 + $0x9e] sm:$0xff]
      %v3366 = vld [vmem:[%s611 + $0xa6] sm:$0xff]
      %v3367 = vld [vmem:[%s611 + $0xae] sm:$0xff]
      %v3368 = vld [vmem:[%s611 + $0xb6] sm:$0xff]
      %v3369 = vld [vmem:[%s611 + $0xbe] sm:$0xff]
      %v3370 = vld [vmem:[%s611 + $0xc6] sm:$0xff]
      %v3371 = vld [vmem:[%s611 + $0xce] sm:$0xff]
      %v3372 = vld [vmem:[%s611 + $0xd6] sm:$0xff]
      %v3373 = vld [vmem:[%s611 + $0xde] sm:$0xff]
      %v3374 = vld [vmem:[%s611 + $0xe6] sm:$0xff]
      %v3375 = vld [vmem:[%s611 + $0xee] sm:$0xff]
      %v3376 = vld [vmem:[%s611 + $0xf6] sm:$0xff]
      %v3377 = vld [vmem:[%s611 + $0xfe] sm:$0xff]
      %v3378 = vld [vmem:[%s611 + $0x106] sm:$0xff]
      %v3379 = vld [vmem:[%s611 + $0x10e] sm:$0xff]
      %v3380 = vld [vmem:[%s611 + $0x116] sm:$0xff]
      %v3381 = vld [vmem:[%s611 + $0x11e] sm:$0xff]
      %v3382 = vld [vmem:[%s611 + $0x126] sm:$0xff]
      %v3383 = vld [vmem:[%s611 + $0x12e] sm:$0xff]
      %v3384 = vld [vmem:[%s611 + $0x136] sm:$0xff]
      %v3385 = vld [vmem:[%s611 + $0x13e] sm:$0x3f]
      %v3386 = vpack.c.bf16 %v3351, %v3350
      %v3387 = vpack.c.bf16 %v3353, %v3352
      %v3388 = vpack.c.bf16 %v3355, %v3354
      %v3389 = vpack.c.bf16 %v3357, %v3356
      %v3390 = vpack.c.bf16 %v3359, %v3358
      %v3391 = vpack.c.bf16 %v3361, %v3360
      %v3392 = vpack.c.bf16 %v3363, %v3362
      %v3393 = vpack.c.bf16 %v3365, %v3364
      %v3394 = vpack.c.bf16 %v3367, %v3366
      %v3395 = vpack.c.bf16 %v3369, %v3368
      %v3396 = vpack.c.bf16 %v3371, %v3370
      %v3397 = vpack.c.bf16 %v3373, %v3372
      %v3398 = vpack.c.bf16 %v3375, %v3374
      %v3399 = vpack.c.bf16 %v3377, %v3376
      %v3400 = vpack.c.bf16 %v3379, %v3378
      %v3401 = vpack.c.bf16 %v3381, %v3380
      %v3402 = vpack.c.bf16 %v3383, %v3382
      %v3403 = vpack.c.bf16 %v3385, %v3384
      %s3404 = scalar_lea.vmem %s9, 16
      %v3405 = vld [vmem:[%s3404] sm:$0x3]
      %v3407 = vsel %vm924, %v3386, 0
      %v3410 = vsel %vm924, %v3387, 0
      %v3413 = vsel %vm924, %v3388, 0
      %v3416 = vsel %vm924, %v3389, 0
      %v3419 = vsel %vm924, %v3390, 0
      %v3422 = vsel %vm924, %v3391, 0
      %v3425 = vsel %vm924, %v3392, 0
      %v3428 = vsel %vm924, %v3393, 0
      %v3431 = vsel %vm924, %v3394, 0
      %v3434 = vsel %vm924, %v3395, 0
      %v3437 = vsel %vm924, %v3396, 0
      %v3440 = vsel %vm924, %v3397, 0
      %v3443 = vsel %vm924, %v3398, 0
      %v3446 = vsel %vm924, %v3399, 0
      %v3449 = vsel %vm924, %v3400, 0
      %v3452 = vsel %vm924, %v3401, 0
      %v3455 = vsel %vm924, %v3402, 0
      %v3458 = vsel %vm924, %v3403, 0
      %v3461 = vsel %vm979, %v3405, 0
      %3463 = vmatprep.subr.bf16.mxu0 0
      %3464 = vmatpush1.bf16.msra.mxu0 0
      %3465 = vmatprep.subr.bf16.mxu0 0
      %3466 = vmatpush1.bf16.msra.mxu0 0
      %3467 = vmatprep.subr.bf16.mxu0 0
      %3468 = vmatpush1.bf16.msra.mxu0 0
      %3469 = vmatprep.subr.bf16.mxu0 0
      %3470 = vmatpush1.bf16.msra.mxu0 0
      %3471 = vmatprep.subr.bf16.mxu0 0
      %3472 = vmatpush1.bf16.msra.mxu0 0
      %3473 = vmatprep.subr.bf16.mxu0 0
      %3474 = vmatpush1.bf16.msra.mxu0 0
      %3475 = vmatprep.subr.bf16.mxu0 0
      %3476 = vmatpush1.bf16.msra.mxu0 0
      %3477 = vmatprep.subr.bf16.mxu0 0
      %3478 = vmatpush1.bf16.msra.mxu0 %v3461
      %3479 = vmatprep.subr.bf16.mxu0 0
      %3480 = vmatpush2.bf16.msra.mxu0 0
      %3481 = vmatprep.subr.bf16.mxu0 0
      %3482 = vmatpush2.bf16.msra.mxu0 0
      %3483 = vmatprep.subr.bf16.mxu0 0
      %3484 = vmatpush2.bf16.msra.mxu0 0
      %3485 = vmatprep.subr.bf16.mxu0 0
      %3486 = vmatpush2.bf16.msra.mxu0 0
      %3487 = vmatprep.subr.bf16.mxu0 0
      %3488 = vmatpush2.bf16.msra.mxu0 0
      %3489 = vmatprep.subr.bf16.mxu0 0
      %3490 = vmatpush2.bf16.msra.mxu0 0
      %3491 = vmatprep.subr.bf16.mxu0 0
      %3492 = vmatpush2.bf16.msra.mxu0 0
      %3493 = vmatprep.subr.bf16.mxu0 0
      %3494 = vmatpush2.bf16.msra.mxu0 0
      %3495 = vmatprep.mubr.bf16.mxu0 0
      %3496 = vmatmul.mubr.bf16.gmra.mxu0 %v3407
      %v3497 = vpop.f32.mrf.mxu0
      %v3498 = vadd.f32 0.0, %v3497
      %v3499 = vpop.f32.mrf.mxu0
      %v3500 = vpop.f32.mrf.mxu0
      %v3501 = vadd.f32 0.0, %v3500
      %v3502 = vpop.f32.mrf.mxu0
      %3503 = vmatprep.mubr.bf16.mxu0 0
      %3504 = vmatmul.mubr.bf16.gmra.mxu0 %v3410
      %v3505 = vpop.f32.mrf.mxu0
      %v3506 = vadd.f32 0.0, %v3505
      %v3507 = vpop.f32.mrf.mxu0
      %v3508 = vpop.f32.mrf.mxu0
      %v3509 = vadd.f32 0.0, %v3508
      %v3510 = vpop.f32.mrf.mxu0
      %3511 = vmatprep.mubr.bf16.mxu0 0
      %3512 = vmatmul.mubr.bf16.gmra.mxu0 %v3413
      %v3513 = vpop.f32.mrf.mxu0
      %v3514 = vadd.f32 0.0, %v3513
      %v3515 = vpop.f32.mrf.mxu0
      %v3516 = vpop.f32.mrf.mxu0
      %v3517 = vadd.f32 0.0, %v3516
      %v3518 = vpop.f32.mrf.mxu0
      %3519 = vmatprep.mubr.bf16.mxu0 0
      %3520 = vmatmul.mubr.bf16.gmra.mxu0 %v3416
      %v3521 = vpop.f32.mrf.mxu0
      %v3522 = vadd.f32 0.0, %v3521
      %v3523 = vpop.f32.mrf.mxu0
      %v3524 = vpop.f32.mrf.mxu0
      %v3525 = vadd.f32 0.0, %v3524
      %v3526 = vpop.f32.mrf.mxu0
      %3527 = vmatprep.mubr.bf16.mxu0 0
      %3528 = vmatmul.mubr.bf16.gmra.mxu0 %v3419
      %v3529 = vpop.f32.mrf.mxu0
      %v3530 = vadd.f32 0.0, %v3529
      %v3531 = vpop.f32.mrf.mxu0
      %v3532 = vpop.f32.mrf.mxu0
      %v3533 = vadd.f32 0.0, %v3532
      %v3534 = vpop.f32.mrf.mxu0
      %3535 = vmatprep.mubr.bf16.mxu0 0
      %3536 = vmatmul.mubr.bf16.gmra.mxu0 %v3422
      %v3537 = vpop.f32.mrf.mxu0
      %v3538 = vadd.f32 0.0, %v3537
      %v3539 = vpop.f32.mrf.mxu0
      %v3540 = vpop.f32.mrf.mxu0
      %v3541 = vadd.f32 0.0, %v3540
      %v3542 = vpop.f32.mrf.mxu0
      %3543 = vmatprep.mubr.bf16.mxu0 0
      %3544 = vmatmul.mubr.bf16.gmra.mxu0 %v3425
      %v3545 = vpop.f32.mrf.mxu0
      %v3546 = vadd.f32 0.0, %v3545
      %v3547 = vpop.f32.mrf.mxu0
      %v3548 = vpop.f32.mrf.mxu0
      %v3549 = vadd.f32 0.0, %v3548
      %v3550 = vpop.f32.mrf.mxu0
      %3551 = vmatprep.mubr.bf16.mxu0 0
      %3552 = vmatmul.mubr.bf16.gmra.mxu0 %v3428
      %v3553 = vpop.f32.mrf.mxu0
      %v3554 = vadd.f32 0.0, %v3553
      %v3555 = vpop.f32.mrf.mxu0
      %v3556 = vpop.f32.mrf.mxu0
      %v3557 = vadd.f32 0.0, %v3556
      %v3558 = vpop.f32.mrf.mxu0
      %3559 = vmatprep.mubr.bf16.mxu0 0
      %3560 = vmatmul.mubr.bf16.gmra.mxu0 %v3431
      %v3561 = vpop.f32.mrf.mxu0
      %v3562 = vadd.f32 0.0, %v3561
      %v3563 = vpop.f32.mrf.mxu0
      %v3564 = vpop.f32.mrf.mxu0
      %v3565 = vadd.f32 0.0, %v3564
      %v3566 = vpop.f32.mrf.mxu0
      %3567 = vmatprep.mubr.bf16.mxu0 0
      %3568 = vmatmul.mubr.bf16.gmra.mxu0 %v3434
      %v3569 = vpop.f32.mrf.mxu0
      %v3570 = vadd.f32 0.0, %v3569
      %v3571 = vpop.f32.mrf.mxu0
      %v3572 = vpop.f32.mrf.mxu0
      %v3573 = vadd.f32 0.0, %v3572
      %v3574 = vpop.f32.mrf.mxu0
      %3575 = vmatprep.mubr.bf16.mxu0 0
      %3576 = vmatmul.mubr.bf16.gmra.mxu0 %v3437
      %v3577 = vpop.f32.mrf.mxu0
      %v3578 = vadd.f32 0.0, %v3577
      %v3579 = vpop.f32.mrf.mxu0
      %v3580 = vpop.f32.mrf.mxu0
      %v3581 = vadd.f32 0.0, %v3580
      %v3582 = vpop.f32.mrf.mxu0
      %3583 = vmatprep.mubr.bf16.mxu0 0
      %3584 = vmatmul.mubr.bf16.gmra.mxu0 %v3440
      %v3585 = vpop.f32.mrf.mxu0
      %v3586 = vadd.f32 0.0, %v3585
      %v3587 = vpop.f32.mrf.mxu0
      %v3588 = vpop.f32.mrf.mxu0
      %v3589 = vadd.f32 0.0, %v3588
      %v3590 = vpop.f32.mrf.mxu0
      %3591 = vmatprep.mubr.bf16.mxu0 0
      %3592 = vmatmul.mubr.bf16.gmra.mxu0 %v3443
      %v3593 = vpop.f32.mrf.mxu0
      %v3594 = vadd.f32 0.0, %v3593
      %v3595 = vpop.f32.mrf.mxu0
      %v3596 = vpop.f32.mrf.mxu0
      %v3597 = vadd.f32 0.0, %v3596
      %v3598 = vpop.f32.mrf.mxu0
      %3599 = vmatprep.mubr.bf16.mxu0 0
      %3600 = vmatmul.mubr.bf16.gmra.mxu0 %v3446
      %v3601 = vpop.f32.mrf.mxu0
      %v3602 = vadd.f32 0.0, %v3601
      %v3603 = vpop.f32.mrf.mxu0
      %v3604 = vpop.f32.mrf.mxu0
      %v3605 = vadd.f32 0.0, %v3604
      %v3606 = vpop.f32.mrf.mxu0
      %3607 = vmatprep.mubr.bf16.mxu0 0
      %3608 = vmatmul.mubr.bf16.gmra.mxu0 %v3449
      %v3609 = vpop.f32.mrf.mxu0
      %v3610 = vadd.f32 0.0, %v3609
      %v3611 = vpop.f32.mrf.mxu0
      %v3612 = vpop.f32.mrf.mxu0
      %v3613 = vadd.f32 0.0, %v3612
      %v3614 = vpop.f32.mrf.mxu0
      %3615 = vmatprep.mubr.bf16.mxu0 0
      %3616 = vmatmul.mubr.bf16.gmra.mxu0 %v3452
      %v3617 = vpop.f32.mrf.mxu0
      %v3618 = vadd.f32 0.0, %v3617
      %v3619 = vpop.f32.mrf.mxu0
      %v3620 = vpop.f32.mrf.mxu0
      %v3621 = vadd.f32 0.0, %v3620
      %v3622 = vpop.f32.mrf.mxu0
      %3623 = vmatprep.mubr.bf16.mxu0 0
      %3624 = vmatmul.mubr.bf16.gmra.mxu0 %v3455
      %v3625 = vpop.f32.mrf.mxu0
      %v3626 = vadd.f32 0.0, %v3625
      %v3627 = vpop.f32.mrf.mxu0
      %v3628 = vpop.f32.mrf.mxu0
      %v3629 = vadd.f32 0.0, %v3628
      %v3630 = vpop.f32.mrf.mxu0
      %3631 = vmatprep.mubr.bf16.mxu0 0
      %3632 = vmatmul.mubr.bf16.gmra.mxu0 %v3458
      %v3633 = vpop.f32.mrf.mxu0
      %v3634 = vadd.f32 0.0, %v3633
      %v3635 = vpop.f32.mrf.mxu0
      %v3636 = vpop.f32.mrf.mxu0
      %v3637 = vadd.f32 0.0, %v3636
      %v3638 = vpop.f32.mrf.mxu0
      %3639 = vdwg.mxu0
      %v3640 = vadd.f32 %v3314, %v3498
      %v3641 = vadd.f32 %v3315, %v3501
      %v3642 = vadd.f32 %v3316, %v3506
      %v3643 = vadd.f32 %v3317, %v3509
      %v3644 = vadd.f32 %v3318, %v3514
      %v3645 = vadd.f32 %v3319, %v3517
      %v3646 = vadd.f32 %v3320, %v3522
      %v3647 = vadd.f32 %v3321, %v3525
      %v3648 = vadd.f32 %v3322, %v3530
      %v3649 = vadd.f32 %v3323, %v3533
      %v3650 = vadd.f32 %v3324, %v3538
      %v3651 = vadd.f32 %v3325, %v3541
      %v3652 = vadd.f32 %v3326, %v3546
      %v3653 = vadd.f32 %v3327, %v3549
      %v3654 = vadd.f32 %v3328, %v3554
      %v3655 = vadd.f32 %v3329, %v3557
      %v3656 = vadd.f32 %v3330, %v3562
      %v3657 = vadd.f32 %v3331, %v3565
      %v3658 = vadd.f32 %v3332, %v3570
      %v3659 = vadd.f32 %v3333, %v3573
      %v3660 = vadd.f32 %v3334, %v3578
      %v3661 = vadd.f32 %v3335, %v3581
      %v3662 = vadd.f32 %v3336, %v3586
      %v3663 = vadd.f32 %v3337, %v3589
      %v3664 = vadd.f32 %v3338, %v3594
      %v3665 = vadd.f32 %v3339, %v3597
      %v3666 = vadd.f32 %v3340, %v3602
      %v3667 = vadd.f32 %v3341, %v3605
      %v3668 = vadd.f32 %v3342, %v3610
      %v3669 = vadd.f32 %v3343, %v3613
      %v3670 = vadd.f32 %v3344, %v3618
      %v3671 = vadd.f32 %v3345, %v3621
      %v3672 = vadd.f32 %v3346, %v3626
      %v3673 = vadd.f32 %v3347, %v3629
      %v3674 = vadd.f32 %v3348, %v3634
      %v3675 = vadd.f32 %v3349, %v3637
      %v3676 = vld [vmem:[%s10] sm:$0x1]
      %v3678 = vlaneseq
      %v3679 = vshrl.u32 %v3678, 7
      %v3680 = vsub.s32 0, %v3679
      %v3681 = vrot.slane %v3676, %v3680
      %v3683 = vadd.f32 %v3640, %v3681
      %v3684 = vadd.f32 %v3641, %v3681
      %v3685 = vadd.f32 %v3642, %v3681
      %v3686 = vadd.f32 %v3643, %v3681
      %v3687 = vadd.f32 %v3644, %v3681
      %v3688 = vadd.f32 %v3645, %v3681
      %v3689 = vadd.f32 %v3646, %v3681
      %v3690 = vadd.f32 %v3647, %v3681
      %v3691 = vadd.f32 %v3648, %v3681
      %v3692 = vadd.f32 %v3649, %v3681
      %v3693 = vadd.f32 %v3650, %v3681
      %v3694 = vadd.f32 %v3651, %v3681
      %v3695 = vadd.f32 %v3652, %v3681
      %v3696 = vadd.f32 %v3653, %v3681
      %v3697 = vadd.f32 %v3654, %v3681
      %v3698 = vadd.f32 %v3655, %v3681
      %v3699 = vadd.f32 %v3656, %v3681
      %v3700 = vadd.f32 %v3657, %v3681
      %v3701 = vadd.f32 %v3658, %v3681
      %v3702 = vadd.f32 %v3659, %v3681
      %v3703 = vadd.f32 %v3660, %v3681
      %v3704 = vadd.f32 %v3661, %v3681
      %v3705 = vadd.f32 %v3662, %v3681
      %v3706 = vadd.f32 %v3663, %v3681
      %v3707 = vadd.f32 %v3664, %v3681
      %v3708 = vadd.f32 %v3665, %v3681
      %v3709 = vadd.f32 %v3666, %v3681
      %v3710 = vadd.f32 %v3667, %v3681
      %v3711 = vadd.f32 %v3668, %v3681
      %v3712 = vadd.f32 %v3669, %v3681
      %v3713 = vadd.f32 %v3670, %v3681
      %v3714 = vadd.f32 %v3671, %v3681
      %v3715 = vadd.f32 %v3672, %v3681
      %v3716 = vadd.f32 %v3673, %v3681
      %v3717 = vadd.f32 %v3674, %v3681
      %v3718 = vadd.f32 %v3675, %v3681
      %v3719 = vld [vmem:[%s11] sm:$0x1]
      %v3720 = vld [vmem:[%s12] sm:$0x1]
      %3722 = vset.pattern.permute.xlu0 0
      %3723 = vperm.xlu0 %3722, %v618
      %v3724 = vpop.permute.xlu0 %3723
      %3727 = vset.pattern.permute.xlu0 0
      %3728 = vperm.xlu0 %3727, %v619
      %v3729 = vpop.permute.xlu0 %3728
      %3732 = vset.pattern.permute.xlu0 0
      %3733 = vperm.xlu0 %3732, %v620
      %v3734 = vpop.permute.xlu0 %3733
      %3737 = vset.pattern.permute.xlu0 0
      %3738 = vperm.xlu0 %3737, %v621
      %v3739 = vpop.permute.xlu0 %3738
      %3742 = vset.pattern.permute.xlu0 0
      %3743 = vperm.xlu0 %3742, %v622
      %v3744 = vpop.permute.xlu0 %3743
      %3747 = vset.pattern.permute.xlu0 0
      %3748 = vperm.xlu0 %3747, %v623
      %v3749 = vpop.permute.xlu0 %3748
      %3752 = vset.pattern.permute.xlu0 0
      %3753 = vperm.xlu0 %3752, %v624
      %v3754 = vpop.permute.xlu0 %3753
      %3757 = vset.pattern.permute.xlu0 0
      %3758 = vperm.xlu0 %3757, %v625
      %v3759 = vpop.permute.xlu0 %3758
      %3762 = vset.pattern.permute.xlu0 0
      %3763 = vperm.xlu0 %3762, %v626
      %v3764 = vpop.permute.xlu0 %3763
      %3767 = vset.pattern.permute.xlu0 0
      %3768 = vperm.xlu0 %3767, %v627
      %v3769 = vpop.permute.xlu0 %3768
      %3772 = vset.pattern.permute.xlu0 0
      %3773 = vperm.xlu0 %3772, %v628
      %v3774 = vpop.permute.xlu0 %3773
      %3777 = vset.pattern.permute.xlu0 0
      %3778 = vperm.xlu0 %3777, %v629
      %v3779 = vpop.permute.xlu0 %3778
      %3782 = vset.pattern.permute.xlu0 0
      %3783 = vperm.xlu0 %3782, %v630
      %v3784 = vpop.permute.xlu0 %3783
      %3787 = vset.pattern.permute.xlu0 0
      %3788 = vperm.xlu0 %3787, %v631
      %v3789 = vpop.permute.xlu0 %3788
      %3792 = vset.pattern.permute.xlu0 0
      %3793 = vperm.xlu0 %3792, %v632
      %v3794 = vpop.permute.xlu0 %3793
      %3797 = vset.pattern.permute.xlu0 0
      %3798 = vperm.xlu0 %3797, %v633
      %v3799 = vpop.permute.xlu0 %3798
      %3802 = vset.pattern.permute.xlu0 0
      %3803 = vperm.xlu0 %3802, %v634
      %v3804 = vpop.permute.xlu0 %3803
      %3807 = vset.pattern.permute.xlu0 0
      %3808 = vperm.xlu0 %3807, %v635
      %v3809 = vpop.permute.xlu0 %3808
      %3812 = vset.pattern.permute.xlu0 0
      %3813 = vperm.xlu0 %3812, %v636
      %v3814 = vpop.permute.xlu0 %3813
      %3817 = vset.pattern.permute.xlu0 0
      %3818 = vperm.xlu0 %3817, %v637
      %v3819 = vpop.permute.xlu0 %3818
      %3822 = vset.pattern.permute.xlu0 0
      %3823 = vperm.xlu0 %3822, %v638
      %v3824 = vpop.permute.xlu0 %3823
      %3827 = vset.pattern.permute.xlu0 0
      %3828 = vperm.xlu0 %3827, %v639
      %v3829 = vpop.permute.xlu0 %3828
      %3832 = vset.pattern.permute.xlu0 0
      %3833 = vperm.xlu0 %3832, %v640
      %v3834 = vpop.permute.xlu0 %3833
      %3837 = vset.pattern.permute.xlu0 0
      %3838 = vperm.xlu0 %3837, %v641
      %v3839 = vpop.permute.xlu0 %3838
      %3842 = vset.pattern.permute.xlu0 0
      %3843 = vperm.xlu0 %3842, %v642
      %v3844 = vpop.permute.xlu0 %3843
      %3847 = vset.pattern.permute.xlu0 0
      %3848 = vperm.xlu0 %3847, %v643
      %v3849 = vpop.permute.xlu0 %3848
      %3852 = vset.pattern.permute.xlu0 0
      %3853 = vperm.xlu0 %3852, %v644
      %v3854 = vpop.permute.xlu0 %3853
      %3857 = vset.pattern.permute.xlu0 0
      %3858 = vperm.xlu0 %3857, %v645
      %v3859 = vpop.permute.xlu0 %3858
      %3862 = vset.pattern.permute.xlu0 0
      %3863 = vperm.xlu0 %3862, %v646
      %v3864 = vpop.permute.xlu0 %3863
      %3867 = vset.pattern.permute.xlu0 0
      %3868 = vperm.xlu0 %3867, %v647
      %v3869 = vpop.permute.xlu0 %3868
      %3872 = vset.pattern.permute.xlu0 0
      %3873 = vperm.xlu0 %3872, %v648
      %v3874 = vpop.permute.xlu0 %3873
      %3877 = vset.pattern.permute.xlu0 0
      %3878 = vperm.xlu0 %3877, %v649
      %v3879 = vpop.permute.xlu0 %3878
      %3882 = vset.pattern.permute.xlu0 0
      %3883 = vperm.xlu0 %3882, %v650
      %v3884 = vpop.permute.xlu0 %3883
      %3887 = vset.pattern.permute.xlu0 0
      %3888 = vperm.xlu0 %3887, %v651
      %v3889 = vpop.permute.xlu0 %3888
      %3892 = vset.pattern.permute.xlu0 0
      %3893 = vperm.xlu0 %3892, %v652
      %v3894 = vpop.permute.xlu0 %3893
      %3897 = vset.pattern.permute.xlu0 0
      %3898 = vperm.xlu0 %3897, %v653
      %v3899 = vpop.permute.xlu0 %3898
      %v3901 = vmul.f32 %v3683, %v3724
      %v3902 = vmul.f32 %v3684, %v3729
      %v3903 = vmul.f32 %v3685, %v3734
      %v3904 = vmul.f32 %v3686, %v3739
      %v3905 = vmul.f32 %v3687, %v3744
      %v3906 = vmul.f32 %v3688, %v3749
      %v3907 = vmul.f32 %v3689, %v3754
      %v3908 = vmul.f32 %v3690, %v3759
      %v3909 = vmul.f32 %v3691, %v3764
      %v3910 = vmul.f32 %v3692, %v3769
      %v3911 = vmul.f32 %v3693, %v3774
      %v3912 = vmul.f32 %v3694, %v3779
      %v3913 = vmul.f32 %v3695, %v3784
      %v3914 = vmul.f32 %v3696, %v3789
      %v3915 = vmul.f32 %v3697, %v3794
      %v3916 = vmul.f32 %v3698, %v3799
      %v3917 = vmul.f32 %v3699, %v3804
      %v3918 = vmul.f32 %v3700, %v3809
      %v3919 = vmul.f32 %v3701, %v3814
      %v3920 = vmul.f32 %v3702, %v3819
      %v3921 = vmul.f32 %v3703, %v3824
      %v3922 = vmul.f32 %v3704, %v3829
      %v3923 = vmul.f32 %v3705, %v3834
      %v3924 = vmul.f32 %v3706, %v3839
      %v3925 = vmul.f32 %v3707, %v3844
      %v3926 = vmul.f32 %v3708, %v3849
      %v3927 = vmul.f32 %v3709, %v3854
      %v3928 = vmul.f32 %v3710, %v3859
      %v3929 = vmul.f32 %v3711, %v3864
      %v3930 = vmul.f32 %v3712, %v3869
      %v3931 = vmul.f32 %v3713, %v3874
      %v3932 = vmul.f32 %v3714, %v3879
      %v3933 = vmul.f32 %v3715, %v3884
      %v3934 = vmul.f32 %v3716, %v3889
      %v3935 = vmul.f32 %v3717, %v3894
      %v3936 = vmul.f32 %v3718, %v3899
      %vm3937 = vcmask 64512
      %v3938 = vsel %vm3937, %v3901, 0.0
      %v3939 = vsel %vm3937, %v3902, 0.0
      %v3940 = vadd.f32 %v3938, %v3939
      %v3941 = vsel %vm3937, %v3903, 0.0
      %v3942 = vadd.f32 %v3940, %v3941
      %v3943 = vsel %vm3937, %v3904, 0.0
      %v3944 = vadd.f32 %v3942, %v3943
      %v3945 = vsel %vm3937, %v3905, 0.0
      %v3946 = vadd.f32 %v3944, %v3945
      %v3947 = vsel %vm3937, %v3906, 0.0
      %v3948 = vadd.f32 %v3946, %v3947
      %v3949 = vsel %vm3937, %v3907, 0.0
      %v3950 = vadd.f32 %v3948, %v3949
      %v3951 = vsel %vm3937, %v3908, 0.0
      %v3952 = vadd.f32 %v3950, %v3951
      %v3953 = vsel %vm3937, %v3909, 0.0
      %v3954 = vadd.f32 %v3952, %v3953
      %v3955 = vsel %vm3937, %v3910, 0.0
      %v3956 = vadd.f32 %v3954, %v3955
      %v3957 = vsel %vm3937, %v3911, 0.0
      %v3958 = vadd.f32 %v3956, %v3957
      %v3959 = vsel %vm3937, %v3912, 0.0
      %v3960 = vadd.f32 %v3958, %v3959
      %v3961 = vsel %vm3937, %v3913, 0.0
      %v3962 = vadd.f32 %v3960, %v3961
      %v3963 = vsel %vm3937, %v3914, 0.0
      %v3964 = vadd.f32 %v3962, %v3963
      %v3965 = vsel %vm3937, %v3915, 0.0
      %v3966 = vadd.f32 %v3964, %v3965
      %v3967 = vsel %vm3937, %v3916, 0.0
      %v3968 = vadd.f32 %v3966, %v3967
      %v3969 = vsel %vm3937, %v3917, 0.0
      %v3970 = vadd.f32 %v3968, %v3969
      %v3971 = vsel %vm3937, %v3918, 0.0
      %v3972 = vadd.f32 %v3970, %v3971
      %v3973 = vsel %vm3937, %v3919, 0.0
      %v3974 = vadd.f32 %v3972, %v3973
      %v3975 = vsel %vm3937, %v3920, 0.0
      %v3976 = vadd.f32 %v3974, %v3975
      %v3977 = vsel %vm3937, %v3921, 0.0
      %v3978 = vadd.f32 %v3976, %v3977
      %v3979 = vsel %vm3937, %v3922, 0.0
      %v3980 = vadd.f32 %v3978, %v3979
      %v3981 = vsel %vm3937, %v3923, 0.0
      %v3982 = vadd.f32 %v3980, %v3981
      %v3983 = vsel %vm3937, %v3924, 0.0
      %v3984 = vadd.f32 %v3982, %v3983
      %v3985 = vsel %vm3937, %v3925, 0.0
      %v3986 = vadd.f32 %v3984, %v3985
      %v3987 = vsel %vm3937, %v3926, 0.0
      %v3988 = vadd.f32 %v3986, %v3987
      %v3989 = vsel %vm3937, %v3927, 0.0
      %v3990 = vadd.f32 %v3988, %v3989
      %v3991 = vsel %vm3937, %v3928, 0.0
      %v3992 = vadd.f32 %v3990, %v3991
      %v3993 = vsel %vm3937, %v3929, 0.0
      %v3994 = vadd.f32 %v3992, %v3993
      %v3995 = vsel %vm3937, %v3930, 0.0
      %v3996 = vadd.f32 %v3994, %v3995
      %v3997 = vsel %vm3937, %v3931, 0.0
      %v3998 = vadd.f32 %v3996, %v3997
      %v3999 = vsel %vm3937, %v3932, 0.0
      %v4000 = vadd.f32 %v3998, %v3999
      %v4001 = vsel %vm3937, %v3933, 0.0
      %v4002 = vadd.f32 %v4000, %v4001
      %v4003 = vsel %vm3937, %v3934, 0.0
      %v4004 = vadd.f32 %v4002, %v4003
      %v4005 = vsel %vm3937, %v3935, 0.0
      %v4006 = vadd.f32 %v4004, %v4005
      %vm4007 = vcmask 62464
      %v4008 = vsel %vm4007, %v3936, 0.0
      %v4009 = vadd.f32 %v4006, %v4008
      %v4010 = vrot.slane %v4009, 4
      %v4011 = vadd.f32 %v4009, %v4010
      %v4012 = vrot.slane %v4011, 2
      %v4013 = vadd.f32 %v4011, %v4012
      %v4014 = vrot.slane %v4013, 1
      %v4015 = vadd.f32 %v4013, %v4014
      %v4017 = vsel %vm3937, %v4015, 0
      %4019 = vmatprep.subr.mxu0 0.0
      %4020 = vmatpush1.msra.mxu0 0.0
      %4021 = vmatprep.subr.mxu0 0.0
      %4022 = vmatpush1.msra.mxu0 0.0
      %4023 = vmatprep.subr.mxu0 0.0
      %4024 = vmatpush1.msra.mxu0 0.0
      %4025 = vmatprep.subr.mxu0 0.0
      %4026 = vmatpush1.msra.mxu0 0.0
      %4027 = vmatprep.subr.mxu0 0.0
      %4028 = vmatpush1.msra.mxu0 0.0
      %4029 = vmatprep.subr.mxu0 0.0
      %4030 = vmatpush1.msra.mxu0 0.0
      %4031 = vmatprep.subr.mxu0 0.0
      %4032 = vmatpush1.msra.mxu0 0.0
      %4033 = vmatprep.subr.mxu0 0.0
      %4034 = vmatpush1.msra.mxu0 0.0
      %4035 = vmatprep.subr.mxu0 0.0
      %4036 = vmatpush1.msra.mxu0 0.0
      %4037 = vmatprep.subr.mxu0 0.0
      %4038 = vmatpush1.msra.mxu0 0.0
      %4039 = vmatprep.subr.mxu0 0.0
      %4040 = vmatpush1.msra.mxu0 0.0
      %4041 = vmatprep.subr.mxu0 0.0
      %4042 = vmatpush1.msra.mxu0 0.0
      %4043 = vmatprep.subr.mxu0 0.0
      %4044 = vmatpush1.msra.mxu0 0.0
      %4045 = vmatprep.subr.mxu0 0.0
      %4046 = vmatpush1.msra.mxu0 0.0
      %4047 = vmatprep.subr.mxu0 0.0
      %4048 = vmatpush1.msra.mxu0 0.0
      %4049 = vmatprep.subr.mxu0 0.0
      %4050 = vmatpush1.msra.mxu0 %v654
      %4051 = vmatprep.subr.mxu0 0.0
      %4052 = vmatpush2.msra.mxu0 0.0
      %4053 = vmatprep.subr.mxu0 0.0
      %4054 = vmatpush2.msra.mxu0 0.0
      %4055 = vmatprep.subr.mxu0 0.0
      %4056 = vmatpush2.msra.mxu0 0.0
      %4057 = vmatprep.subr.mxu0 0.0
      %4058 = vmatpush2.msra.mxu0 0.0
      %4059 = vmatprep.subr.mxu0 0.0
      %4060 = vmatpush2.msra.mxu0 0.0
      %4061 = vmatprep.subr.mxu0 0.0
      %4062 = vmatpush2.msra.mxu0 0.0
      %4063 = vmatprep.subr.mxu0 0.0
      %4064 = vmatpush2.msra.mxu0 0.0
      %4065 = vmatprep.subr.mxu0 0.0
      %4066 = vmatpush2.msra.mxu0 0.0
      %4067 = vmatprep.subr.mxu0 0.0
      %4068 = vmatpush2.msra.mxu0 0.0
      %4069 = vmatprep.subr.mxu0 0.0
      %4070 = vmatpush2.msra.mxu0 0.0
      %4071 = vmatprep.subr.mxu0 0.0
      %4072 = vmatpush2.msra.mxu0 0.0
      %4073 = vmatprep.subr.mxu0 0.0
      %4074 = vmatpush2.msra.mxu0 0.0
      %4075 = vmatprep.subr.mxu0 0.0
      %4076 = vmatpush2.msra.mxu0 0.0
      %4077 = vmatprep.subr.mxu0 0.0
      %4078 = vmatpush2.msra.mxu0 0.0
      %4079 = vmatprep.subr.mxu0 0.0
      %4080 = vmatpush2.msra.mxu0 0.0
      %4081 = vmatprep.subr.mxu0 0.0
      %4082 = vmatpush2.msra.mxu0 0.0
      %4083 = vmatprep.mubr.f32.mxu0 0.0
      %4084 = vmatmul.mubr.f32.gmra.mxu0 %v4017
      %v4085 = vpop.f32.mrf.mxu0
      %v4086 = vadd.f32 0.0, %v4085
      %v4087 = vpop.f32.mrf.mxu0
      %4088 = vdwg.mxu0
      %v4089 = vmul.f32 %v4086, 0.001953125
      %v4091 = vsel %vm924, %v4089, 0
      %vm4093 = vcmask 1043456
      %v4095 = vsel %vm4093, %v655, 0
      %4097 = vmatprep.subr.mxu0 0.0
      %4098 = vmatpush1.msra.mxu0 0.0
      %4099 = vmatprep.subr.mxu0 0.0
      %4100 = vmatpush1.msra.mxu0 0.0
      %4101 = vmatprep.subr.mxu0 0.0
      %4102 = vmatpush1.msra.mxu0 0.0
      %4103 = vmatprep.subr.mxu0 0.0
      %4104 = vmatpush1.msra.mxu0 0.0
      %4105 = vmatprep.subr.mxu0 0.0
      %4106 = vmatpush1.msra.mxu0 0.0
      %4107 = vmatprep.subr.mxu0 0.0
      %4108 = vmatpush1.msra.mxu0 0.0
      %4109 = vmatprep.subr.mxu0 0.0
      %4110 = vmatpush1.msra.mxu0 0.0
      %4111 = vmatprep.subr.mxu0 0.0
      %4112 = vmatpush1.msra.mxu0 0.0
      %4113 = vmatprep.subr.mxu0 0.0
      %4114 = vmatpush1.msra.mxu0 0.0
      %4115 = vmatprep.subr.mxu0 0.0
      %4116 = vmatpush1.msra.mxu0 0.0
      %4117 = vmatprep.subr.mxu0 0.0
      %4118 = vmatpush1.msra.mxu0 0.0
      %4119 = vmatprep.subr.mxu0 0.0
      %4120 = vmatpush1.msra.mxu0 0.0
      %4121 = vmatprep.subr.mxu0 0.0
      %4122 = vmatpush1.msra.mxu0 0.0
      %4123 = vmatprep.subr.mxu0 0.0
      %4124 = vmatpush1.msra.mxu0 0.0
      %4125 = vmatprep.subr.mxu0 0.0
      %4126 = vmatpush1.msra.mxu0 0.0
      %4127 = vmatprep.subr.mxu0 0.0
      %4128 = vmatpush1.msra.mxu0 %v4095
      %4129 = vmatprep.subr.mxu0 0.0
      %4130 = vmatpush2.msra.mxu0 0.0
      %4131 = vmatprep.subr.mxu0 0.0
      %4132 = vmatpush2.msra.mxu0 0.0
      %4133 = vmatprep.subr.mxu0 0.0
      %4134 = vmatpush2.msra.mxu0 0.0
      %4135 = vmatprep.subr.mxu0 0.0
      %4136 = vmatpush2.msra.mxu0 0.0
      %4137 = vmatprep.subr.mxu0 0.0
      %4138 = vmatpush2.msra.mxu0 0.0
      %4139 = vmatprep.subr.mxu0 0.0
      %4140 = vmatpush2.msra.mxu0 0.0
      %4141 = vmatprep.subr.mxu0 0.0
      %4142 = vmatpush2.msra.mxu0 0.0
      %4143 = vmatprep.subr.mxu0 0.0
      %4144 = vmatpush2.msra.mxu0 0.0
      %4145 = vmatprep.subr.mxu0 0.0
      %4146 = vmatpush2.msra.mxu0 0.0
      %4147 = vmatprep.subr.mxu0 0.0
      %4148 = vmatpush2.msra.mxu0 0.0
      %4149 = vmatprep.subr.mxu0 0.0
      %4150 = vmatpush2.msra.mxu0 0.0
      %4151 = vmatprep.subr.mxu0 0.0
      %4152 = vmatpush2.msra.mxu0 0.0
      %4153 = vmatprep.subr.mxu0 0.0
      %4154 = vmatpush2.msra.mxu0 0.0
      %4155 = vmatprep.subr.mxu0 0.0
      %4156 = vmatpush2.msra.mxu0 0.0
      %4157 = vmatprep.subr.mxu0 0.0
      %4158 = vmatpush2.msra.mxu0 0.0
      %4159 = vmatprep.subr.mxu0 0.0
      %4160 = vmatpush2.msra.mxu0 0.0
      %4161 = vmatprep.mubr.f32.mxu0 0.0
      %4162 = vmatmul.mubr.f32.gmra.mxu0 %v4091
      %v4163 = vpop.f32.mrf.mxu0
      %v4164 = vadd.f32 0.0, %v4163
      %v4165 = vpop.f32.mrf.mxu0
      %4166 = vdwg.mxu0
      %v4167 = vlaneseq
      %v4168 = vshrl.u32 %v4167, 7
      %v4169 = vsub.s32 0, %v4168
      %v4170 = vrot.slane %v4164, %v4169
      %v4171 = vsub.f32 %v3683, %v4170
      %v4172 = vsub.f32 %v3684, %v4170
      %v4173 = vsub.f32 %v3685, %v4170
      %v4174 = vsub.f32 %v3686, %v4170
      %v4175 = vsub.f32 %v3687, %v4170
      %v4176 = vsub.f32 %v3688, %v4170
      %v4177 = vsub.f32 %v3689, %v4170
      %v4178 = vsub.f32 %v3690, %v4170
      %v4179 = vsub.f32 %v3691, %v4170
      %v4180 = vsub.f32 %v3692, %v4170
      %v4181 = vsub.f32 %v3693, %v4170
      %v4182 = vsub.f32 %v3694, %v4170
      %v4183 = vsub.f32 %v3695, %v4170
      %v4184 = vsub.f32 %v3696, %v4170
      %v4185 = vsub.f32 %v3697, %v4170
      %v4186 = vsub.f32 %v3698, %v4170
      %v4187 = vsub.f32 %v3699, %v4170
      %v4188 = vsub.f32 %v3700, %v4170
      %v4189 = vsub.f32 %v3701, %v4170
      %v4190 = vsub.f32 %v3702, %v4170
      %v4191 = vsub.f32 %v3703, %v4170
      %v4192 = vsub.f32 %v3704, %v4170
      %v4193 = vsub.f32 %v3705, %v4170
      %v4194 = vsub.f32 %v3706, %v4170
      %v4195 = vsub.f32 %v3707, %v4170
      %v4196 = vsub.f32 %v3708, %v4170
      %v4197 = vsub.f32 %v3709, %v4170
      %v4198 = vsub.f32 %v3710, %v4170
      %v4199 = vsub.f32 %v3711, %v4170
      %v4200 = vsub.f32 %v3712, %v4170
      %v4201 = vsub.f32 %v3713, %v4170
      %v4202 = vsub.f32 %v3714, %v4170
      %v4203 = vsub.f32 %v3715, %v4170
      %v4204 = vsub.f32 %v3716, %v4170
      %v4205 = vsub.f32 %v3717, %v4170
      %v4206 = vsub.f32 %v3718, %v4170
      %v4207 = vmul.f32 %v4171, %v4171
      %v4208 = vmul.f32 %v4172, %v4172
      %v4209 = vmul.f32 %v4173, %v4173
      %v4210 = vmul.f32 %v4174, %v4174
      %v4211 = vmul.f32 %v4175, %v4175
      %v4212 = vmul.f32 %v4176, %v4176
      %v4213 = vmul.f32 %v4177, %v4177
      %v4214 = vmul.f32 %v4178, %v4178
      %v4215 = vmul.f32 %v4179, %v4179
      %v4216 = vmul.f32 %v4180, %v4180
      %v4217 = vmul.f32 %v4181, %v4181
      %v4218 = vmul.f32 %v4182, %v4182
      %v4219 = vmul.f32 %v4183, %v4183
      %v4220 = vmul.f32 %v4184, %v4184
      %v4221 = vmul.f32 %v4185, %v4185
      %v4222 = vmul.f32 %v4186, %v4186
      %v4223 = vmul.f32 %v4187, %v4187
      %v4224 = vmul.f32 %v4188, %v4188
      %v4225 = vmul.f32 %v4189, %v4189
      %v4226 = vmul.f32 %v4190, %v4190
      %v4227 = vmul.f32 %v4191, %v4191
      %v4228 = vmul.f32 %v4192, %v4192
      %v4229 = vmul.f32 %v4193, %v4193
      %v4230 = vmul.f32 %v4194, %v4194
      %v4231 = vmul.f32 %v4195, %v4195
      %v4232 = vmul.f32 %v4196, %v4196
      %v4233 = vmul.f32 %v4197, %v4197
      %v4234 = vmul.f32 %v4198, %v4198
      %v4235 = vmul.f32 %v4199, %v4199
      %v4236 = vmul.f32 %v4200, %v4200
      %v4237 = vmul.f32 %v4201, %v4201
      %v4238 = vmul.f32 %v4202, %v4202
      %v4239 = vmul.f32 %v4203, %v4203
      %v4240 = vmul.f32 %v4204, %v4204
      %v4241 = vmul.f32 %v4205, %v4205
      %v4242 = vmul.f32 %v4206, %v4206
      %v4243 = vmul.f32 %v4207, %v3724
      %v4244 = vmul.f32 %v4208, %v3729
      %v4245 = vmul.f32 %v4209, %v3734
      %v4246 = vmul.f32 %v4210, %v3739
      %v4247 = vmul.f32 %v4211, %v3744
      %v4248 = vmul.f32 %v4212, %v3749
      %v4249 = vmul.f32 %v4213, %v3754
      %v4250 = vmul.f32 %v4214, %v3759
      %v4251 = vmul.f32 %v4215, %v3764
      %v4252 = vmul.f32 %v4216, %v3769
      %v4253 = vmul.f32 %v4217, %v3774
      %v4254 = vmul.f32 %v4218, %v3779
      %v4255 = vmul.f32 %v4219, %v3784
      %v4256 = vmul.f32 %v4220, %v3789
      %v4257 = vmul.f32 %v4221, %v3794
      %v4258 = vmul.f32 %v4222, %v3799
      %v4259 = vmul.f32 %v4223, %v3804
      %v4260 = vmul.f32 %v4224, %v3809
      %v4261 = vmul.f32 %v4225, %v3814
      %v4262 = vmul.f32 %v4226, %v3819
      %v4263 = vmul.f32 %v4227, %v3824
      %v4264 = vmul.f32 %v4228, %v3829
      %v4265 = vmul.f32 %v4229, %v3834
      %v4266 = vmul.f32 %v4230, %v3839
      %v4267 = vmul.f32 %v4231, %v3844
      %v4268 = vmul.f32 %v4232, %v3849
      %v4269 = vmul.f32 %v4233, %v3854
      %v4270 = vmul.f32 %v4234, %v3859
      %v4271 = vmul.f32 %v4235, %v3864
      %v4272 = vmul.f32 %v4236, %v3869
      %v4273 = vmul.f32 %v4237, %v3874
      %v4274 = vmul.f32 %v4238, %v3879
      %v4275 = vmul.f32 %v4239, %v3884
      %v4276 = vmul.f32 %v4240, %v3889
      %v4277 = vmul.f32 %v4241, %v3894
      %v4278 = vmul.f32 %v4242, %v3899
      %v4279 = vsel %vm3937, %v4243, 0.0
      %v4280 = vsel %vm3937, %v4244, 0.0
      %v4281 = vadd.f32 %v4279, %v4280
      %v4282 = vsel %vm3937, %v4245, 0.0
      %v4283 = vadd.f32 %v4281, %v4282
      %v4284 = vsel %vm3937, %v4246, 0.0
      %v4285 = vadd.f32 %v4283, %v4284
      %v4286 = vsel %vm3937, %v4247, 0.0
      %v4287 = vadd.f32 %v4285, %v4286
      %v4288 = vsel %vm3937, %v4248, 0.0
      %v4289 = vadd.f32 %v4287, %v4288
      %v4290 = vsel %vm3937, %v4249, 0.0
      %v4291 = vadd.f32 %v4289, %v4290
      %v4292 = vsel %vm3937, %v4250, 0.0
      %v4293 = vadd.f32 %v4291, %v4292
      %v4294 = vsel %vm3937, %v4251, 0.0
      %v4295 = vadd.f32 %v4293, %v4294
      %v4296 = vsel %vm3937, %v4252, 0.0
      %v4297 = vadd.f32 %v4295, %v4296
      %v4298 = vsel %vm3937, %v4253, 0.0
      %v4299 = vadd.f32 %v4297, %v4298
      %v4300 = vsel %vm3937, %v4254, 0.0
      %v4301 = vadd.f32 %v4299, %v4300
      %v4302 = vsel %vm3937, %v4255, 0.0
      %v4303 = vadd.f32 %v4301, %v4302
      %v4304 = vsel %vm3937, %v4256, 0.0
      %v4305 = vadd.f32 %v4303, %v4304
      %v4306 = vsel %vm3937, %v4257, 0.0
      %v4307 = vadd.f32 %v4305, %v4306
      %v4308 = vsel %vm3937, %v4258, 0.0
      %v4309 = vadd.f32 %v4307, %v4308
      %v4310 = vsel %vm3937, %v4259, 0.0
      %v4311 = vadd.f32 %v4309, %v4310
      %v4312 = vsel %vm3937, %v4260, 0.0
      %v4313 = vadd.f32 %v4311, %v4312
      %v4314 = vsel %vm3937, %v4261, 0.0
      %v4315 = vadd.f32 %v4313, %v4314
      %v4316 = vsel %vm3937, %v4262, 0.0
      %v4317 = vadd.f32 %v4315, %v4316
      %v4318 = vsel %vm3937, %v4263, 0.0
      %v4319 = vadd.f32 %v4317, %v4318
      %v4320 = vsel %vm3937, %v4264, 0.0
      %v4321 = vadd.f32 %v4319, %v4320
      %v4322 = vsel %vm3937, %v4265, 0.0
      %v4323 = vadd.f32 %v4321, %v4322
      %v4324 = vsel %vm3937, %v4266, 0.0
      %v4325 = vadd.f32 %v4323, %v4324
      %v4326 = vsel %vm3937, %v4267, 0.0
      %v4327 = vadd.f32 %v4325, %v4326
      %v4328 = vsel %vm3937, %v4268, 0.0
      %v4329 = vadd.f32 %v4327, %v4328
      %v4330 = vsel %vm3937, %v4269, 0.0
      %v4331 = vadd.f32 %v4329, %v4330
      %v4332 = vsel %vm3937, %v4270, 0.0
      %v4333 = vadd.f32 %v4331, %v4332
      %v4334 = vsel %vm3937, %v4271, 0.0
      %v4335 = vadd.f32 %v4333, %v4334
      %v4336 = vsel %vm3937, %v4272, 0.0
      %v4337 = vadd.f32 %v4335, %v4336
      %v4338 = vsel %vm3937, %v4273, 0.0
      %v4339 = vadd.f32 %v4337, %v4338
      %v4340 = vsel %vm3937, %v4274, 0.0
      %v4341 = vadd.f32 %v4339, %v4340
      %v4342 = vsel %vm3937, %v4275, 0.0
      %v4343 = vadd.f32 %v4341, %v4342
      %v4344 = vsel %vm3937, %v4276, 0.0
      %v4345 = vadd.f32 %v4343, %v4344
      %v4346 = vsel %vm3937, %v4277, 0.0
      %v4347 = vadd.f32 %v4345, %v4346
      %v4348 = vsel %vm4007, %v4278, 0.0
      %v4349 = vadd.f32 %v4347, %v4348
      %v4350 = vrot.slane %v4349, 4
      %v4351 = vadd.f32 %v4349, %v4350
      %v4352 = vrot.slane %v4351, 2
      %v4353 = vadd.f32 %v4351, %v4352
      %v4354 = vrot.slane %v4353, 1
      %v4355 = vadd.f32 %v4353, %v4354
      %v4357 = vsel %vm3937, %v4355, 0
      %4359 = vmatprep.subr.mxu0 0.0
      %4360 = vmatpush1.msra.mxu0 0.0
      %4361 = vmatprep.subr.mxu0 0.0
      %4362 = vmatpush1.msra.mxu0 0.0
      %4363 = vmatprep.subr.mxu0 0.0
      %4364 = vmatpush1.msra.mxu0 0.0
      %4365 = vmatprep.subr.mxu0 0.0
      %4366 = vmatpush1.msra.mxu0 0.0
      %4367 = vmatprep.subr.mxu0 0.0
      %4368 = vmatpush1.msra.mxu0 0.0
      %4369 = vmatprep.subr.mxu0 0.0
      %4370 = vmatpush1.msra.mxu0 0.0
      %4371 = vmatprep.subr.mxu0 0.0
      %4372 = vmatpush1.msra.mxu0 0.0
      %4373 = vmatprep.subr.mxu0 0.0
      %4374 = vmatpush1.msra.mxu0 0.0
      %4375 = vmatprep.subr.mxu0 0.0
      %4376 = vmatpush1.msra.mxu0 0.0
      %4377 = vmatprep.subr.mxu0 0.0
      %4378 = vmatpush1.msra.mxu0 0.0
      %4379 = vmatprep.subr.mxu0 0.0
      %4380 = vmatpush1.msra.mxu0 0.0
      %4381 = vmatprep.subr.mxu0 0.0
      %4382 = vmatpush1.msra.mxu0 0.0
      %4383 = vmatprep.subr.mxu0 0.0
      %4384 = vmatpush1.msra.mxu0 0.0
      %4385 = vmatprep.subr.mxu0 0.0
      %4386 = vmatpush1.msra.mxu0 0.0
      %4387 = vmatprep.subr.mxu0 0.0
      %4388 = vmatpush1.msra.mxu0 0.0
      %4389 = vmatprep.subr.mxu0 0.0
      %4390 = vmatpush1.msra.mxu0 %v654
      %4391 = vmatprep.subr.mxu0 0.0
      %4392 = vmatpush2.msra.mxu0 0.0
      %4393 = vmatprep.subr.mxu0 0.0
      %4394 = vmatpush2.msra.mxu0 0.0
      %4395 = vmatprep.subr.mxu0 0.0
      %4396 = vmatpush2.msra.mxu0 0.0
      %4397 = vmatprep.subr.mxu0 0.0
      %4398 = vmatpush2.msra.mxu0 0.0
      %4399 = vmatprep.subr.mxu0 0.0
      %4400 = vmatpush2.msra.mxu0 0.0
      %4401 = vmatprep.subr.mxu0 0.0
      %4402 = vmatpush2.msra.mxu0 0.0
      %4403 = vmatprep.subr.mxu0 0.0
      %4404 = vmatpush2.msra.mxu0 0.0
      %4405 = vmatprep.subr.mxu0 0.0
      %4406 = vmatpush2.msra.mxu0 0.0
      %4407 = vmatprep.subr.mxu0 0.0
      %4408 = vmatpush2.msra.mxu0 0.0
      %4409 = vmatprep.subr.mxu0 0.0
      %4410 = vmatpush2.msra.mxu0 0.0
      %4411 = vmatprep.subr.mxu0 0.0
      %4412 = vmatpush2.msra.mxu0 0.0
      %4413 = vmatprep.subr.mxu0 0.0
      %4414 = vmatpush2.msra.mxu0 0.0
      %4415 = vmatprep.subr.mxu0 0.0
      %4416 = vmatpush2.msra.mxu0 0.0
      %4417 = vmatprep.subr.mxu0 0.0
      %4418 = vmatpush2.msra.mxu0 0.0
      %4419 = vmatprep.subr.mxu0 0.0
      %4420 = vmatpush2.msra.mxu0 0.0
      %4421 = vmatprep.subr.mxu0 0.0
      %4422 = vmatpush2.msra.mxu0 0.0
      %4423 = vmatprep.mubr.f32.mxu0 0.0
      %4424 = vmatmul.mubr.f32.gmra.mxu0 %v4357
      %v4425 = vpop.f32.mrf.mxu0
      %v4426 = vadd.f32 0.0, %v4425
      %v4427 = vpop.f32.mrf.mxu0
      %4428 = vdwg.mxu0
      %v4429 = vmul.f32 %v4426, 0.001953125
      %v4431 = vsel %vm924, %v4429, 0
      %4433 = vmatprep.subr.mxu0 0.0
      %4434 = vmatpush1.msra.mxu0 0.0
      %4435 = vmatprep.subr.mxu0 0.0
      %4436 = vmatpush1.msra.mxu0 0.0
      %4437 = vmatprep.subr.mxu0 0.0
      %4438 = vmatpush1.msra.mxu0 0.0
      %4439 = vmatprep.subr.mxu0 0.0
      %4440 = vmatpush1.msra.mxu0 0.0
      %4441 = vmatprep.subr.mxu0 0.0
      %4442 = vmatpush1.msra.mxu0 0.0
      %4443 = vmatprep.subr.mxu0 0.0
      %4444 = vmatpush1.msra.mxu0 0.0
      %4445 = vmatprep.subr.mxu0 0.0
      %4446 = vmatpush1.msra.mxu0 0.0
      %4447 = vmatprep.subr.mxu0 0.0
      %4448 = vmatpush1.msra.mxu0 0.0
      %4449 = vmatprep.subr.mxu0 0.0
      %4450 = vmatpush1.msra.mxu0 0.0
      %4451 = vmatprep.subr.mxu0 0.0
      %4452 = vmatpush1.msra.mxu0 0.0
      %4453 = vmatprep.subr.mxu0 0.0
      %4454 = vmatpush1.msra.mxu0 0.0
      %4455 = vmatprep.subr.mxu0 0.0
      %4456 = vmatpush1.msra.mxu0 0.0
      %4457 = vmatprep.subr.mxu0 0.0
      %4458 = vmatpush1.msra.mxu0 0.0
      %4459 = vmatprep.subr.mxu0 0.0
      %4460 = vmatpush1.msra.mxu0 0.0
      %4461 = vmatprep.subr.mxu0 0.0
      %4462 = vmatpush1.msra.mxu0 0.0
      %4463 = vmatprep.subr.mxu0 0.0
      %4464 = vmatpush1.msra.mxu0 %v4095
      %4465 = vmatprep.subr.mxu0 0.0
      %4466 = vmatpush2.msra.mxu0 0.0
      %4467 = vmatprep.subr.mxu0 0.0
      %4468 = vmatpush2.msra.mxu0 0.0
      %4469 = vmatprep.subr.mxu0 0.0
      %4470 = vmatpush2.msra.mxu0 0.0
      %4471 = vmatprep.subr.mxu0 0.0
      %4472 = vmatpush2.msra.mxu0 0.0
      %4473 = vmatprep.subr.mxu0 0.0
      %4474 = vmatpush2.msra.mxu0 0.0
      %4475 = vmatprep.subr.mxu0 0.0
      %4476 = vmatpush2.msra.mxu0 0.0
      %4477 = vmatprep.subr.mxu0 0.0
      %4478 = vmatpush2.msra.mxu0 0.0
      %4479 = vmatprep.subr.mxu0 0.0
      %4480 = vmatpush2.msra.mxu0 0.0
      %4481 = vmatprep.subr.mxu0 0.0
      %4482 = vmatpush2.msra.mxu0 0.0
      %4483 = vmatprep.subr.mxu0 0.0
      %4484 = vmatpush2.msra.mxu0 0.0
      %4485 = vmatprep.subr.mxu0 0.0
      %4486 = vmatpush2.msra.mxu0 0.0
      %4487 = vmatprep.subr.mxu0 0.0
      %4488 = vmatpush2.msra.mxu0 0.0
      %4489 = vmatprep.subr.mxu0 0.0
      %4490 = vmatpush2.msra.mxu0 0.0
      %4491 = vmatprep.subr.mxu0 0.0
      %4492 = vmatpush2.msra.mxu0 0.0
      %4493 = vmatprep.subr.mxu0 0.0
      %4494 = vmatpush2.msra.mxu0 0.0
      %4495 = vmatprep.subr.mxu0 0.0
      %4496 = vmatpush2.msra.mxu0 0.0
      %4497 = vmatprep.mubr.f32.mxu0 0.0
      %4498 = vmatmul.mubr.f32.gmra.mxu0 %v4431
      %v4499 = vpop.f32.mrf.mxu0
      %v4500 = vadd.f32 1e-05, %v4499
      %v4501 = vpop.f32.mrf.mxu0
      %4502 = vdwg.mxu0
      %v4503 = vrsqrt.pop %v4500
      %v4504 = vlaneseq
      %v4505 = vshrl.u32 %v4504, 7
      %v4506 = vsub.s32 0, %v4505
      %v4507 = vrot.slane %v4503, %v4506
      %v4508 = vmul.f32 %v4171, %v4507
      %v4509 = vmul.f32 %v4172, %v4507
      %v4510 = vmul.f32 %v4173, %v4507
      %v4511 = vmul.f32 %v4174, %v4507
      %v4512 = vmul.f32 %v4175, %v4507
      %v4513 = vmul.f32 %v4176, %v4507
      %v4514 = vmul.f32 %v4177, %v4507
      %v4515 = vmul.f32 %v4178, %v4507
      %v4516 = vmul.f32 %v4179, %v4507
      %v4517 = vmul.f32 %v4180, %v4507
      %v4518 = vmul.f32 %v4181, %v4507
      %v4519 = vmul.f32 %v4182, %v4507
      %v4520 = vmul.f32 %v4183, %v4507
      %v4521 = vmul.f32 %v4184, %v4507
      %v4522 = vmul.f32 %v4185, %v4507
      %v4523 = vmul.f32 %v4186, %v4507
      %v4524 = vmul.f32 %v4187, %v4507
      %v4525 = vmul.f32 %v4188, %v4507
      %v4526 = vmul.f32 %v4189, %v4507
      %v4527 = vmul.f32 %v4190, %v4507
      %v4528 = vmul.f32 %v4191, %v4507
      %v4529 = vmul.f32 %v4192, %v4507
      %v4530 = vmul.f32 %v4193, %v4507
      %v4531 = vmul.f32 %v4194, %v4507
      %v4532 = vmul.f32 %v4195, %v4507
      %v4533 = vmul.f32 %v4196, %v4507
      %v4534 = vmul.f32 %v4197, %v4507
      %v4535 = vmul.f32 %v4198, %v4507
      %v4536 = vmul.f32 %v4199, %v4507
      %v4537 = vmul.f32 %v4200, %v4507
      %v4538 = vmul.f32 %v4201, %v4507
      %v4539 = vmul.f32 %v4202, %v4507
      %v4540 = vmul.f32 %v4203, %v4507
      %v4541 = vmul.f32 %v4204, %v4507
      %v4542 = vmul.f32 %v4205, %v4507
      %v4543 = vmul.f32 %v4206, %v4507
      %v4545 = vlaneseq
      %v4546 = vshrl.u32 %v4545, 7
      %v4547 = vsub.s32 0, %v4546
      %v4548 = vrot.slane %v3719, %v4547
      %v4550 = vmul.f32 %v4508, %v4548
      %v4551 = vmul.f32 %v4509, %v4548
      %v4552 = vmul.f32 %v4510, %v4548
      %v4553 = vmul.f32 %v4511, %v4548
      %v4554 = vmul.f32 %v4512, %v4548
      %v4555 = vmul.f32 %v4513, %v4548
      %v4556 = vmul.f32 %v4514, %v4548
      %v4557 = vmul.f32 %v4515, %v4548
      %v4558 = vmul.f32 %v4516, %v4548
      %v4559 = vmul.f32 %v4517, %v4548
      %v4560 = vmul.f32 %v4518, %v4548
      %v4561 = vmul.f32 %v4519, %v4548
      %v4562 = vmul.f32 %v4520, %v4548
      %v4563 = vmul.f32 %v4521, %v4548
      %v4564 = vmul.f32 %v4522, %v4548
      %v4565 = vmul.f32 %v4523, %v4548
      %v4566 = vmul.f32 %v4524, %v4548
      %v4567 = vmul.f32 %v4525, %v4548
      %v4568 = vmul.f32 %v4526, %v4548
      %v4569 = vmul.f32 %v4527, %v4548
      %v4570 = vmul.f32 %v4528, %v4548
      %v4571 = vmul.f32 %v4529, %v4548
      %v4572 = vmul.f32 %v4530, %v4548
      %v4573 = vmul.f32 %v4531, %v4548
      %v4574 = vmul.f32 %v4532, %v4548
      %v4575 = vmul.f32 %v4533, %v4548
      %v4576 = vmul.f32 %v4534, %v4548
      %v4577 = vmul.f32 %v4535, %v4548
      %v4578 = vmul.f32 %v4536, %v4548
      %v4579 = vmul.f32 %v4537, %v4548
      %v4580 = vmul.f32 %v4538, %v4548
      %v4581 = vmul.f32 %v4539, %v4548
      %v4582 = vmul.f32 %v4540, %v4548
      %v4583 = vmul.f32 %v4541, %v4548
      %v4584 = vmul.f32 %v4542, %v4548
      %v4585 = vmul.f32 %v4543, %v4548
      %v4587 = vlaneseq
      %v4588 = vshrl.u32 %v4587, 7
      %v4589 = vsub.s32 0, %v4588
      %v4590 = vrot.slane %v3720, %v4589
      %v4592 = vadd.f32 %v4550, %v4590
      %v4593 = vadd.f32 %v4551, %v4590
      %v4594 = vadd.f32 %v4552, %v4590
      %v4595 = vadd.f32 %v4553, %v4590
      %v4596 = vadd.f32 %v4554, %v4590
      %v4597 = vadd.f32 %v4555, %v4590
      %v4598 = vadd.f32 %v4556, %v4590
      %v4599 = vadd.f32 %v4557, %v4590
      %v4600 = vadd.f32 %v4558, %v4590
      %v4601 = vadd.f32 %v4559, %v4590
      %v4602 = vadd.f32 %v4560, %v4590
      %v4603 = vadd.f32 %v4561, %v4590
      %v4604 = vadd.f32 %v4562, %v4590
      %v4605 = vadd.f32 %v4563, %v4590
      %v4606 = vadd.f32 %v4564, %v4590
      %v4607 = vadd.f32 %v4565, %v4590
      %v4608 = vadd.f32 %v4566, %v4590
      %v4609 = vadd.f32 %v4567, %v4590
      %v4610 = vadd.f32 %v4568, %v4590
      %v4611 = vadd.f32 %v4569, %v4590
      %v4612 = vadd.f32 %v4570, %v4590
      %v4613 = vadd.f32 %v4571, %v4590
      %v4614 = vadd.f32 %v4572, %v4590
      %v4615 = vadd.f32 %v4573, %v4590
      %v4616 = vadd.f32 %v4574, %v4590
      %v4617 = vadd.f32 %v4575, %v4590
      %v4618 = vadd.f32 %v4576, %v4590
      %v4619 = vadd.f32 %v4577, %v4590
      %v4620 = vadd.f32 %v4578, %v4590
      %v4621 = vadd.f32 %v4579, %v4590
      %v4622 = vadd.f32 %v4580, %v4590
      %v4623 = vadd.f32 %v4581, %v4590
      %v4624 = vadd.f32 %v4582, %v4590
      %v4625 = vadd.f32 %v4583, %v4590
      %v4626 = vadd.f32 %v4584, %v4590
      %v4627 = vadd.f32 %v4585, %v4590
      %v4628 = vadd.f32 %v737, 1.0
      %v4629 = vlaneseq
      %v4630 = vshrl.u32 %v4629, 7
      %v4631 = vsub.s32 0, %v4630
      %v4632 = vrot.slane %v4628, %v4631
      %v4633 = vmul.f32 %v4592, %v4632
      %v4634 = vmul.f32 %v4593, %v4632
      %v4635 = vmul.f32 %v4594, %v4632
      %v4636 = vmul.f32 %v4595, %v4632
      %v4637 = vmul.f32 %v4596, %v4632
      %v4638 = vmul.f32 %v4597, %v4632
      %v4639 = vmul.f32 %v4598, %v4632
      %v4640 = vmul.f32 %v4599, %v4632
      %v4641 = vmul.f32 %v4600, %v4632
      %v4642 = vmul.f32 %v4601, %v4632
      %v4643 = vmul.f32 %v4602, %v4632
      %v4644 = vmul.f32 %v4603, %v4632
      %v4645 = vmul.f32 %v4604, %v4632
      %v4646 = vmul.f32 %v4605, %v4632
      %v4647 = vmul.f32 %v4606, %v4632
      %v4648 = vmul.f32 %v4607, %v4632
      %v4649 = vmul.f32 %v4608, %v4632
      %v4650 = vmul.f32 %v4609, %v4632
      %v4651 = vmul.f32 %v4610, %v4632
      %v4652 = vmul.f32 %v4611, %v4632
      %v4653 = vmul.f32 %v4612, %v4632
      %v4654 = vmul.f32 %v4613, %v4632
      %v4655 = vmul.f32 %v4614, %v4632
      %v4656 = vmul.f32 %v4615, %v4632
      %v4657 = vmul.f32 %v4616, %v4632
      %v4658 = vmul.f32 %v4617, %v4632
      %v4659 = vmul.f32 %v4618, %v4632
      %v4660 = vmul.f32 %v4619, %v4632
      %v4661 = vmul.f32 %v4620, %v4632
      %v4662 = vmul.f32 %v4621, %v4632
      %v4663 = vmul.f32 %v4622, %v4632
      %v4664 = vmul.f32 %v4623, %v4632
      %v4665 = vmul.f32 %v4624, %v4632
      %v4666 = vmul.f32 %v4625, %v4632
      %v4667 = vmul.f32 %v4626, %v4632
      %v4668 = vmul.f32 %v4627, %v4632
      %v4669 = vlaneseq
      %v4670 = vshrl.u32 %v4669, 7
      %v4671 = vsub.s32 0, %v4670
      %v4672 = vrot.slane %v810, %v4671
      %v4673 = vadd.f32 %v4633, %v4672
      %v4674 = vadd.f32 %v4634, %v4672
      %v4675 = vadd.f32 %v4635, %v4672
      %v4676 = vadd.f32 %v4636, %v4672
      %v4677 = vadd.f32 %v4637, %v4672
      %v4678 = vadd.f32 %v4638, %v4672
      %v4679 = vadd.f32 %v4639, %v4672
      %v4680 = vadd.f32 %v4640, %v4672
      %v4681 = vadd.f32 %v4641, %v4672
      %v4682 = vadd.f32 %v4642, %v4672
      %v4683 = vadd.f32 %v4643, %v4672
      %v4684 = vadd.f32 %v4644, %v4672
      %v4685 = vadd.f32 %v4645, %v4672
      %v4686 = vadd.f32 %v4646, %v4672
      %v4687 = vadd.f32 %v4647, %v4672
      %v4688 = vadd.f32 %v4648, %v4672
      %v4689 = vadd.f32 %v4649, %v4672
      %v4690 = vadd.f32 %v4650, %v4672
      %v4691 = vadd.f32 %v4651, %v4672
      %v4692 = vadd.f32 %v4652, %v4672
      %v4693 = vadd.f32 %v4653, %v4672
      %v4694 = vadd.f32 %v4654, %v4672
      %v4695 = vadd.f32 %v4655, %v4672
      %v4696 = vadd.f32 %v4656, %v4672
      %v4697 = vadd.f32 %v4657, %v4672
      %v4698 = vadd.f32 %v4658, %v4672
      %v4699 = vadd.f32 %v4659, %v4672
      %v4700 = vadd.f32 %v4660, %v4672
      %v4701 = vadd.f32 %v4661, %v4672
      %v4702 = vadd.f32 %v4662, %v4672
      %v4703 = vadd.f32 %v4663, %v4672
      %v4704 = vadd.f32 %v4664, %v4672
      %v4705 = vadd.f32 %v4665, %v4672
      %v4706 = vadd.f32 %v4666, %v4672
      %v4707 = vadd.f32 %v4667, %v4672
      %v4708 = vadd.f32 %v4668, %v4672
      %v4709 = vsub.f32 0.0, %v4673
      %v4710 = vsub.f32 0.0, %v4674
      %v4711 = vsub.f32 0.0, %v4675
      %v4712 = vsub.f32 0.0, %v4676
      %v4713 = vsub.f32 0.0, %v4677
      %v4714 = vsub.f32 0.0, %v4678
      %v4715 = vsub.f32 0.0, %v4679
      %v4716 = vsub.f32 0.0, %v4680
      %v4717 = vsub.f32 0.0, %v4681
      %v4718 = vsub.f32 0.0, %v4682
      %v4719 = vsub.f32 0.0, %v4683
      %v4720 = vsub.f32 0.0, %v4684
      %v4721 = vsub.f32 0.0, %v4685
      %v4722 = vsub.f32 0.0, %v4686
      %v4723 = vsub.f32 0.0, %v4687
      %v4724 = vsub.f32 0.0, %v4688
      %v4725 = vsub.f32 0.0, %v4689
      %v4726 = vsub.f32 0.0, %v4690
      %v4727 = vsub.f32 0.0, %v4691
      %v4728 = vsub.f32 0.0, %v4692
      %v4729 = vsub.f32 0.0, %v4693
      %v4730 = vsub.f32 0.0, %v4694
      %v4731 = vsub.f32 0.0, %v4695
      %v4732 = vsub.f32 0.0, %v4696
      %v4733 = vsub.f32 0.0, %v4697
      %v4734 = vsub.f32 0.0, %v4698
      %v4735 = vsub.f32 0.0, %v4699
      %v4736 = vsub.f32 0.0, %v4700
      %v4737 = vsub.f32 0.0, %v4701
      %v4738 = vsub.f32 0.0, %v4702
      %v4739 = vsub.f32 0.0, %v4703
      %v4740 = vsub.f32 0.0, %v4704
      %v4741 = vsub.f32 0.0, %v4705
      %v4742 = vsub.f32 0.0, %v4706
      %v4743 = vsub.f32 0.0, %v4707
      %v4744 = vsub.f32 0.0, %v4708
      %v4745 = vmul.f32 %v4709, 1.442695
      %v4746 = vpow.pop %v4745
      %v4747 = vmul.f32 %v4710, 1.442695
      %v4748 = vpow.pop %v4747
      %v4749 = vmul.f32 %v4711, 1.442695
      %v4750 = vpow.pop %v4749
      %v4751 = vmul.f32 %v4712, 1.442695
      %v4752 = vpow.pop %v4751
      %v4753 = vmul.f32 %v4713, 1.442695
      %v4754 = vpow.pop %v4753
      %v4755 = vmul.f32 %v4714, 1.442695
      %v4756 = vpow.pop %v4755
      %v4757 = vmul.f32 %v4715, 1.442695
      %v4758 = vpow.pop %v4757
      %v4759 = vmul.f32 %v4716, 1.442695
      %v4760 = vpow.pop %v4759
      %v4761 = vmul.f32 %v4717, 1.442695
      %v4762 = vpow.pop %v4761
      %v4763 = vmul.f32 %v4718, 1.442695
      %v4764 = vpow.pop %v4763
      %v4765 = vmul.f32 %v4719, 1.442695
      %v4766 = vpow.pop %v4765
      %v4767 = vmul.f32 %v4720, 1.442695
      %v4768 = vpow.pop %v4767
      %v4769 = vmul.f32 %v4721, 1.442695
      %v4770 = vpow.pop %v4769
      %v4771 = vmul.f32 %v4722, 1.442695
      %v4772 = vpow.pop %v4771
      %v4773 = vmul.f32 %v4723, 1.442695
      %v4774 = vpow.pop %v4773
      %v4775 = vmul.f32 %v4724, 1.442695
      %v4776 = vpow.pop %v4775
      %v4777 = vmul.f32 %v4725, 1.442695
      %v4778 = vpow.pop %v4777
      %v4779 = vmul.f32 %v4726, 1.442695
      %v4780 = vpow.pop %v4779
      %v4781 = vmul.f32 %v4727, 1.442695
      %v4782 = vpow.pop %v4781
      %v4783 = vmul.f32 %v4728, 1.442695
      %v4784 = vpow.pop %v4783
      %v4785 = vmul.f32 %v4729, 1.442695
      %v4786 = vpow.pop %v4785
      %v4787 = vmul.f32 %v4730, 1.442695
      %v4788 = vpow.pop %v4787
      %v4789 = vmul.f32 %v4731, 1.442695
      %v4790 = vpow.pop %v4789
      %v4791 = vmul.f32 %v4732, 1.442695
      %v4792 = vpow.pop %v4791
      %v4793 = vmul.f32 %v4733, 1.442695
      %v4794 = vpow.pop %v4793
      %v4795 = vmul.f32 %v4734, 1.442695
      %v4796 = vpow.pop %v4795
      %v4797 = vmul.f32 %v4735, 1.442695
      %v4798 = vpow.pop %v4797
      %v4799 = vmul.f32 %v4736, 1.442695
      %v4800 = vpow.pop %v4799
      %v4801 = vmul.f32 %v4737, 1.442695
      %v4802 = vpow.pop %v4801
      %v4803 = vmul.f32 %v4738, 1.442695
      %v4804 = vpow.pop %v4803
      %v4805 = vmul.f32 %v4739, 1.442695
      %v4806 = vpow.pop %v4805
      %v4807 = vmul.f32 %v4740, 1.442695
      %v4808 = vpow.pop %v4807
      %v4809 = vmul.f32 %v4741, 1.442695
      %v4810 = vpow.pop %v4809
      %v4811 = vmul.f32 %v4742, 1.442695
      %v4812 = vpow.pop %v4811
      %v4813 = vmul.f32 %v4743, 1.442695
      %v4814 = vpow.pop %v4813
      %v4815 = vmul.f32 %v4744, 1.442695
      %v4816 = vpow.pop %v4815
      %v4817 = vadd.f32 %v4746, 1.0
      %v4818 = vadd.f32 %v4748, 1.0
      %v4819 = vadd.f32 %v4750, 1.0
      %v4820 = vadd.f32 %v4752, 1.0
      %v4821 = vadd.f32 %v4754, 1.0
      %v4822 = vadd.f32 %v4756, 1.0
      %v4823 = vadd.f32 %v4758, 1.0
      %v4824 = vadd.f32 %v4760, 1.0
      %v4825 = vadd.f32 %v4762, 1.0
      %v4826 = vadd.f32 %v4764, 1.0
      %v4827 = vadd.f32 %v4766, 1.0
      %v4828 = vadd.f32 %v4768, 1.0
      %v4829 = vadd.f32 %v4770, 1.0
      %v4830 = vadd.f32 %v4772, 1.0
      %v4831 = vadd.f32 %v4774, 1.0
      %v4832 = vadd.f32 %v4776, 1.0
      %v4833 = vadd.f32 %v4778, 1.0
      %v4834 = vadd.f32 %v4780, 1.0
      %v4835 = vadd.f32 %v4782, 1.0
      %v4836 = vadd.f32 %v4784, 1.0
      %v4837 = vadd.f32 %v4786, 1.0
      %v4838 = vadd.f32 %v4788, 1.0
      %v4839 = vadd.f32 %v4790, 1.0
      %v4840 = vadd.f32 %v4792, 1.0
      %v4841 = vadd.f32 %v4794, 1.0
      %v4842 = vadd.f32 %v4796, 1.0
      %v4843 = vadd.f32 %v4798, 1.0
      %v4844 = vadd.f32 %v4800, 1.0
      %v4845 = vadd.f32 %v4802, 1.0
      %v4846 = vadd.f32 %v4804, 1.0
      %v4847 = vadd.f32 %v4806, 1.0
      %v4848 = vadd.f32 %v4808, 1.0
      %v4849 = vadd.f32 %v4810, 1.0
      %v4850 = vadd.f32 %v4812, 1.0
      %v4851 = vadd.f32 %v4814, 1.0
      %v4852 = vadd.f32 %v4816, 1.0
      %v4853 = vrcp.pop %v4817
      %v4854 = vrcp.pop %v4818
      %v4855 = vrcp.pop %v4819
      %v4856 = vrcp.pop %v4820
      %v4857 = vrcp.pop %v4821
      %v4858 = vrcp.pop %v4822
      %v4859 = vrcp.pop %v4823
      %v4860 = vrcp.pop %v4824
      %v4861 = vrcp.pop %v4825
      %v4862 = vrcp.pop %v4826
      %v4863 = vrcp.pop %v4827
      %v4864 = vrcp.pop %v4828
      %v4865 = vrcp.pop %v4829
      %v4866 = vrcp.pop %v4830
      %v4867 = vrcp.pop %v4831
      %v4868 = vrcp.pop %v4832
      %v4869 = vrcp.pop %v4833
      %v4870 = vrcp.pop %v4834
      %v4871 = vrcp.pop %v4835
      %v4872 = vrcp.pop %v4836
      %v4873 = vrcp.pop %v4837
      %v4874 = vrcp.pop %v4838
      %v4875 = vrcp.pop %v4839
      %v4876 = vrcp.pop %v4840
      %v4877 = vrcp.pop %v4841
      %v4878 = vrcp.pop %v4842
      %v4879 = vrcp.pop %v4843
      %v4880 = vrcp.pop %v4844
      %v4881 = vrcp.pop %v4845
      %v4882 = vrcp.pop %v4846
      %v4883 = vrcp.pop %v4847
      %v4884 = vrcp.pop %v4848
      %v4885 = vrcp.pop %v4849
      %v4886 = vrcp.pop %v4850
      %v4887 = vrcp.pop %v4851
      %v4888 = vrcp.pop %v4852
      %v4889 = vmul.f32 %v4673, %v4853
      %v4890 = vmul.f32 %v4674, %v4854
      %v4891 = vmul.f32 %v4675, %v4855
      %v4892 = vmul.f32 %v4676, %v4856
      %v4893 = vmul.f32 %v4677, %v4857
      %v4894 = vmul.f32 %v4678, %v4858
      %v4895 = vmul.f32 %v4679, %v4859
      %v4896 = vmul.f32 %v4680, %v4860
      %v4897 = vmul.f32 %v4681, %v4861
      %v4898 = vmul.f32 %v4682, %v4862
      %v4899 = vmul.f32 %v4683, %v4863
      %v4900 = vmul.f32 %v4684, %v4864
      %v4901 = vmul.f32 %v4685, %v4865
      %v4902 = vmul.f32 %v4686, %v4866
      %v4903 = vmul.f32 %v4687, %v4867
      %v4904 = vmul.f32 %v4688, %v4868
      %v4905 = vmul.f32 %v4689, %v4869
      %v4906 = vmul.f32 %v4690, %v4870
      %v4907 = vmul.f32 %v4691, %v4871
      %v4908 = vmul.f32 %v4692, %v4872
      %v4909 = vmul.f32 %v4693, %v4873
      %v4910 = vmul.f32 %v4694, %v4874
      %v4911 = vmul.f32 %v4695, %v4875
      %v4912 = vmul.f32 %v4696, %v4876
      %v4913 = vmul.f32 %v4697, %v4877
      %v4914 = vmul.f32 %v4698, %v4878
      %v4915 = vmul.f32 %v4699, %v4879
      %v4916 = vmul.f32 %v4700, %v4880
      %v4917 = vmul.f32 %v4701, %v4881
      %v4918 = vmul.f32 %v4702, %v4882
      %v4919 = vmul.f32 %v4703, %v4883
      %v4920 = vmul.f32 %v4704, %v4884
      %v4921 = vmul.f32 %v4705, %v4885
      %v4922 = vmul.f32 %v4706, %v4886
      %v4923 = vmul.f32 %v4707, %v4887
      %v4924 = vmul.f32 %v4708, %v4888
      %4925 = vst.msk [vmem:[#allocation2] sm:$0xff] %vm3937, 0.0
      %4926 = vst.msk [vmem:[#allocation2 + $0x8] sm:$0xff] %vm3937, 0.0
      %4927 = vst.msk [vmem:[#allocation2 + $0x10] sm:$0xff] %vm3937, 0.0
      %4928 = vst.msk [vmem:[#allocation2 + $0x18] sm:$0xff] %vm3937, 0.0
      %4929 = vst.msk [vmem:[#allocation2 + $0x20] sm:$0xff] %vm3937, 0.0
      %4930 = vst.msk [vmem:[#allocation2 + $0x28] sm:$0xff] %vm3937, 0.0
      %4931 = vst.msk [vmem:[#allocation2 + $0x30] sm:$0xff] %vm3937, 0.0
      %4932 = vst.msk [vmem:[#allocation2 + $0x38] sm:$0xff] %vm3937, 0.0
      %4933 = vst.msk [vmem:[#allocation2 + $0x40] sm:$0xff] %vm3937, 0.0
      %4934 = vst.msk [vmem:[#allocation2 + $0x48] sm:$0xff] %vm3937, 0.0
      %4935 = vst.msk [vmem:[#allocation2 + $0x50] sm:$0xff] %vm3937, 0.0
      %4936 = vst.msk [vmem:[#allocation2 + $0x58] sm:$0xff] %vm3937, 0.0
      %4937 = vst.msk [vmem:[#allocation2 + $0x60] sm:$0xff] %vm3937, 0.0
      %4938 = vst.msk [vmem:[#allocation2 + $0x68] sm:$0xff] %vm3937, 0.0
      %4939 = vst.msk [vmem:[#allocation2 + $0x70] sm:$0xff] %vm3937, 0.0
      %4940 = vst.msk [vmem:[#allocation2 + $0x78] sm:$0xff] %vm3937, 0.0
      %4941 = vst.msk [vmem:[#allocation2 + $0x80] sm:$0xff] %vm3937, 0.0
      %4942 = vst.msk [vmem:[#allocation2 + $0x88] sm:$0xff] %vm3937, 0.0
      %4943 = vst.msk [vmem:[#allocation2 + $0x90] sm:$0xff] %vm3937, 0.0
      %4944 = vst.msk [vmem:[#allocation2 + $0x98] sm:$0xff] %vm3937, 0.0
      %4945 = vst.msk [vmem:[#allocation2 + $0xa0] sm:$0xff] %vm3937, 0.0
      %4946 = vst.msk [vmem:[#allocation2 + $0xa8] sm:$0xff] %vm3937, 0.0
      %4947 = vst.msk [vmem:[#allocation2 + $0xb0] sm:$0xff] %vm3937, 0.0
      %4948 = vst.msk [vmem:[#allocation2 + $0xb8] sm:$0xff] %vm3937, 0.0
      %4949 = vst.msk [vmem:[#allocation2 + $0xc0] sm:$0xff] %vm3937, 0.0
      %4950 = vst.msk [vmem:[#allocation2 + $0xc8] sm:$0xff] %vm3937, 0.0
      %4951 = vst.msk [vmem:[#allocation2 + $0xd0] sm:$0xff] %vm3937, 0.0
      %4952 = vst.msk [vmem:[#allocation2 + $0xd8] sm:$0xff] %vm3937, 0.0
      %4953 = vst.msk [vmem:[#allocation2 + $0xe0] sm:$0xff] %vm3937, 0.0
      %4954 = vst.msk [vmem:[#allocation2 + $0xe8] sm:$0xff] %vm3937, 0.0
      %4955 = vst.msk [vmem:[#allocation2 + $0xf0] sm:$0xff] %vm3937, 0.0
      %4956 = vst.msk [vmem:[#allocation2 + $0xf8] sm:$0xff] %vm3937, 0.0
      %4957 = vst.msk [vmem:[#allocation2 + $0x100] sm:$0xff] %vm3937, 0.0
      %4958 = vst.msk [vmem:[#allocation2 + $0x108] sm:$0xff] %vm3937, 0.0
      %4959 = vst.msk [vmem:[#allocation2 + $0x110] sm:$0xff] %vm3937, 0.0
      %4960 = vst.msk [vmem:[#allocation2 + $0x118] sm:$0xff] %vm3937, 0.0
      %4961 = vst.msk [vmem:[#allocation2 + $0x120] sm:$0xff] %vm3937, 0.0
      %4962 = vst.msk [vmem:[#allocation2 + $0x128] sm:$0xff] %vm3937, 0.0
      %4963 = vst.msk [vmem:[#allocation2 + $0x130] sm:$0xff] %vm3937, 0.0
      %4964 = vst.msk [vmem:[#allocation2 + $0x138] sm:$0xff] %vm3937, 0.0
      %vm4965 = vcmask 60416
      %4966 = vst.msk [vmem:[#allocation2 + $0x140] sm:$0xf] %vm4965, 0.0
      %v4967 = vmul.f32 %v4889, %v3724
      %v4968 = vmul.f32 %v4890, %v3729
      %v4969 = vmul.f32 %v4891, %v3734
      %v4970 = vmul.f32 %v4892, %v3739
      %v4971 = vmul.f32 %v4893, %v3744
      %v4972 = vmul.f32 %v4894, %v3749
      %v4973 = vmul.f32 %v4895, %v3754
      %v4974 = vmul.f32 %v4896, %v3759
      %v4975 = vmul.f32 %v4897, %v3764
      %v4976 = vmul.f32 %v4898, %v3769
      %v4977 = vmul.f32 %v4899, %v3774
      %v4978 = vmul.f32 %v4900, %v3779
      %v4979 = vmul.f32 %v4901, %v3784
      %v4980 = vmul.f32 %v4902, %v3789
      %v4981 = vmul.f32 %v4903, %v3794
      %v4982 = vmul.f32 %v4904, %v3799
      %v4983 = vmul.f32 %v4905, %v3804
      %v4984 = vmul.f32 %v4906, %v3809
      %v4985 = vmul.f32 %v4907, %v3814
      %v4986 = vmul.f32 %v4908, %v3819
      %v4987 = vmul.f32 %v4909, %v3824
      %v4988 = vmul.f32 %v4910, %v3829
      %v4989 = vmul.f32 %v4911, %v3834
      %v4990 = vmul.f32 %v4912, %v3839
      %v4991 = vmul.f32 %v4913, %v3844
      %v4992 = vmul.f32 %v4914, %v3849
      %v4993 = vmul.f32 %v4915, %v3854
      %v4994 = vmul.f32 %v4916, %v3859
      %v4995 = vmul.f32 %v4917, %v3864
      %v4996 = vmul.f32 %v4918, %v3869
      %v4997 = vmul.f32 %v4919, %v3874
      %v4998 = vmul.f32 %v4920, %v3879
      %v4999 = vmul.f32 %v4921, %v3884
      %v5000 = vmul.f32 %v4922, %v3889
      %v5001 = vmul.f32 %v4923, %v3894
      %v5002 = vmul.f32 %v4924, %v3899
      %5003 = vst.msk [vmem:[#allocation2 + $0x13] sm:$0xff] %vm3937, %v4967
      %5004 = vst.msk [vmem:[#allocation2 + $0x1b] sm:$0xff] %vm3937, %v4968
      %5005 = vst.msk [vmem:[#allocation2 + $0x23] sm:$0xff] %vm3937, %v4969
      %5006 = vst.msk [vmem:[#allocation2 + $0x2b] sm:$0xff] %vm3937, %v4970
      %5007 = vst.msk [vmem:[#allocation2 + $0x33] sm:$0xff] %vm3937, %v4971
      %5008 = vst.msk [vmem:[#allocation2 + $0x3b] sm:$0xff] %vm3937, %v4972
      %5009 = vst.msk [vmem:[#allocation2 + $0x43] sm:$0xff] %vm3937, %v4973
      %5010 = vst.msk [vmem:[#allocation2 + $0x4b] sm:$0xff] %vm3937, %v4974
      %5011 = vst.msk [vmem:[#allocation2 + $0x53] sm:$0xff] %vm3937, %v4975
      %5012 = vst.msk [vmem:[#allocation2 + $0x5b] sm:$0xff] %vm3937, %v4976
      %5013 = vst.msk [vmem:[#allocation2 + $0x63] sm:$0xff] %vm3937, %v4977
      %5014 = vst.msk [vmem:[#allocation2 + $0x6b] sm:$0xff] %vm3937, %v4978
      %5015 = vst.msk [vmem:[#allocation2 + $0x73] sm:$0xff] %vm3937, %v4979
      %5016 = vst.msk [vmem:[#allocation2 + $0x7b] sm:$0xff] %vm3937, %v4980
      %5017 = vst.msk [vmem:[#allocation2 + $0x83] sm:$0xff] %vm3937, %v4981
      %5018 = vst.msk [vmem:[#allocation2 + $0x8b] sm:$0xff] %vm3937, %v4982
      %5019 = vst.msk [vmem:[#allocation2 + $0x93] sm:$0xff] %vm3937, %v4983
      %5020 = vst.msk [vmem:[#allocation2 + $0x9b] sm:$0xff] %vm3937, %v4984
      %5021 = vst.msk [vmem:[#allocation2 + $0xa3] sm:$0xff] %vm3937, %v4985
      %5022 = vst.msk [vmem:[#allocation2 + $0xab] sm:$0xff] %vm3937, %v4986
      %5023 = vst.msk [vmem:[#allocation2 + $0xb3] sm:$0xff] %vm3937, %v4987
      %5024 = vst.msk [vmem:[#allocation2 + $0xbb] sm:$0xff] %vm3937, %v4988
      %5025 = vst.msk [vmem:[#allocation2 + $0xc3] sm:$0xff] %vm3937, %v4989
      %5026 = vst.msk [vmem:[#allocation2 + $0xcb] sm:$0xff] %vm3937, %v4990
      %5027 = vst.msk [vmem:[#allocation2 + $0xd3] sm:$0xff] %vm3937, %v4991
      %5028 = vst.msk [vmem:[#allocation2 + $0xdb] sm:$0xff] %vm3937, %v4992
      %5029 = vst.msk [vmem:[#allocation2 + $0xe3] sm:$0xff] %vm3937, %v4993
      %5030 = vst.msk [vmem:[#allocation2 + $0xeb] sm:$0xff] %vm3937, %v4994
      %5031 = vst.msk [vmem:[#allocation2 + $0xf3] sm:$0xff] %vm3937, %v4995
      %5032 = vst.msk [vmem:[#allocation2 + $0xfb] sm:$0xff] %vm3937, %v4996
      %5033 = vst.msk [vmem:[#allocation2 + $0x103] sm:$0xff] %vm3937, %v4997
      %5034 = vst.msk [vmem:[#allocation2 + $0x10b] sm:$0xff] %vm3937, %v4998
      %5035 = vst.msk [vmem:[#allocation2 + $0x113] sm:$0xff] %vm3937, %v4999
      %5036 = vst.msk [vmem:[#allocation2 + $0x11b] sm:$0xff] %vm3937, %v5000
      %5037 = vst.msk [vmem:[#allocation2 + $0x123] sm:$0xff] %vm3937, %v5001
      %5038 = vst.msk [vmem:[#allocation2 + $0x12b] sm:$0x3f] %vm4007, %v5002
      %v5039 = vld [vmem:[#allocation2] sm:$0xff]
      %v5040 = vld [vmem:[#allocation2 + $0x8] sm:$0xff]
      %v5041 = vld [vmem:[#allocation2 + $0x10] sm:$0xff]
      %v5042 = vld [vmem:[#allocation2 + $0x18] sm:$0xff]
      %v5043 = vld [vmem:[#allocation2 + $0x20] sm:$0xff]
      %v5044 = vld [vmem:[#allocation2 + $0x28] sm:$0xff]
      %v5045 = vld [vmem:[#allocation2 + $0x30] sm:$0xff]
      %v5046 = vld [vmem:[#allocation2 + $0x38] sm:$0xff]
      %v5047 = vld [vmem:[#allocation2 + $0x40] sm:$0xff]
      %v5048 = vld [vmem:[#allocation2 + $0x48] sm:$0xff]
      %v5049 = vld [vmem:[#allocation2 + $0x50] sm:$0xff]
      %v5050 = vld [vmem:[#allocation2 + $0x58] sm:$0xff]
      %v5051 = vld [vmem:[#allocation2 + $0x60] sm:$0xff]
      %v5052 = vld [vmem:[#allocation2 + $0x68] sm:$0xff]
      %v5053 = vld [vmem:[#allocation2 + $0x70] sm:$0xff]
      %v5054 = vld [vmem:[#allocation2 + $0x78] sm:$0xff]
      %v5055 = vld [vmem:[#allocation2 + $0x80] sm:$0xff]
      %v5056 = vld [vmem:[#allocation2 + $0x88] sm:$0xff]
      %v5057 = vld [vmem:[#allocation2 + $0x90] sm:$0xff]
      %v5058 = vld [vmem:[#allocation2 + $0x98] sm:$0xff]
      %v5059 = vld [vmem:[#allocation2 + $0xa0] sm:$0xff]
      %v5060 = vld [vmem:[#allocation2 + $0xa8] sm:$0xff]
      %v5061 = vld [vmem:[#allocation2 + $0xb0] sm:$0xff]
      %v5062 = vld [vmem:[#allocation2 + $0xb8] sm:$0xff]
      %v5063 = vld [vmem:[#allocation2 + $0xc0] sm:$0xff]
      %v5064 = vld [vmem:[#allocation2 + $0xc8] sm:$0xff]
      %v5065 = vld [vmem:[#allocation2 + $0xd0] sm:$0xff]
      %v5066 = vld [vmem:[#allocation2 + $0xd8] sm:$0xff]
      %v5067 = vld [vmem:[#allocation2 + $0xe0] sm:$0xff]
      %v5068 = vld [vmem:[#allocation2 + $0xe8] sm:$0xff]
      %v5069 = vld [vmem:[#allocation2 + $0xf0] sm:$0xff]
      %v5070 = vld [vmem:[#allocation2 + $0xf8] sm:$0xff]
      %v5071 = vld [vmem:[#allocation2 + $0x100] sm:$0xff]
      %v5072 = vld [vmem:[#allocation2 + $0x108] sm:$0xff]
      %v5073 = vld [vmem:[#allocation2 + $0x110] sm:$0xff]
      %v5074 = vld [vmem:[#allocation2 + $0x118] sm:$0x3f]
      %v5075 = vpack.c.bf16 %v5040, %v5039
      %v5076 = vpack.c.bf16 %v5042, %v5041
      %v5077 = vpack.c.bf16 %v5044, %v5043
      %v5078 = vpack.c.bf16 %v5046, %v5045
      %v5079 = vpack.c.bf16 %v5048, %v5047
      %v5080 = vpack.c.bf16 %v5050, %v5049
      %v5081 = vpack.c.bf16 %v5052, %v5051
      %v5082 = vpack.c.bf16 %v5054, %v5053
      %v5083 = vpack.c.bf16 %v5056, %v5055
      %v5084 = vpack.c.bf16 %v5058, %v5057
      %v5085 = vpack.c.bf16 %v5060, %v5059
      %v5086 = vpack.c.bf16 %v5062, %v5061
      %v5087 = vpack.c.bf16 %v5064, %v5063
      %v5088 = vpack.c.bf16 %v5066, %v5065
      %v5089 = vpack.c.bf16 %v5068, %v5067
      %v5090 = vpack.c.bf16 %v5070, %v5069
      %v5091 = vpack.c.bf16 %v5072, %v5071
      %v5092 = vpack.c.bf16 %v5074, %v5073
      %v5093 = vld [vmem:[%s13] sm:$0xf]
      %v5094 = vld [vmem:[#allocation2 + $0x1] sm:$0xff]
      %v5095 = vld [vmem:[#allocation2 + $0x9] sm:$0xff]
      %v5096 = vld [vmem:[#allocation2 + $0x11] sm:$0xff]
      %v5097 = vld [vmem:[#allocation2 + $0x19] sm:$0xff]
      %v5098 = vld [vmem:[#allocation2 + $0x21] sm:$0xff]
      %v5099 = vld [vmem:[#allocation2 + $0x29] sm:$0xff]
      %v5100 = vld [vmem:[#allocation2 + $0x31] sm:$0xff]
      %v5101 = vld [vmem:[#allocation2 + $0x39] sm:$0xff]
      %v5102 = vld [vmem:[#allocation2 + $0x41] sm:$0xff]
      %v5103 = vld [vmem:[#allocation2 + $0x49] sm:$0xff]
      %v5104 = vld [vmem:[#allocation2 + $0x51] sm:$0xff]
      %v5105 = vld [vmem:[#allocation2 + $0x59] sm:$0xff]
      %v5106 = vld [vmem:[#allocation2 + $0x61] sm:$0xff]
      %v5107 = vld [vmem:[#allocation2 + $0x69] sm:$0xff]
      %v5108 = vld [vmem:[#allocation2 + $0x71] sm:$0xff]
      %v5109 = vld [vmem:[#allocation2 + $0x79] sm:$0xff]
      %v5110 = vld [vmem:[#allocation2 + $0x81] sm:$0xff]
      %v5111 = vld [vmem:[#allocation2 + $0x89] sm:$0xff]
      %v5112 = vld [vmem:[#allocation2 + $0x91] sm:$0xff]
      %v5113 = vld [vmem:[#allocation2 + $0x99] sm:$0xff]
      %v5114 = vld [vmem:[#allocation2 + $0xa1] sm:$0xff]
      %v5115 = vld [vmem:[#allocation2 + $0xa9] sm:$0xff]
      %v5116 = vld [vmem:[#allocation2 + $0xb1] sm:$0xff]
      %v5117 = vld [vmem:[#allocation2 + $0xb9] sm:$0xff]
      %v5118 = vld [vmem:[#allocation2 + $0xc1] sm:$0xff]
      %v5119 = vld [vmem:[#allocation2 + $0xc9] sm:$0xff]
      %v5120 = vld [vmem:[#allocation2 + $0xd1] sm:$0xff]
      %v5121 = vld [vmem:[#allocation2 + $0xd9] sm:$0xff]
      %v5122 = vld [vmem:[#allocation2 + $0xe1] sm:$0xff]
      %v5123 = vld [vmem:[#allocation2 + $0xe9] sm:$0xff]
      %v5124 = vld [vmem:[#allocation2 + $0xf1] sm:$0xff]
      %v5125 = vld [vmem:[#allocation2 + $0xf9] sm:$0xff]
      %v5126 = vld [vmem:[#allocation2 + $0x101] sm:$0xff]
      %v5127 = vld [vmem:[#allocation2 + $0x109] sm:$0xff]
      %v5128 = vld [vmem:[#allocation2 + $0x111] sm:$0xff]
      %v5129 = vld [vmem:[#allocation2 + $0x119] sm:$0x3f]
      %v5130 = vpack.c.bf16 %v5095, %v5094
      %v5131 = vpack.c.bf16 %v5097, %v5096
      %v5132 = vpack.c.bf16 %v5099, %v5098
      %v5133 = vpack.c.bf16 %v5101, %v5100
      %v5134 = vpack.c.bf16 %v5103, %v5102
      %v5135 = vpack.c.bf16 %v5105, %v5104
      %v5136 = vpack.c.bf16 %v5107, %v5106
      %v5137 = vpack.c.bf16 %v5109, %v5108
      %v5138 = vpack.c.bf16 %v5111, %v5110
      %v5139 = vpack.c.bf16 %v5113, %v5112
      %v5140 = vpack.c.bf16 %v5115, %v5114
      %v5141 = vpack.c.bf16 %v5117, %v5116
      %v5142 = vpack.c.bf16 %v5119, %v5118
      %v5143 = vpack.c.bf16 %v5121, %v5120
      %v5144 = vpack.c.bf16 %v5123, %v5122
      %v5145 = vpack.c.bf16 %v5125, %v5124
      %v5146 = vpack.c.bf16 %v5127, %v5126
      %v5147 = vpack.c.bf16 %v5129, %v5128
      %s5148 = scalar_lea.vmem %s13, 4
      %v5149 = vld [vmem:[%s5148] sm:$0xf]
      %v5151 = vsel %vm3937, %v5130, 0
      %v5154 = vsel %vm3937, %v5131, 0
      %v5157 = vsel %vm3937, %v5132, 0
      %v5160 = vsel %vm3937, %v5133, 0
      %v5163 = vsel %vm3937, %v5134, 0
      %v5166 = vsel %vm3937, %v5135, 0
      %v5169 = vsel %vm3937, %v5136, 0
      %v5172 = vsel %vm3937, %v5137, 0
      %v5175 = vsel %vm3937, %v5138, 0
      %v5178 = vsel %vm3937, %v5139, 0
      %v5181 = vsel %vm3937, %v5140, 0
      %v5184 = vsel %vm3937, %v5141, 0
      %v5187 = vsel %vm3937, %v5142, 0
      %v5190 = vsel %vm3937, %v5143, 0
      %v5193 = vsel %vm3937, %v5144, 0
      %v5196 = vsel %vm3937, %v5145, 0
      %v5199 = vsel %vm3937, %v5146, 0
      %v5202 = vsel %vm3937, %v5147, 0
      %v5205 = vsel %vm4093, %v5149, 0
      %5207 = vmatprep.subr.bf16.mxu0 0
      %5208 = vmatpush1.bf16.msra.mxu0 0
      %5209 = vmatprep.subr.bf16.mxu0 0
      %5210 = vmatpush1.bf16.msra.mxu0 0
      %5211 = vmatprep.subr.bf16.mxu0 0
      %5212 = vmatpush1.bf16.msra.mxu0 0
      %5213 = vmatprep.subr.bf16.mxu0 0
      %5214 = vmatpush1.bf16.msra.mxu0 0
      %5215 = vmatprep.subr.bf16.mxu0 0
      %5216 = vmatpush1.bf16.msra.mxu0 0
      %5217 = vmatprep.subr.bf16.mxu0 0
      %5218 = vmatpush1.bf16.msra.mxu0 0
      %5219 = vmatprep.subr.bf16.mxu0 0
      %5220 = vmatpush1.bf16.msra.mxu0 0
      %5221 = vmatprep.subr.bf16.mxu0 0
      %5222 = vmatpush1.bf16.msra.mxu0 %v5205
      %5223 = vmatprep.subr.bf16.mxu0 0
      %5224 = vmatpush2.bf16.msra.mxu0 0
      %5225 = vmatprep.subr.bf16.mxu0 0
      %5226 = vmatpush2.bf16.msra.mxu0 0
      %5227 = vmatprep.subr.bf16.mxu0 0
      %5228 = vmatpush2.bf16.msra.mxu0 0
      %5229 = vmatprep.subr.bf16.mxu0 0
      %5230 = vmatpush2.bf16.msra.mxu0 0
      %5231 = vmatprep.subr.bf16.mxu0 0
      %5232 = vmatpush2.bf16.msra.mxu0 0
      %5233 = vmatprep.subr.bf16.mxu0 0
      %5234 = vmatpush2.bf16.msra.mxu0 0
      %5235 = vmatprep.subr.bf16.mxu0 0
      %5236 = vmatpush2.bf16.msra.mxu0 0
      %5237 = vmatprep.subr.bf16.mxu0 0
      %5238 = vmatpush2.bf16.msra.mxu0 0
      %5239 = vmatprep.mubr.bf16.mxu0 0
      %5240 = vmatmul.mubr.bf16.gmra.mxu0 %v5151
      %v5241 = vpop.f32.mrf.mxu0
      %v5242 = vadd.f32 0.0, %v5241
      %v5243 = vpop.f32.mrf.mxu0
      %v5244 = vpop.f32.mrf.mxu0
      %v5245 = vadd.f32 0.0, %v5244
      %v5246 = vpop.f32.mrf.mxu0
      %5247 = vmatprep.mubr.bf16.mxu0 0
      %5248 = vmatmul.mubr.bf16.gmra.mxu0 %v5154
      %v5249 = vpop.f32.mrf.mxu0
      %v5250 = vadd.f32 0.0, %v5249
      %v5251 = vpop.f32.mrf.mxu0
      %v5252 = vpop.f32.mrf.mxu0
      %v5253 = vadd.f32 0.0, %v5252
      %v5254 = vpop.f32.mrf.mxu0
      %5255 = vmatprep.mubr.bf16.mxu0 0
      %5256 = vmatmul.mubr.bf16.gmra.mxu0 %v5157
      %v5257 = vpop.f32.mrf.mxu0
      %v5258 = vadd.f32 0.0, %v5257
      %v5259 = vpop.f32.mrf.mxu0
      %v5260 = vpop.f32.mrf.mxu0
      %v5261 = vadd.f32 0.0, %v5260
      %v5262 = vpop.f32.mrf.mxu0
      %5263 = vmatprep.mubr.bf16.mxu0 0
      %5264 = vmatmul.mubr.bf16.gmra.mxu0 %v5160
      %v5265 = vpop.f32.mrf.mxu0
      %v5266 = vadd.f32 0.0, %v5265
      %v5267 = vpop.f32.mrf.mxu0
      %v5268 = vpop.f32.mrf.mxu0
      %v5269 = vadd.f32 0.0, %v5268
      %v5270 = vpop.f32.mrf.mxu0
      %5271 = vmatprep.mubr.bf16.mxu0 0
      %5272 = vmatmul.mubr.bf16.gmra.mxu0 %v5163
      %v5273 = vpop.f32.mrf.mxu0
      %v5274 = vadd.f32 0.0, %v5273
      %v5275 = vpop.f32.mrf.mxu0
      %v5276 = vpop.f32.mrf.mxu0
      %v5277 = vadd.f32 0.0, %v5276
      %v5278 = vpop.f32.mrf.mxu0
      %5279 = vmatprep.mubr.bf16.mxu0 0
      %5280 = vmatmul.mubr.bf16.gmra.mxu0 %v5166
      %v5281 = vpop.f32.mrf.mxu0
      %v5282 = vadd.f32 0.0, %v5281
      %v5283 = vpop.f32.mrf.mxu0
      %v5284 = vpop.f32.mrf.mxu0
      %v5285 = vadd.f32 0.0, %v5284
      %v5286 = vpop.f32.mrf.mxu0
      %5287 = vmatprep.mubr.bf16.mxu0 0
      %5288 = vmatmul.mubr.bf16.gmra.mxu0 %v5169
      %v5289 = vpop.f32.mrf.mxu0
      %v5290 = vadd.f32 0.0, %v5289
      %v5291 = vpop.f32.mrf.mxu0
      %v5292 = vpop.f32.mrf.mxu0
      %v5293 = vadd.f32 0.0, %v5292
      %v5294 = vpop.f32.mrf.mxu0
      %5295 = vmatprep.mubr.bf16.mxu0 0
      %5296 = vmatmul.mubr.bf16.gmra.mxu0 %v5172
      %v5297 = vpop.f32.mrf.mxu0
      %v5298 = vadd.f32 0.0, %v5297
      %v5299 = vpop.f32.mrf.mxu0
      %v5300 = vpop.f32.mrf.mxu0
      %v5301 = vadd.f32 0.0, %v5300
      %v5302 = vpop.f32.mrf.mxu0
      %5303 = vmatprep.mubr.bf16.mxu0 0
      %5304 = vmatmul.mubr.bf16.gmra.mxu0 %v5175
      %v5305 = vpop.f32.mrf.mxu0
      %v5306 = vadd.f32 0.0, %v5305
      %v5307 = vpop.f32.mrf.mxu0
      %v5308 = vpop.f32.mrf.mxu0
      %v5309 = vadd.f32 0.0, %v5308
      %v5310 = vpop.f32.mrf.mxu0
      %5311 = vmatprep.mubr.bf16.mxu0 0
      %5312 = vmatmul.mubr.bf16.gmra.mxu0 %v5178
      %v5313 = vpop.f32.mrf.mxu0
      %v5314 = vadd.f32 0.0, %v5313
      %v5315 = vpop.f32.mrf.mxu0
      %v5316 = vpop.f32.mrf.mxu0
      %v5317 = vadd.f32 0.0, %v5316
      %v5318 = vpop.f32.mrf.mxu0
      %5319 = vmatprep.mubr.bf16.mxu0 0
      %5320 = vmatmul.mubr.bf16.gmra.mxu0 %v5181
      %v5321 = vpop.f32.mrf.mxu0
      %v5322 = vadd.f32 0.0, %v5321
      %v5323 = vpop.f32.mrf.mxu0
      %v5324 = vpop.f32.mrf.mxu0
      %v5325 = vadd.f32 0.0, %v5324
      %v5326 = vpop.f32.mrf.mxu0
      %5327 = vmatprep.mubr.bf16.mxu0 0
      %5328 = vmatmul.mubr.bf16.gmra.mxu0 %v5184
      %v5329 = vpop.f32.mrf.mxu0
      %v5330 = vadd.f32 0.0, %v5329
      %v5331 = vpop.f32.mrf.mxu0
      %v5332 = vpop.f32.mrf.mxu0
      %v5333 = vadd.f32 0.0, %v5332
      %v5334 = vpop.f32.mrf.mxu0
      %5335 = vmatprep.mubr.bf16.mxu0 0
      %5336 = vmatmul.mubr.bf16.gmra.mxu0 %v5187
      %v5337 = vpop.f32.mrf.mxu0
      %v5338 = vadd.f32 0.0, %v5337
      %v5339 = vpop.f32.mrf.mxu0
      %v5340 = vpop.f32.mrf.mxu0
      %v5341 = vadd.f32 0.0, %v5340
      %v5342 = vpop.f32.mrf.mxu0
      %5343 = vmatprep.mubr.bf16.mxu0 0
      %5344 = vmatmul.mubr.bf16.gmra.mxu0 %v5190
      %v5345 = vpop.f32.mrf.mxu0
      %v5346 = vadd.f32 0.0, %v5345
      %v5347 = vpop.f32.mrf.mxu0
      %v5348 = vpop.f32.mrf.mxu0
      %v5349 = vadd.f32 0.0, %v5348
      %v5350 = vpop.f32.mrf.mxu0
      %5351 = vmatprep.mubr.bf16.mxu0 0
      %5352 = vmatmul.mubr.bf16.gmra.mxu0 %v5193
      %v5353 = vpop.f32.mrf.mxu0
      %v5354 = vadd.f32 0.0, %v5353
      %v5355 = vpop.f32.mrf.mxu0
      %v5356 = vpop.f32.mrf.mxu0
      %v5357 = vadd.f32 0.0, %v5356
      %v5358 = vpop.f32.mrf.mxu0
      %5359 = vmatprep.mubr.bf16.mxu0 0
      %5360 = vmatmul.mubr.bf16.gmra.mxu0 %v5196
      %v5361 = vpop.f32.mrf.mxu0
      %v5362 = vadd.f32 0.0, %v5361
      %v5363 = vpop.f32.mrf.mxu0
      %v5364 = vpop.f32.mrf.mxu0
      %v5365 = vadd.f32 0.0, %v5364
      %v5366 = vpop.f32.mrf.mxu0
      %5367 = vmatprep.mubr.bf16.mxu0 0
      %5368 = vmatmul.mubr.bf16.gmra.mxu0 %v5199
      %v5369 = vpop.f32.mrf.mxu0
      %v5370 = vadd.f32 0.0, %v5369
      %v5371 = vpop.f32.mrf.mxu0
      %v5372 = vpop.f32.mrf.mxu0
      %v5373 = vadd.f32 0.0, %v5372
      %v5374 = vpop.f32.mrf.mxu0
      %5375 = vmatprep.mubr.bf16.mxu0 0
      %5376 = vmatmul.mubr.bf16.gmra.mxu0 %v5202
      %v5377 = vpop.f32.mrf.mxu0
      %v5378 = vadd.f32 0.0, %v5377
      %v5379 = vpop.f32.mrf.mxu0
      %v5380 = vpop.f32.mrf.mxu0
      %v5381 = vadd.f32 0.0, %v5380
      %v5382 = vpop.f32.mrf.mxu0
      %5383 = vdwg.mxu0
      %v5385 = vsel %vm3937, %v5075, 0
      %v5388 = vsel %vm3937, %v5076, 0
      %v5391 = vsel %vm3937, %v5077, 0
      %v5394 = vsel %vm3937, %v5078, 0
      %v5397 = vsel %vm3937, %v5079, 0
      %v5400 = vsel %vm3937, %v5080, 0
      %v5403 = vsel %vm3937, %v5081, 0
      %v5406 = vsel %vm3937, %v5082, 0
      %v5409 = vsel %vm3937, %v5083, 0
      %v5412 = vsel %vm3937, %v5084, 0
      %v5415 = vsel %vm3937, %v5085, 0
      %v5418 = vsel %vm3937, %v5086, 0
      %v5421 = vsel %vm3937, %v5087, 0
      %v5424 = vsel %vm3937, %v5088, 0
      %v5427 = vsel %vm3937, %v5089, 0
      %v5430 = vsel %vm3937, %v5090, 0
      %v5433 = vsel %vm3937, %v5091, 0
      %v5436 = vsel %vm3937, %v5092, 0
      %v5439 = vsel %vm4093, %v5093, 0
      %5441 = vmatprep.subr.bf16.mxu0 0
      %5442 = vmatpush1.bf16.msra.mxu0 0
      %5443 = vmatprep.subr.bf16.mxu0 0
      %5444 = vmatpush1.bf16.msra.mxu0 0
      %5445 = vmatprep.subr.bf16.mxu0 0
      %5446 = vmatpush1.bf16.msra.mxu0 0
      %5447 = vmatprep.subr.bf16.mxu0 0
      %5448 = vmatpush1.bf16.msra.mxu0 0
      %5449 = vmatprep.subr.bf16.mxu0 0
      %5450 = vmatpush1.bf16.msra.mxu0 0
      %5451 = vmatprep.subr.bf16.mxu0 0
      %5452 = vmatpush1.bf16.msra.mxu0 0
      %5453 = vmatprep.subr.bf16.mxu0 0
      %5454 = vmatpush1.bf16.msra.mxu0 0
      %5455 = vmatprep.subr.bf16.mxu0 0
      %5456 = vmatpush1.bf16.msra.mxu0 %v5439
      %5457 = vmatprep.subr.bf16.mxu0 0
      %5458 = vmatpush2.bf16.msra.mxu0 0
      %5459 = vmatprep.subr.bf16.mxu0 0
      %5460 = vmatpush2.bf16.msra.mxu0 0
      %5461 = vmatprep.subr.bf16.mxu0 0
      %5462 = vmatpush2.bf16.msra.mxu0 0
      %5463 = vmatprep.subr.bf16.mxu0 0
      %5464 = vmatpush2.bf16.msra.mxu0 0
      %5465 = vmatprep.subr.bf16.mxu0 0
      %5466 = vmatpush2.bf16.msra.mxu0 0
      %5467 = vmatprep.subr.bf16.mxu0 0
      %5468 = vmatpush2.bf16.msra.mxu0 0
      %5469 = vmatprep.subr.bf16.mxu0 0
      %5470 = vmatpush2.bf16.msra.mxu0 0
      %5471 = vmatprep.subr.bf16.mxu0 0
      %5472 = vmatpush2.bf16.msra.mxu0 0
      %5473 = vmatprep.mubr.bf16.mxu0 0
      %5474 = vmatmul.mubr.bf16.gmra.mxu0 %v5385
      %v5475 = vpop.f32.mrf.mxu0
      %v5476 = vadd.f32 %v5242, %v5475
      %v5477 = vpop.f32.mrf.mxu0
      %v5478 = vpop.f32.mrf.mxu0
      %v5479 = vadd.f32 %v5245, %v5478
      %v5480 = vpop.f32.mrf.mxu0
      %5481 = vmatprep.mubr.bf16.mxu0 0
      %5482 = vmatmul.mubr.bf16.gmra.mxu0 %v5388
      %v5483 = vpop.f32.mrf.mxu0
      %v5484 = vadd.f32 %v5250, %v5483
      %v5485 = vpop.f32.mrf.mxu0
      %v5486 = vpop.f32.mrf.mxu0
      %v5487 = vadd.f32 %v5253, %v5486
      %v5488 = vpop.f32.mrf.mxu0
      %5489 = vmatprep.mubr.bf16.mxu0 0
      %5490 = vmatmul.mubr.bf16.gmra.mxu0 %v5391
      %v5491 = vpop.f32.mrf.mxu0
      %v5492 = vadd.f32 %v5258, %v5491
      %v5493 = vpop.f32.mrf.mxu0
      %v5494 = vpop.f32.mrf.mxu0
      %v5495 = vadd.f32 %v5261, %v5494
      %v5496 = vpop.f32.mrf.mxu0
      %5497 = vmatprep.mubr.bf16.mxu0 0
      %5498 = vmatmul.mubr.bf16.gmra.mxu0 %v5394
      %v5499 = vpop.f32.mrf.mxu0
      %v5500 = vadd.f32 %v5266, %v5499
      %v5501 = vpop.f32.mrf.mxu0
      %v5502 = vpop.f32.mrf.mxu0
      %v5503 = vadd.f32 %v5269, %v5502
      %v5504 = vpop.f32.mrf.mxu0
      %5505 = vmatprep.mubr.bf16.mxu0 0
      %5506 = vmatmul.mubr.bf16.gmra.mxu0 %v5397
      %v5507 = vpop.f32.mrf.mxu0
      %v5508 = vadd.f32 %v5274, %v5507
      %v5509 = vpop.f32.mrf.mxu0
      %v5510 = vpop.f32.mrf.mxu0
      %v5511 = vadd.f32 %v5277, %v5510
      %v5512 = vpop.f32.mrf.mxu0
      %5513 = vmatprep.mubr.bf16.mxu0 0
      %5514 = vmatmul.mubr.bf16.gmra.mxu0 %v5400
      %v5515 = vpop.f32.mrf.mxu0
      %v5516 = vadd.f32 %v5282, %v5515
      %v5517 = vpop.f32.mrf.mxu0
      %v5518 = vpop.f32.mrf.mxu0
      %v5519 = vadd.f32 %v5285, %v5518
      %v5520 = vpop.f32.mrf.mxu0
      %5521 = vmatprep.mubr.bf16.mxu0 0
      %5522 = vmatmul.mubr.bf16.gmra.mxu0 %v5403
      %v5523 = vpop.f32.mrf.mxu0
      %v5524 = vadd.f32 %v5290, %v5523
      %v5525 = vpop.f32.mrf.mxu0
      %v5526 = vpop.f32.mrf.mxu0
      %v5527 = vadd.f32 %v5293, %v5526
      %v5528 = vpop.f32.mrf.mxu0
      %5529 = vmatprep.mubr.bf16.mxu0 0
      %5530 = vmatmul.mubr.bf16.gmra.mxu0 %v5406
      %v5531 = vpop.f32.mrf.mxu0
      %v5532 = vadd.f32 %v5298, %v5531
      %v5533 = vpop.f32.mrf.mxu0
      %v5534 = vpop.f32.mrf.mxu0
      %v5535 = vadd.f32 %v5301, %v5534
      %v5536 = vpop.f32.mrf.mxu0
      %5537 = vmatprep.mubr.bf16.mxu0 0
      %5538 = vmatmul.mubr.bf16.gmra.mxu0 %v5409
      %v5539 = vpop.f32.mrf.mxu0
      %v5540 = vadd.f32 %v5306, %v5539
      %v5541 = vpop.f32.mrf.mxu0
      %v5542 = vpop.f32.mrf.mxu0
      %v5543 = vadd.f32 %v5309, %v5542
      %v5544 = vpop.f32.mrf.mxu0
      %5545 = vmatprep.mubr.bf16.mxu0 0
      %5546 = vmatmul.mubr.bf16.gmra.mxu0 %v5412
      %v5547 = vpop.f32.mrf.mxu0
      %v5548 = vadd.f32 %v5314, %v5547
      %v5549 = vpop.f32.mrf.mxu0
      %v5550 = vpop.f32.mrf.mxu0
      %v5551 = vadd.f32 %v5317, %v5550
      %v5552 = vpop.f32.mrf.mxu0
      %5553 = vmatprep.mubr.bf16.mxu0 0
      %5554 = vmatmul.mubr.bf16.gmra.mxu0 %v5415
      %v5555 = vpop.f32.mrf.mxu0
      %v5556 = vadd.f32 %v5322, %v5555
      %v5557 = vpop.f32.mrf.mxu0
      %v5558 = vpop.f32.mrf.mxu0
      %v5559 = vadd.f32 %v5325, %v5558
      %v5560 = vpop.f32.mrf.mxu0
      %5561 = vmatprep.mubr.bf16.mxu0 0
      %5562 = vmatmul.mubr.bf16.gmra.mxu0 %v5418
      %v5563 = vpop.f32.mrf.mxu0
      %v5564 = vadd.f32 %v5330, %v5563
      %v5565 = vpop.f32.mrf.mxu0
      %v5566 = vpop.f32.mrf.mxu0
      %v5567 = vadd.f32 %v5333, %v5566
      %v5568 = vpop.f32.mrf.mxu0
      %5569 = vmatprep.mubr.bf16.mxu0 0
      %5570 = vmatmul.mubr.bf16.gmra.mxu0 %v5421
      %v5571 = vpop.f32.mrf.mxu0
      %v5572 = vadd.f32 %v5338, %v5571
      %v5573 = vpop.f32.mrf.mxu0
      %v5574 = vpop.f32.mrf.mxu0
      %v5575 = vadd.f32 %v5341, %v5574
      %v5576 = vpop.f32.mrf.mxu0
      %5577 = vmatprep.mubr.bf16.mxu0 0
      %5578 = vmatmul.mubr.bf16.gmra.mxu0 %v5424
      %v5579 = vpop.f32.mrf.mxu0
      %v5580 = vadd.f32 %v5346, %v5579
      %v5581 = vpop.f32.mrf.mxu0
      %v5582 = vpop.f32.mrf.mxu0
      %v5583 = vadd.f32 %v5349, %v5582
      %v5584 = vpop.f32.mrf.mxu0
      %5585 = vmatprep.mubr.bf16.mxu0 0
      %5586 = vmatmul.mubr.bf16.gmra.mxu0 %v5427
      %v5587 = vpop.f32.mrf.mxu0
      %v5588 = vadd.f32 %v5354, %v5587
      %v5589 = vpop.f32.mrf.mxu0
      %v5590 = vpop.f32.mrf.mxu0
      %v5591 = vadd.f32 %v5357, %v5590
      %v5592 = vpop.f32.mrf.mxu0
      %5593 = vmatprep.mubr.bf16.mxu0 0
      %5594 = vmatmul.mubr.bf16.gmra.mxu0 %v5430
      %v5595 = vpop.f32.mrf.mxu0
      %v5596 = vadd.f32 %v5362, %v5595
      %v5597 = vpop.f32.mrf.mxu0
      %v5598 = vpop.f32.mrf.mxu0
      %v5599 = vadd.f32 %v5365, %v5598
      %v5600 = vpop.f32.mrf.mxu0
      %5601 = vmatprep.mubr.bf16.mxu0 0
      %5602 = vmatmul.mubr.bf16.gmra.mxu0 %v5433
      %v5603 = vpop.f32.mrf.mxu0
      %v5604 = vadd.f32 %v5370, %v5603
      %v5605 = vpop.f32.mrf.mxu0
      %v5606 = vpop.f32.mrf.mxu0
      %v5607 = vadd.f32 %v5373, %v5606
      %v5608 = vpop.f32.mrf.mxu0
      %5609 = vmatprep.mubr.bf16.mxu0 0
      %5610 = vmatmul.mubr.bf16.gmra.mxu0 %v5436
      %v5611 = vpop.f32.mrf.mxu0
      %v5612 = vadd.f32 %v5378, %v5611
      %v5613 = vpop.f32.mrf.mxu0
      %v5614 = vpop.f32.mrf.mxu0
      %v5615 = vadd.f32 %v5381, %v5614
      %v5616 = vpop.f32.mrf.mxu0
      %5617 = vdwg.mxu0
      %v5618 = vld [vmem:[#allocation2 + $0x2] sm:$0xff]
      %v5619 = vld [vmem:[#allocation2 + $0xa] sm:$0xff]
      %v5620 = vld [vmem:[#allocation2 + $0x12] sm:$0xff]
      %v5621 = vld [vmem:[#allocation2 + $0x1a] sm:$0xff]
      %v5622 = vld [vmem:[#allocation2 + $0x22] sm:$0xff]
      %v5623 = vld [vmem:[#allocation2 + $0x2a] sm:$0xff]
      %v5624 = vld [vmem:[#allocation2 + $0x32] sm:$0xff]
      %v5625 = vld [vmem:[#allocation2 + $0x3a] sm:$0xff]
      %v5626 = vld [vmem:[#allocation2 + $0x42] sm:$0xff]
      %v5627 = vld [vmem:[#allocation2 + $0x4a] sm:$0xff]
      %v5628 = vld [vmem:[#allocation2 + $0x52] sm:$0xff]
      %v5629 = vld [vmem:[#allocation2 + $0x5a] sm:$0xff]
      %v5630 = vld [vmem:[#allocation2 + $0x62] sm:$0xff]
      %v5631 = vld [vmem:[#allocation2 + $0x6a] sm:$0xff]
      %v5632 = vld [vmem:[#allocation2 + $0x72] sm:$0xff]
      %v5633 = vld [vmem:[#allocation2 + $0x7a] sm:$0xff]
      %v5634 = vld [vmem:[#allocation2 + $0x82] sm:$0xff]
      %v5635 = vld [vmem:[#allocation2 + $0x8a] sm:$0xff]
      %v5636 = vld [vmem:[#allocation2 + $0x92] sm:$0xff]
      %v5637 = vld [vmem:[#allocation2 + $0x9a] sm:$0xff]
      %v5638 = vld [vmem:[#allocation2 + $0xa2] sm:$0xff]
      %v5639 = vld [vmem:[#allocation2 + $0xaa] sm:$0xff]
      %v5640 = vld [vmem:[#allocation2 + $0xb2] sm:$0xff]
      %v5641 = vld [vmem:[#allocation2 + $0xba] sm:$0xff]
      %v5642 = vld [vmem:[#allocation2 + $0xc2] sm:$0xff]
      %v5643 = vld [vmem:[#allocation2 + $0xca] sm:$0xff]
      %v5644 = vld [vmem:[#allocation2 + $0xd2] sm:$0xff]
      %v5645 = vld [vmem:[#allocation2 + $0xda] sm:$0xff]
      %v5646 = vld [vmem:[#allocation2 + $0xe2] sm:$0xff]
      %v5647 = vld [vmem:[#allocation2 + $0xea] sm:$0xff]
      %v5648 = vld [vmem:[#allocation2 + $0xf2] sm:$0xff]
      %v5649 = vld [vmem:[#allocation2 + $0xfa] sm:$0xff]
      %v5650 = vld [vmem:[#allocation2 + $0x102] sm:$0xff]
      %v5651 = vld [vmem:[#allocation2 + $0x10a] sm:$0xff]
      %v5652 = vld [vmem:[#allocation2 + $0x112] sm:$0xff]
      %v5653 = vld [vmem:[#allocation2 + $0x11a] sm:$0x3f]
      %v5654 = vpack.c.bf16 %v5619, %v5618
      %v5655 = vpack.c.bf16 %v5621, %v5620
      %v5656 = vpack.c.bf16 %v5623, %v5622
      %v5657 = vpack.c.bf16 %v5625, %v5624
      %v5658 = vpack.c.bf16 %v5627, %v5626
      %v5659 = vpack.c.bf16 %v5629, %v5628
      %v5660 = vpack.c.bf16 %v5631, %v5630
      %v5661 = vpack.c.bf16 %v5633, %v5632
      %v5662 = vpack.c.bf16 %v5635, %v5634
      %v5663 = vpack.c.bf16 %v5637, %v5636
      %v5664 = vpack.c.bf16 %v5639, %v5638
      %v5665 = vpack.c.bf16 %v5641, %v5640
      %v5666 = vpack.c.bf16 %v5643, %v5642
      %v5667 = vpack.c.bf16 %v5645, %v5644
      %v5668 = vpack.c.bf16 %v5647, %v5646
      %v5669 = vpack.c.bf16 %v5649, %v5648
      %v5670 = vpack.c.bf16 %v5651, %v5650
      %v5671 = vpack.c.bf16 %v5653, %v5652
      %s5672 = scalar_lea.vmem %s13, 8
      %v5673 = vld [vmem:[%s5672] sm:$0xf]
      %v5675 = vsel %vm3937, %v5654, 0
      %v5678 = vsel %vm3937, %v5655, 0
      %v5681 = vsel %vm3937, %v5656, 0
      %v5684 = vsel %vm3937, %v5657, 0
      %v5687 = vsel %vm3937, %v5658, 0
      %v5690 = vsel %vm3937, %v5659, 0
      %v5693 = vsel %vm3937, %v5660, 0
      %v5696 = vsel %vm3937, %v5661, 0
      %v5699 = vsel %vm3937, %v5662, 0
      %v5702 = vsel %vm3937, %v5663, 0
      %v5705 = vsel %vm3937, %v5664, 0
      %v5708 = vsel %vm3937, %v5665, 0
      %v5711 = vsel %vm3937, %v5666, 0
      %v5714 = vsel %vm3937, %v5667, 0
      %v5717 = vsel %vm3937, %v5668, 0
      %v5720 = vsel %vm3937, %v5669, 0
      %v5723 = vsel %vm3937, %v5670, 0
      %v5726 = vsel %vm3937, %v5671, 0
      %v5729 = vsel %vm4093, %v5673, 0
      %5731 = vmatprep.subr.bf16.mxu0 0
      %5732 = vmatpush1.bf16.msra.mxu0 0
      %5733 = vmatprep.subr.bf16.mxu0 0
      %5734 = vmatpush1.bf16.msra.mxu0 0
      %5735 = vmatprep.subr.bf16.mxu0 0
      %5736 = vmatpush1.bf16.msra.mxu0 0
      %5737 = vmatprep.subr.bf16.mxu0 0
      %5738 = vmatpush1.bf16.msra.mxu0 0
      %5739 = vmatprep.subr.bf16.mxu0 0
      %5740 = vmatpush1.bf16.msra.mxu0 0
      %5741 = vmatprep.subr.bf16.mxu0 0
      %5742 = vmatpush1.bf16.msra.mxu0 0
      %5743 = vmatprep.subr.bf16.mxu0 0
      %5744 = vmatpush1.bf16.msra.mxu0 0
      %5745 = vmatprep.subr.bf16.mxu0 0
      %5746 = vmatpush1.bf16.msra.mxu0 %v5729
      %5747 = vmatprep.subr.bf16.mxu0 0
      %5748 = vmatpush2.bf16.msra.mxu0 0
      %5749 = vmatprep.subr.bf16.mxu0 0
      %5750 = vmatpush2.bf16.msra.mxu0 0
      %5751 = vmatprep.subr.bf16.mxu0 0
      %5752 = vmatpush2.bf16.msra.mxu0 0
      %5753 = vmatprep.subr.bf16.mxu0 0
      %5754 = vmatpush2.bf16.msra.mxu0 0
      %5755 = vmatprep.subr.bf16.mxu0 0
      %5756 = vmatpush2.bf16.msra.mxu0 0
      %5757 = vmatprep.subr.bf16.mxu0 0
      %5758 = vmatpush2.bf16.msra.mxu0 0
      %5759 = vmatprep.subr.bf16.mxu0 0
      %5760 = vmatpush2.bf16.msra.mxu0 0
      %5761 = vmatprep.subr.bf16.mxu0 0
      %5762 = vmatpush2.bf16.msra.mxu0 0
      %5763 = vmatprep.mubr.bf16.mxu0 0
      %5764 = vmatmul.mubr.bf16.gmra.mxu0 %v5675
      %v5765 = vpop.f32.mrf.mxu0
      %v5766 = vadd.f32 0.0, %v5765
      %v5767 = vpop.f32.mrf.mxu0
      %v5768 = vpop.f32.mrf.mxu0
      %v5769 = vadd.f32 0.0, %v5768
      %v5770 = vpop.f32.mrf.mxu0
      %5771 = vmatprep.mubr.bf16.mxu0 0
      %5772 = vmatmul.mubr.bf16.gmra.mxu0 %v5678
      %v5773 = vpop.f32.mrf.mxu0
      %v5774 = vadd.f32 0.0, %v5773
      %v5775 = vpop.f32.mrf.mxu0
      %v5776 = vpop.f32.mrf.mxu0
      %v5777 = vadd.f32 0.0, %v5776
      %v5778 = vpop.f32.mrf.mxu0
      %5779 = vmatprep.mubr.bf16.mxu0 0
      %5780 = vmatmul.mubr.bf16.gmra.mxu0 %v5681
      %v5781 = vpop.f32.mrf.mxu0
      %v5782 = vadd.f32 0.0, %v5781
      %v5783 = vpop.f32.mrf.mxu0
      %v5784 = vpop.f32.mrf.mxu0
      %v5785 = vadd.f32 0.0, %v5784
      %v5786 = vpop.f32.mrf.mxu0
      %5787 = vmatprep.mubr.bf16.mxu0 0
      %5788 = vmatmul.mubr.bf16.gmra.mxu0 %v5684
      %v5789 = vpop.f32.mrf.mxu0
      %v5790 = vadd.f32 0.0, %v5789
      %v5791 = vpop.f32.mrf.mxu0
      %v5792 = vpop.f32.mrf.mxu0
      %v5793 = vadd.f32 0.0, %v5792
      %v5794 = vpop.f32.mrf.mxu0
      %5795 = vmatprep.mubr.bf16.mxu0 0
      %5796 = vmatmul.mubr.bf16.gmra.mxu0 %v5687
      %v5797 = vpop.f32.mrf.mxu0
      %v5798 = vadd.f32 0.0, %v5797
      %v5799 = vpop.f32.mrf.mxu0
      %v5800 = vpop.f32.mrf.mxu0
      %v5801 = vadd.f32 0.0, %v5800
      %v5802 = vpop.f32.mrf.mxu0
      %5803 = vmatprep.mubr.bf16.mxu0 0
      %5804 = vmatmul.mubr.bf16.gmra.mxu0 %v5690
      %v5805 = vpop.f32.mrf.mxu0
      %v5806 = vadd.f32 0.0, %v5805
      %v5807 = vpop.f32.mrf.mxu0
      %v5808 = vpop.f32.mrf.mxu0
      %v5809 = vadd.f32 0.0, %v5808
      %v5810 = vpop.f32.mrf.mxu0
      %5811 = vmatprep.mubr.bf16.mxu0 0
      %5812 = vmatmul.mubr.bf16.gmra.mxu0 %v5693
      %v5813 = vpop.f32.mrf.mxu0
      %v5814 = vadd.f32 0.0, %v5813
      %v5815 = vpop.f32.mrf.mxu0
      %v5816 = vpop.f32.mrf.mxu0
      %v5817 = vadd.f32 0.0, %v5816
      %v5818 = vpop.f32.mrf.mxu0
      %5819 = vmatprep.mubr.bf16.mxu0 0
      %5820 = vmatmul.mubr.bf16.gmra.mxu0 %v5696
      %v5821 = vpop.f32.mrf.mxu0
      %v5822 = vadd.f32 0.0, %v5821
      %v5823 = vpop.f32.mrf.mxu0
      %v5824 = vpop.f32.mrf.mxu0
      %v5825 = vadd.f32 0.0, %v5824
      %v5826 = vpop.f32.mrf.mxu0
      %5827 = vmatprep.mubr.bf16.mxu0 0
      %5828 = vmatmul.mubr.bf16.gmra.mxu0 %v5699
      %v5829 = vpop.f32.mrf.mxu0
      %v5830 = vadd.f32 0.0, %v5829
      %v5831 = vpop.f32.mrf.mxu0
      %v5832 = vpop.f32.mrf.mxu0
      %v5833 = vadd.f32 0.0, %v5832
      %v5834 = vpop.f32.mrf.mxu0
      %5835 = vmatprep.mubr.bf16.mxu0 0
      %5836 = vmatmul.mubr.bf16.gmra.mxu0 %v5702
      %v5837 = vpop.f32.mrf.mxu0
      %v5838 = vadd.f32 0.0, %v5837
      %v5839 = vpop.f32.mrf.mxu0
      %v5840 = vpop.f32.mrf.mxu0
      %v5841 = vadd.f32 0.0, %v5840
      %v5842 = vpop.f32.mrf.mxu0
      %5843 = vmatprep.mubr.bf16.mxu0 0
      %5844 = vmatmul.mubr.bf16.gmra.mxu0 %v5705
      %v5845 = vpop.f32.mrf.mxu0
      %v5846 = vadd.f32 0.0, %v5845
      %v5847 = vpop.f32.mrf.mxu0
      %v5848 = vpop.f32.mrf.mxu0
      %v5849 = vadd.f32 0.0, %v5848
      %v5850 = vpop.f32.mrf.mxu0
      %5851 = vmatprep.mubr.bf16.mxu0 0
      %5852 = vmatmul.mubr.bf16.gmra.mxu0 %v5708
      %v5853 = vpop.f32.mrf.mxu0
      %v5854 = vadd.f32 0.0, %v5853
      %v5855 = vpop.f32.mrf.mxu0
      %v5856 = vpop.f32.mrf.mxu0
      %v5857 = vadd.f32 0.0, %v5856
      %v5858 = vpop.f32.mrf.mxu0
      %5859 = vmatprep.mubr.bf16.mxu0 0
      %5860 = vmatmul.mubr.bf16.gmra.mxu0 %v5711
      %v5861 = vpop.f32.mrf.mxu0
      %v5862 = vadd.f32 0.0, %v5861
      %v5863 = vpop.f32.mrf.mxu0
      %v5864 = vpop.f32.mrf.mxu0
      %v5865 = vadd.f32 0.0, %v5864
      %v5866 = vpop.f32.mrf.mxu0
      %5867 = vmatprep.mubr.bf16.mxu0 0
      %5868 = vmatmul.mubr.bf16.gmra.mxu0 %v5714
      %v5869 = vpop.f32.mrf.mxu0
      %v5870 = vadd.f32 0.0, %v5869
      %v5871 = vpop.f32.mrf.mxu0
      %v5872 = vpop.f32.mrf.mxu0
      %v5873 = vadd.f32 0.0, %v5872
      %v5874 = vpop.f32.mrf.mxu0
      %5875 = vmatprep.mubr.bf16.mxu0 0
      %5876 = vmatmul.mubr.bf16.gmra.mxu0 %v5717
      %v5877 = vpop.f32.mrf.mxu0
      %v5878 = vadd.f32 0.0, %v5877
      %v5879 = vpop.f32.mrf.mxu0
      %v5880 = vpop.f32.mrf.mxu0
      %v5881 = vadd.f32 0.0, %v5880
      %v5882 = vpop.f32.mrf.mxu0
      %5883 = vmatprep.mubr.bf16.mxu0 0
      %5884 = vmatmul.mubr.bf16.gmra.mxu0 %v5720
      %v5885 = vpop.f32.mrf.mxu0
      %v5886 = vadd.f32 0.0, %v5885
      %v5887 = vpop.f32.mrf.mxu0
      %v5888 = vpop.f32.mrf.mxu0
      %v5889 = vadd.f32 0.0, %v5888
      %v5890 = vpop.f32.mrf.mxu0
      %5891 = vmatprep.mubr.bf16.mxu0 0
      %5892 = vmatmul.mubr.bf16.gmra.mxu0 %v5723
      %v5893 = vpop.f32.mrf.mxu0
      %v5894 = vadd.f32 0.0, %v5893
      %v5895 = vpop.f32.mrf.mxu0
      %v5896 = vpop.f32.mrf.mxu0
      %v5897 = vadd.f32 0.0, %v5896
      %v5898 = vpop.f32.mrf.mxu0
      %5899 = vmatprep.mubr.bf16.mxu0 0
      %5900 = vmatmul.mubr.bf16.gmra.mxu0 %v5726
      %v5901 = vpop.f32.mrf.mxu0
      %v5902 = vadd.f32 0.0, %v5901
      %v5903 = vpop.f32.mrf.mxu0
      %v5904 = vpop.f32.mrf.mxu0
      %v5905 = vadd.f32 0.0, %v5904
      %v5906 = vpop.f32.mrf.mxu0
      %5907 = vdwg.mxu0
      %v5908 = vadd.f32 %v5476, %v5766
      %v5909 = vadd.f32 %v5479, %v5769
      %v5910 = vadd.f32 %v5484, %v5774
      %v5911 = vadd.f32 %v5487, %v5777
      %v5912 = vadd.f32 %v5492, %v5782
      %v5913 = vadd.f32 %v5495, %v5785
      %v5914 = vadd.f32 %v5500, %v5790
      %v5915 = vadd.f32 %v5503, %v5793
      %v5916 = vadd.f32 %v5508, %v5798
      %v5917 = vadd.f32 %v5511, %v5801
      %v5918 = vadd.f32 %v5516, %v5806
      %v5919 = vadd.f32 %v5519, %v5809
      %v5920 = vadd.f32 %v5524, %v5814
      %v5921 = vadd.f32 %v5527, %v5817
      %v5922 = vadd.f32 %v5532, %v5822
      %v5923 = vadd.f32 %v5535, %v5825
      %v5924 = vadd.f32 %v5540, %v5830
      %v5925 = vadd.f32 %v5543, %v5833
      %v5926 = vadd.f32 %v5548, %v5838
      %v5927 = vadd.f32 %v5551, %v5841
      %v5928 = vadd.f32 %v5556, %v5846
      %v5929 = vadd.f32 %v5559, %v5849
      %v5930 = vadd.f32 %v5564, %v5854
      %v5931 = vadd.f32 %v5567, %v5857
      %v5932 = vadd.f32 %v5572, %v5862
      %v5933 = vadd.f32 %v5575, %v5865
      %v5934 = vadd.f32 %v5580, %v5870
      %v5935 = vadd.f32 %v5583, %v5873
      %v5936 = vadd.f32 %v5588, %v5878
      %v5937 = vadd.f32 %v5591, %v5881
      %v5938 = vadd.f32 %v5596, %v5886
      %v5939 = vadd.f32 %v5599, %v5889
      %v5940 = vadd.f32 %v5604, %v5894
      %v5941 = vadd.f32 %v5607, %v5897
      %v5942 = vadd.f32 %v5612, %v5902
      %v5943 = vadd.f32 %v5615, %v5905
      %v5944 = vld [vmem:[#allocation2 + $0x12] sm:$0xff]
      %v5945 = vld [vmem:[#allocation2 + $0x1a] sm:$0xff]
      %v5946 = vld [vmem:[#allocation2 + $0x22] sm:$0xff]
      %v5947 = vld [vmem:[#allocation2 + $0x2a] sm:$0xff]
      %v5948 = vld [vmem:[#allocation2 + $0x32] sm:$0xff]
      %v5949 = vld [vmem:[#allocation2 + $0x3a] sm:$0xff]
      %v5950 = vld [vmem:[#allocation2 + $0x42] sm:$0xff]
      %v5951 = vld [vmem:[#allocation2 + $0x4a] sm:$0xff]
      %v5952 = vld [vmem:[#allocation2 + $0x52] sm:$0xff]
      %v5953 = vld [vmem:[#allocation2 + $0x5a] sm:$0xff]
      %v5954 = vld [vmem:[#allocation2 + $0x62] sm:$0xff]
      %v5955 = vld [vmem:[#allocation2 + $0x6a] sm:$0xff]
      %v5956 = vld [vmem:[#allocation2 + $0x72] sm:$0xff]
      %v5957 = vld [vmem:[#allocation2 + $0x7a] sm:$0xff]
      %v5958 = vld [vmem:[#allocation2 + $0x82] sm:$0xff]
      %v5959 = vld [vmem:[#allocation2 + $0x8a] sm:$0xff]
      %v5960 = vld [vmem:[#allocation2 + $0x92] sm:$0xff]
      %v5961 = vld [vmem:[#allocation2 + $0x9a] sm:$0xff]
      %v5962 = vld [vmem:[#allocation2 + $0xa2] sm:$0xff]
      %v5963 = vld [vmem:[#allocation2 + $0xaa] sm:$0xff]
      %v5964 = vld [vmem:[#allocation2 + $0xb2] sm:$0xff]
      %v5965 = vld [vmem:[#allocation2 + $0xba] sm:$0xff]
      %v5966 = vld [vmem:[#allocation2 + $0xc2] sm:$0xff]
      %v5967 = vld [vmem:[#allocation2 + $0xca] sm:$0xff]
      %v5968 = vld [vmem:[#allocation2 + $0xd2] sm:$0xff]
      %v5969 = vld [vmem:[#allocation2 + $0xda] sm:$0xff]
      %v5970 = vld [vmem:[#allocation2 + $0xe2] sm:$0xff]
      %v5971 = vld [vmem:[#allocation2 + $0xea] sm:$0xff]
      %v5972 = vld [vmem:[#allocation2 + $0xf2] sm:$0xff]
      %v5973 = vld [vmem:[#allocation2 + $0xfa] sm:$0xff]
      %v5974 = vld [vmem:[#allocation2 + $0x102] sm:$0xff]
      %v5975 = vld [vmem:[#allocation2 + $0x10a] sm:$0xff]
      %v5976 = vld [vmem:[#allocation2 + $0x112] sm:$0xff]
      %v5977 = vld [vmem:[#allocation2 + $0x11a] sm:$0xff]
      %v5978 = vld [vmem:[#allocation2 + $0x122] sm:$0xff]
      %v5979 = vld [vmem:[#allocation2 + $0x12a] sm:$0x3f]
      %v5980 = vpack.c.bf16 %v5945, %v5944
      %v5981 = vpack.c.bf16 %v5947, %v5946
      %v5982 = vpack.c.bf16 %v5949, %v5948
      %v5983 = vpack.c.bf16 %v5951, %v5950
      %v5984 = vpack.c.bf16 %v5953, %v5952
      %v5985 = vpack.c.bf16 %v5955, %v5954
      %v5986 = vpack.c.bf16 %v5957, %v5956
      %v5987 = vpack.c.bf16 %v5959, %v5958
      %v5988 = vpack.c.bf16 %v5961, %v5960
      %v5989 = vpack.c.bf16 %v5963, %v5962
      %v5990 = vpack.c.bf16 %v5965, %v5964
      %v5991 = vpack.c.bf16 %v5967, %v5966
      %v5992 = vpack.c.bf16 %v5969, %v5968
      %v5993 = vpack.c.bf16 %v5971, %v5970
      %v5994 = vpack.c.bf16 %v5973, %v5972
      %v5995 = vpack.c.bf16 %v5975, %v5974
      %v5996 = vpack.c.bf16 %v5977, %v5976
      %v5997 = vpack.c.bf16 %v5979, %v5978
      %s5998 = scalar_lea.vmem %s13, 12
      %v5999 = vld [vmem:[%s5998] sm:$0xf]
      %v6001 = vsel %vm3937, %v5980, 0
      %v6004 = vsel %vm3937, %v5981, 0
      %v6007 = vsel %vm3937, %v5982, 0
      %v6010 = vsel %vm3937, %v5983, 0
      %v6013 = vsel %vm3937, %v5984, 0
      %v6016 = vsel %vm3937, %v5985, 0
      %v6019 = vsel %vm3937, %v5986, 0
      %v6022 = vsel %vm3937, %v5987, 0
      %v6025 = vsel %vm3937, %v5988, 0
      %v6028 = vsel %vm3937, %v5989, 0
      %v6031 = vsel %vm3937, %v5990, 0
      %v6034 = vsel %vm3937, %v5991, 0
      %v6037 = vsel %vm3937, %v5992, 0
      %v6040 = vsel %vm3937, %v5993, 0
      %v6043 = vsel %vm3937, %v5994, 0
      %v6046 = vsel %vm3937, %v5995, 0
      %v6049 = vsel %vm3937, %v5996, 0
      %v6052 = vsel %vm3937, %v5997, 0
      %v6055 = vsel %vm4093, %v5999, 0
      %6057 = vmatprep.subr.bf16.mxu0 0
      %6058 = vmatpush1.bf16.msra.mxu0 0
      %6059 = vmatprep.subr.bf16.mxu0 0
      %6060 = vmatpush1.bf16.msra.mxu0 0
      %6061 = vmatprep.subr.bf16.mxu0 0
      %6062 = vmatpush1.bf16.msra.mxu0 0
      %6063 = vmatprep.subr.bf16.mxu0 0
      %6064 = vmatpush1.bf16.msra.mxu0 0
      %6065 = vmatprep.subr.bf16.mxu0 0
      %6066 = vmatpush1.bf16.msra.mxu0 0
      %6067 = vmatprep.subr.bf16.mxu0 0
      %6068 = vmatpush1.bf16.msra.mxu0 0
      %6069 = vmatprep.subr.bf16.mxu0 0
      %6070 = vmatpush1.bf16.msra.mxu0 0
      %6071 = vmatprep.subr.bf16.mxu0 0
      %6072 = vmatpush1.bf16.msra.mxu0 %v6055
      %6073 = vmatprep.subr.bf16.mxu0 0
      %6074 = vmatpush2.bf16.msra.mxu0 0
      %6075 = vmatprep.subr.bf16.mxu0 0
      %6076 = vmatpush2.bf16.msra.mxu0 0
      %6077 = vmatprep.subr.bf16.mxu0 0
      %6078 = vmatpush2.bf16.msra.mxu0 0
      %6079 = vmatprep.subr.bf16.mxu0 0
      %6080 = vmatpush2.bf16.msra.mxu0 0
      %6081 = vmatprep.subr.bf16.mxu0 0
      %6082 = vmatpush2.bf16.msra.mxu0 0
      %6083 = vmatprep.subr.bf16.mxu0 0
      %6084 = vmatpush2.bf16.msra.mxu0 0
      %6085 = vmatprep.subr.bf16.mxu0 0
      %6086 = vmatpush2.bf16.msra.mxu0 0
      %6087 = vmatprep.subr.bf16.mxu0 0
      %6088 = vmatpush2.bf16.msra.mxu0 0
      %6089 = vmatprep.mubr.bf16.mxu0 0
      %6090 = vmatmul.mubr.bf16.gmra.mxu0 %v6001
      %v6091 = vpop.f32.mrf.mxu0
      %v6092 = vadd.f32 0.0, %v6091
      %v6093 = vpop.f32.mrf.mxu0
      %v6094 = vpop.f32.mrf.mxu0
      %v6095 = vadd.f32 0.0, %v6094
      %v6096 = vpop.f32.mrf.mxu0
      %6097 = vmatprep.mubr.bf16.mxu0 0
      %6098 = vmatmul.mubr.bf16.gmra.mxu0 %v6004
      %v6099 = vpop.f32.mrf.mxu0
      %v6100 = vadd.f32 0.0, %v6099
      %v6101 = vpop.f32.mrf.mxu0
      %v6102 = vpop.f32.mrf.mxu0
      %v6103 = vadd.f32 0.0, %v6102
      %v6104 = vpop.f32.mrf.mxu0
      %6105 = vmatprep.mubr.bf16.mxu0 0
      %6106 = vmatmul.mubr.bf16.gmra.mxu0 %v6007
      %v6107 = vpop.f32.mrf.mxu0
      %v6108 = vadd.f32 0.0, %v6107
      %v6109 = vpop.f32.mrf.mxu0
      %v6110 = vpop.f32.mrf.mxu0
      %v6111 = vadd.f32 0.0, %v6110
      %v6112 = vpop.f32.mrf.mxu0
      %6113 = vmatprep.mubr.bf16.mxu0 0
      %6114 = vmatmul.mubr.bf16.gmra.mxu0 %v6010
      %v6115 = vpop.f32.mrf.mxu0
      %v6116 = vadd.f32 0.0, %v6115
      %v6117 = vpop.f32.mrf.mxu0
      %v6118 = vpop.f32.mrf.mxu0
      %v6119 = vadd.f32 0.0, %v6118
      %v6120 = vpop.f32.mrf.mxu0
      %6121 = vmatprep.mubr.bf16.mxu0 0
      %6122 = vmatmul.mubr.bf16.gmra.mxu0 %v6013
      %v6123 = vpop.f32.mrf.mxu0
      %v6124 = vadd.f32 0.0, %v6123
      %v6125 = vpop.f32.mrf.mxu0
      %v6126 = vpop.f32.mrf.mxu0
      %v6127 = vadd.f32 0.0, %v6126
      %v6128 = vpop.f32.mrf.mxu0
      %6129 = vmatprep.mubr.bf16.mxu0 0
      %6130 = vmatmul.mubr.bf16.gmra.mxu0 %v6016
      %v6131 = vpop.f32.mrf.mxu0
      %v6132 = vadd.f32 0.0, %v6131
      %v6133 = vpop.f32.mrf.mxu0
      %v6134 = vpop.f32.mrf.mxu0
      %v6135 = vadd.f32 0.0, %v6134
      %v6136 = vpop.f32.mrf.mxu0
      %6137 = vmatprep.mubr.bf16.mxu0 0
      %6138 = vmatmul.mubr.bf16.gmra.mxu0 %v6019
      %v6139 = vpop.f32.mrf.mxu0
      %v6140 = vadd.f32 0.0, %v6139
      %v6141 = vpop.f32.mrf.mxu0
      %v6142 = vpop.f32.mrf.mxu0
      %v6143 = vadd.f32 0.0, %v6142
      %v6144 = vpop.f32.mrf.mxu0
      %6145 = vmatprep.mubr.bf16.mxu0 0
      %6146 = vmatmul.mubr.bf16.gmra.mxu0 %v6022
      %v6147 = vpop.f32.mrf.mxu0
      %v6148 = vadd.f32 0.0, %v6147
      %v6149 = vpop.f32.mrf.mxu0
      %v6150 = vpop.f32.mrf.mxu0
      %v6151 = vadd.f32 0.0, %v6150
      %v6152 = vpop.f32.mrf.mxu0
      %6153 = vmatprep.mubr.bf16.mxu0 0
      %6154 = vmatmul.mubr.bf16.gmra.mxu0 %v6025
      %v6155 = vpop.f32.mrf.mxu0
      %v6156 = vadd.f32 0.0, %v6155
      %v6157 = vpop.f32.mrf.mxu0
      %v6158 = vpop.f32.mrf.mxu0
      %v6159 = vadd.f32 0.0, %v6158
      %v6160 = vpop.f32.mrf.mxu0
      %6161 = vmatprep.mubr.bf16.mxu0 0
      %6162 = vmatmul.mubr.bf16.gmra.mxu0 %v6028
      %v6163 = vpop.f32.mrf.mxu0
      %v6164 = vadd.f32 0.0, %v6163
      %v6165 = vpop.f32.mrf.mxu0
      %v6166 = vpop.f32.mrf.mxu0
      %v6167 = vadd.f32 0.0, %v6166
      %v6168 = vpop.f32.mrf.mxu0
      %6169 = vmatprep.mubr.bf16.mxu0 0
      %6170 = vmatmul.mubr.bf16.gmra.mxu0 %v6031
      %v6171 = vpop.f32.mrf.mxu0
      %v6172 = vadd.f32 0.0, %v6171
      %v6173 = vpop.f32.mrf.mxu0
      %v6174 = vpop.f32.mrf.mxu0
      %v6175 = vadd.f32 0.0, %v6174
      %v6176 = vpop.f32.mrf.mxu0
      %6177 = vmatprep.mubr.bf16.mxu0 0
      %6178 = vmatmul.mubr.bf16.gmra.mxu0 %v6034
      %v6179 = vpop.f32.mrf.mxu0
      %v6180 = vadd.f32 0.0, %v6179
      %v6181 = vpop.f32.mrf.mxu0
      %v6182 = vpop.f32.mrf.mxu0
      %v6183 = vadd.f32 0.0, %v6182
      %v6184 = vpop.f32.mrf.mxu0
      %6185 = vmatprep.mubr.bf16.mxu0 0
      %6186 = vmatmul.mubr.bf16.gmra.mxu0 %v6037
      %v6187 = vpop.f32.mrf.mxu0
      %v6188 = vadd.f32 0.0, %v6187
      %v6189 = vpop.f32.mrf.mxu0
      %v6190 = vpop.f32.mrf.mxu0
      %v6191 = vadd.f32 0.0, %v6190
      %v6192 = vpop.f32.mrf.mxu0
      %6193 = vmatprep.mubr.bf16.mxu0 0
      %6194 = vmatmul.mubr.bf16.gmra.mxu0 %v6040
      %v6195 = vpop.f32.mrf.mxu0
      %v6196 = vadd.f32 0.0, %v6195
      %v6197 = vpop.f32.mrf.mxu0
      %v6198 = vpop.f32.mrf.mxu0
      %v6199 = vadd.f32 0.0, %v6198
      %v6200 = vpop.f32.mrf.mxu0
      %6201 = vmatprep.mubr.bf16.mxu0 0
      %6202 = vmatmul.mubr.bf16.gmra.mxu0 %v6043
      %v6203 = vpop.f32.mrf.mxu0
      %v6204 = vadd.f32 0.0, %v6203
      %v6205 = vpop.f32.mrf.mxu0
      %v6206 = vpop.f32.mrf.mxu0
      %v6207 = vadd.f32 0.0, %v6206
      %v6208 = vpop.f32.mrf.mxu0
      %6209 = vmatprep.mubr.bf16.mxu0 0
      %6210 = vmatmul.mubr.bf16.gmra.mxu0 %v6046
      %v6211 = vpop.f32.mrf.mxu0
      %v6212 = vadd.f32 0.0, %v6211
      %v6213 = vpop.f32.mrf.mxu0
      %v6214 = vpop.f32.mrf.mxu0
      %v6215 = vadd.f32 0.0, %v6214
      %v6216 = vpop.f32.mrf.mxu0
      %6217 = vmatprep.mubr.bf16.mxu0 0
      %6218 = vmatmul.mubr.bf16.gmra.mxu0 %v6049
      %v6219 = vpop.f32.mrf.mxu0
      %v6220 = vadd.f32 0.0, %v6219
      %v6221 = vpop.f32.mrf.mxu0
      %v6222 = vpop.f32.mrf.mxu0
      %v6223 = vadd.f32 0.0, %v6222
      %v6224 = vpop.f32.mrf.mxu0
      %6225 = vmatprep.mubr.bf16.mxu0 0
      %6226 = vmatmul.mubr.bf16.gmra.mxu0 %v6052
      %v6227 = vpop.f32.mrf.mxu0
      %v6228 = vadd.f32 0.0, %v6227
      %v6229 = vpop.f32.mrf.mxu0
      %v6230 = vpop.f32.mrf.mxu0
      %v6231 = vadd.f32 0.0, %v6230
      %v6232 = vpop.f32.mrf.mxu0
      %6233 = vdwg.mxu0
      %v6234 = vadd.f32 %v5908, %v6092
      %v6235 = vadd.f32 %v5909, %v6095
      %v6236 = vadd.f32 %v5910, %v6100
      %v6237 = vadd.f32 %v5911, %v6103
      %v6238 = vadd.f32 %v5912, %v6108
      %v6239 = vadd.f32 %v5913, %v6111
      %v6240 = vadd.f32 %v5914, %v6116
      %v6241 = vadd.f32 %v5915, %v6119
      %v6242 = vadd.f32 %v5916, %v6124
      %v6243 = vadd.f32 %v5917, %v6127
      %v6244 = vadd.f32 %v5918, %v6132
      %v6245 = vadd.f32 %v5919, %v6135
      %v6246 = vadd.f32 %v5920, %v6140
      %v6247 = vadd.f32 %v5921, %v6143
      %v6248 = vadd.f32 %v5922, %v6148
      %v6249 = vadd.f32 %v5923, %v6151
      %v6250 = vadd.f32 %v5924, %v6156
      %v6251 = vadd.f32 %v5925, %v6159
      %v6252 = vadd.f32 %v5926, %v6164
      %v6253 = vadd.f32 %v5927, %v6167
      %v6254 = vadd.f32 %v5928, %v6172
      %v6255 = vadd.f32 %v5929, %v6175
      %v6256 = vadd.f32 %v5930, %v6180
      %v6257 = vadd.f32 %v5931, %v6183
      %v6258 = vadd.f32 %v5932, %v6188
      %v6259 = vadd.f32 %v5933, %v6191
      %v6260 = vadd.f32 %v5934, %v6196
      %v6261 = vadd.f32 %v5935, %v6199
      %v6262 = vadd.f32 %v5936, %v6204
      %v6263 = vadd.f32 %v5937, %v6207
      %v6264 = vadd.f32 %v5938, %v6212
      %v6265 = vadd.f32 %v5939, %v6215
      %v6266 = vadd.f32 %v5940, %v6220
      %v6267 = vadd.f32 %v5941, %v6223
      %v6268 = vadd.f32 %v5942, %v6228
      %v6269 = vadd.f32 %v5943, %v6231
      %v6270 = vld [vmem:[#allocation2 + $0x13] sm:$0xff]
      %v6271 = vld [vmem:[#allocation2 + $0x1b] sm:$0xff]
      %v6272 = vld [vmem:[#allocation2 + $0x23] sm:$0xff]
      %v6273 = vld [vmem:[#allocation2 + $0x2b] sm:$0xff]
      %v6274 = vld [vmem:[#allocation2 + $0x33] sm:$0xff]
      %v6275 = vld [vmem:[#allocation2 + $0x3b] sm:$0xff]
      %v6276 = vld [vmem:[#allocation2 + $0x43] sm:$0xff]
      %v6277 = vld [vmem:[#allocation2 + $0x4b] sm:$0xff]
      %v6278 = vld [vmem:[#allocation2 + $0x53] sm:$0xff]
      %v6279 = vld [vmem:[#allocation2 + $0x5b] sm:$0xff]
      %v6280 = vld [vmem:[#allocation2 + $0x63] sm:$0xff]
      %v6281 = vld [vmem:[#allocation2 + $0x6b] sm:$0xff]
      %v6282 = vld [vmem:[#allocation2 + $0x73] sm:$0xff]
      %v6283 = vld [vmem:[#allocation2 + $0x7b] sm:$0xff]
      %v6284 = vld [vmem:[#allocation2 + $0x83] sm:$0xff]
      %v6285 = vld [vmem:[#allocation2 + $0x8b] sm:$0xff]
      %v6286 = vld [vmem:[#allocation2 + $0x93] sm:$0xff]
      %v6287 = vld [vmem:[#allocation2 + $0x9b] sm:$0xff]
      %v6288 = vld [vmem:[#allocation2 + $0xa3] sm:$0xff]
      %v6289 = vld [vmem:[#allocation2 + $0xab] sm:$0xff]
      %v6290 = vld [vmem:[#allocation2 + $0xb3] sm:$0xff]
      %v6291 = vld [vmem:[#allocation2 + $0xbb] sm:$0xff]
      %v6292 = vld [vmem:[#allocation2 + $0xc3] sm:$0xff]
      %v6293 = vld [vmem:[#allocation2 + $0xcb] sm:$0xff]
      %v6294 = vld [vmem:[#allocation2 + $0xd3] sm:$0xff]
      %v6295 = vld [vmem:[#allocation2 + $0xdb] sm:$0xff]
      %v6296 = vld [vmem:[#allocation2 + $0xe3] sm:$0xff]
      %v6297 = vld [vmem:[#allocation2 + $0xeb] sm:$0xff]
      %v6298 = vld [vmem:[#allocation2 + $0xf3] sm:$0xff]
      %v6299 = vld [vmem:[#allocation2 + $0xfb] sm:$0xff]
      %v6300 = vld [vmem:[#allocation2 + $0x103] sm:$0xff]
      %v6301 = vld [vmem:[#allocation2 + $0x10b] sm:$0xff]
      %v6302 = vld [vmem:[#allocation2 + $0x113] sm:$0xff]
      %v6303 = vld [vmem:[#allocation2 + $0x11b] sm:$0xff]
      %v6304 = vld [vmem:[#allocation2 + $0x123] sm:$0xff]
      %v6305 = vld [vmem:[#allocation2 + $0x12b] sm:$0x3f]
      %v6306 = vpack.c.bf16 %v6271, %v6270
      %v6307 = vpack.c.bf16 %v6273, %v6272
      %v6308 = vpack.c.bf16 %v6275, %v6274
      %v6309 = vpack.c.bf16 %v6277, %v6276
      %v6310 = vpack.c.bf16 %v6279, %v6278
      %v6311 = vpack.c.bf16 %v6281, %v6280
      %v6312 = vpack.c.bf16 %v6283, %v6282
      %v6313 = vpack.c.bf16 %v6285, %v6284
      %v6314 = vpack.c.bf16 %v6287, %v6286
      %v6315 = vpack.c.bf16 %v6289, %v6288
      %v6316 = vpack.c.bf16 %v6291, %v6290
      %v6317 = vpack.c.bf16 %v6293, %v6292
      %v6318 = vpack.c.bf16 %v6295, %v6294
      %v6319 = vpack.c.bf16 %v6297, %v6296
      %v6320 = vpack.c.bf16 %v6299, %v6298
      %v6321 = vpack.c.bf16 %v6301, %v6300
      %v6322 = vpack.c.bf16 %v6303, %v6302
      %v6323 = vpack.c.bf16 %v6305, %v6304
      %s6324 = scalar_lea.vmem %s13, 16
      %v6325 = vld [vmem:[%s6324] sm:$0xf]
      %v6327 = vsel %vm3937, %v6306, 0
      %v6330 = vsel %vm3937, %v6307, 0
      %v6333 = vsel %vm3937, %v6308, 0
      %v6336 = vsel %vm3937, %v6309, 0
      %v6339 = vsel %vm3937, %v6310, 0
      %v6342 = vsel %vm3937, %v6311, 0
      %v6345 = vsel %vm3937, %v6312, 0
      %v6348 = vsel %vm3937, %v6313, 0
      %v6351 = vsel %vm3937, %v6314, 0
      %v6354 = vsel %vm3937, %v6315, 0
      %v6357 = vsel %vm3937, %v6316, 0
      %v6360 = vsel %vm3937, %v6317, 0
      %v6363 = vsel %vm3937, %v6318, 0
      %v6366 = vsel %vm3937, %v6319, 0
      %v6369 = vsel %vm3937, %v6320, 0
      %v6372 = vsel %vm3937, %v6321, 0
      %v6375 = vsel %vm3937, %v6322, 0
      %v6378 = vsel %vm3937, %v6323, 0
      %v6381 = vsel %vm4093, %v6325, 0
      %6383 = vmatprep.subr.bf16.mxu0 0
      %6384 = vmatpush1.bf16.msra.mxu0 0
      %6385 = vmatprep.subr.bf16.mxu0 0
      %6386 = vmatpush1.bf16.msra.mxu0 0
      %6387 = vmatprep.subr.bf16.mxu0 0
      %6388 = vmatpush1.bf16.msra.mxu0 0
      %6389 = vmatprep.subr.bf16.mxu0 0
      %6390 = vmatpush1.bf16.msra.mxu0 0
      %6391 = vmatprep.subr.bf16.mxu0 0
      %6392 = vmatpush1.bf16.msra.mxu0 0
      %6393 = vmatprep.subr.bf16.mxu0 0
      %6394 = vmatpush1.bf16.msra.mxu0 0
      %6395 = vmatprep.subr.bf16.mxu0 0
      %6396 = vmatpush1.bf16.msra.mxu0 0
      %6397 = vmatprep.subr.bf16.mxu0 0
      %6398 = vmatpush1.bf16.msra.mxu0 %v6381
      %6399 = vmatprep.subr.bf16.mxu0 0
      %6400 = vmatpush2.bf16.msra.mxu0 0
      %6401 = vmatprep.subr.bf16.mxu0 0
      %6402 = vmatpush2.bf16.msra.mxu0 0
      %6403 = vmatprep.subr.bf16.mxu0 0
      %6404 = vmatpush2.bf16.msra.mxu0 0
      %6405 = vmatprep.subr.bf16.mxu0 0
      %6406 = vmatpush2.bf16.msra.mxu0 0
      %6407 = vmatprep.subr.bf16.mxu0 0
      %6408 = vmatpush2.bf16.msra.mxu0 0
      %6409 = vmatprep.subr.bf16.mxu0 0
      %6410 = vmatpush2.bf16.msra.mxu0 0
      %6411 = vmatprep.subr.bf16.mxu0 0
      %6412 = vmatpush2.bf16.msra.mxu0 0
      %6413 = vmatprep.subr.bf16.mxu0 0
      %6414 = vmatpush2.bf16.msra.mxu0 0
      %6415 = vmatprep.mubr.bf16.mxu0 0
      %6416 = vmatmul.mubr.bf16.gmra.mxu0 %v6327
      %v6417 = vpop.f32.mrf.mxu0
      %v6418 = vadd.f32 0.0, %v6417
      %v6419 = vpop.f32.mrf.mxu0
      %v6420 = vpop.f32.mrf.mxu0
      %v6421 = vadd.f32 0.0, %v6420
      %v6422 = vpop.f32.mrf.mxu0
      %6423 = vmatprep.mubr.bf16.mxu0 0
      %6424 = vmatmul.mubr.bf16.gmra.mxu0 %v6330
      %v6425 = vpop.f32.mrf.mxu0
      %v6426 = vadd.f32 0.0, %v6425
      %v6427 = vpop.f32.mrf.mxu0
      %v6428 = vpop.f32.mrf.mxu0
      %v6429 = vadd.f32 0.0, %v6428
      %v6430 = vpop.f32.mrf.mxu0
      %6431 = vmatprep.mubr.bf16.mxu0 0
      %6432 = vmatmul.mubr.bf16.gmra.mxu0 %v6333
      %v6433 = vpop.f32.mrf.mxu0
      %v6434 = vadd.f32 0.0, %v6433
      %v6435 = vpop.f32.mrf.mxu0
      %v6436 = vpop.f32.mrf.mxu0
      %v6437 = vadd.f32 0.0, %v6436
      %v6438 = vpop.f32.mrf.mxu0
      %6439 = vmatprep.mubr.bf16.mxu0 0
      %6440 = vmatmul.mubr.bf16.gmra.mxu0 %v6336
      %v6441 = vpop.f32.mrf.mxu0
      %v6442 = vadd.f32 0.0, %v6441
      %v6443 = vpop.f32.mrf.mxu0
      %v6444 = vpop.f32.mrf.mxu0
      %v6445 = vadd.f32 0.0, %v6444
      %v6446 = vpop.f32.mrf.mxu0
      %6447 = vmatprep.mubr.bf16.mxu0 0
      %6448 = vmatmul.mubr.bf16.gmra.mxu0 %v6339
      %v6449 = vpop.f32.mrf.mxu0
      %v6450 = vadd.f32 0.0, %v6449
      %v6451 = vpop.f32.mrf.mxu0
      %v6452 = vpop.f32.mrf.mxu0
      %v6453 = vadd.f32 0.0, %v6452
      %v6454 = vpop.f32.mrf.mxu0
      %6455 = vmatprep.mubr.bf16.mxu0 0
      %6456 = vmatmul.mubr.bf16.gmra.mxu0 %v6342
      %v6457 = vpop.f32.mrf.mxu0
      %v6458 = vadd.f32 0.0, %v6457
      %v6459 = vpop.f32.mrf.mxu0
      %v6460 = vpop.f32.mrf.mxu0
      %v6461 = vadd.f32 0.0, %v6460
      %v6462 = vpop.f32.mrf.mxu0
      %6463 = vmatprep.mubr.bf16.mxu0 0
      %6464 = vmatmul.mubr.bf16.gmra.mxu0 %v6345
      %v6465 = vpop.f32.mrf.mxu0
      %v6466 = vadd.f32 0.0, %v6465
      %v6467 = vpop.f32.mrf.mxu0
      %v6468 = vpop.f32.mrf.mxu0
      %v6469 = vadd.f32 0.0, %v6468
      %v6470 = vpop.f32.mrf.mxu0
      %6471 = vmatprep.mubr.bf16.mxu0 0
      %6472 = vmatmul.mubr.bf16.gmra.mxu0 %v6348
      %v6473 = vpop.f32.mrf.mxu0
      %v6474 = vadd.f32 0.0, %v6473
      %v6475 = vpop.f32.mrf.mxu0
      %v6476 = vpop.f32.mrf.mxu0
      %v6477 = vadd.f32 0.0, %v6476
      %v6478 = vpop.f32.mrf.mxu0
      %6479 = vmatprep.mubr.bf16.mxu0 0
      %6480 = vmatmul.mubr.bf16.gmra.mxu0 %v6351
      %v6481 = vpop.f32.mrf.mxu0
      %v6482 = vadd.f32 0.0, %v6481
      %v6483 = vpop.f32.mrf.mxu0
      %v6484 = vpop.f32.mrf.mxu0
      %v6485 = vadd.f32 0.0, %v6484
      %v6486 = vpop.f32.mrf.mxu0
      %6487 = vmatprep.mubr.bf16.mxu0 0
      %6488 = vmatmul.mubr.bf16.gmra.mxu0 %v6354
      %v6489 = vpop.f32.mrf.mxu0
      %v6490 = vadd.f32 0.0, %v6489
      %v6491 = vpop.f32.mrf.mxu0
      %v6492 = vpop.f32.mrf.mxu0
      %v6493 = vadd.f32 0.0, %v6492
      %v6494 = vpop.f32.mrf.mxu0
      %6495 = vmatprep.mubr.bf16.mxu0 0
      %6496 = vmatmul.mubr.bf16.gmra.mxu0 %v6357
      %v6497 = vpop.f32.mrf.mxu0
      %v6498 = vadd.f32 0.0, %v6497
      %v6499 = vpop.f32.mrf.mxu0
      %v6500 = vpop.f32.mrf.mxu0
      %v6501 = vadd.f32 0.0, %v6500
      %v6502 = vpop.f32.mrf.mxu0
      %6503 = vmatprep.mubr.bf16.mxu0 0
      %6504 = vmatmul.mubr.bf16.gmra.mxu0 %v6360
      %v6505 = vpop.f32.mrf.mxu0
      %v6506 = vadd.f32 0.0, %v6505
      %v6507 = vpop.f32.mrf.mxu0
      %v6508 = vpop.f32.mrf.mxu0
      %v6509 = vadd.f32 0.0, %v6508
      %v6510 = vpop.f32.mrf.mxu0
      %6511 = vmatprep.mubr.bf16.mxu0 0
      %6512 = vmatmul.mubr.bf16.gmra.mxu0 %v6363
      %v6513 = vpop.f32.mrf.mxu0
      %v6514 = vadd.f32 0.0, %v6513
      %v6515 = vpop.f32.mrf.mxu0
      %v6516 = vpop.f32.mrf.mxu0
      %v6517 = vadd.f32 0.0, %v6516
      %v6518 = vpop.f32.mrf.mxu0
      %6519 = vmatprep.mubr.bf16.mxu0 0
      %6520 = vmatmul.mubr.bf16.gmra.mxu0 %v6366
      %v6521 = vpop.f32.mrf.mxu0
      %v6522 = vadd.f32 0.0, %v6521
      %v6523 = vpop.f32.mrf.mxu0
      %v6524 = vpop.f32.mrf.mxu0
      %v6525 = vadd.f32 0.0, %v6524
      %v6526 = vpop.f32.mrf.mxu0
      %6527 = vmatprep.mubr.bf16.mxu0 0
      %6528 = vmatmul.mubr.bf16.gmra.mxu0 %v6369
      %v6529 = vpop.f32.mrf.mxu0
      %v6530 = vadd.f32 0.0, %v6529
      %v6531 = vpop.f32.mrf.mxu0
      %v6532 = vpop.f32.mrf.mxu0
      %v6533 = vadd.f32 0.0, %v6532
      %v6534 = vpop.f32.mrf.mxu0
      %6535 = vmatprep.mubr.bf16.mxu0 0
      %6536 = vmatmul.mubr.bf16.gmra.mxu0 %v6372
      %v6537 = vpop.f32.mrf.mxu0
      %v6538 = vadd.f32 0.0, %v6537
      %v6539 = vpop.f32.mrf.mxu0
      %v6540 = vpop.f32.mrf.mxu0
      %v6541 = vadd.f32 0.0, %v6540
      %v6542 = vpop.f32.mrf.mxu0
      %6543 = vmatprep.mubr.bf16.mxu0 0
      %6544 = vmatmul.mubr.bf16.gmra.mxu0 %v6375
      %v6545 = vpop.f32.mrf.mxu0
      %v6546 = vadd.f32 0.0, %v6545
      %v6547 = vpop.f32.mrf.mxu0
      %v6548 = vpop.f32.mrf.mxu0
      %v6549 = vadd.f32 0.0, %v6548
      %v6550 = vpop.f32.mrf.mxu0
      %6551 = vmatprep.mubr.bf16.mxu0 0
      %6552 = vmatmul.mubr.bf16.gmra.mxu0 %v6378
      %v6553 = vpop.f32.mrf.mxu0
      %v6554 = vadd.f32 0.0, %v6553
      %v6555 = vpop.f32.mrf.mxu0
      %v6556 = vpop.f32.mrf.mxu0
      %v6557 = vadd.f32 0.0, %v6556
      %v6558 = vpop.f32.mrf.mxu0
      %6559 = vdwg.mxu0
      %v6560 = vadd.f32 %v6234, %v6418
      %v6561 = vadd.f32 %v6235, %v6421
      %v6562 = vadd.f32 %v6236, %v6426
      %v6563 = vadd.f32 %v6237, %v6429
      %v6564 = vadd.f32 %v6238, %v6434
      %v6565 = vadd.f32 %v6239, %v6437
      %v6566 = vadd.f32 %v6240, %v6442
      %v6567 = vadd.f32 %v6241, %v6445
      %v6568 = vadd.f32 %v6242, %v6450
      %v6569 = vadd.f32 %v6243, %v6453
      %v6570 = vadd.f32 %v6244, %v6458
      %v6571 = vadd.f32 %v6245, %v6461
      %v6572 = vadd.f32 %v6246, %v6466
      %v6573 = vadd.f32 %v6247, %v6469
      %v6574 = vadd.f32 %v6248, %v6474
      %v6575 = vadd.f32 %v6249, %v6477
      %v6576 = vadd.f32 %v6250, %v6482
      %v6577 = vadd.f32 %v6251, %v6485
      %v6578 = vadd.f32 %v6252, %v6490
      %v6579 = vadd.f32 %v6253, %v6493
      %v6580 = vadd.f32 %v6254, %v6498
      %v6581 = vadd.f32 %v6255, %v6501
      %v6582 = vadd.f32 %v6256, %v6506
      %v6583 = vadd.f32 %v6257, %v6509
      %v6584 = vadd.f32 %v6258, %v6514
      %v6585 = vadd.f32 %v6259, %v6517
      %v6586 = vadd.f32 %v6260, %v6522
      %v6587 = vadd.f32 %v6261, %v6525
      %v6588 = vadd.f32 %v6262, %v6530
      %v6589 = vadd.f32 %v6263, %v6533
      %v6590 = vadd.f32 %v6264, %v6538
      %v6591 = vadd.f32 %v6265, %v6541
      %v6592 = vadd.f32 %v6266, %v6546
      %v6593 = vadd.f32 %v6267, %v6549
      %v6594 = vadd.f32 %v6268, %v6554
      %v6595 = vadd.f32 %v6269, %v6557
      %v6596 = vld [vmem:[#allocation2 + $0x14] sm:$0xff]
      %v6597 = vld [vmem:[#allocation2 + $0x1c] sm:$0xff]
      %v6598 = vld [vmem:[#allocation2 + $0x24] sm:$0xff]
      %v6599 = vld [vmem:[#allocation2 + $0x2c] sm:$0xff]
      %v6600 = vld [vmem:[#allocation2 + $0x34] sm:$0xff]
      %v6601 = vld [vmem:[#allocation2 + $0x3c] sm:$0xff]
      %v6602 = vld [vmem:[#allocation2 + $0x44] sm:$0xff]
      %v6603 = vld [vmem:[#allocation2 + $0x4c] sm:$0xff]
      %v6604 = vld [vmem:[#allocation2 + $0x54] sm:$0xff]
      %v6605 = vld [vmem:[#allocation2 + $0x5c] sm:$0xff]
      %v6606 = vld [vmem:[#allocation2 + $0x64] sm:$0xff]
      %v6607 = vld [vmem:[#allocation2 + $0x6c] sm:$0xff]
      %v6608 = vld [vmem:[#allocation2 + $0x74] sm:$0xff]
      %v6609 = vld [vmem:[#allocation2 + $0x7c] sm:$0xff]
      %v6610 = vld [vmem:[#allocation2 + $0x84] sm:$0xff]
      %v6611 = vld [vmem:[#allocation2 + $0x8c] sm:$0xff]
      %v6612 = vld [vmem:[#allocation2 + $0x94] sm:$0xff]
      %v6613 = vld [vmem:[#allocation2 + $0x9c] sm:$0xff]
      %v6614 = vld [vmem:[#allocation2 + $0xa4] sm:$0xff]
      %v6615 = vld [vmem:[#allocation2 + $0xac] sm:$0xff]
      %v6616 = vld [vmem:[#allocation2 + $0xb4] sm:$0xff]
      %v6617 = vld [vmem:[#allocation2 + $0xbc] sm:$0xff]
      %v6618 = vld [vmem:[#allocation2 + $0xc4] sm:$0xff]
      %v6619 = vld [vmem:[#allocation2 + $0xcc] sm:$0xff]
      %v6620 = vld [vmem:[#allocation2 + $0xd4] sm:$0xff]
      %v6621 = vld [vmem:[#allocation2 + $0xdc] sm:$0xff]
      %v6622 = vld [vmem:[#allocation2 + $0xe4] sm:$0xff]
      %v6623 = vld [vmem:[#allocation2 + $0xec] sm:$0xff]
      %v6624 = vld [vmem:[#allocation2 + $0xf4] sm:$0xff]
      %v6625 = vld [vmem:[#allocation2 + $0xfc] sm:$0xff]
      %v6626 = vld [vmem:[#allocation2 + $0x104] sm:$0xff]
      %v6627 = vld [vmem:[#allocation2 + $0x10c] sm:$0xff]
      %v6628 = vld [vmem:[#allocation2 + $0x114] sm:$0xff]
      %v6629 = vld [vmem:[#allocation2 + $0x11c] sm:$0xff]
      %v6630 = vld [vmem:[#allocation2 + $0x124] sm:$0xff]
      %v6631 = vld [vmem:[#allocation2 + $0x12c] sm:$0x3f]
      %v6632 = vpack.c.bf16 %v6597, %v6596
      %v6633 = vpack.c.bf16 %v6599, %v6598
      %v6634 = vpack.c.bf16 %v6601, %v6600
      %v6635 = vpack.c.bf16 %v6603, %v6602
      %v6636 = vpack.c.bf16 %v6605, %v6604
      %v6637 = vpack.c.bf16 %v6607, %v6606
      %v6638 = vpack.c.bf16 %v6609, %v6608
      %v6639 = vpack.c.bf16 %v6611, %v6610
      %v6640 = vpack.c.bf16 %v6613, %v6612
      %v6641 = vpack.c.bf16 %v6615, %v6614
      %v6642 = vpack.c.bf16 %v6617, %v6616
      %v6643 = vpack.c.bf16 %v6619, %v6618
      %v6644 = vpack.c.bf16 %v6621, %v6620
      %v6645 = vpack.c.bf16 %v6623, %v6622
      %v6646 = vpack.c.bf16 %v6625, %v6624
      %v6647 = vpack.c.bf16 %v6627, %v6626
      %v6648 = vpack.c.bf16 %v6629, %v6628
      %v6649 = vpack.c.bf16 %v6631, %v6630
      %s6650 = scalar_lea.vmem %s13, 20
      %v6651 = vld [vmem:[%s6650] sm:$0xf]
      %v6653 = vsel %vm3937, %v6632, 0
      %v6656 = vsel %vm3937, %v6633, 0
      %v6659 = vsel %vm3937, %v6634, 0
      %v6662 = vsel %vm3937, %v6635, 0
      %v6665 = vsel %vm3937, %v6636, 0
      %v6668 = vsel %vm3937, %v6637, 0
      %v6671 = vsel %vm3937, %v6638, 0
      %v6674 = vsel %vm3937, %v6639, 0
      %v6677 = vsel %vm3937, %v6640, 0
      %v6680 = vsel %vm3937, %v6641, 0
      %v6683 = vsel %vm3937, %v6642, 0
      %v6686 = vsel %vm3937, %v6643, 0
      %v6689 = vsel %vm3937, %v6644, 0
      %v6692 = vsel %vm3937, %v6645, 0
      %v6695 = vsel %vm3937, %v6646, 0
      %v6698 = vsel %vm3937, %v6647, 0
      %v6701 = vsel %vm3937, %v6648, 0
      %v6704 = vsel %vm3937, %v6649, 0
      %v6707 = vsel %vm4093, %v6651, 0
      %6709 = vmatprep.subr.bf16.mxu0 0
      %6710 = vmatpush1.bf16.msra.mxu0 0
      %6711 = vmatprep.subr.bf16.mxu0 0
      %6712 = vmatpush1.bf16.msra.mxu0 0
      %6713 = vmatprep.subr.bf16.mxu0 0
      %6714 = vmatpush1.bf16.msra.mxu0 0
      %6715 = vmatprep.subr.bf16.mxu0 0
      %6716 = vmatpush1.bf16.msra.mxu0 0
      %6717 = vmatprep.subr.bf16.mxu0 0
      %6718 = vmatpush1.bf16.msra.mxu0 0
      %6719 = vmatprep.subr.bf16.mxu0 0
      %6720 = vmatpush1.bf16.msra.mxu0 0
      %6721 = vmatprep.subr.bf16.mxu0 0
      %6722 = vmatpush1.bf16.msra.mxu0 0
      %6723 = vmatprep.subr.bf16.mxu0 0
      %6724 = vmatpush1.bf16.msra.mxu0 %v6707
      %6725 = vmatprep.subr.bf16.mxu0 0
      %6726 = vmatpush2.bf16.msra.mxu0 0
      %6727 = vmatprep.subr.bf16.mxu0 0
      %6728 = vmatpush2.bf16.msra.mxu0 0
      %6729 = vmatprep.subr.bf16.mxu0 0
      %6730 = vmatpush2.bf16.msra.mxu0 0
      %6731 = vmatprep.subr.bf16.mxu0 0
      %6732 = vmatpush2.bf16.msra.mxu0 0
      %6733 = vmatprep.subr.bf16.mxu0 0
      %6734 = vmatpush2.bf16.msra.mxu0 0
      %6735 = vmatprep.subr.bf16.mxu0 0
      %6736 = vmatpush2.bf16.msra.mxu0 0
      %6737 = vmatprep.subr.bf16.mxu0 0
      %6738 = vmatpush2.bf16.msra.mxu0 0
      %6739 = vmatprep.subr.bf16.mxu0 0
      %6740 = vmatpush2.bf16.msra.mxu0 0
      %6741 = vmatprep.mubr.bf16.mxu0 0
      %6742 = vmatmul.mubr.bf16.gmra.mxu0 %v6653
      %v6743 = vpop.f32.mrf.mxu0
      %v6744 = vadd.f32 0.0, %v6743
      %v6745 = vpop.f32.mrf.mxu0
      %v6746 = vpop.f32.mrf.mxu0
      %v6747 = vadd.f32 0.0, %v6746
      %v6748 = vpop.f32.mrf.mxu0
      %6749 = vmatprep.mubr.bf16.mxu0 0
      %6750 = vmatmul.mubr.bf16.gmra.mxu0 %v6656
      %v6751 = vpop.f32.mrf.mxu0
      %v6752 = vadd.f32 0.0, %v6751
      %v6753 = vpop.f32.mrf.mxu0
      %v6754 = vpop.f32.mrf.mxu0
      %v6755 = vadd.f32 0.0, %v6754
      %v6756 = vpop.f32.mrf.mxu0
      %6757 = vmatprep.mubr.bf16.mxu0 0
      %6758 = vmatmul.mubr.bf16.gmra.mxu0 %v6659
      %v6759 = vpop.f32.mrf.mxu0
      %v6760 = vadd.f32 0.0, %v6759
      %v6761 = vpop.f32.mrf.mxu0
      %v6762 = vpop.f32.mrf.mxu0
      %v6763 = vadd.f32 0.0, %v6762
      %v6764 = vpop.f32.mrf.mxu0
      %6765 = vmatprep.mubr.bf16.mxu0 0
      %6766 = vmatmul.mubr.bf16.gmra.mxu0 %v6662
      %v6767 = vpop.f32.mrf.mxu0
      %v6768 = vadd.f32 0.0, %v6767
      %v6769 = vpop.f32.mrf.mxu0
      %v6770 = vpop.f32.mrf.mxu0
      %v6771 = vadd.f32 0.0, %v6770
      %v6772 = vpop.f32.mrf.mxu0
      %6773 = vmatprep.mubr.bf16.mxu0 0
      %6774 = vmatmul.mubr.bf16.gmra.mxu0 %v6665
      %v6775 = vpop.f32.mrf.mxu0
      %v6776 = vadd.f32 0.0, %v6775
      %v6777 = vpop.f32.mrf.mxu0
      %v6778 = vpop.f32.mrf.mxu0
      %v6779 = vadd.f32 0.0, %v6778
      %v6780 = vpop.f32.mrf.mxu0
      %6781 = vmatprep.mubr.bf16.mxu0 0
      %6782 = vmatmul.mubr.bf16.gmra.mxu0 %v6668
      %v6783 = vpop.f32.mrf.mxu0
      %v6784 = vadd.f32 0.0, %v6783
      %v6785 = vpop.f32.mrf.mxu0
      %v6786 = vpop.f32.mrf.mxu0
      %v6787 = vadd.f32 0.0, %v6786
      %v6788 = vpop.f32.mrf.mxu0
      %6789 = vmatprep.mubr.bf16.mxu0 0
      %6790 = vmatmul.mubr.bf16.gmra.mxu0 %v6671
      %v6791 = vpop.f32.mrf.mxu0
      %v6792 = vadd.f32 0.0, %v6791
      %v6793 = vpop.f32.mrf.mxu0
      %v6794 = vpop.f32.mrf.mxu0
      %v6795 = vadd.f32 0.0, %v6794
      %v6796 = vpop.f32.mrf.mxu0
      %6797 = vmatprep.mubr.bf16.mxu0 0
      %6798 = vmatmul.mubr.bf16.gmra.mxu0 %v6674
      %v6799 = vpop.f32.mrf.mxu0
      %v6800 = vadd.f32 0.0, %v6799
      %v6801 = vpop.f32.mrf.mxu0
      %v6802 = vpop.f32.mrf.mxu0
      %v6803 = vadd.f32 0.0, %v6802
      %v6804 = vpop.f32.mrf.mxu0
      %6805 = vmatprep.mubr.bf16.mxu0 0
      %6806 = vmatmul.mubr.bf16.gmra.mxu0 %v6677
      %v6807 = vpop.f32.mrf.mxu0
      %v6808 = vadd.f32 0.0, %v6807
      %v6809 = vpop.f32.mrf.mxu0
      %v6810 = vpop.f32.mrf.mxu0
      %v6811 = vadd.f32 0.0, %v6810
      %v6812 = vpop.f32.mrf.mxu0
      %6813 = vmatprep.mubr.bf16.mxu0 0
      %6814 = vmatmul.mubr.bf16.gmra.mxu0 %v6680
      %v6815 = vpop.f32.mrf.mxu0
      %v6816 = vadd.f32 0.0, %v6815
      %v6817 = vpop.f32.mrf.mxu0
      %v6818 = vpop.f32.mrf.mxu0
      %v6819 = vadd.f32 0.0, %v6818
      %v6820 = vpop.f32.mrf.mxu0
      %6821 = vmatprep.mubr.bf16.mxu0 0
      %6822 = vmatmul.mubr.bf16.gmra.mxu0 %v6683
      %v6823 = vpop.f32.mrf.mxu0
      %v6824 = vadd.f32 0.0, %v6823
      %v6825 = vpop.f32.mrf.mxu0
      %v6826 = vpop.f32.mrf.mxu0
      %v6827 = vadd.f32 0.0, %v6826
      %v6828 = vpop.f32.mrf.mxu0
      %6829 = vmatprep.mubr.bf16.mxu0 0
      %6830 = vmatmul.mubr.bf16.gmra.mxu0 %v6686
      %v6831 = vpop.f32.mrf.mxu0
      %v6832 = vadd.f32 0.0, %v6831
      %v6833 = vpop.f32.mrf.mxu0
      %v6834 = vpop.f32.mrf.mxu0
      %v6835 = vadd.f32 0.0, %v6834
      %v6836 = vpop.f32.mrf.mxu0
      %6837 = vmatprep.mubr.bf16.mxu0 0
      %6838 = vmatmul.mubr.bf16.gmra.mxu0 %v6689
      %v6839 = vpop.f32.mrf.mxu0
      %v6840 = vadd.f32 0.0, %v6839
      %v6841 = vpop.f32.mrf.mxu0
      %v6842 = vpop.f32.mrf.mxu0
      %v6843 = vadd.f32 0.0, %v6842
      %v6844 = vpop.f32.mrf.mxu0
      %6845 = vmatprep.mubr.bf16.mxu0 0
      %6846 = vmatmul.mubr.bf16.gmra.mxu0 %v6692
      %v6847 = vpop.f32.mrf.mxu0
      %v6848 = vadd.f32 0.0, %v6847
      %v6849 = vpop.f32.mrf.mxu0
      %v6850 = vpop.f32.mrf.mxu0
      %v6851 = vadd.f32 0.0, %v6850
      %v6852 = vpop.f32.mrf.mxu0
      %6853 = vmatprep.mubr.bf16.mxu0 0
      %6854 = vmatmul.mubr.bf16.gmra.mxu0 %v6695
      %v6855 = vpop.f32.mrf.mxu0
      %v6856 = vadd.f32 0.0, %v6855
      %v6857 = vpop.f32.mrf.mxu0
      %v6858 = vpop.f32.mrf.mxu0
      %v6859 = vadd.f32 0.0, %v6858
      %v6860 = vpop.f32.mrf.mxu0
      %6861 = vmatprep.mubr.bf16.mxu0 0
      %6862 = vmatmul.mubr.bf16.gmra.mxu0 %v6698
      %v6863 = vpop.f32.mrf.mxu0
      %v6864 = vadd.f32 0.0, %v6863
      %v6865 = vpop.f32.mrf.mxu0
      %v6866 = vpop.f32.mrf.mxu0
      %v6867 = vadd.f32 0.0, %v6866
      %v6868 = vpop.f32.mrf.mxu0
      %6869 = vmatprep.mubr.bf16.mxu0 0
      %6870 = vmatmul.mubr.bf16.gmra.mxu0 %v6701
      %v6871 = vpop.f32.mrf.mxu0
      %v6872 = vadd.f32 0.0, %v6871
      %v6873 = vpop.f32.mrf.mxu0
      %v6874 = vpop.f32.mrf.mxu0
      %v6875 = vadd.f32 0.0, %v6874
      %v6876 = vpop.f32.mrf.mxu0
      %6877 = vmatprep.mubr.bf16.mxu0 0
      %6878 = vmatmul.mubr.bf16.gmra.mxu0 %v6704
      %v6879 = vpop.f32.mrf.mxu0
      %v6880 = vadd.f32 0.0, %v6879
      %v6881 = vpop.f32.mrf.mxu0
      %v6882 = vpop.f32.mrf.mxu0
      %v6883 = vadd.f32 0.0, %v6882
      %v6884 = vpop.f32.mrf.mxu0
      %6885 = vdwg.mxu0
      %v6886 = vadd.f32 %v6560, %v6744
      %v6887 = vadd.f32 %v6561, %v6747
      %v6888 = vadd.f32 %v6562, %v6752
      %v6889 = vadd.f32 %v6563, %v6755
      %v6890 = vadd.f32 %v6564, %v6760
      %v6891 = vadd.f32 %v6565, %v6763
      %v6892 = vadd.f32 %v6566, %v6768
      %v6893 = vadd.f32 %v6567, %v6771
      %v6894 = vadd.f32 %v6568, %v6776
      %v6895 = vadd.f32 %v6569, %v6779
      %v6896 = vadd.f32 %v6570, %v6784
      %v6897 = vadd.f32 %v6571, %v6787
      %v6898 = vadd.f32 %v6572, %v6792
      %v6899 = vadd.f32 %v6573, %v6795
      %v6900 = vadd.f32 %v6574, %v6800
      %v6901 = vadd.f32 %v6575, %v6803
      %v6902 = vadd.f32 %v6576, %v6808
      %v6903 = vadd.f32 %v6577, %v6811
      %v6904 = vadd.f32 %v6578, %v6816
      %v6905 = vadd.f32 %v6579, %v6819
      %v6906 = vadd.f32 %v6580, %v6824
      %v6907 = vadd.f32 %v6581, %v6827
      %v6908 = vadd.f32 %v6582, %v6832
      %v6909 = vadd.f32 %v6583, %v6835
      %v6910 = vadd.f32 %v6584, %v6840
      %v6911 = vadd.f32 %v6585, %v6843
      %v6912 = vadd.f32 %v6586, %v6848
      %v6913 = vadd.f32 %v6587, %v6851
      %v6914 = vadd.f32 %v6588, %v6856
      %v6915 = vadd.f32 %v6589, %v6859
      %v6916 = vadd.f32 %v6590, %v6864
      %v6917 = vadd.f32 %v6591, %v6867
      %v6918 = vadd.f32 %v6592, %v6872
      %v6919 = vadd.f32 %v6593, %v6875
      %v6920 = vadd.f32 %v6594, %v6880
      %v6921 = vadd.f32 %v6595, %v6883
      %v6922 = vld [vmem:[#allocation2 + $0x24] sm:$0xff]
      %v6923 = vld [vmem:[#allocation2 + $0x2c] sm:$0xff]
      %v6924 = vld [vmem:[#allocation2 + $0x34] sm:$0xff]
      %v6925 = vld [vmem:[#allocation2 + $0x3c] sm:$0xff]
      %v6926 = vld [vmem:[#allocation2 + $0x44] sm:$0xff]
      %v6927 = vld [vmem:[#allocation2 + $0x4c] sm:$0xff]
      %v6928 = vld [vmem:[#allocation2 + $0x54] sm:$0xff]
      %v6929 = vld [vmem:[#allocation2 + $0x5c] sm:$0xff]
      %v6930 = vld [vmem:[#allocation2 + $0x64] sm:$0xff]
      %v6931 = vld [vmem:[#allocation2 + $0x6c] sm:$0xff]
      %v6932 = vld [vmem:[#allocation2 + $0x74] sm:$0xff]
      %v6933 = vld [vmem:[#allocation2 + $0x7c] sm:$0xff]
      %v6934 = vld [vmem:[#allocation2 + $0x84] sm:$0xff]
      %v6935 = vld [vmem:[#allocation2 + $0x8c] sm:$0xff]
      %v6936 = vld [vmem:[#allocation2 + $0x94] sm:$0xff]
      %v6937 = vld [vmem:[#allocation2 + $0x9c] sm:$0xff]
      %v6938 = vld [vmem:[#allocation2 + $0xa4] sm:$0xff]
      %v6939 = vld [vmem:[#allocation2 + $0xac] sm:$0xff]
      %v6940 = vld [vmem:[#allocation2 + $0xb4] sm:$0xff]
      %v6941 = vld [vmem:[#allocation2 + $0xbc] sm:$0xff]
      %v6942 = vld [vmem:[#allocation2 + $0xc4] sm:$0xff]
      %v6943 = vld [vmem:[#allocation2 + $0xcc] sm:$0xff]
      %v6944 = vld [vmem:[#allocation2 + $0xd4] sm:$0xff]
      %v6945 = vld [vmem:[#allocation2 + $0xdc] sm:$0xff]
      %v6946 = vld [vmem:[#allocation2 + $0xe4] sm:$0xff]
      %v6947 = vld [vmem:[#allocation2 + $0xec] sm:$0xff]
      %v6948 = vld [vmem:[#allocation2 + $0xf4] sm:$0xff]
      %v6949 = vld [vmem:[#allocation2 + $0xfc] sm:$0xff]
      %v6950 = vld [vmem:[#allocation2 + $0x104] sm:$0xff]
      %v6951 = vld [vmem:[#allocation2 + $0x10c] sm:$0xff]
      %v6952 = vld [vmem:[#allocation2 + $0x114] sm:$0xff]
      %v6953 = vld [vmem:[#allocation2 + $0x11c] sm:$0xff]
      %v6954 = vld [vmem:[#allocation2 + $0x124] sm:$0xff]
      %v6955 = vld [vmem:[#allocation2 + $0x12c] sm:$0xff]
      %v6956 = vld [vmem:[#allocation2 + $0x134] sm:$0xff]
      %v6957 = vld [vmem:[#allocation2 + $0x13c] sm:$0x3f]
      %v6958 = vpack.c.bf16 %v6923, %v6922
      %v6959 = vpack.c.bf16 %v6925, %v6924
      %v6960 = vpack.c.bf16 %v6927, %v6926
      %v6961 = vpack.c.bf16 %v6929, %v6928
      %v6962 = vpack.c.bf16 %v6931, %v6930
      %v6963 = vpack.c.bf16 %v6933, %v6932
      %v6964 = vpack.c.bf16 %v6935, %v6934
      %v6965 = vpack.c.bf16 %v6937, %v6936
      %v6966 = vpack.c.bf16 %v6939, %v6938
      %v6967 = vpack.c.bf16 %v6941, %v6940
      %v6968 = vpack.c.bf16 %v6943, %v6942
      %v6969 = vpack.c.bf16 %v6945, %v6944
      %v6970 = vpack.c.bf16 %v6947, %v6946
      %v6971 = vpack.c.bf16 %v6949, %v6948
      %v6972 = vpack.c.bf16 %v6951, %v6950
      %v6973 = vpack.c.bf16 %v6953, %v6952
      %v6974 = vpack.c.bf16 %v6955, %v6954
      %v6975 = vpack.c.bf16 %v6957, %v6956
      %s6976 = scalar_lea.vmem %s13, 24
      %v6977 = vld [vmem:[%s6976] sm:$0xf]
      %v6979 = vsel %vm3937, %v6958, 0
      %v6982 = vsel %vm3937, %v6959, 0
      %v6985 = vsel %vm3937, %v6960, 0
      %v6988 = vsel %vm3937, %v6961, 0
      %v6991 = vsel %vm3937, %v6962, 0
      %v6994 = vsel %vm3937, %v6963, 0
      %v6997 = vsel %vm3937, %v6964, 0
      %v7000 = vsel %vm3937, %v6965, 0
      %v7003 = vsel %vm3937, %v6966, 0
      %v7006 = vsel %vm3937, %v6967, 0
      %v7009 = vsel %vm3937, %v6968, 0
      %v7012 = vsel %vm3937, %v6969, 0
      %v7015 = vsel %vm3937, %v6970, 0
      %v7018 = vsel %vm3937, %v6971, 0
      %v7021 = vsel %vm3937, %v6972, 0
      %v7024 = vsel %vm3937, %v6973, 0
      %v7027 = vsel %vm3937, %v6974, 0
      %v7030 = vsel %vm3937, %v6975, 0
      %v7033 = vsel %vm4093, %v6977, 0
      %7035 = vmatprep.subr.bf16.mxu0 0
      %7036 = vmatpush1.bf16.msra.mxu0 0
      %7037 = vmatprep.subr.bf16.mxu0 0
      %7038 = vmatpush1.bf16.msra.mxu0 0
      %7039 = vmatprep.subr.bf16.mxu0 0
      %7040 = vmatpush1.bf16.msra.mxu0 0
      %7041 = vmatprep.subr.bf16.mxu0 0
      %7042 = vmatpush1.bf16.msra.mxu0 0
      %7043 = vmatprep.subr.bf16.mxu0 0
      %7044 = vmatpush1.bf16.msra.mxu0 0
      %7045 = vmatprep.subr.bf16.mxu0 0
      %7046 = vmatpush1.bf16.msra.mxu0 0
      %7047 = vmatprep.subr.bf16.mxu0 0
      %7048 = vmatpush1.bf16.msra.mxu0 0
      %7049 = vmatprep.subr.bf16.mxu0 0
      %7050 = vmatpush1.bf16.msra.mxu0 %v7033
      %7051 = vmatprep.subr.bf16.mxu0 0
      %7052 = vmatpush2.bf16.msra.mxu0 0
      %7053 = vmatprep.subr.bf16.mxu0 0
      %7054 = vmatpush2.bf16.msra.mxu0 0
      %7055 = vmatprep.subr.bf16.mxu0 0
      %7056 = vmatpush2.bf16.msra.mxu0 0
      %7057 = vmatprep.subr.bf16.mxu0 0
      %7058 = vmatpush2.bf16.msra.mxu0 0
      %7059 = vmatprep.subr.bf16.mxu0 0
      %7060 = vmatpush2.bf16.msra.mxu0 0
      %7061 = vmatprep.subr.bf16.mxu0 0
      %7062 = vmatpush2.bf16.msra.mxu0 0
      %7063 = vmatprep.subr.bf16.mxu0 0
      %7064 = vmatpush2.bf16.msra.mxu0 0
      %7065 = vmatprep.subr.bf16.mxu0 0
      %7066 = vmatpush2.bf16.msra.mxu0 0
      %7067 = vmatprep.mubr.bf16.mxu0 0
      %7068 = vmatmul.mubr.bf16.gmra.mxu0 %v6979
      %v7069 = vpop.f32.mrf.mxu0
      %v7070 = vadd.f32 0.0, %v7069
      %v7071 = vpop.f32.mrf.mxu0
      %v7072 = vpop.f32.mrf.mxu0
      %v7073 = vadd.f32 0.0, %v7072
      %v7074 = vpop.f32.mrf.mxu0
      %7075 = vmatprep.mubr.bf16.mxu0 0
      %7076 = vmatmul.mubr.bf16.gmra.mxu0 %v6982
      %v7077 = vpop.f32.mrf.mxu0
      %v7078 = vadd.f32 0.0, %v7077
      %v7079 = vpop.f32.mrf.mxu0
      %v7080 = vpop.f32.mrf.mxu0
      %v7081 = vadd.f32 0.0, %v7080
      %v7082 = vpop.f32.mrf.mxu0
      %7083 = vmatprep.mubr.bf16.mxu0 0
      %7084 = vmatmul.mubr.bf16.gmra.mxu0 %v6985
      %v7085 = vpop.f32.mrf.mxu0
      %v7086 = vadd.f32 0.0, %v7085
      %v7087 = vpop.f32.mrf.mxu0
      %v7088 = vpop.f32.mrf.mxu0
      %v7089 = vadd.f32 0.0, %v7088
      %v7090 = vpop.f32.mrf.mxu0
      %7091 = vmatprep.mubr.bf16.mxu0 0
      %7092 = vmatmul.mubr.bf16.gmra.mxu0 %v6988
      %v7093 = vpop.f32.mrf.mxu0
      %v7094 = vadd.f32 0.0, %v7093
      %v7095 = vpop.f32.mrf.mxu0
      %v7096 = vpop.f32.mrf.mxu0
      %v7097 = vadd.f32 0.0, %v7096
      %v7098 = vpop.f32.mrf.mxu0
      %7099 = vmatprep.mubr.bf16.mxu0 0
      %7100 = vmatmul.mubr.bf16.gmra.mxu0 %v6991
      %v7101 = vpop.f32.mrf.mxu0
      %v7102 = vadd.f32 0.0, %v7101
      %v7103 = vpop.f32.mrf.mxu0
      %v7104 = vpop.f32.mrf.mxu0
      %v7105 = vadd.f32 0.0, %v7104
      %v7106 = vpop.f32.mrf.mxu0
      %7107 = vmatprep.mubr.bf16.mxu0 0
      %7108 = vmatmul.mubr.bf16.gmra.mxu0 %v6994
      %v7109 = vpop.f32.mrf.mxu0
      %v7110 = vadd.f32 0.0, %v7109
      %v7111 = vpop.f32.mrf.mxu0
      %v7112 = vpop.f32.mrf.mxu0
      %v7113 = vadd.f32 0.0, %v7112
      %v7114 = vpop.f32.mrf.mxu0
      %7115 = vmatprep.mubr.bf16.mxu0 0
      %7116 = vmatmul.mubr.bf16.gmra.mxu0 %v6997
      %v7117 = vpop.f32.mrf.mxu0
      %v7118 = vadd.f32 0.0, %v7117
      %v7119 = vpop.f32.mrf.mxu0
      %v7120 = vpop.f32.mrf.mxu0
      %v7121 = vadd.f32 0.0, %v7120
      %v7122 = vpop.f32.mrf.mxu0
      %7123 = vmatprep.mubr.bf16.mxu0 0
      %7124 = vmatmul.mubr.bf16.gmra.mxu0 %v7000
      %v7125 = vpop.f32.mrf.mxu0
      %v7126 = vadd.f32 0.0, %v7125
      %v7127 = vpop.f32.mrf.mxu0
      %v7128 = vpop.f32.mrf.mxu0
      %v7129 = vadd.f32 0.0, %v7128
      %v7130 = vpop.f32.mrf.mxu0
      %7131 = vmatprep.mubr.bf16.mxu0 0
      %7132 = vmatmul.mubr.bf16.gmra.mxu0 %v7003
      %v7133 = vpop.f32.mrf.mxu0
      %v7134 = vadd.f32 0.0, %v7133
      %v7135 = vpop.f32.mrf.mxu0
      %v7136 = vpop.f32.mrf.mxu0
      %v7137 = vadd.f32 0.0, %v7136
      %v7138 = vpop.f32.mrf.mxu0
      %7139 = vmatprep.mubr.bf16.mxu0 0
      %7140 = vmatmul.mubr.bf16.gmra.mxu0 %v7006
      %v7141 = vpop.f32.mrf.mxu0
      %v7142 = vadd.f32 0.0, %v7141
      %v7143 = vpop.f32.mrf.mxu0
      %v7144 = vpop.f32.mrf.mxu0
      %v7145 = vadd.f32 0.0, %v7144
      %v7146 = vpop.f32.mrf.mxu0
      %7147 = vmatprep.mubr.bf16.mxu0 0
      %7148 = vmatmul.mubr.bf16.gmra.mxu0 %v7009
      %v7149 = vpop.f32.mrf.mxu0
      %v7150 = vadd.f32 0.0, %v7149
      %v7151 = vpop.f32.mrf.mxu0
      %v7152 = vpop.f32.mrf.mxu0
      %v7153 = vadd.f32 0.0, %v7152
      %v7154 = vpop.f32.mrf.mxu0
      %7155 = vmatprep.mubr.bf16.mxu0 0
      %7156 = vmatmul.mubr.bf16.gmra.mxu0 %v7012
      %v7157 = vpop.f32.mrf.mxu0
      %v7158 = vadd.f32 0.0, %v7157
      %v7159 = vpop.f32.mrf.mxu0
      %v7160 = vpop.f32.mrf.mxu0
      %v7161 = vadd.f32 0.0, %v7160
      %v7162 = vpop.f32.mrf.mxu0
      %7163 = vmatprep.mubr.bf16.mxu0 0
      %7164 = vmatmul.mubr.bf16.gmra.mxu0 %v7015
      %v7165 = vpop.f32.mrf.mxu0
      %v7166 = vadd.f32 0.0, %v7165
      %v7167 = vpop.f32.mrf.mxu0
      %v7168 = vpop.f32.mrf.mxu0
      %v7169 = vadd.f32 0.0, %v7168
      %v7170 = vpop.f32.mrf.mxu0
      %7171 = vmatprep.mubr.bf16.mxu0 0
      %7172 = vmatmul.mubr.bf16.gmra.mxu0 %v7018
      %v7173 = vpop.f32.mrf.mxu0
      %v7174 = vadd.f32 0.0, %v7173
      %v7175 = vpop.f32.mrf.mxu0
      %v7176 = vpop.f32.mrf.mxu0
      %v7177 = vadd.f32 0.0, %v7176
      %v7178 = vpop.f32.mrf.mxu0
      %7179 = vmatprep.mubr.bf16.mxu0 0
      %7180 = vmatmul.mubr.bf16.gmra.mxu0 %v7021
      %v7181 = vpop.f32.mrf.mxu0
      %v7182 = vadd.f32 0.0, %v7181
      %v7183 = vpop.f32.mrf.mxu0
      %v7184 = vpop.f32.mrf.mxu0
      %v7185 = vadd.f32 0.0, %v7184
      %v7186 = vpop.f32.mrf.mxu0
      %7187 = vmatprep.mubr.bf16.mxu0 0
      %7188 = vmatmul.mubr.bf16.gmra.mxu0 %v7024
      %v7189 = vpop.f32.mrf.mxu0
      %v7190 = vadd.f32 0.0, %v7189
      %v7191 = vpop.f32.mrf.mxu0
      %v7192 = vpop.f32.mrf.mxu0
      %v7193 = vadd.f32 0.0, %v7192
      %v7194 = vpop.f32.mrf.mxu0
      %7195 = vmatprep.mubr.bf16.mxu0 0
      %7196 = vmatmul.mubr.bf16.gmra.mxu0 %v7027
      %v7197 = vpop.f32.mrf.mxu0
      %v7198 = vadd.f32 0.0, %v7197
      %v7199 = vpop.f32.mrf.mxu0
      %v7200 = vpop.f32.mrf.mxu0
      %v7201 = vadd.f32 0.0, %v7200
      %v7202 = vpop.f32.mrf.mxu0
      %7203 = vmatprep.mubr.bf16.mxu0 0
      %7204 = vmatmul.mubr.bf16.gmra.mxu0 %v7030
      %v7205 = vpop.f32.mrf.mxu0
      %v7206 = vadd.f32 0.0, %v7205
      %v7207 = vpop.f32.mrf.mxu0
      %v7208 = vpop.f32.mrf.mxu0
      %v7209 = vadd.f32 0.0, %v7208
      %v7210 = vpop.f32.mrf.mxu0
      %7211 = vdwg.mxu0
      %v7212 = vadd.f32 %v6886, %v7070
      %v7213 = vadd.f32 %v6887, %v7073
      %v7214 = vadd.f32 %v6888, %v7078
      %v7215 = vadd.f32 %v6889, %v7081
      %v7216 = vadd.f32 %v6890, %v7086
      %v7217 = vadd.f32 %v6891, %v7089
      %v7218 = vadd.f32 %v6892, %v7094
      %v7219 = vadd.f32 %v6893, %v7097
      %v7220 = vadd.f32 %v6894, %v7102
      %v7221 = vadd.f32 %v6895, %v7105
      %v7222 = vadd.f32 %v6896, %v7110
      %v7223 = vadd.f32 %v6897, %v7113
      %v7224 = vadd.f32 %v6898, %v7118
      %v7225 = vadd.f32 %v6899, %v7121
      %v7226 = vadd.f32 %v6900, %v7126
      %v7227 = vadd.f32 %v6901, %v7129
      %v7228 = vadd.f32 %v6902, %v7134
      %v7229 = vadd.f32 %v6903, %v7137
      %v7230 = vadd.f32 %v6904, %v7142
      %v7231 = vadd.f32 %v6905, %v7145
      %v7232 = vadd.f32 %v6906, %v7150
      %v7233 = vadd.f32 %v6907, %v7153
      %v7234 = vadd.f32 %v6908, %v7158
      %v7235 = vadd.f32 %v6909, %v7161
      %v7236 = vadd.f32 %v6910, %v7166
      %v7237 = vadd.f32 %v6911, %v7169
      %v7238 = vadd.f32 %v6912, %v7174
      %v7239 = vadd.f32 %v6913, %v7177
      %v7240 = vadd.f32 %v6914, %v7182
      %v7241 = vadd.f32 %v6915, %v7185
      %v7242 = vadd.f32 %v6916, %v7190
      %v7243 = vadd.f32 %v6917, %v7193
      %v7244 = vadd.f32 %v6918, %v7198
      %v7245 = vadd.f32 %v6919, %v7201
      %v7246 = vadd.f32 %v6920, %v7206
      %v7247 = vadd.f32 %v6921, %v7209
      %v7248 = vld [vmem:[#allocation2 + $0x25] sm:$0xff]
      %v7249 = vld [vmem:[#allocation2 + $0x2d] sm:$0xff]
      %v7250 = vld [vmem:[#allocation2 + $0x35] sm:$0xff]
      %v7251 = vld [vmem:[#allocation2 + $0x3d] sm:$0xff]
      %v7252 = vld [vmem:[#allocation2 + $0x45] sm:$0xff]
      %v7253 = vld [vmem:[#allocation2 + $0x4d] sm:$0xff]
      %v7254 = vld [vmem:[#allocation2 + $0x55] sm:$0xff]
      %v7255 = vld [vmem:[#allocation2 + $0x5d] sm:$0xff]
      %v7256 = vld [vmem:[#allocation2 + $0x65] sm:$0xff]
      %v7257 = vld [vmem:[#allocation2 + $0x6d] sm:$0xff]
      %v7258 = vld [vmem:[#allocation2 + $0x75] sm:$0xff]
      %v7259 = vld [vmem:[#allocation2 + $0x7d] sm:$0xff]
      %v7260 = vld [vmem:[#allocation2 + $0x85] sm:$0xff]
      %v7261 = vld [vmem:[#allocation2 + $0x8d] sm:$0xff]
      %v7262 = vld [vmem:[#allocation2 + $0x95] sm:$0xff]
      %v7263 = vld [vmem:[#allocation2 + $0x9d] sm:$0xff]
      %v7264 = vld [vmem:[#allocation2 + $0xa5] sm:$0xff]
      %v7265 = vld [vmem:[#allocation2 + $0xad] sm:$0xff]
      %v7266 = vld [vmem:[#allocation2 + $0xb5] sm:$0xff]
      %v7267 = vld [vmem:[#allocation2 + $0xbd] sm:$0xff]
      %v7268 = vld [vmem:[#allocation2 + $0xc5] sm:$0xff]
      %v7269 = vld [vmem:[#allocation2 + $0xcd] sm:$0xff]
      %v7270 = vld [vmem:[#allocation2 + $0xd5] sm:$0xff]
      %v7271 = vld [vmem:[#allocation2 + $0xdd] sm:$0xff]
      %v7272 = vld [vmem:[#allocation2 + $0xe5] sm:$0xff]
      %v7273 = vld [vmem:[#allocation2 + $0xed] sm:$0xff]
      %v7274 = vld [vmem:[#allocation2 + $0xf5] sm:$0xff]
      %v7275 = vld [vmem:[#allocation2 + $0xfd] sm:$0xff]
      %v7276 = vld [vmem:[#allocation2 + $0x105] sm:$0xff]
      %v7277 = vld [vmem:[#allocation2 + $0x10d] sm:$0xff]
      %v7278 = vld [vmem:[#allocation2 + $0x115] sm:$0xff]
      %v7279 = vld [vmem:[#allocation2 + $0x11d] sm:$0xff]
      %v7280 = vld [vmem:[#allocation2 + $0x125] sm:$0xff]
      %v7281 = vld [vmem:[#allocation2 + $0x12d] sm:$0xff]
      %v7282 = vld [vmem:[#allocation2 + $0x135] sm:$0xff]
      %v7283 = vld [vmem:[#allocation2 + $0x13d] sm:$0x3f]
      %v7284 = vpack.c.bf16 %v7249, %v7248
      %v7285 = vpack.c.bf16 %v7251, %v7250
      %v7286 = vpack.c.bf16 %v7253, %v7252
      %v7287 = vpack.c.bf16 %v7255, %v7254
      %v7288 = vpack.c.bf16 %v7257, %v7256
      %v7289 = vpack.c.bf16 %v7259, %v7258
      %v7290 = vpack.c.bf16 %v7261, %v7260
      %v7291 = vpack.c.bf16 %v7263, %v7262
      %v7292 = vpack.c.bf16 %v7265, %v7264
      %v7293 = vpack.c.bf16 %v7267, %v7266
      %v7294 = vpack.c.bf16 %v7269, %v7268
      %v7295 = vpack.c.bf16 %v7271, %v7270
      %v7296 = vpack.c.bf16 %v7273, %v7272
      %v7297 = vpack.c.bf16 %v7275, %v7274
      %v7298 = vpack.c.bf16 %v7277, %v7276
      %v7299 = vpack.c.bf16 %v7279, %v7278
      %v7300 = vpack.c.bf16 %v7281, %v7280
      %v7301 = vpack.c.bf16 %v7283, %v7282
      %s7302 = scalar_lea.vmem %s13, 28
      %v7303 = vld [vmem:[%s7302] sm:$0xf]
      %v7305 = vsel %vm3937, %v7284, 0
      %v7308 = vsel %vm3937, %v7285, 0
      %v7311 = vsel %vm3937, %v7286, 0
      %v7314 = vsel %vm3937, %v7287, 0
      %v7317 = vsel %vm3937, %v7288, 0
      %v7320 = vsel %vm3937, %v7289, 0
      %v7323 = vsel %vm3937, %v7290, 0
      %v7326 = vsel %vm3937, %v7291, 0
      %v7329 = vsel %vm3937, %v7292, 0
      %v7332 = vsel %vm3937, %v7293, 0
      %v7335 = vsel %vm3937, %v7294, 0
      %v7338 = vsel %vm3937, %v7295, 0
      %v7341 = vsel %vm3937, %v7296, 0
      %v7344 = vsel %vm3937, %v7297, 0
      %v7347 = vsel %vm3937, %v7298, 0
      %v7350 = vsel %vm3937, %v7299, 0
      %v7353 = vsel %vm3937, %v7300, 0
      %v7356 = vsel %vm3937, %v7301, 0
      %v7359 = vsel %vm4093, %v7303, 0
      %7361 = vmatprep.subr.bf16.mxu0 0
      %7362 = vmatpush1.bf16.msra.mxu0 0
      %7363 = vmatprep.subr.bf16.mxu0 0
      %7364 = vmatpush1.bf16.msra.mxu0 0
      %7365 = vmatprep.subr.bf16.mxu0 0
      %7366 = vmatpush1.bf16.msra.mxu0 0
      %7367 = vmatprep.subr.bf16.mxu0 0
      %7368 = vmatpush1.bf16.msra.mxu0 0
      %7369 = vmatprep.subr.bf16.mxu0 0
      %7370 = vmatpush1.bf16.msra.mxu0 0
      %7371 = vmatprep.subr.bf16.mxu0 0
      %7372 = vmatpush1.bf16.msra.mxu0 0
      %7373 = vmatprep.subr.bf16.mxu0 0
      %7374 = vmatpush1.bf16.msra.mxu0 0
      %7375 = vmatprep.subr.bf16.mxu0 0
      %7376 = vmatpush1.bf16.msra.mxu0 %v7359
      %7377 = vmatprep.subr.bf16.mxu0 0
      %7378 = vmatpush2.bf16.msra.mxu0 0
      %7379 = vmatprep.subr.bf16.mxu0 0
      %7380 = vmatpush2.bf16.msra.mxu0 0
      %7381 = vmatprep.subr.bf16.mxu0 0
      %7382 = vmatpush2.bf16.msra.mxu0 0
      %7383 = vmatprep.subr.bf16.mxu0 0
      %7384 = vmatpush2.bf16.msra.mxu0 0
      %7385 = vmatprep.subr.bf16.mxu0 0
      %7386 = vmatpush2.bf16.msra.mxu0 0
      %7387 = vmatprep.subr.bf16.mxu0 0
      %7388 = vmatpush2.bf16.msra.mxu0 0
      %7389 = vmatprep.subr.bf16.mxu0 0
      %7390 = vmatpush2.bf16.msra.mxu0 0
      %7391 = vmatprep.subr.bf16.mxu0 0
      %7392 = vmatpush2.bf16.msra.mxu0 0
      %7393 = vmatprep.mubr.bf16.mxu0 0
      %7394 = vmatmul.mubr.bf16.gmra.mxu0 %v7305
      %v7395 = vpop.f32.mrf.mxu0
      %v7396 = vadd.f32 0.0, %v7395
      %v7397 = vpop.f32.mrf.mxu0
      %v7398 = vpop.f32.mrf.mxu0
      %v7399 = vadd.f32 0.0, %v7398
      %v7400 = vpop.f32.mrf.mxu0
      %7401 = vmatprep.mubr.bf16.mxu0 0
      %7402 = vmatmul.mubr.bf16.gmra.mxu0 %v7308
      %v7403 = vpop.f32.mrf.mxu0
      %v7404 = vadd.f32 0.0, %v7403
      %v7405 = vpop.f32.mrf.mxu0
      %v7406 = vpop.f32.mrf.mxu0
      %v7407 = vadd.f32 0.0, %v7406
      %v7408 = vpop.f32.mrf.mxu0
      %7409 = vmatprep.mubr.bf16.mxu0 0
      %7410 = vmatmul.mubr.bf16.gmra.mxu0 %v7311
      %v7411 = vpop.f32.mrf.mxu0
      %v7412 = vadd.f32 0.0, %v7411
      %v7413 = vpop.f32.mrf.mxu0
      %v7414 = vpop.f32.mrf.mxu0
      %v7415 = vadd.f32 0.0, %v7414
      %v7416 = vpop.f32.mrf.mxu0
      %7417 = vmatprep.mubr.bf16.mxu0 0
      %7418 = vmatmul.mubr.bf16.gmra.mxu0 %v7314
      %v7419 = vpop.f32.mrf.mxu0
      %v7420 = vadd.f32 0.0, %v7419
      %v7421 = vpop.f32.mrf.mxu0
      %v7422 = vpop.f32.mrf.mxu0
      %v7423 = vadd.f32 0.0, %v7422
      %v7424 = vpop.f32.mrf.mxu0
      %7425 = vmatprep.mubr.bf16.mxu0 0
      %7426 = vmatmul.mubr.bf16.gmra.mxu0 %v7317
      %v7427 = vpop.f32.mrf.mxu0
      %v7428 = vadd.f32 0.0, %v7427
      %v7429 = vpop.f32.mrf.mxu0
      %v7430 = vpop.f32.mrf.mxu0
      %v7431 = vadd.f32 0.0, %v7430
      %v7432 = vpop.f32.mrf.mxu0
      %7433 = vmatprep.mubr.bf16.mxu0 0
      %7434 = vmatmul.mubr.bf16.gmra.mxu0 %v7320
      %v7435 = vpop.f32.mrf.mxu0
      %v7436 = vadd.f32 0.0, %v7435
      %v7437 = vpop.f32.mrf.mxu0
      %v7438 = vpop.f32.mrf.mxu0
      %v7439 = vadd.f32 0.0, %v7438
      %v7440 = vpop.f32.mrf.mxu0
      %7441 = vmatprep.mubr.bf16.mxu0 0
      %7442 = vmatmul.mubr.bf16.gmra.mxu0 %v7323
      %v7443 = vpop.f32.mrf.mxu0
      %v7444 = vadd.f32 0.0, %v7443
      %v7445 = vpop.f32.mrf.mxu0
      %v7446 = vpop.f32.mrf.mxu0
      %v7447 = vadd.f32 0.0, %v7446
      %v7448 = vpop.f32.mrf.mxu0
      %7449 = vmatprep.mubr.bf16.mxu0 0
      %7450 = vmatmul.mubr.bf16.gmra.mxu0 %v7326
      %v7451 = vpop.f32.mrf.mxu0
      %v7452 = vadd.f32 0.0, %v7451
      %v7453 = vpop.f32.mrf.mxu0
      %v7454 = vpop.f32.mrf.mxu0
      %v7455 = vadd.f32 0.0, %v7454
      %v7456 = vpop.f32.mrf.mxu0
      %7457 = vmatprep.mubr.bf16.mxu0 0
      %7458 = vmatmul.mubr.bf16.gmra.mxu0 %v7329
      %v7459 = vpop.f32.mrf.mxu0
      %v7460 = vadd.f32 0.0, %v7459
      %v7461 = vpop.f32.mrf.mxu0
      %v7462 = vpop.f32.mrf.mxu0
      %v7463 = vadd.f32 0.0, %v7462
      %v7464 = vpop.f32.mrf.mxu0
      %7465 = vmatprep.mubr.bf16.mxu0 0
      %7466 = vmatmul.mubr.bf16.gmra.mxu0 %v7332
      %v7467 = vpop.f32.mrf.mxu0
      %v7468 = vadd.f32 0.0, %v7467
      %v7469 = vpop.f32.mrf.mxu0
      %v7470 = vpop.f32.mrf.mxu0
      %v7471 = vadd.f32 0.0, %v7470
      %v7472 = vpop.f32.mrf.mxu0
      %7473 = vmatprep.mubr.bf16.mxu0 0
      %7474 = vmatmul.mubr.bf16.gmra.mxu0 %v7335
      %v7475 = vpop.f32.mrf.mxu0
      %v7476 = vadd.f32 0.0, %v7475
      %v7477 = vpop.f32.mrf.mxu0
      %v7478 = vpop.f32.mrf.mxu0
      %v7479 = vadd.f32 0.0, %v7478
      %v7480 = vpop.f32.mrf.mxu0
      %7481 = vmatprep.mubr.bf16.mxu0 0
      %7482 = vmatmul.mubr.bf16.gmra.mxu0 %v7338
      %v7483 = vpop.f32.mrf.mxu0
      %v7484 = vadd.f32 0.0, %v7483
      %v7485 = vpop.f32.mrf.mxu0
      %v7486 = vpop.f32.mrf.mxu0
      %v7487 = vadd.f32 0.0, %v7486
      %v7488 = vpop.f32.mrf.mxu0
      %7489 = vmatprep.mubr.bf16.mxu0 0
      %7490 = vmatmul.mubr.bf16.gmra.mxu0 %v7341
      %v7491 = vpop.f32.mrf.mxu0
      %v7492 = vadd.f32 0.0, %v7491
      %v7493 = vpop.f32.mrf.mxu0
      %v7494 = vpop.f32.mrf.mxu0
      %v7495 = vadd.f32 0.0, %v7494
      %v7496 = vpop.f32.mrf.mxu0
      %7497 = vmatprep.mubr.bf16.mxu0 0
      %7498 = vmatmul.mubr.bf16.gmra.mxu0 %v7344
      %v7499 = vpop.f32.mrf.mxu0
      %v7500 = vadd.f32 0.0, %v7499
      %v7501 = vpop.f32.mrf.mxu0
      %v7502 = vpop.f32.mrf.mxu0
      %v7503 = vadd.f32 0.0, %v7502
      %v7504 = vpop.f32.mrf.mxu0
      %7505 = vmatprep.mubr.bf16.mxu0 0
      %7506 = vmatmul.mubr.bf16.gmra.mxu0 %v7347
      %v7507 = vpop.f32.mrf.mxu0
      %v7508 = vadd.f32 0.0, %v7507
      %v7509 = vpop.f32.mrf.mxu0
      %v7510 = vpop.f32.mrf.mxu0
      %v7511 = vadd.f32 0.0, %v7510
      %v7512 = vpop.f32.mrf.mxu0
      %7513 = vmatprep.mubr.bf16.mxu0 0
      %7514 = vmatmul.mubr.bf16.gmra.mxu0 %v7350
      %v7515 = vpop.f32.mrf.mxu0
      %v7516 = vadd.f32 0.0, %v7515
      %v7517 = vpop.f32.mrf.mxu0
      %v7518 = vpop.f32.mrf.mxu0
      %v7519 = vadd.f32 0.0, %v7518
      %v7520 = vpop.f32.mrf.mxu0
      %7521 = vmatprep.mubr.bf16.mxu0 0
      %7522 = vmatmul.mubr.bf16.gmra.mxu0 %v7353
      %v7523 = vpop.f32.mrf.mxu0
      %v7524 = vadd.f32 0.0, %v7523
      %v7525 = vpop.f32.mrf.mxu0
      %v7526 = vpop.f32.mrf.mxu0
      %v7527 = vadd.f32 0.0, %v7526
      %v7528 = vpop.f32.mrf.mxu0
      %7529 = vmatprep.mubr.bf16.mxu0 0
      %7530 = vmatmul.mubr.bf16.gmra.mxu0 %v7356
      %v7531 = vpop.f32.mrf.mxu0
      %v7532 = vadd.f32 0.0, %v7531
      %v7533 = vpop.f32.mrf.mxu0
      %v7534 = vpop.f32.mrf.mxu0
      %v7535 = vadd.f32 0.0, %v7534
      %v7536 = vpop.f32.mrf.mxu0
      %7537 = vdwg.mxu0
      %v7538 = vadd.f32 %v7212, %v7396
      %v7539 = vadd.f32 %v7213, %v7399
      %v7540 = vadd.f32 %v7214, %v7404
      %v7541 = vadd.f32 %v7215, %v7407
      %v7542 = vadd.f32 %v7216, %v7412
      %v7543 = vadd.f32 %v7217, %v7415
      %v7544 = vadd.f32 %v7218, %v7420
      %v7545 = vadd.f32 %v7219, %v7423
      %v7546 = vadd.f32 %v7220, %v7428
      %v7547 = vadd.f32 %v7221, %v7431
      %v7548 = vadd.f32 %v7222, %v7436
      %v7549 = vadd.f32 %v7223, %v7439
      %v7550 = vadd.f32 %v7224, %v7444
      %v7551 = vadd.f32 %v7225, %v7447
      %v7552 = vadd.f32 %v7226, %v7452
      %v7553 = vadd.f32 %v7227, %v7455
      %v7554 = vadd.f32 %v7228, %v7460
      %v7555 = vadd.f32 %v7229, %v7463
      %v7556 = vadd.f32 %v7230, %v7468
      %v7557 = vadd.f32 %v7231, %v7471
      %v7558 = vadd.f32 %v7232, %v7476
      %v7559 = vadd.f32 %v7233, %v7479
      %v7560 = vadd.f32 %v7234, %v7484
      %v7561 = vadd.f32 %v7235, %v7487
      %v7562 = vadd.f32 %v7236, %v7492
      %v7563 = vadd.f32 %v7237, %v7495
      %v7564 = vadd.f32 %v7238, %v7500
      %v7565 = vadd.f32 %v7239, %v7503
      %v7566 = vadd.f32 %v7240, %v7508
      %v7567 = vadd.f32 %v7241, %v7511
      %v7568 = vadd.f32 %v7242, %v7516
      %v7569 = vadd.f32 %v7243, %v7519
      %v7570 = vadd.f32 %v7244, %v7524
      %v7571 = vadd.f32 %v7245, %v7527
      %v7572 = vadd.f32 %v7246, %v7532
      %v7573 = vadd.f32 %v7247, %v7535
      %v7574 = vld [vmem:[#allocation2 + $0x26] sm:$0xff]
      %v7575 = vld [vmem:[#allocation2 + $0x2e] sm:$0xff]
      %v7576 = vld [vmem:[#allocation2 + $0x36] sm:$0xff]
      %v7577 = vld [vmem:[#allocation2 + $0x3e] sm:$0xff]
      %v7578 = vld [vmem:[#allocation2 + $0x46] sm:$0xff]
      %v7579 = vld [vmem:[#allocation2 + $0x4e] sm:$0xff]
      %v7580 = vld [vmem:[#allocation2 + $0x56] sm:$0xff]
      %v7581 = vld [vmem:[#allocation2 + $0x5e] sm:$0xff]
      %v7582 = vld [vmem:[#allocation2 + $0x66] sm:$0xff]
      %v7583 = vld [vmem:[#allocation2 + $0x6e] sm:$0xff]
      %v7584 = vld [vmem:[#allocation2 + $0x76] sm:$0xff]
      %v7585 = vld [vmem:[#allocation2 + $0x7e] sm:$0xff]
      %v7586 = vld [vmem:[#allocation2 + $0x86] sm:$0xff]
      %v7587 = vld [vmem:[#allocation2 + $0x8e] sm:$0xff]
      %v7588 = vld [vmem:[#allocation2 + $0x96] sm:$0xff]
      %v7589 = vld [vmem:[#allocation2 + $0x9e] sm:$0xff]
      %v7590 = vld [vmem:[#allocation2 + $0xa6] sm:$0xff]
      %v7591 = vld [vmem:[#allocation2 + $0xae] sm:$0xff]
      %v7592 = vld [vmem:[#allocation2 + $0xb6] sm:$0xff]
      %v7593 = vld [vmem:[#allocation2 + $0xbe] sm:$0xff]
      %v7594 = vld [vmem:[#allocation2 + $0xc6] sm:$0xff]
      %v7595 = vld [vmem:[#allocation2 + $0xce] sm:$0xff]
      %v7596 = vld [vmem:[#allocation2 + $0xd6] sm:$0xff]
      %v7597 = vld [vmem:[#allocation2 + $0xde] sm:$0xff]
      %v7598 = vld [vmem:[#allocation2 + $0xe6] sm:$0xff]
      %v7599 = vld [vmem:[#allocation2 + $0xee] sm:$0xff]
      %v7600 = vld [vmem:[#allocation2 + $0xf6] sm:$0xff]
      %v7601 = vld [vmem:[#allocation2 + $0xfe] sm:$0xff]
      %v7602 = vld [vmem:[#allocation2 + $0x106] sm:$0xff]
      %v7603 = vld [vmem:[#allocation2 + $0x10e] sm:$0xff]
      %v7604 = vld [vmem:[#allocation2 + $0x116] sm:$0xff]
      %v7605 = vld [vmem:[#allocation2 + $0x11e] sm:$0xff]
      %v7606 = vld [vmem:[#allocation2 + $0x126] sm:$0xff]
      %v7607 = vld [vmem:[#allocation2 + $0x12e] sm:$0xff]
      %v7608 = vld [vmem:[#allocation2 + $0x136] sm:$0xff]
      %v7609 = vld [vmem:[#allocation2 + $0x13e] sm:$0x3f]
      %v7610 = vpack.c.bf16 %v7575, %v7574
      %v7611 = vpack.c.bf16 %v7577, %v7576
      %v7612 = vpack.c.bf16 %v7579, %v7578
      %v7613 = vpack.c.bf16 %v7581, %v7580
      %v7614 = vpack.c.bf16 %v7583, %v7582
      %v7615 = vpack.c.bf16 %v7585, %v7584
      %v7616 = vpack.c.bf16 %v7587, %v7586
      %v7617 = vpack.c.bf16 %v7589, %v7588
      %v7618 = vpack.c.bf16 %v7591, %v7590
      %v7619 = vpack.c.bf16 %v7593, %v7592
      %v7620 = vpack.c.bf16 %v7595, %v7594
      %v7621 = vpack.c.bf16 %v7597, %v7596
      %v7622 = vpack.c.bf16 %v7599, %v7598
      %v7623 = vpack.c.bf16 %v7601, %v7600
      %v7624 = vpack.c.bf16 %v7603, %v7602
      %v7625 = vpack.c.bf16 %v7605, %v7604
      %v7626 = vpack.c.bf16 %v7607, %v7606
      %v7627 = vpack.c.bf16 %v7609, %v7608
      %s7628 = scalar_lea.vmem %s13, 32
      %v7629 = vld [vmem:[%s7628] sm:$0xf]
      %v7631 = vsel %vm3937, %v7610, 0
      %v7634 = vsel %vm3937, %v7611, 0
      %v7637 = vsel %vm3937, %v7612, 0
      %v7640 = vsel %vm3937, %v7613, 0
      %v7643 = vsel %vm3937, %v7614, 0
      %v7646 = vsel %vm3937, %v7615, 0
      %v7649 = vsel %vm3937, %v7616, 0
      %v7652 = vsel %vm3937, %v7617, 0
      %v7655 = vsel %vm3937, %v7618, 0
      %v7658 = vsel %vm3937, %v7619, 0
      %v7661 = vsel %vm3937, %v7620, 0
      %v7664 = vsel %vm3937, %v7621, 0
      %v7667 = vsel %vm3937, %v7622, 0
      %v7670 = vsel %vm3937, %v7623, 0
      %v7673 = vsel %vm3937, %v7624, 0
      %v7676 = vsel %vm3937, %v7625, 0
      %v7679 = vsel %vm3937, %v7626, 0
      %v7682 = vsel %vm3937, %v7627, 0
      %v7685 = vsel %vm4093, %v7629, 0
      %7687 = vmatprep.subr.bf16.mxu0 0
      %7688 = vmatpush1.bf16.msra.mxu0 0
      %7689 = vmatprep.subr.bf16.mxu0 0
      %7690 = vmatpush1.bf16.msra.mxu0 0
      %7691 = vmatprep.subr.bf16.mxu0 0
      %7692 = vmatpush1.bf16.msra.mxu0 0
      %7693 = vmatprep.subr.bf16.mxu0 0
      %7694 = vmatpush1.bf16.msra.mxu0 0
      %7695 = vmatprep.subr.bf16.mxu0 0
      %7696 = vmatpush1.bf16.msra.mxu0 0
      %7697 = vmatprep.subr.bf16.mxu0 0
      %7698 = vmatpush1.bf16.msra.mxu0 0
      %7699 = vmatprep.subr.bf16.mxu0 0
      %7700 = vmatpush1.bf16.msra.mxu0 0
      %7701 = vmatprep.subr.bf16.mxu0 0
      %7702 = vmatpush1.bf16.msra.mxu0 %v7685
      %7703 = vmatprep.subr.bf16.mxu0 0
      %7704 = vmatpush2.bf16.msra.mxu0 0
      %7705 = vmatprep.subr.bf16.mxu0 0
      %7706 = vmatpush2.bf16.msra.mxu0 0
      %7707 = vmatprep.subr.bf16.mxu0 0
      %7708 = vmatpush2.bf16.msra.mxu0 0
      %7709 = vmatprep.subr.bf16.mxu0 0
      %7710 = vmatpush2.bf16.msra.mxu0 0
      %7711 = vmatprep.subr.bf16.mxu0 0
      %7712 = vmatpush2.bf16.msra.mxu0 0
      %7713 = vmatprep.subr.bf16.mxu0 0
      %7714 = vmatpush2.bf16.msra.mxu0 0
      %7715 = vmatprep.subr.bf16.mxu0 0
      %7716 = vmatpush2.bf16.msra.mxu0 0
      %7717 = vmatprep.subr.bf16.mxu0 0
      %7718 = vmatpush2.bf16.msra.mxu0 0
      %7719 = vmatprep.mubr.bf16.mxu0 0
      %7720 = vmatmul.mubr.bf16.gmra.mxu0 %v7631
      %v7721 = vpop.f32.mrf.mxu0
      %v7722 = vadd.f32 0.0, %v7721
      %v7723 = vpop.f32.mrf.mxu0
      %v7724 = vpop.f32.mrf.mxu0
      %v7725 = vadd.f32 0.0, %v7724
      %v7726 = vpop.f32.mrf.mxu0
      %7727 = vmatprep.mubr.bf16.mxu0 0
      %7728 = vmatmul.mubr.bf16.gmra.mxu0 %v7634
      %v7729 = vpop.f32.mrf.mxu0
      %v7730 = vadd.f32 0.0, %v7729
      %v7731 = vpop.f32.mrf.mxu0
      %v7732 = vpop.f32.mrf.mxu0
      %v7733 = vadd.f32 0.0, %v7732
      %v7734 = vpop.f32.mrf.mxu0
      %7735 = vmatprep.mubr.bf16.mxu0 0
      %7736 = vmatmul.mubr.bf16.gmra.mxu0 %v7637
      %v7737 = vpop.f32.mrf.mxu0
      %v7738 = vadd.f32 0.0, %v7737
      %v7739 = vpop.f32.mrf.mxu0
      %v7740 = vpop.f32.mrf.mxu0
      %v7741 = vadd.f32 0.0, %v7740
      %v7742 = vpop.f32.mrf.mxu0
      %7743 = vmatprep.mubr.bf16.mxu0 0
      %7744 = vmatmul.mubr.bf16.gmra.mxu0 %v7640
      %v7745 = vpop.f32.mrf.mxu0
      %v7746 = vadd.f32 0.0, %v7745
      %v7747 = vpop.f32.mrf.mxu0
      %v7748 = vpop.f32.mrf.mxu0
      %v7749 = vadd.f32 0.0, %v7748
      %v7750 = vpop.f32.mrf.mxu0
      %7751 = vmatprep.mubr.bf16.mxu0 0
      %7752 = vmatmul.mubr.bf16.gmra.mxu0 %v7643
      %v7753 = vpop.f32.mrf.mxu0
      %v7754 = vadd.f32 0.0, %v7753
      %v7755 = vpop.f32.mrf.mxu0
      %v7756 = vpop.f32.mrf.mxu0
      %v7757 = vadd.f32 0.0, %v7756
      %v7758 = vpop.f32.mrf.mxu0
      %7759 = vmatprep.mubr.bf16.mxu0 0
      %7760 = vmatmul.mubr.bf16.gmra.mxu0 %v7646
      %v7761 = vpop.f32.mrf.mxu0
      %v7762 = vadd.f32 0.0, %v7761
      %v7763 = vpop.f32.mrf.mxu0
      %v7764 = vpop.f32.mrf.mxu0
      %v7765 = vadd.f32 0.0, %v7764
      %v7766 = vpop.f32.mrf.mxu0
      %7767 = vmatprep.mubr.bf16.mxu0 0
      %7768 = vmatmul.mubr.bf16.gmra.mxu0 %v7649
      %v7769 = vpop.f32.mrf.mxu0
      %v7770 = vadd.f32 0.0, %v7769
      %v7771 = vpop.f32.mrf.mxu0
      %v7772 = vpop.f32.mrf.mxu0
      %v7773 = vadd.f32 0.0, %v7772
      %v7774 = vpop.f32.mrf.mxu0
      %7775 = vmatprep.mubr.bf16.mxu0 0
      %7776 = vmatmul.mubr.bf16.gmra.mxu0 %v7652
      %v7777 = vpop.f32.mrf.mxu0
      %v7778 = vadd.f32 0.0, %v7777
      %v7779 = vpop.f32.mrf.mxu0
      %v7780 = vpop.f32.mrf.mxu0
      %v7781 = vadd.f32 0.0, %v7780
      %v7782 = vpop.f32.mrf.mxu0
      %7783 = vmatprep.mubr.bf16.mxu0 0
      %7784 = vmatmul.mubr.bf16.gmra.mxu0 %v7655
      %v7785 = vpop.f32.mrf.mxu0
      %v7786 = vadd.f32 0.0, %v7785
      %v7787 = vpop.f32.mrf.mxu0
      %v7788 = vpop.f32.mrf.mxu0
      %v7789 = vadd.f32 0.0, %v7788
      %v7790 = vpop.f32.mrf.mxu0
      %7791 = vmatprep.mubr.bf16.mxu0 0
      %7792 = vmatmul.mubr.bf16.gmra.mxu0 %v7658
      %v7793 = vpop.f32.mrf.mxu0
      %v7794 = vadd.f32 0.0, %v7793
      %v7795 = vpop.f32.mrf.mxu0
      %v7796 = vpop.f32.mrf.mxu0
      %v7797 = vadd.f32 0.0, %v7796
      %v7798 = vpop.f32.mrf.mxu0
      %7799 = vmatprep.mubr.bf16.mxu0 0
      %7800 = vmatmul.mubr.bf16.gmra.mxu0 %v7661
      %v7801 = vpop.f32.mrf.mxu0
      %v7802 = vadd.f32 0.0, %v7801
      %v7803 = vpop.f32.mrf.mxu0
      %v7804 = vpop.f32.mrf.mxu0
      %v7805 = vadd.f32 0.0, %v7804
      %v7806 = vpop.f32.mrf.mxu0
      %7807 = vmatprep.mubr.bf16.mxu0 0
      %7808 = vmatmul.mubr.bf16.gmra.mxu0 %v7664
      %v7809 = vpop.f32.mrf.mxu0
      %v7810 = vadd.f32 0.0, %v7809
      %v7811 = vpop.f32.mrf.mxu0
      %v7812 = vpop.f32.mrf.mxu0
      %v7813 = vadd.f32 0.0, %v7812
      %v7814 = vpop.f32.mrf.mxu0
      %7815 = vmatprep.mubr.bf16.mxu0 0
      %7816 = vmatmul.mubr.bf16.gmra.mxu0 %v7667
      %v7817 = vpop.f32.mrf.mxu0
      %v7818 = vadd.f32 0.0, %v7817
      %v7819 = vpop.f32.mrf.mxu0
      %v7820 = vpop.f32.mrf.mxu0
      %v7821 = vadd.f32 0.0, %v7820
      %v7822 = vpop.f32.mrf.mxu0
      %7823 = vmatprep.mubr.bf16.mxu0 0
      %7824 = vmatmul.mubr.bf16.gmra.mxu0 %v7670
      %v7825 = vpop.f32.mrf.mxu0
      %v7826 = vadd.f32 0.0, %v7825
      %v7827 = vpop.f32.mrf.mxu0
      %v7828 = vpop.f32.mrf.mxu0
      %v7829 = vadd.f32 0.0, %v7828
      %v7830 = vpop.f32.mrf.mxu0
      %7831 = vmatprep.mubr.bf16.mxu0 0
      %7832 = vmatmul.mubr.bf16.gmra.mxu0 %v7673
      %v7833 = vpop.f32.mrf.mxu0
      %v7834 = vadd.f32 0.0, %v7833
      %v7835 = vpop.f32.mrf.mxu0
      %v7836 = vpop.f32.mrf.mxu0
      %v7837 = vadd.f32 0.0, %v7836
      %v7838 = vpop.f32.mrf.mxu0
      %7839 = vmatprep.mubr.bf16.mxu0 0
      %7840 = vmatmul.mubr.bf16.gmra.mxu0 %v7676
      %v7841 = vpop.f32.mrf.mxu0
      %v7842 = vadd.f32 0.0, %v7841
      %v7843 = vpop.f32.mrf.mxu0
      %v7844 = vpop.f32.mrf.mxu0
      %v7845 = vadd.f32 0.0, %v7844
      %v7846 = vpop.f32.mrf.mxu0
      %7847 = vmatprep.mubr.bf16.mxu0 0
      %7848 = vmatmul.mubr.bf16.gmra.mxu0 %v7679
      %v7849 = vpop.f32.mrf.mxu0
      %v7850 = vadd.f32 0.0, %v7849
      %v7851 = vpop.f32.mrf.mxu0
      %v7852 = vpop.f32.mrf.mxu0
      %v7853 = vadd.f32 0.0, %v7852
      %v7854 = vpop.f32.mrf.mxu0
      %7855 = vmatprep.mubr.bf16.mxu0 0
      %7856 = vmatmul.mubr.bf16.gmra.mxu0 %v7682
      %v7857 = vpop.f32.mrf.mxu0
      %v7858 = vadd.f32 0.0, %v7857
      %v7859 = vpop.f32.mrf.mxu0
      %v7860 = vpop.f32.mrf.mxu0
      %v7861 = vadd.f32 0.0, %v7860
      %v7862 = vpop.f32.mrf.mxu0
      %7863 = vdwg.mxu0
      %v7864 = vadd.f32 %v7538, %v7722
      %v7865 = vadd.f32 %v7539, %v7725
      %v7866 = vadd.f32 %v7540, %v7730
      %v7867 = vadd.f32 %v7541, %v7733
      %v7868 = vadd.f32 %v7542, %v7738
      %v7869 = vadd.f32 %v7543, %v7741
      %v7870 = vadd.f32 %v7544, %v7746
      %v7871 = vadd.f32 %v7545, %v7749
      %v7872 = vadd.f32 %v7546, %v7754
      %v7873 = vadd.f32 %v7547, %v7757
      %v7874 = vadd.f32 %v7548, %v7762
      %v7875 = vadd.f32 %v7549, %v7765
      %v7876 = vadd.f32 %v7550, %v7770
      %v7877 = vadd.f32 %v7551, %v7773
      %v7878 = vadd.f32 %v7552, %v7778
      %v7879 = vadd.f32 %v7553, %v7781
      %v7880 = vadd.f32 %v7554, %v7786
      %v7881 = vadd.f32 %v7555, %v7789
      %v7882 = vadd.f32 %v7556, %v7794
      %v7883 = vadd.f32 %v7557, %v7797
      %v7884 = vadd.f32 %v7558, %v7802
      %v7885 = vadd.f32 %v7559, %v7805
      %v7886 = vadd.f32 %v7560, %v7810
      %v7887 = vadd.f32 %v7561, %v7813
      %v7888 = vadd.f32 %v7562, %v7818
      %v7889 = vadd.f32 %v7563, %v7821
      %v7890 = vadd.f32 %v7564, %v7826
      %v7891 = vadd.f32 %v7565, %v7829
      %v7892 = vadd.f32 %v7566, %v7834
      %v7893 = vadd.f32 %v7567, %v7837
      %v7894 = vadd.f32 %v7568, %v7842
      %v7895 = vadd.f32 %v7569, %v7845
      %v7896 = vadd.f32 %v7570, %v7850
      %v7897 = vadd.f32 %v7571, %v7853
      %v7898 = vadd.f32 %v7572, %v7858
      %v7899 = vadd.f32 %v7573, %v7861
      %v7900 = vld [vmem:[%s14] sm:$0x1]
      %v7902 = vlaneseq
      %v7903 = vshrl.u32 %v7902, 7
      %v7904 = vsub.s32 0, %v7903
      %v7905 = vrot.slane %v7900, %v7904
      %v7907 = vadd.f32 %v7864, %v7905
      %v7908 = vadd.f32 %v7865, %v7905
      %v7909 = vadd.f32 %v7866, %v7905
      %v7910 = vadd.f32 %v7867, %v7905
      %v7911 = vadd.f32 %v7868, %v7905
      %v7912 = vadd.f32 %v7869, %v7905
      %v7913 = vadd.f32 %v7870, %v7905
      %v7914 = vadd.f32 %v7871, %v7905
      %v7915 = vadd.f32 %v7872, %v7905
      %v7916 = vadd.f32 %v7873, %v7905
      %v7917 = vadd.f32 %v7874, %v7905
      %v7918 = vadd.f32 %v7875, %v7905
      %v7919 = vadd.f32 %v7876, %v7905
      %v7920 = vadd.f32 %v7877, %v7905
      %v7921 = vadd.f32 %v7878, %v7905
      %v7922 = vadd.f32 %v7879, %v7905
      %v7923 = vadd.f32 %v7880, %v7905
      %v7924 = vadd.f32 %v7881, %v7905
      %v7925 = vadd.f32 %v7882, %v7905
      %v7926 = vadd.f32 %v7883, %v7905
      %v7927 = vadd.f32 %v7884, %v7905
      %v7928 = vadd.f32 %v7885, %v7905
      %v7929 = vadd.f32 %v7886, %v7905
      %v7930 = vadd.f32 %v7887, %v7905
      %v7931 = vadd.f32 %v7888, %v7905
      %v7932 = vadd.f32 %v7889, %v7905
      %v7933 = vadd.f32 %v7890, %v7905
      %v7934 = vadd.f32 %v7891, %v7905
      %v7935 = vadd.f32 %v7892, %v7905
      %v7936 = vadd.f32 %v7893, %v7905
      %v7937 = vadd.f32 %v7894, %v7905
      %v7938 = vadd.f32 %v7895, %v7905
      %v7939 = vadd.f32 %v7896, %v7905
      %v7940 = vadd.f32 %v7897, %v7905
      %v7941 = vadd.f32 %v7898, %v7905
      %v7942 = vadd.f32 %v7899, %v7905
      %v7943 = vld [vmem:[%s15] sm:$0x1]
      %v7944 = vld [vmem:[%s16] sm:$0x1]
      %v7945 = vmul.f32 %v7907, %v3724
      %v7946 = vmul.f32 %v7908, %v3729
      %v7947 = vmul.f32 %v7909, %v3734
      %v7948 = vmul.f32 %v7910, %v3739
      %v7949 = vmul.f32 %v7911, %v3744
      %v7950 = vmul.f32 %v7912, %v3749
      %v7951 = vmul.f32 %v7913, %v3754
      %v7952 = vmul.f32 %v7914, %v3759
      %v7953 = vmul.f32 %v7915, %v3764
      %v7954 = vmul.f32 %v7916, %v3769
      %v7955 = vmul.f32 %v7917, %v3774
      %v7956 = vmul.f32 %v7918, %v3779
      %v7957 = vmul.f32 %v7919, %v3784
      %v7958 = vmul.f32 %v7920, %v3789
      %v7959 = vmul.f32 %v7921, %v3794
      %v7960 = vmul.f32 %v7922, %v3799
      %v7961 = vmul.f32 %v7923, %v3804
      %v7962 = vmul.f32 %v7924, %v3809
      %v7963 = vmul.f32 %v7925, %v3814
      %v7964 = vmul.f32 %v7926, %v3819
      %v7965 = vmul.f32 %v7927, %v3824
      %v7966 = vmul.f32 %v7928, %v3829
      %v7967 = vmul.f32 %v7929, %v3834
      %v7968 = vmul.f32 %v7930, %v3839
      %v7969 = vmul.f32 %v7931, %v3844
      %v7970 = vmul.f32 %v7932, %v3849
      %v7971 = vmul.f32 %v7933, %v3854
      %v7972 = vmul.f32 %v7934, %v3859
      %v7973 = vmul.f32 %v7935, %v3864
      %v7974 = vmul.f32 %v7936, %v3869
      %v7975 = vmul.f32 %v7937, %v3874
      %v7976 = vmul.f32 %v7938, %v3879
      %v7977 = vmul.f32 %v7939, %v3884
      %v7978 = vmul.f32 %v7940, %v3889
      %v7979 = vmul.f32 %v7941, %v3894
      %v7980 = vmul.f32 %v7942, %v3899
      %v7981 = vsel %vm3937, %v7945, 0.0
      %v7982 = vsel %vm3937, %v7946, 0.0
      %v7983 = vadd.f32 %v7981, %v7982
      %v7984 = vsel %vm3937, %v7947, 0.0
      %v7985 = vadd.f32 %v7983, %v7984
      %v7986 = vsel %vm3937, %v7948, 0.0
      %v7987 = vadd.f32 %v7985, %v7986
      %v7988 = vsel %vm3937, %v7949, 0.0
      %v7989 = vadd.f32 %v7987, %v7988
      %v7990 = vsel %vm3937, %v7950, 0.0
      %v7991 = vadd.f32 %v7989, %v7990
      %v7992 = vsel %vm3937, %v7951, 0.0
      %v7993 = vadd.f32 %v7991, %v7992
      %v7994 = vsel %vm3937, %v7952, 0.0
      %v7995 = vadd.f32 %v7993, %v7994
      %v7996 = vsel %vm3937, %v7953, 0.0
      %v7997 = vadd.f32 %v7995, %v7996
      %v7998 = vsel %vm3937, %v7954, 0.0
      %v7999 = vadd.f32 %v7997, %v7998
      %v8000 = vsel %vm3937, %v7955, 0.0
      %v8001 = vadd.f32 %v7999, %v8000
      %v8002 = vsel %vm3937, %v7956, 0.0
      %v8003 = vadd.f32 %v8001, %v8002
      %v8004 = vsel %vm3937, %v7957, 0.0
      %v8005 = vadd.f32 %v8003, %v8004
      %v8006 = vsel %vm3937, %v7958, 0.0
      %v8007 = vadd.f32 %v8005, %v8006
      %v8008 = vsel %vm3937, %v7959, 0.0
      %v8009 = vadd.f32 %v8007, %v8008
      %v8010 = vsel %vm3937, %v7960, 0.0
      %v8011 = vadd.f32 %v8009, %v8010
      %v8012 = vsel %vm3937, %v7961, 0.0
      %v8013 = vadd.f32 %v8011, %v8012
      %v8014 = vsel %vm3937, %v7962, 0.0
      %v8015 = vadd.f32 %v8013, %v8014
      %v8016 = vsel %vm3937, %v7963, 0.0
      %v8017 = vadd.f32 %v8015, %v8016
      %v8018 = vsel %vm3937, %v7964, 0.0
      %v8019 = vadd.f32 %v8017, %v8018
      %v8020 = vsel %vm3937, %v7965, 0.0
      %v8021 = vadd.f32 %v8019, %v8020
      %v8022 = vsel %vm3937, %v7966, 0.0
      %v8023 = vadd.f32 %v8021, %v8022
      %v8024 = vsel %vm3937, %v7967, 0.0
      %v8025 = vadd.f32 %v8023, %v8024
      %v8026 = vsel %vm3937, %v7968, 0.0
      %v8027 = vadd.f32 %v8025, %v8026
      %v8028 = vsel %vm3937, %v7969, 0.0
      %v8029 = vadd.f32 %v8027, %v8028
      %v8030 = vsel %vm3937, %v7970, 0.0
      %v8031 = vadd.f32 %v8029, %v8030
      %v8032 = vsel %vm3937, %v7971, 0.0
      %v8033 = vadd.f32 %v8031, %v8032
      %v8034 = vsel %vm3937, %v7972, 0.0
      %v8035 = vadd.f32 %v8033, %v8034
      %v8036 = vsel %vm3937, %v7973, 0.0
      %v8037 = vadd.f32 %v8035, %v8036
      %v8038 = vsel %vm3937, %v7974, 0.0
      %v8039 = vadd.f32 %v8037, %v8038
      %v8040 = vsel %vm3937, %v7975, 0.0
      %v8041 = vadd.f32 %v8039, %v8040
      %v8042 = vsel %vm3937, %v7976, 0.0
      %v8043 = vadd.f32 %v8041, %v8042
      %v8044 = vsel %vm3937, %v7977, 0.0
      %v8045 = vadd.f32 %v8043, %v8044
      %v8046 = vsel %vm3937, %v7978, 0.0
      %v8047 = vadd.f32 %v8045, %v8046
      %v8048 = vsel %vm3937, %v7979, 0.0
      %v8049 = vadd.f32 %v8047, %v8048
      %v8050 = vsel %vm4007, %v7980, 0.0
      %v8051 = vadd.f32 %v8049, %v8050
      %v8052 = vrot.slane %v8051, 4
      %v8053 = vadd.f32 %v8051, %v8052
      %v8054 = vrot.slane %v8053, 2
      %v8055 = vadd.f32 %v8053, %v8054
      %v8056 = vrot.slane %v8055, 1
      %v8057 = vadd.f32 %v8055, %v8056
      %v8059 = vsel %vm3937, %v8057, 0
      %8061 = vmatprep.subr.mxu0 0.0
      %8062 = vmatpush1.msra.mxu0 0.0
      %8063 = vmatprep.subr.mxu0 0.0
      %8064 = vmatpush1.msra.mxu0 0.0
      %8065 = vmatprep.subr.mxu0 0.0
      %8066 = vmatpush1.msra.mxu0 0.0
      %8067 = vmatprep.subr.mxu0 0.0
      %8068 = vmatpush1.msra.mxu0 0.0
      %8069 = vmatprep.subr.mxu0 0.0
      %8070 = vmatpush1.msra.mxu0 0.0
      %8071 = vmatprep.subr.mxu0 0.0
      %8072 = vmatpush1.msra.mxu0 0.0
      %8073 = vmatprep.subr.mxu0 0.0
      %8074 = vmatpush1.msra.mxu0 0.0
      %8075 = vmatprep.subr.mxu0 0.0
      %8076 = vmatpush1.msra.mxu0 0.0
      %8077 = vmatprep.subr.mxu0 0.0
      %8078 = vmatpush1.msra.mxu0 0.0
      %8079 = vmatprep.subr.mxu0 0.0
      %8080 = vmatpush1.msra.mxu0 0.0
      %8081 = vmatprep.subr.mxu0 0.0
      %8082 = vmatpush1.msra.mxu0 0.0
      %8083 = vmatprep.subr.mxu0 0.0
      %8084 = vmatpush1.msra.mxu0 0.0
      %8085 = vmatprep.subr.mxu0 0.0
      %8086 = vmatpush1.msra.mxu0 0.0
      %8087 = vmatprep.subr.mxu0 0.0
      %8088 = vmatpush1.msra.mxu0 0.0
      %8089 = vmatprep.subr.mxu0 0.0
      %8090 = vmatpush1.msra.mxu0 0.0
      %8091 = vmatprep.subr.mxu0 0.0
      %8092 = vmatpush1.msra.mxu0 %v654
      %8093 = vmatprep.subr.mxu0 0.0
      %8094 = vmatpush2.msra.mxu0 0.0
      %8095 = vmatprep.subr.mxu0 0.0
      %8096 = vmatpush2.msra.mxu0 0.0
      %8097 = vmatprep.subr.mxu0 0.0
      %8098 = vmatpush2.msra.mxu0 0.0
      %8099 = vmatprep.subr.mxu0 0.0
      %8100 = vmatpush2.msra.mxu0 0.0
      %8101 = vmatprep.subr.mxu0 0.0
      %8102 = vmatpush2.msra.mxu0 0.0
      %8103 = vmatprep.subr.mxu0 0.0
      %8104 = vmatpush2.msra.mxu0 0.0
      %8105 = vmatprep.subr.mxu0 0.0
      %8106 = vmatpush2.msra.mxu0 0.0
      %8107 = vmatprep.subr.mxu0 0.0
      %8108 = vmatpush2.msra.mxu0 0.0
      %8109 = vmatprep.subr.mxu0 0.0
      %8110 = vmatpush2.msra.mxu0 0.0
      %8111 = vmatprep.subr.mxu0 0.0
      %8112 = vmatpush2.msra.mxu0 0.0
      %8113 = vmatprep.subr.mxu0 0.0
      %8114 = vmatpush2.msra.mxu0 0.0
      %8115 = vmatprep.subr.mxu0 0.0
      %8116 = vmatpush2.msra.mxu0 0.0
      %8117 = vmatprep.subr.mxu0 0.0
      %8118 = vmatpush2.msra.mxu0 0.0
      %8119 = vmatprep.subr.mxu0 0.0
      %8120 = vmatpush2.msra.mxu0 0.0
      %8121 = vmatprep.subr.mxu0 0.0
      %8122 = vmatpush2.msra.mxu0 0.0
      %8123 = vmatprep.subr.mxu0 0.0
      %8124 = vmatpush2.msra.mxu0 0.0
      %8125 = vmatprep.mubr.f32.mxu0 0.0
      %8126 = vmatmul.mubr.f32.gmra.mxu0 %v8059
      %v8127 = vpop.f32.mrf.mxu0
      %v8128 = vadd.f32 0.0, %v8127
      %v8129 = vpop.f32.mrf.mxu0
      %8130 = vdwg.mxu0
      %v8131 = vmul.f32 %v8128, 0.001953125
      %v8133 = vsel %vm924, %v8131, 0
      %8135 = vmatprep.subr.mxu0 0.0
      %8136 = vmatpush1.msra.mxu0 0.0
      %8137 = vmatprep.subr.mxu0 0.0
      %8138 = vmatpush1.msra.mxu0 0.0
      %8139 = vmatprep.subr.mxu0 0.0
      %8140 = vmatpush1.msra.mxu0 0.0
      %8141 = vmatprep.subr.mxu0 0.0
      %8142 = vmatpush1.msra.mxu0 0.0
      %8143 = vmatprep.subr.mxu0 0.0
      %8144 = vmatpush1.msra.mxu0 0.0
      %8145 = vmatprep.subr.mxu0 0.0
      %8146 = vmatpush1.msra.mxu0 0.0
      %8147 = vmatprep.subr.mxu0 0.0
      %8148 = vmatpush1.msra.mxu0 0.0
      %8149 = vmatprep.subr.mxu0 0.0
      %8150 = vmatpush1.msra.mxu0 0.0
      %8151 = vmatprep.subr.mxu0 0.0
      %8152 = vmatpush1.msra.mxu0 0.0
      %8153 = vmatprep.subr.mxu0 0.0
      %8154 = vmatpush1.msra.mxu0 0.0
      %8155 = vmatprep.subr.mxu0 0.0
      %8156 = vmatpush1.msra.mxu0 0.0
      %8157 = vmatprep.subr.mxu0 0.0
      %8158 = vmatpush1.msra.mxu0 0.0
      %8159 = vmatprep.subr.mxu0 0.0
      %8160 = vmatpush1.msra.mxu0 0.0
      %8161 = vmatprep.subr.mxu0 0.0
      %8162 = vmatpush1.msra.mxu0 0.0
      %8163 = vmatprep.subr.mxu0 0.0
      %8164 = vmatpush1.msra.mxu0 0.0
      %8165 = vmatprep.subr.mxu0 0.0
      %8166 = vmatpush1.msra.mxu0 %v4095
      %8167 = vmatprep.subr.mxu0 0.0
      %8168 = vmatpush2.msra.mxu0 0.0
      %8169 = vmatprep.subr.mxu0 0.0
      %8170 = vmatpush2.msra.mxu0 0.0
      %8171 = vmatprep.subr.mxu0 0.0
      %8172 = vmatpush2.msra.mxu0 0.0
      %8173 = vmatprep.subr.mxu0 0.0
      %8174 = vmatpush2.msra.mxu0 0.0
      %8175 = vmatprep.subr.mxu0 0.0
      %8176 = vmatpush2.msra.mxu0 0.0
      %8177 = vmatprep.subr.mxu0 0.0
      %8178 = vmatpush2.msra.mxu0 0.0
      %8179 = vmatprep.subr.mxu0 0.0
      %8180 = vmatpush2.msra.mxu0 0.0
      %8181 = vmatprep.subr.mxu0 0.0
      %8182 = vmatpush2.msra.mxu0 0.0
      %8183 = vmatprep.subr.mxu0 0.0
      %8184 = vmatpush2.msra.mxu0 0.0
      %8185 = vmatprep.subr.mxu0 0.0
      %8186 = vmatpush2.msra.mxu0 0.0
      %8187 = vmatprep.subr.mxu0 0.0
      %8188 = vmatpush2.msra.mxu0 0.0
      %8189 = vmatprep.subr.mxu0 0.0
      %8190 = vmatpush2.msra.mxu0 0.0
      %8191 = vmatprep.subr.mxu0 0.0
      %8192 = vmatpush2.msra.mxu0 0.0
      %8193 = vmatprep.subr.mxu0 0.0
      %8194 = vmatpush2.msra.mxu0 0.0
      %8195 = vmatprep.subr.mxu0 0.0
      %8196 = vmatpush2.msra.mxu0 0.0
      %8197 = vmatprep.subr.mxu0 0.0
      %8198 = vmatpush2.msra.mxu0 0.0
      %8199 = vmatprep.mubr.f32.mxu0 0.0
      %8200 = vmatmul.mubr.f32.gmra.mxu0 %v8133
      %v8201 = vpop.f32.mrf.mxu0
      %v8202 = vadd.f32 0.0, %v8201
      %v8203 = vpop.f32.mrf.mxu0
      %8204 = vdwg.mxu0
      %v8205 = vlaneseq
      %v8206 = vshrl.u32 %v8205, 7
      %v8207 = vsub.s32 0, %v8206
      %v8208 = vrot.slane %v8202, %v8207
      %v8209 = vsub.f32 %v7907, %v8208
      %v8210 = vsub.f32 %v7908, %v8208
      %v8211 = vsub.f32 %v7909, %v8208
      %v8212 = vsub.f32 %v7910, %v8208
      %v8213 = vsub.f32 %v7911, %v8208
      %v8214 = vsub.f32 %v7912, %v8208
      %v8215 = vsub.f32 %v7913, %v8208
      %v8216 = vsub.f32 %v7914, %v8208
      %v8217 = vsub.f32 %v7915, %v8208
      %v8218 = vsub.f32 %v7916, %v8208
      %v8219 = vsub.f32 %v7917, %v8208
      %v8220 = vsub.f32 %v7918, %v8208
      %v8221 = vsub.f32 %v7919, %v8208
      %v8222 = vsub.f32 %v7920, %v8208
      %v8223 = vsub.f32 %v7921, %v8208
      %v8224 = vsub.f32 %v7922, %v8208
      %v8225 = vsub.f32 %v7923, %v8208
      %v8226 = vsub.f32 %v7924, %v8208
      %v8227 = vsub.f32 %v7925, %v8208
      %v8228 = vsub.f32 %v7926, %v8208
      %v8229 = vsub.f32 %v7927, %v8208
      %v8230 = vsub.f32 %v7928, %v8208
      %v8231 = vsub.f32 %v7929, %v8208
      %v8232 = vsub.f32 %v7930, %v8208
      %v8233 = vsub.f32 %v7931, %v8208
      %v8234 = vsub.f32 %v7932, %v8208
      %v8235 = vsub.f32 %v7933, %v8208
      %v8236 = vsub.f32 %v7934, %v8208
      %v8237 = vsub.f32 %v7935, %v8208
      %v8238 = vsub.f32 %v7936, %v8208
      %v8239 = vsub.f32 %v7937, %v8208
      %v8240 = vsub.f32 %v7938, %v8208
      %v8241 = vsub.f32 %v7939, %v8208
      %v8242 = vsub.f32 %v7940, %v8208
      %v8243 = vsub.f32 %v7941, %v8208
      %v8244 = vsub.f32 %v7942, %v8208
      %v8245 = vmul.f32 %v8209, %v8209
      %v8246 = vmul.f32 %v8210, %v8210
      %v8247 = vmul.f32 %v8211, %v8211
      %v8248 = vmul.f32 %v8212, %v8212
      %v8249 = vmul.f32 %v8213, %v8213
      %v8250 = vmul.f32 %v8214, %v8214
      %v8251 = vmul.f32 %v8215, %v8215
      %v8252 = vmul.f32 %v8216, %v8216
      %v8253 = vmul.f32 %v8217, %v8217
      %v8254 = vmul.f32 %v8218, %v8218
      %v8255 = vmul.f32 %v8219, %v8219
      %v8256 = vmul.f32 %v8220, %v8220
      %v8257 = vmul.f32 %v8221, %v8221
      %v8258 = vmul.f32 %v8222, %v8222
      %v8259 = vmul.f32 %v8223, %v8223
      %v8260 = vmul.f32 %v8224, %v8224
      %v8261 = vmul.f32 %v8225, %v8225
      %v8262 = vmul.f32 %v8226, %v8226
      %v8263 = vmul.f32 %v8227, %v8227
      %v8264 = vmul.f32 %v8228, %v8228
      %v8265 = vmul.f32 %v8229, %v8229
      %v8266 = vmul.f32 %v8230, %v8230
      %v8267 = vmul.f32 %v8231, %v8231
      %v8268 = vmul.f32 %v8232, %v8232
      %v8269 = vmul.f32 %v8233, %v8233
      %v8270 = vmul.f32 %v8234, %v8234
      %v8271 = vmul.f32 %v8235, %v8235
      %v8272 = vmul.f32 %v8236, %v8236
      %v8273 = vmul.f32 %v8237, %v8237
      %v8274 = vmul.f32 %v8238, %v8238
      %v8275 = vmul.f32 %v8239, %v8239
      %v8276 = vmul.f32 %v8240, %v8240
      %v8277 = vmul.f32 %v8241, %v8241
      %v8278 = vmul.f32 %v8242, %v8242
      %v8279 = vmul.f32 %v8243, %v8243
      %v8280 = vmul.f32 %v8244, %v8244
      %v8281 = vmul.f32 %v8245, %v3724
      %v8282 = vmul.f32 %v8246, %v3729
      %v8283 = vmul.f32 %v8247, %v3734
      %v8284 = vmul.f32 %v8248, %v3739
      %v8285 = vmul.f32 %v8249, %v3744
      %v8286 = vmul.f32 %v8250, %v3749
      %v8287 = vmul.f32 %v8251, %v3754
      %v8288 = vmul.f32 %v8252, %v3759
      %v8289 = vmul.f32 %v8253, %v3764
      %v8290 = vmul.f32 %v8254, %v3769
      %v8291 = vmul.f32 %v8255, %v3774
      %v8292 = vmul.f32 %v8256, %v3779
      %v8293 = vmul.f32 %v8257, %v3784
      %v8294 = vmul.f32 %v8258, %v3789
      %v8295 = vmul.f32 %v8259, %v3794
      %v8296 = vmul.f32 %v8260, %v3799
      %v8297 = vmul.f32 %v8261, %v3804
      %v8298 = vmul.f32 %v8262, %v3809
      %v8299 = vmul.f32 %v8263, %v3814
      %v8300 = vmul.f32 %v8264, %v3819
      %v8301 = vmul.f32 %v8265, %v3824
      %v8302 = vmul.f32 %v8266, %v3829
      %v8303 = vmul.f32 %v8267, %v3834
      %v8304 = vmul.f32 %v8268, %v3839
      %v8305 = vmul.f32 %v8269, %v3844
      %v8306 = vmul.f32 %v8270, %v3849
      %v8307 = vmul.f32 %v8271, %v3854
      %v8308 = vmul.f32 %v8272, %v3859
      %v8309 = vmul.f32 %v8273, %v3864
      %v8310 = vmul.f32 %v8274, %v3869
      %v8311 = vmul.f32 %v8275, %v3874
      %v8312 = vmul.f32 %v8276, %v3879
      %v8313 = vmul.f32 %v8277, %v3884
      %v8314 = vmul.f32 %v8278, %v3889
      %v8315 = vmul.f32 %v8279, %v3894
      %v8316 = vmul.f32 %v8280, %v3899
      %v8317 = vsel %vm3937, %v8281, 0.0
      %v8318 = vsel %vm3937, %v8282, 0.0
      %v8319 = vadd.f32 %v8317, %v8318
      %v8320 = vsel %vm3937, %v8283, 0.0
      %v8321 = vadd.f32 %v8319, %v8320
      %v8322 = vsel %vm3937, %v8284, 0.0
      %v8323 = vadd.f32 %v8321, %v8322
      %v8324 = vsel %vm3937, %v8285, 0.0
      %v8325 = vadd.f32 %v8323, %v8324
      %v8326 = vsel %vm3937, %v8286, 0.0
      %v8327 = vadd.f32 %v8325, %v8326
      %v8328 = vsel %vm3937, %v8287, 0.0
      %v8329 = vadd.f32 %v8327, %v8328
      %v8330 = vsel %vm3937, %v8288, 0.0
      %v8331 = vadd.f32 %v8329, %v8330
      %v8332 = vsel %vm3937, %v8289, 0.0
      %v8333 = vadd.f32 %v8331, %v8332
      %v8334 = vsel %vm3937, %v8290, 0.0
      %v8335 = vadd.f32 %v8333, %v8334
      %v8336 = vsel %vm3937, %v8291, 0.0
      %v8337 = vadd.f32 %v8335, %v8336
      %v8338 = vsel %vm3937, %v8292, 0.0
      %v8339 = vadd.f32 %v8337, %v8338
      %v8340 = vsel %vm3937, %v8293, 0.0
      %v8341 = vadd.f32 %v8339, %v8340
      %v8342 = vsel %vm3937, %v8294, 0.0
      %v8343 = vadd.f32 %v8341, %v8342
      %v8344 = vsel %vm3937, %v8295, 0.0
      %v8345 = vadd.f32 %v8343, %v8344
      %v8346 = vsel %vm3937, %v8296, 0.0
      %v8347 = vadd.f32 %v8345, %v8346
      %v8348 = vsel %vm3937, %v8297, 0.0
      %v8349 = vadd.f32 %v8347, %v8348
      %v8350 = vsel %vm3937, %v8298, 0.0
      %v8351 = vadd.f32 %v8349, %v8350
      %v8352 = vsel %vm3937, %v8299, 0.0
      %v8353 = vadd.f32 %v8351, %v8352
      %v8354 = vsel %vm3937, %v8300, 0.0
      %v8355 = vadd.f32 %v8353, %v8354
      %v8356 = vsel %vm3937, %v8301, 0.0
      %v8357 = vadd.f32 %v8355, %v8356
      %v8358 = vsel %vm3937, %v8302, 0.0
      %v8359 = vadd.f32 %v8357, %v8358
      %v8360 = vsel %vm3937, %v8303, 0.0
      %v8361 = vadd.f32 %v8359, %v8360
      %v8362 = vsel %vm3937, %v8304, 0.0
      %v8363 = vadd.f32 %v8361, %v8362
      %v8364 = vsel %vm3937, %v8305, 0.0
      %v8365 = vadd.f32 %v8363, %v8364
      %v8366 = vsel %vm3937, %v8306, 0.0
      %v8367 = vadd.f32 %v8365, %v8366
      %v8368 = vsel %vm3937, %v8307, 0.0
      %v8369 = vadd.f32 %v8367, %v8368
      %v8370 = vsel %vm3937, %v8308, 0.0
      %v8371 = vadd.f32 %v8369, %v8370
      %v8372 = vsel %vm3937, %v8309, 0.0
      %v8373 = vadd.f32 %v8371, %v8372
      %v8374 = vsel %vm3937, %v8310, 0.0
      %v8375 = vadd.f32 %v8373, %v8374
      %v8376 = vsel %vm3937, %v8311, 0.0
      %v8377 = vadd.f32 %v8375, %v8376
      %v8378 = vsel %vm3937, %v8312, 0.0
      %v8379 = vadd.f32 %v8377, %v8378
      %v8380 = vsel %vm3937, %v8313, 0.0
      %v8381 = vadd.f32 %v8379, %v8380
      %v8382 = vsel %vm3937, %v8314, 0.0
      %v8383 = vadd.f32 %v8381, %v8382
      %v8384 = vsel %vm3937, %v8315, 0.0
      %v8385 = vadd.f32 %v8383, %v8384
      %v8386 = vsel %vm4007, %v8316, 0.0
      %v8387 = vadd.f32 %v8385, %v8386
      %v8388 = vrot.slane %v8387, 4
      %v8389 = vadd.f32 %v8387, %v8388
      %v8390 = vrot.slane %v8389, 2
      %v8391 = vadd.f32 %v8389, %v8390
      %v8392 = vrot.slane %v8391, 1
      %v8393 = vadd.f32 %v8391, %v8392
      %v8395 = vsel %vm3937, %v8393, 0
      %8397 = vmatprep.subr.mxu0 0.0
      %8398 = vmatpush1.msra.mxu0 0.0
      %8399 = vmatprep.subr.mxu0 0.0
      %8400 = vmatpush1.msra.mxu0 0.0
      %8401 = vmatprep.subr.mxu0 0.0
      %8402 = vmatpush1.msra.mxu0 0.0
      %8403 = vmatprep.subr.mxu0 0.0
      %8404 = vmatpush1.msra.mxu0 0.0
      %8405 = vmatprep.subr.mxu0 0.0
      %8406 = vmatpush1.msra.mxu0 0.0
      %8407 = vmatprep.subr.mxu0 0.0
      %8408 = vmatpush1.msra.mxu0 0.0
      %8409 = vmatprep.subr.mxu0 0.0
      %8410 = vmatpush1.msra.mxu0 0.0
      %8411 = vmatprep.subr.mxu0 0.0
      %8412 = vmatpush1.msra.mxu0 0.0
      %8413 = vmatprep.subr.mxu0 0.0
      %8414 = vmatpush1.msra.mxu0 0.0
      %8415 = vmatprep.subr.mxu0 0.0
      %8416 = vmatpush1.msra.mxu0 0.0
      %8417 = vmatprep.subr.mxu0 0.0
      %8418 = vmatpush1.msra.mxu0 0.0
      %8419 = vmatprep.subr.mxu0 0.0
      %8420 = vmatpush1.msra.mxu0 0.0
      %8421 = vmatprep.subr.mxu0 0.0
      %8422 = vmatpush1.msra.mxu0 0.0
      %8423 = vmatprep.subr.mxu0 0.0
      %8424 = vmatpush1.msra.mxu0 0.0
      %8425 = vmatprep.subr.mxu0 0.0
      %8426 = vmatpush1.msra.mxu0 0.0
      %8427 = vmatprep.subr.mxu0 0.0
      %8428 = vmatpush1.msra.mxu0 %v654
      %8429 = vmatprep.subr.mxu0 0.0
      %8430 = vmatpush2.msra.mxu0 0.0
      %8431 = vmatprep.subr.mxu0 0.0
      %8432 = vmatpush2.msra.mxu0 0.0
      %8433 = vmatprep.subr.mxu0 0.0
      %8434 = vmatpush2.msra.mxu0 0.0
      %8435 = vmatprep.subr.mxu0 0.0
      %8436 = vmatpush2.msra.mxu0 0.0
      %8437 = vmatprep.subr.mxu0 0.0
      %8438 = vmatpush2.msra.mxu0 0.0
      %8439 = vmatprep.subr.mxu0 0.0
      %8440 = vmatpush2.msra.mxu0 0.0
      %8441 = vmatprep.subr.mxu0 0.0
      %8442 = vmatpush2.msra.mxu0 0.0
      %8443 = vmatprep.subr.mxu0 0.0
      %8444 = vmatpush2.msra.mxu0 0.0
      %8445 = vmatprep.subr.mxu0 0.0
      %8446 = vmatpush2.msra.mxu0 0.0
      %8447 = vmatprep.subr.mxu0 0.0
      %8448 = vmatpush2.msra.mxu0 0.0
      %8449 = vmatprep.subr.mxu0 0.0
      %8450 = vmatpush2.msra.mxu0 0.0
      %8451 = vmatprep.subr.mxu0 0.0
      %8452 = vmatpush2.msra.mxu0 0.0
      %8453 = vmatprep.subr.mxu0 0.0
      %8454 = vmatpush2.msra.mxu0 0.0
      %8455 = vmatprep.subr.mxu0 0.0
      %8456 = vmatpush2.msra.mxu0 0.0
      %8457 = vmatprep.subr.mxu0 0.0
      %8458 = vmatpush2.msra.mxu0 0.0
      %8459 = vmatprep.subr.mxu0 0.0
      %8460 = vmatpush2.msra.mxu0 0.0
      %8461 = vmatprep.mubr.f32.mxu0 0.0
      %8462 = vmatmul.mubr.f32.gmra.mxu0 %v8395
      %v8463 = vpop.f32.mrf.mxu0
      %v8464 = vadd.f32 0.0, %v8463
      %v8465 = vpop.f32.mrf.mxu0
      %8466 = vdwg.mxu0
      %v8467 = vmul.f32 %v8464, 0.001953125
      %v8469 = vsel %vm924, %v8467, 0
      %8471 = vmatprep.subr.mxu0 0.0
      %8472 = vmatpush1.msra.mxu0 0.0
      %8473 = vmatprep.subr.mxu0 0.0
      %8474 = vmatpush1.msra.mxu0 0.0
      %8475 = vmatprep.subr.mxu0 0.0
      %8476 = vmatpush1.msra.mxu0 0.0
      %8477 = vmatprep.subr.mxu0 0.0
      %8478 = vmatpush1.msra.mxu0 0.0
      %8479 = vmatprep.subr.mxu0 0.0
      %8480 = vmatpush1.msra.mxu0 0.0
      %8481 = vmatprep.subr.mxu0 0.0
      %8482 = vmatpush1.msra.mxu0 0.0
      %8483 = vmatprep.subr.mxu0 0.0
      %8484 = vmatpush1.msra.mxu0 0.0
      %8485 = vmatprep.subr.mxu0 0.0
      %8486 = vmatpush1.msra.mxu0 0.0
      %8487 = vmatprep.subr.mxu0 0.0
      %8488 = vmatpush1.msra.mxu0 0.0
      %8489 = vmatprep.subr.mxu0 0.0
      %8490 = vmatpush1.msra.mxu0 0.0
      %8491 = vmatprep.subr.mxu0 0.0
      %8492 = vmatpush1.msra.mxu0 0.0
      %8493 = vmatprep.subr.mxu0 0.0
      %8494 = vmatpush1.msra.mxu0 0.0
      %8495 = vmatprep.subr.mxu0 0.0
      %8496 = vmatpush1.msra.mxu0 0.0
      %8497 = vmatprep.subr.mxu0 0.0
      %8498 = vmatpush1.msra.mxu0 0.0
      %8499 = vmatprep.subr.mxu0 0.0
      %8500 = vmatpush1.msra.mxu0 0.0
      %8501 = vmatprep.subr.mxu0 0.0
      %8502 = vmatpush1.msra.mxu0 %v4095
      %8503 = vmatprep.subr.mxu0 0.0
      %8504 = vmatpush2.msra.mxu0 0.0
      %8505 = vmatprep.subr.mxu0 0.0
      %8506 = vmatpush2.msra.mxu0 0.0
      %8507 = vmatprep.subr.mxu0 0.0
      %8508 = vmatpush2.msra.mxu0 0.0
      %8509 = vmatprep.subr.mxu0 0.0
      %8510 = vmatpush2.msra.mxu0 0.0
      %8511 = vmatprep.subr.mxu0 0.0
      %8512 = vmatpush2.msra.mxu0 0.0
      %8513 = vmatprep.subr.mxu0 0.0
      %8514 = vmatpush2.msra.mxu0 0.0
      %8515 = vmatprep.subr.mxu0 0.0
      %8516 = vmatpush2.msra.mxu0 0.0
      %8517 = vmatprep.subr.mxu0 0.0
      %8518 = vmatpush2.msra.mxu0 0.0
      %8519 = vmatprep.subr.mxu0 0.0
      %8520 = vmatpush2.msra.mxu0 0.0
      %8521 = vmatprep.subr.mxu0 0.0
      %8522 = vmatpush2.msra.mxu0 0.0
      %8523 = vmatprep.subr.mxu0 0.0
      %8524 = vmatpush2.msra.mxu0 0.0
      %8525 = vmatprep.subr.mxu0 0.0
      %8526 = vmatpush2.msra.mxu0 0.0
      %8527 = vmatprep.subr.mxu0 0.0
      %8528 = vmatpush2.msra.mxu0 0.0
      %8529 = vmatprep.subr.mxu0 0.0
      %8530 = vmatpush2.msra.mxu0 0.0
      %8531 = vmatprep.subr.mxu0 0.0
      %8532 = vmatpush2.msra.mxu0 0.0
      %8533 = vmatprep.subr.mxu0 0.0
      %8534 = vmatpush2.msra.mxu0 0.0
      %8535 = vmatprep.mubr.f32.mxu0 0.0
      %8536 = vmatmul.mubr.f32.gmra.mxu0 %v8469
      %v8537 = vpop.f32.mrf.mxu0
      %v8538 = vadd.f32 1e-05, %v8537
      %v8539 = vpop.f32.mrf.mxu0
      %8540 = vdwg.mxu0
      %v8541 = vrsqrt.pop %v8538
      %v8542 = vlaneseq
      %v8543 = vshrl.u32 %v8542, 7
      %v8544 = vsub.s32 0, %v8543
      %v8545 = vrot.slane %v8541, %v8544
      %v8546 = vmul.f32 %v8209, %v8545
      %v8547 = vmul.f32 %v8210, %v8545
      %v8548 = vmul.f32 %v8211, %v8545
      %v8549 = vmul.f32 %v8212, %v8545
      %v8550 = vmul.f32 %v8213, %v8545
      %v8551 = vmul.f32 %v8214, %v8545
      %v8552 = vmul.f32 %v8215, %v8545
      %v8553 = vmul.f32 %v8216, %v8545
      %v8554 = vmul.f32 %v8217, %v8545
      %v8555 = vmul.f32 %v8218, %v8545
      %v8556 = vmul.f32 %v8219, %v8545
      %v8557 = vmul.f32 %v8220, %v8545
      %v8558 = vmul.f32 %v8221, %v8545
      %v8559 = vmul.f32 %v8222, %v8545
      %v8560 = vmul.f32 %v8223, %v8545
      %v8561 = vmul.f32 %v8224, %v8545
      %v8562 = vmul.f32 %v8225, %v8545
      %v8563 = vmul.f32 %v8226, %v8545
      %v8564 = vmul.f32 %v8227, %v8545
      %v8565 = vmul.f32 %v8228, %v8545
      %v8566 = vmul.f32 %v8229, %v8545
      %v8567 = vmul.f32 %v8230, %v8545
      %v8568 = vmul.f32 %v8231, %v8545
      %v8569 = vmul.f32 %v8232, %v8545
      %v8570 = vmul.f32 %v8233, %v8545
      %v8571 = vmul.f32 %v8234, %v8545
      %v8572 = vmul.f32 %v8235, %v8545
      %v8573 = vmul.f32 %v8236, %v8545
      %v8574 = vmul.f32 %v8237, %v8545
      %v8575 = vmul.f32 %v8238, %v8545
      %v8576 = vmul.f32 %v8239, %v8545
      %v8577 = vmul.f32 %v8240, %v8545
      %v8578 = vmul.f32 %v8241, %v8545
      %v8579 = vmul.f32 %v8242, %v8545
      %v8580 = vmul.f32 %v8243, %v8545
      %v8581 = vmul.f32 %v8244, %v8545
      %v8583 = vlaneseq
      %v8584 = vshrl.u32 %v8583, 7
      %v8585 = vsub.s32 0, %v8584
      %v8586 = vrot.slane %v7943, %v8585
      %v8588 = vmul.f32 %v8546, %v8586
      %v8589 = vmul.f32 %v8547, %v8586
      %v8590 = vmul.f32 %v8548, %v8586
      %v8591 = vmul.f32 %v8549, %v8586
      %v8592 = vmul.f32 %v8550, %v8586
      %v8593 = vmul.f32 %v8551, %v8586
      %v8594 = vmul.f32 %v8552, %v8586
      %v8595 = vmul.f32 %v8553, %v8586
      %v8596 = vmul.f32 %v8554, %v8586
      %v8597 = vmul.f32 %v8555, %v8586
      %v8598 = vmul.f32 %v8556, %v8586
      %v8599 = vmul.f32 %v8557, %v8586
      %v8600 = vmul.f32 %v8558, %v8586
      %v8601 = vmul.f32 %v8559, %v8586
      %v8602 = vmul.f32 %v8560, %v8586
      %v8603 = vmul.f32 %v8561, %v8586
      %v8604 = vmul.f32 %v8562, %v8586
      %v8605 = vmul.f32 %v8563, %v8586
      %v8606 = vmul.f32 %v8564, %v8586
      %v8607 = vmul.f32 %v8565, %v8586
      %v8608 = vmul.f32 %v8566, %v8586
      %v8609 = vmul.f32 %v8567, %v8586
      %v8610 = vmul.f32 %v8568, %v8586
      %v8611 = vmul.f32 %v8569, %v8586
      %v8612 = vmul.f32 %v8570, %v8586
      %v8613 = vmul.f32 %v8571, %v8586
      %v8614 = vmul.f32 %v8572, %v8586
      %v8615 = vmul.f32 %v8573, %v8586
      %v8616 = vmul.f32 %v8574, %v8586
      %v8617 = vmul.f32 %v8575, %v8586
      %v8618 = vmul.f32 %v8576, %v8586
      %v8619 = vmul.f32 %v8577, %v8586
      %v8620 = vmul.f32 %v8578, %v8586
      %v8621 = vmul.f32 %v8579, %v8586
      %v8622 = vmul.f32 %v8580, %v8586
      %v8623 = vmul.f32 %v8581, %v8586
      %v8625 = vlaneseq
      %v8626 = vshrl.u32 %v8625, 7
      %v8627 = vsub.s32 0, %v8626
      %v8628 = vrot.slane %v7944, %v8627
      %v8630 = vadd.f32 %v8588, %v8628
      %v8631 = vadd.f32 %v8589, %v8628
      %v8632 = vadd.f32 %v8590, %v8628
      %v8633 = vadd.f32 %v8591, %v8628
      %v8634 = vadd.f32 %v8592, %v8628
      %v8635 = vadd.f32 %v8593, %v8628
      %v8636 = vadd.f32 %v8594, %v8628
      %v8637 = vadd.f32 %v8595, %v8628
      %v8638 = vadd.f32 %v8596, %v8628
      %v8639 = vadd.f32 %v8597, %v8628
      %v8640 = vadd.f32 %v8598, %v8628
      %v8641 = vadd.f32 %v8599, %v8628
      %v8642 = vadd.f32 %v8600, %v8628
      %v8643 = vadd.f32 %v8601, %v8628
      %v8644 = vadd.f32 %v8602, %v8628
      %v8645 = vadd.f32 %v8603, %v8628
      %v8646 = vadd.f32 %v8604, %v8628
      %v8647 = vadd.f32 %v8605, %v8628
      %v8648 = vadd.f32 %v8606, %v8628
      %v8649 = vadd.f32 %v8607, %v8628
      %v8650 = vadd.f32 %v8608, %v8628
      %v8651 = vadd.f32 %v8609, %v8628
      %v8652 = vadd.f32 %v8610, %v8628
      %v8653 = vadd.f32 %v8611, %v8628
      %v8654 = vadd.f32 %v8612, %v8628
      %v8655 = vadd.f32 %v8613, %v8628
      %v8656 = vadd.f32 %v8614, %v8628
      %v8657 = vadd.f32 %v8615, %v8628
      %v8658 = vadd.f32 %v8616, %v8628
      %v8659 = vadd.f32 %v8617, %v8628
      %v8660 = vadd.f32 %v8618, %v8628
      %v8661 = vadd.f32 %v8619, %v8628
      %v8662 = vadd.f32 %v8620, %v8628
      %v8663 = vadd.f32 %v8621, %v8628
      %v8664 = vadd.f32 %v8622, %v8628
      %v8665 = vadd.f32 %v8623, %v8628
      %v8666 = vsub.f32 0.0, %v8630
      %v8667 = vsub.f32 0.0, %v8631
      %v8668 = vsub.f32 0.0, %v8632
      %v8669 = vsub.f32 0.0, %v8633
      %v8670 = vsub.f32 0.0, %v8634
      %v8671 = vsub.f32 0.0, %v8635
      %v8672 = vsub.f32 0.0, %v8636
      %v8673 = vsub.f32 0.0, %v8637
      %v8674 = vsub.f32 0.0, %v8638
      %v8675 = vsub.f32 0.0, %v8639
      %v8676 = vsub.f32 0.0, %v8640
      %v8677 = vsub.f32 0.0, %v8641
      %v8678 = vsub.f32 0.0, %v8642
      %v8679 = vsub.f32 0.0, %v8643
      %v8680 = vsub.f32 0.0, %v8644
      %v8681 = vsub.f32 0.0, %v8645
      %v8682 = vsub.f32 0.0, %v8646
      %v8683 = vsub.f32 0.0, %v8647
      %v8684 = vsub.f32 0.0, %v8648
      %v8685 = vsub.f32 0.0, %v8649
      %v8686 = vsub.f32 0.0, %v8650
      %v8687 = vsub.f32 0.0, %v8651
      %v8688 = vsub.f32 0.0, %v8652
      %v8689 = vsub.f32 0.0, %v8653
      %v8690 = vsub.f32 0.0, %v8654
      %v8691 = vsub.f32 0.0, %v8655
      %v8692 = vsub.f32 0.0, %v8656
      %v8693 = vsub.f32 0.0, %v8657
      %v8694 = vsub.f32 0.0, %v8658
      %v8695 = vsub.f32 0.0, %v8659
      %v8696 = vsub.f32 0.0, %v8660
      %v8697 = vsub.f32 0.0, %v8661
      %v8698 = vsub.f32 0.0, %v8662
      %v8699 = vsub.f32 0.0, %v8663
      %v8700 = vsub.f32 0.0, %v8664
      %v8701 = vsub.f32 0.0, %v8665
      %v8702 = vmul.f32 %v8666, 1.442695
      %v8703 = vpow.pop %v8702
      %v8704 = vmul.f32 %v8667, 1.442695
      %v8705 = vpow.pop %v8704
      %v8706 = vmul.f32 %v8668, 1.442695
      %v8707 = vpow.pop %v8706
      %v8708 = vmul.f32 %v8669, 1.442695
      %v8709 = vpow.pop %v8708
      %v8710 = vmul.f32 %v8670, 1.442695
      %v8711 = vpow.pop %v8710
      %v8712 = vmul.f32 %v8671, 1.442695
      %v8713 = vpow.pop %v8712
      %v8714 = vmul.f32 %v8672, 1.442695
      %v8715 = vpow.pop %v8714
      %v8716 = vmul.f32 %v8673, 1.442695
      %v8717 = vpow.pop %v8716
      %v8718 = vmul.f32 %v8674, 1.442695
      %v8719 = vpow.pop %v8718
      %v8720 = vmul.f32 %v8675, 1.442695
      %v8721 = vpow.pop %v8720
      %v8722 = vmul.f32 %v8676, 1.442695
      %v8723 = vpow.pop %v8722
      %v8724 = vmul.f32 %v8677, 1.442695
      %v8725 = vpow.pop %v8724
      %v8726 = vmul.f32 %v8678, 1.442695
      %v8727 = vpow.pop %v8726
      %v8728 = vmul.f32 %v8679, 1.442695
      %v8729 = vpow.pop %v8728
      %v8730 = vmul.f32 %v8680, 1.442695
      %v8731 = vpow.pop %v8730
      %v8732 = vmul.f32 %v8681, 1.442695
      %v8733 = vpow.pop %v8732
      %v8734 = vmul.f32 %v8682, 1.442695
      %v8735 = vpow.pop %v8734
      %v8736 = vmul.f32 %v8683, 1.442695
      %v8737 = vpow.pop %v8736
      %v8738 = vmul.f32 %v8684, 1.442695
      %v8739 = vpow.pop %v8738
      %v8740 = vmul.f32 %v8685, 1.442695
      %v8741 = vpow.pop %v8740
      %v8742 = vmul.f32 %v8686, 1.442695
      %v8743 = vpow.pop %v8742
      %v8744 = vmul.f32 %v8687, 1.442695
      %v8745 = vpow.pop %v8744
      %v8746 = vmul.f32 %v8688, 1.442695
      %v8747 = vpow.pop %v8746
      %v8748 = vmul.f32 %v8689, 1.442695
      %v8749 = vpow.pop %v8748
      %v8750 = vmul.f32 %v8690, 1.442695
      %v8751 = vpow.pop %v8750
      %v8752 = vmul.f32 %v8691, 1.442695
      %v8753 = vpow.pop %v8752
      %v8754 = vmul.f32 %v8692, 1.442695
      %v8755 = vpow.pop %v8754
      %v8756 = vmul.f32 %v8693, 1.442695
      %v8757 = vpow.pop %v8756
      %v8758 = vmul.f32 %v8694, 1.442695
      %v8759 = vpow.pop %v8758
      %v8760 = vmul.f32 %v8695, 1.442695
      %v8761 = vpow.pop %v8760
      %v8762 = vmul.f32 %v8696, 1.442695
      %v8763 = vpow.pop %v8762
      %v8764 = vmul.f32 %v8697, 1.442695
      %v8765 = vpow.pop %v8764
      %v8766 = vmul.f32 %v8698, 1.442695
      %v8767 = vpow.pop %v8766
      %v8768 = vmul.f32 %v8699, 1.442695
      %v8769 = vpow.pop %v8768
      %v8770 = vmul.f32 %v8700, 1.442695
      %v8771 = vpow.pop %v8770
      %v8772 = vmul.f32 %v8701, 1.442695
      %v8773 = vpow.pop %v8772
      %v8774 = vadd.f32 %v8703, 1.0
      %v8775 = vadd.f32 %v8705, 1.0
      %v8776 = vadd.f32 %v8707, 1.0
      %v8777 = vadd.f32 %v8709, 1.0
      %v8778 = vadd.f32 %v8711, 1.0
      %v8779 = vadd.f32 %v8713, 1.0
      %v8780 = vadd.f32 %v8715, 1.0
      %v8781 = vadd.f32 %v8717, 1.0
      %v8782 = vadd.f32 %v8719, 1.0
      %v8783 = vadd.f32 %v8721, 1.0
      %v8784 = vadd.f32 %v8723, 1.0
      %v8785 = vadd.f32 %v8725, 1.0
      %v8786 = vadd.f32 %v8727, 1.0
      %v8787 = vadd.f32 %v8729, 1.0
      %v8788 = vadd.f32 %v8731, 1.0
      %v8789 = vadd.f32 %v8733, 1.0
      %v8790 = vadd.f32 %v8735, 1.0
      %v8791 = vadd.f32 %v8737, 1.0
      %v8792 = vadd.f32 %v8739, 1.0
      %v8793 = vadd.f32 %v8741, 1.0
      %v8794 = vadd.f32 %v8743, 1.0
      %v8795 = vadd.f32 %v8745, 1.0
      %v8796 = vadd.f32 %v8747, 1.0
      %v8797 = vadd.f32 %v8749, 1.0
      %v8798 = vadd.f32 %v8751, 1.0
      %v8799 = vadd.f32 %v8753, 1.0
      %v8800 = vadd.f32 %v8755, 1.0
      %v8801 = vadd.f32 %v8757, 1.0
      %v8802 = vadd.f32 %v8759, 1.0
      %v8803 = vadd.f32 %v8761, 1.0
      %v8804 = vadd.f32 %v8763, 1.0
      %v8805 = vadd.f32 %v8765, 1.0
      %v8806 = vadd.f32 %v8767, 1.0
      %v8807 = vadd.f32 %v8769, 1.0
      %v8808 = vadd.f32 %v8771, 1.0
      %v8809 = vadd.f32 %v8773, 1.0
      %v8810 = vrcp.pop %v8774
      %v8811 = vrcp.pop %v8775
      %v8812 = vrcp.pop %v8776
      %v8813 = vrcp.pop %v8777
      %v8814 = vrcp.pop %v8778
      %v8815 = vrcp.pop %v8779
      %v8816 = vrcp.pop %v8780
      %v8817 = vrcp.pop %v8781
      %v8818 = vrcp.pop %v8782
      %v8819 = vrcp.pop %v8783
      %v8820 = vrcp.pop %v8784
      %v8821 = vrcp.pop %v8785
      %v8822 = vrcp.pop %v8786
      %v8823 = vrcp.pop %v8787
      %v8824 = vrcp.pop %v8788
      %v8825 = vrcp.pop %v8789
      %v8826 = vrcp.pop %v8790
      %v8827 = vrcp.pop %v8791
      %v8828 = vrcp.pop %v8792
      %v8829 = vrcp.pop %v8793
      %v8830 = vrcp.pop %v8794
      %v8831 = vrcp.pop %v8795
      %v8832 = vrcp.pop %v8796
      %v8833 = vrcp.pop %v8797
      %v8834 = vrcp.pop %v8798
      %v8835 = vrcp.pop %v8799
      %v8836 = vrcp.pop %v8800
      %v8837 = vrcp.pop %v8801
      %v8838 = vrcp.pop %v8802
      %v8839 = vrcp.pop %v8803
      %v8840 = vrcp.pop %v8804
      %v8841 = vrcp.pop %v8805
      %v8842 = vrcp.pop %v8806
      %v8843 = vrcp.pop %v8807
      %v8844 = vrcp.pop %v8808
      %v8845 = vrcp.pop %v8809
      %v8846 = vmul.f32 %v8630, %v8810
      %v8847 = vmul.f32 %v8631, %v8811
      %v8848 = vmul.f32 %v8632, %v8812
      %v8849 = vmul.f32 %v8633, %v8813
      %v8850 = vmul.f32 %v8634, %v8814
      %v8851 = vmul.f32 %v8635, %v8815
      %v8852 = vmul.f32 %v8636, %v8816
      %v8853 = vmul.f32 %v8637, %v8817
      %v8854 = vmul.f32 %v8638, %v8818
      %v8855 = vmul.f32 %v8639, %v8819
      %v8856 = vmul.f32 %v8640, %v8820
      %v8857 = vmul.f32 %v8641, %v8821
      %v8858 = vmul.f32 %v8642, %v8822
      %v8859 = vmul.f32 %v8643, %v8823
      %v8860 = vmul.f32 %v8644, %v8824
      %v8861 = vmul.f32 %v8645, %v8825
      %v8862 = vmul.f32 %v8646, %v8826
      %v8863 = vmul.f32 %v8647, %v8827
      %v8864 = vmul.f32 %v8648, %v8828
      %v8865 = vmul.f32 %v8649, %v8829
      %v8866 = vmul.f32 %v8650, %v8830
      %v8867 = vmul.f32 %v8651, %v8831
      %v8868 = vmul.f32 %v8652, %v8832
      %v8869 = vmul.f32 %v8653, %v8833
      %v8870 = vmul.f32 %v8654, %v8834
      %v8871 = vmul.f32 %v8655, %v8835
      %v8872 = vmul.f32 %v8656, %v8836
      %v8873 = vmul.f32 %v8657, %v8837
      %v8874 = vmul.f32 %v8658, %v8838
      %v8875 = vmul.f32 %v8659, %v8839
      %v8876 = vmul.f32 %v8660, %v8840
      %v8877 = vmul.f32 %v8661, %v8841
      %v8878 = vmul.f32 %v8662, %v8842
      %v8879 = vmul.f32 %v8663, %v8843
      %v8880 = vmul.f32 %v8664, %v8844
      %v8881 = vmul.f32 %v8665, %v8845
      %v8882 = vld [vmem:[%s611 + $0x13] sm:$0xff]
      %v8883 = vld [vmem:[%s611 + $0x1b] sm:$0xff]
      %v8884 = vld [vmem:[%s611 + $0x23] sm:$0xff]
      %v8885 = vld [vmem:[%s611 + $0x2b] sm:$0xff]
      %v8886 = vld [vmem:[%s611 + $0x33] sm:$0xff]
      %v8887 = vld [vmem:[%s611 + $0x3b] sm:$0xff]
      %v8888 = vld [vmem:[%s611 + $0x43] sm:$0xff]
      %v8889 = vld [vmem:[%s611 + $0x4b] sm:$0xff]
      %v8890 = vld [vmem:[%s611 + $0x53] sm:$0xff]
      %v8891 = vld [vmem:[%s611 + $0x5b] sm:$0xff]
      %v8892 = vld [vmem:[%s611 + $0x63] sm:$0xff]
      %v8893 = vld [vmem:[%s611 + $0x6b] sm:$0xff]
      %v8894 = vld [vmem:[%s611 + $0x73] sm:$0xff]
      %v8895 = vld [vmem:[%s611 + $0x7b] sm:$0xff]
      %v8896 = vld [vmem:[%s611 + $0x83] sm:$0xff]
      %v8897 = vld [vmem:[%s611 + $0x8b] sm:$0xff]
      %v8898 = vld [vmem:[%s611 + $0x93] sm:$0xff]
      %v8899 = vld [vmem:[%s611 + $0x9b] sm:$0xff]
      %v8900 = vld [vmem:[%s611 + $0xa3] sm:$0xff]
      %v8901 = vld [vmem:[%s611 + $0xab] sm:$0xff]
      %v8902 = vld [vmem:[%s611 + $0xb3] sm:$0xff]
      %v8903 = vld [vmem:[%s611 + $0xbb] sm:$0xff]
      %v8904 = vld [vmem:[%s611 + $0xc3] sm:$0xff]
      %v8905 = vld [vmem:[%s611 + $0xcb] sm:$0xff]
      %v8906 = vld [vmem:[%s611 + $0xd3] sm:$0xff]
      %v8907 = vld [vmem:[%s611 + $0xdb] sm:$0xff]
      %v8908 = vld [vmem:[%s611 + $0xe3] sm:$0xff]
      %v8909 = vld [vmem:[%s611 + $0xeb] sm:$0xff]
      %v8910 = vld [vmem:[%s611 + $0xf3] sm:$0xff]
      %v8911 = vld [vmem:[%s611 + $0xfb] sm:$0xff]
      %v8912 = vld [vmem:[%s611 + $0x103] sm:$0xff]
      %v8913 = vld [vmem:[%s611 + $0x10b] sm:$0xff]
      %v8914 = vld [vmem:[%s611 + $0x113] sm:$0xff]
      %v8915 = vld [vmem:[%s611 + $0x11b] sm:$0xff]
      %v8916 = vld [vmem:[%s611 + $0x123] sm:$0xff]
      %v8917 = vld [vmem:[%s611 + $0x12b] sm:$0x3f]
      %v8918 = vpack.c.bf16 %v8883, %v8882
      %v8919 = vpack.c.bf16 %v8885, %v8884
      %v8920 = vpack.c.bf16 %v8887, %v8886
      %v8921 = vpack.c.bf16 %v8889, %v8888
      %v8922 = vpack.c.bf16 %v8891, %v8890
      %v8923 = vpack.c.bf16 %v8893, %v8892
      %v8924 = vpack.c.bf16 %v8895, %v8894
      %v8925 = vpack.c.bf16 %v8897, %v8896
      %v8926 = vpack.c.bf16 %v8899, %v8898
      %v8927 = vpack.c.bf16 %v8901, %v8900
      %v8928 = vpack.c.bf16 %v8903, %v8902
      %v8929 = vpack.c.bf16 %v8905, %v8904
      %v8930 = vpack.c.bf16 %v8907, %v8906
      %v8931 = vpack.c.bf16 %v8909, %v8908
      %v8932 = vpack.c.bf16 %v8911, %v8910
      %v8933 = vpack.c.bf16 %v8913, %v8912
      %v8934 = vpack.c.bf16 %v8915, %v8914
      %v8935 = vpack.c.bf16 %v8917, %v8916
      %v8936 = vld [vmem:[%s17] sm:$0x3]
      %v8937 = vld [vmem:[%s18] sm:$0x1]
      %v8939 = vlaneseq
      %v8940 = vshrl.u32 %v8939, 7
      %v8941 = vsub.s32 0, %v8940
      %v8942 = vrot.slane %v8937, %v8941
      %v8945 = vsel %vm924, %v8918, 0
      %v8948 = vsel %vm924, %v8919, 0
      %v8951 = vsel %vm924, %v8920, 0
      %v8954 = vsel %vm924, %v8921, 0
      %v8957 = vsel %vm924, %v8922, 0
      %v8960 = vsel %vm924, %v8923, 0
      %v8963 = vsel %vm924, %v8924, 0
      %v8966 = vsel %vm924, %v8925, 0
      %v8969 = vsel %vm924, %v8926, 0
      %v8972 = vsel %vm924, %v8927, 0
      %v8975 = vsel %vm924, %v8928, 0
      %v8978 = vsel %vm924, %v8929, 0
      %v8981 = vsel %vm924, %v8930, 0
      %v8984 = vsel %vm924, %v8931, 0
      %v8987 = vsel %vm924, %v8932, 0
      %v8990 = vsel %vm924, %v8933, 0
      %v8993 = vsel %vm924, %v8934, 0
      %v8996 = vsel %vm924, %v8935, 0
      %v8999 = vsel %vm979, %v8936, 0
      %9001 = vmatprep.subr.bf16.mxu0 0
      %9002 = vmatpush1.bf16.msra.mxu0 0
      %9003 = vmatprep.subr.bf16.mxu0 0
      %9004 = vmatpush1.bf16.msra.mxu0 0
      %9005 = vmatprep.subr.bf16.mxu0 0
      %9006 = vmatpush1.bf16.msra.mxu0 0
      %9007 = vmatprep.subr.bf16.mxu0 0
      %9008 = vmatpush1.bf16.msra.mxu0 0
      %9009 = vmatprep.subr.bf16.mxu0 0
      %9010 = vmatpush1.bf16.msra.mxu0 0
      %9011 = vmatprep.subr.bf16.mxu0 0
      %9012 = vmatpush1.bf16.msra.mxu0 0
      %9013 = vmatprep.subr.bf16.mxu0 0
      %9014 = vmatpush1.bf16.msra.mxu0 0
      %9015 = vmatprep.subr.bf16.mxu0 0
      %9016 = vmatpush1.bf16.msra.mxu0 %v8999
      %9017 = vmatprep.subr.bf16.mxu0 0
      %9018 = vmatpush2.bf16.msra.mxu0 0
      %9019 = vmatprep.subr.bf16.mxu0 0
      %9020 = vmatpush2.bf16.msra.mxu0 0
      %9021 = vmatprep.subr.bf16.mxu0 0
      %9022 = vmatpush2.bf16.msra.mxu0 0
      %9023 = vmatprep.subr.bf16.mxu0 0
      %9024 = vmatpush2.bf16.msra.mxu0 0
      %9025 = vmatprep.subr.bf16.mxu0 0
      %9026 = vmatpush2.bf16.msra.mxu0 0
      %9027 = vmatprep.subr.bf16.mxu0 0
      %9028 = vmatpush2.bf16.msra.mxu0 0
      %9029 = vmatprep.subr.bf16.mxu0 0
      %9030 = vmatpush2.bf16.msra.mxu0 0
      %9031 = vmatprep.subr.bf16.mxu0 0
      %9032 = vmatpush2.bf16.msra.mxu0 0
      %9033 = vmatprep.mubr.bf16.mxu0 0
      %9034 = vmatmul.mubr.bf16.gmra.mxu0 %v8945
      %v9035 = vpop.f32.mrf.mxu0
      %v9036 = vadd.f32 %v8942, %v9035
      %v9037 = vpop.f32.mrf.mxu0
      %v9038 = vpop.f32.mrf.mxu0
      %v9039 = vadd.f32 %v8942, %v9038
      %v9040 = vpop.f32.mrf.mxu0
      %9041 = vmatprep.mubr.bf16.mxu0 0
      %9042 = vmatmul.mubr.bf16.gmra.mxu0 %v8948
      %v9043 = vpop.f32.mrf.mxu0
      %v9044 = vadd.f32 %v8942, %v9043
      %v9045 = vpop.f32.mrf.mxu0
      %v9046 = vpop.f32.mrf.mxu0
      %v9047 = vadd.f32 %v8942, %v9046
      %v9048 = vpop.f32.mrf.mxu0
      %9049 = vmatprep.mubr.bf16.mxu0 0
      %9050 = vmatmul.mubr.bf16.gmra.mxu0 %v8951
      %v9051 = vpop.f32.mrf.mxu0
      %v9052 = vadd.f32 %v8942, %v9051
      %v9053 = vpop.f32.mrf.mxu0
      %v9054 = vpop.f32.mrf.mxu0
      %v9055 = vadd.f32 %v8942, %v9054
      %v9056 = vpop.f32.mrf.mxu0
      %9057 = vmatprep.mubr.bf16.mxu0 0
      %9058 = vmatmul.mubr.bf16.gmra.mxu0 %v8954
      %v9059 = vpop.f32.mrf.mxu0
      %v9060 = vadd.f32 %v8942, %v9059
      %v9061 = vpop.f32.mrf.mxu0
      %v9062 = vpop.f32.mrf.mxu0
      %v9063 = vadd.f32 %v8942, %v9062
      %v9064 = vpop.f32.mrf.mxu0
      %9065 = vmatprep.mubr.bf16.mxu0 0
      %9066 = vmatmul.mubr.bf16.gmra.mxu0 %v8957
      %v9067 = vpop.f32.mrf.mxu0
      %v9068 = vadd.f32 %v8942, %v9067
      %v9069 = vpop.f32.mrf.mxu0
      %v9070 = vpop.f32.mrf.mxu0
      %v9071 = vadd.f32 %v8942, %v9070
      %v9072 = vpop.f32.mrf.mxu0
      %9073 = vmatprep.mubr.bf16.mxu0 0
      %9074 = vmatmul.mubr.bf16.gmra.mxu0 %v8960
      %v9075 = vpop.f32.mrf.mxu0
      %v9076 = vadd.f32 %v8942, %v9075
      %v9077 = vpop.f32.mrf.mxu0
      %v9078 = vpop.f32.mrf.mxu0
      %v9079 = vadd.f32 %v8942, %v9078
      %v9080 = vpop.f32.mrf.mxu0
      %9081 = vmatprep.mubr.bf16.mxu0 0
      %9082 = vmatmul.mubr.bf16.gmra.mxu0 %v8963
      %v9083 = vpop.f32.mrf.mxu0
      %v9084 = vadd.f32 %v8942, %v9083
      %v9085 = vpop.f32.mrf.mxu0
      %v9086 = vpop.f32.mrf.mxu0
      %v9087 = vadd.f32 %v8942, %v9086
      %v9088 = vpop.f32.mrf.mxu0
      %9089 = vmatprep.mubr.bf16.mxu0 0
      %9090 = vmatmul.mubr.bf16.gmra.mxu0 %v8966
      %v9091 = vpop.f32.mrf.mxu0
      %v9092 = vadd.f32 %v8942, %v9091
      %v9093 = vpop.f32.mrf.mxu0
      %v9094 = vpop.f32.mrf.mxu0
      %v9095 = vadd.f32 %v8942, %v9094
      %v9096 = vpop.f32.mrf.mxu0
      %9097 = vmatprep.mubr.bf16.mxu0 0
      %9098 = vmatmul.mubr.bf16.gmra.mxu0 %v8969
      %v9099 = vpop.f32.mrf.mxu0
      %v9100 = vadd.f32 %v8942, %v9099
      %v9101 = vpop.f32.mrf.mxu0
      %v9102 = vpop.f32.mrf.mxu0
      %v9103 = vadd.f32 %v8942, %v9102
      %v9104 = vpop.f32.mrf.mxu0
      %9105 = vmatprep.mubr.bf16.mxu0 0
      %9106 = vmatmul.mubr.bf16.gmra.mxu0 %v8972
      %v9107 = vpop.f32.mrf.mxu0
      %v9108 = vadd.f32 %v8942, %v9107
      %v9109 = vpop.f32.mrf.mxu0
      %v9110 = vpop.f32.mrf.mxu0
      %v9111 = vadd.f32 %v8942, %v9110
      %v9112 = vpop.f32.mrf.mxu0
      %9113 = vmatprep.mubr.bf16.mxu0 0
      %9114 = vmatmul.mubr.bf16.gmra.mxu0 %v8975
      %v9115 = vpop.f32.mrf.mxu0
      %v9116 = vadd.f32 %v8942, %v9115
      %v9117 = vpop.f32.mrf.mxu0
      %v9118 = vpop.f32.mrf.mxu0
      %v9119 = vadd.f32 %v8942, %v9118
      %v9120 = vpop.f32.mrf.mxu0
      %9121 = vmatprep.mubr.bf16.mxu0 0
      %9122 = vmatmul.mubr.bf16.gmra.mxu0 %v8978
      %v9123 = vpop.f32.mrf.mxu0
      %v9124 = vadd.f32 %v8942, %v9123
      %v9125 = vpop.f32.mrf.mxu0
      %v9126 = vpop.f32.mrf.mxu0
      %v9127 = vadd.f32 %v8942, %v9126
      %v9128 = vpop.f32.mrf.mxu0
      %9129 = vmatprep.mubr.bf16.mxu0 0
      %9130 = vmatmul.mubr.bf16.gmra.mxu0 %v8981
      %v9131 = vpop.f32.mrf.mxu0
      %v9132 = vadd.f32 %v8942, %v9131
      %v9133 = vpop.f32.mrf.mxu0
      %v9134 = vpop.f32.mrf.mxu0
      %v9135 = vadd.f32 %v8942, %v9134
      %v9136 = vpop.f32.mrf.mxu0
      %9137 = vmatprep.mubr.bf16.mxu0 0
      %9138 = vmatmul.mubr.bf16.gmra.mxu0 %v8984
      %v9139 = vpop.f32.mrf.mxu0
      %v9140 = vadd.f32 %v8942, %v9139
      %v9141 = vpop.f32.mrf.mxu0
      %v9142 = vpop.f32.mrf.mxu0
      %v9143 = vadd.f32 %v8942, %v9142
      %v9144 = vpop.f32.mrf.mxu0
      %9145 = vmatprep.mubr.bf16.mxu0 0
      %9146 = vmatmul.mubr.bf16.gmra.mxu0 %v8987
      %v9147 = vpop.f32.mrf.mxu0
      %v9148 = vadd.f32 %v8942, %v9147
      %v9149 = vpop.f32.mrf.mxu0
      %v9150 = vpop.f32.mrf.mxu0
      %v9151 = vadd.f32 %v8942, %v9150
      %v9152 = vpop.f32.mrf.mxu0
      %9153 = vmatprep.mubr.bf16.mxu0 0
      %9154 = vmatmul.mubr.bf16.gmra.mxu0 %v8990
      %v9155 = vpop.f32.mrf.mxu0
      %v9156 = vadd.f32 %v8942, %v9155
      %v9157 = vpop.f32.mrf.mxu0
      %v9158 = vpop.f32.mrf.mxu0
      %v9159 = vadd.f32 %v8942, %v9158
      %v9160 = vpop.f32.mrf.mxu0
      %9161 = vmatprep.mubr.bf16.mxu0 0
      %9162 = vmatmul.mubr.bf16.gmra.mxu0 %v8993
      %v9163 = vpop.f32.mrf.mxu0
      %v9164 = vadd.f32 %v8942, %v9163
      %v9165 = vpop.f32.mrf.mxu0
      %v9166 = vpop.f32.mrf.mxu0
      %v9167 = vadd.f32 %v8942, %v9166
      %v9168 = vpop.f32.mrf.mxu0
      %9169 = vmatprep.mubr.bf16.mxu0 0
      %9170 = vmatmul.mubr.bf16.gmra.mxu0 %v8996
      %v9171 = vpop.f32.mrf.mxu0
      %v9172 = vadd.f32 %v8942, %v9171
      %v9173 = vpop.f32.mrf.mxu0
      %v9174 = vpop.f32.mrf.mxu0
      %v9175 = vadd.f32 %v8942, %v9174
      %v9176 = vpop.f32.mrf.mxu0
      %9177 = vdwg.mxu0
      %v9178 = vadd.f32 %v8846, %v9036
      %v9179 = vadd.f32 %v8847, %v9039
      %v9180 = vadd.f32 %v8848, %v9044
      %v9181 = vadd.f32 %v8849, %v9047
      %v9182 = vadd.f32 %v8850, %v9052
      %v9183 = vadd.f32 %v8851, %v9055
      %v9184 = vadd.f32 %v8852, %v9060
      %v9185 = vadd.f32 %v8853, %v9063
      %v9186 = vadd.f32 %v8854, %v9068
      %v9187 = vadd.f32 %v8855, %v9071
      %v9188 = vadd.f32 %v8856, %v9076
      %v9189 = vadd.f32 %v8857, %v9079
      %v9190 = vadd.f32 %v8858, %v9084
      %v9191 = vadd.f32 %v8859, %v9087
      %v9192 = vadd.f32 %v8860, %v9092
      %v9193 = vadd.f32 %v8861, %v9095
      %v9194 = vadd.f32 %v8862, %v9100
      %v9195 = vadd.f32 %v8863, %v9103
      %v9196 = vadd.f32 %v8864, %v9108
      %v9197 = vadd.f32 %v8865, %v9111
      %v9198 = vadd.f32 %v8866, %v9116
      %v9199 = vadd.f32 %v8867, %v9119
      %v9200 = vadd.f32 %v8868, %v9124
      %v9201 = vadd.f32 %v8869, %v9127
      %v9202 = vadd.f32 %v8870, %v9132
      %v9203 = vadd.f32 %v8871, %v9135
      %v9204 = vadd.f32 %v8872, %v9140
      %v9205 = vadd.f32 %v8873, %v9143
      %v9206 = vadd.f32 %v8874, %v9148
      %v9207 = vadd.f32 %v8875, %v9151
      %v9208 = vadd.f32 %v8876, %v9156
      %v9209 = vadd.f32 %v8877, %v9159
      %v9210 = vadd.f32 %v8878, %v9164
      %v9211 = vadd.f32 %v8879, %v9167
      %v9212 = vadd.f32 %v8880, %v9172
      %v9213 = vadd.f32 %v8881, %v9175
      %9214 = vst.msk [vmem:[%s616] sm:$0xff] %vm3937, %v9178
      %9215 = vst.msk [vmem:[%s616 + $0x8] sm:$0xff] %vm3937, %v9179
      %9216 = vst.msk [vmem:[%s616 + $0x10] sm:$0xff] %vm3937, %v9180
      %9217 = vst.msk [vmem:[%s616 + $0x18] sm:$0xff] %vm3937, %v9181
      %9218 = vst.msk [vmem:[%s616 + $0x20] sm:$0xff] %vm3937, %v9182
      %9219 = vst.msk [vmem:[%s616 + $0x28] sm:$0xff] %vm3937, %v9183
      %9220 = vst.msk [vmem:[%s616 + $0x30] sm:$0xff] %vm3937, %v9184
      %9221 = vst.msk [vmem:[%s616 + $0x38] sm:$0xff] %vm3937, %v9185
      %9222 = vst.msk [vmem:[%s616 + $0x40] sm:$0xff] %vm3937, %v9186
      %9223 = vst.msk [vmem:[%s616 + $0x48] sm:$0xff] %vm3937, %v9187
      %9224 = vst.msk [vmem:[%s616 + $0x50] sm:$0xff] %vm3937, %v9188
      %9225 = vst.msk [vmem:[%s616 + $0x58] sm:$0xff] %vm3937, %v9189
      %9226 = vst.msk [vmem:[%s616 + $0x60] sm:$0xff] %vm3937, %v9190
      %9227 = vst.msk [vmem:[%s616 + $0x68] sm:$0xff] %vm3937, %v9191
      %9228 = vst.msk [vmem:[%s616 + $0x70] sm:$0xff] %vm3937, %v9192
      %9229 = vst.msk [vmem:[%s616 + $0x78] sm:$0xff] %vm3937, %v9193
      %9230 = vst.msk [vmem:[%s616 + $0x80] sm:$0xff] %vm3937, %v9194
      %9231 = vst.msk [vmem:[%s616 + $0x88] sm:$0xff] %vm3937, %v9195
      %9232 = vst.msk [vmem:[%s616 + $0x90] sm:$0xff] %vm3937, %v9196
      %9233 = vst.msk [vmem:[%s616 + $0x98] sm:$0xff] %vm3937, %v9197
      %9234 = vst.msk [vmem:[%s616 + $0xa0] sm:$0xff] %vm3937, %v9198
      %9235 = vst.msk [vmem:[%s616 + $0xa8] sm:$0xff] %vm3937, %v9199
      %9236 = vst.msk [vmem:[%s616 + $0xb0] sm:$0xff] %vm3937, %v9200
      %9237 = vst.msk [vmem:[%s616 + $0xb8] sm:$0xff] %vm3937, %v9201
      %9238 = vst.msk [vmem:[%s616 + $0xc0] sm:$0xff] %vm3937, %v9202
      %9239 = vst.msk [vmem:[%s616 + $0xc8] sm:$0xff] %vm3937, %v9203
      %9240 = vst.msk [vmem:[%s616 + $0xd0] sm:$0xff] %vm3937, %v9204
      %9241 = vst.msk [vmem:[%s616 + $0xd8] sm:$0xff] %vm3937, %v9205
      %9242 = vst.msk [vmem:[%s616 + $0xe0] sm:$0xff] %vm3937, %v9206
      %9243 = vst.msk [vmem:[%s616 + $0xe8] sm:$0xff] %vm3937, %v9207
      %9244 = vst.msk [vmem:[%s616 + $0xf0] sm:$0xff] %vm3937, %v9208
      %9245 = vst.msk [vmem:[%s616 + $0xf8] sm:$0xff] %vm3937, %v9209
      %9246 = vst.msk [vmem:[%s616 + $0x100] sm:$0xff] %vm3937, %v9210
      %9247 = vst.msk [vmem:[%s616 + $0x108] sm:$0xff] %vm3937, %v9211
      %9248 = vst.msk [vmem:[%s616 + $0x110] sm:$0xff] %vm3937, %v9212
      %9249 = vst.msk [vmem:[%s616 + $0x118] sm:$0x3f] %vm4007, %v9213
      %p9250 = scmp.lt.s32.totalorder %s30, 1
      %s9251 = scalar_select %p9250, %s30, 1
      %s9252 = smul.addr %s9251, 36
      %s9253 = smul.addr %s9252, 8
      %s9254 = scalar_lea.vmem %s19, %s9253
      // Predicated region
      $region97: #{resnet_block_forward.1} parent=95 // pred_check
        %p9255 = pneg %p457
      $region98: #{resnet_block_forward.1} parent=95 // pred_check_branch
        %9257 = sbr.rel (%p9255) target = $region100
      $region99: #{resnet_block_forward.1} parent=95 // pred_region
        _
      $region100: #{resnet_block_forward.1} parent=95 // pred_fallthru
        _
    $region96: #{resnet_block_forward.1} parent=5 // pred_fallthru
      _
    %p9258 = scmp.le.s32.totalorder 2, %s25
    // Predicated region
    $region101: #{resnet_block_forward.1} parent=5 // pred_check
      %p9259 = pneg %p9258
    $region102: #{resnet_block_forward.1} parent=5 // pred_check_branch
      %9261 = sbr.rel (%p9259) target = $region104
    $region103: #{resnet_block_forward.1} parent=5 // pred_region
      %s9262 = ssub.s32 %s25, 2
      // Predicated region
      $region105: #{resnet_block_forward.1} parent=103 // pred_check
        %p9263 = pneg %p463
      $region106: #{resnet_block_forward.1} parent=103 // pred_check_branch
        %9265 = sbr.rel (%p9263) target = $region108
      $region107: #{resnet_block_forward.1} parent=103 // pred_region
        %p9266 = scmp.lt.s32.totalorder %s31, 1
        %s9267 = scalar_select %p9266, %s31, 1
        %s9268 = smul.addr %s9267, 36
        %s9269 = smul.addr %s9268, 8
        %s9270 = scalar_lea.vmem %s19, %s9269
      $region108: #{resnet_block_forward.1} parent=103 // pred_fallthru
        _
    $region104: #{resnet_block_forward.1} parent=5 // pred_fallthru
      _
  $region6: #{resnet_block_forward.1} parent=0 // loop_footer
    %s29 = sadd.s32 1, %s25
  $region7: #{resnet_block_forward.1} parent=0 // loop_footer_branch
    %24 = sbr.rel target = $region3
  $region8: #{resnet_block_forward.1} parent=0 // loop_exit
    _

</llo_original>
